<compile_context>
chip_gen: v7x
topology: tpu7x:2x2x1
jax: 0.10.0
libtpu: 0.0.40
codegen_flags: <defaults>
</compile_context>

<pallas_src>
from functools import partial

import numpy as np
import jax
import jax.numpy as jnp
from jax.experimental import pallas as pl
from jax.experimental.pallas import tpu as pltpu

_SQRT1_2 = 0.7071067811865476
_HIGHEST = jax.lax.Precision.HIGHEST

PARAM_NAMES = (
    "w1a", "b1a", "w1b", "b1b",            # conv1 (both convs, BN folded)
    "wha", "bha", "whb", "bhb",            # conv_hw (first conv+BN folded, last raw)
    "w2a_avg", "w2a_max", "b2a",           # conv2 layer 1 (weight split over avg/max inputs)
    "w2b_a", "b2b_a", "w2b_b", "b2b_b",    # conv2 layer 2 (split over avg/max outputs)
    "wca", "bca", "wcb", "bcb",            # conv_c (first conv+BN folded, last raw)
)


# ----------------------------- in-kernel math ------------------------------

def _recip(d):
    # EUP approximate reciprocal + one Newton step (~f32 accuracy, no vdiv).
    r = pl.reciprocal(d, approx=True)
    return r * (2.0 - d * r)


def _erf(x):
    # Abramowitz & Stegun 7.1.26 — float32-accurate erf using only exp/recip.
    p = 0.3275911
    a1, a2, a3, a4, a5 = (0.254829592, -0.284496736, 1.421413741,
                          -1.453152027, 1.061405429)
    s = jnp.where(x < 0.0, -1.0, 1.0)
    ax = x * s
    t = _recip(1.0 + p * ax)
    poly = ((((a5 * t + a4) * t + a3) * t + a2) * t + a1) * t
    return s * (1.0 - poly * jnp.exp(-ax * ax))


def _gelu(x):
    # exact (erf-based) GELU == torch.nn.GELU() default
    return 0.5 * x * (1.0 + _erf(x * _SQRT1_2))


# --------------------------------- kernel ----------------------------------

def taja_kernel(dims, lay_f, lay_b, x_ref, sf_ref, sb_ref, o_ref):
    h, w, c = dims
    hw, s = h * w, h + w
    f32 = jnp.float32
    lf = {n: (r0, nr, nc) for n, r0, nr, nc in lay_f}
    lb = {n: (r0, nr, nc) for n, r0, nr, nc in lay_b}

    def fpar(name):                        # f32 constants / biases
        r0, nr, nc = lf[name]
        return sf_ref[r0:r0 + nr, 0:nc]

    def bpar(name):                        # bf16 learned weights
        r0, nr, nc = lb[name]
        return sb_ref[r0:r0 + nr, 0:nc]

    def mm(a, name):                       # learned matmul: bf16 in, f32 accum
        return jnp.dot(a.astype(jnp.bfloat16), bpar(name),
                       preferred_element_type=f32)

    def mm_exact(a, b):                    # structural 0/1 matmul: exact
        return jnp.dot(a, b, preferred_element_type=f32, precision=_HIGHEST)

    pool = fpar("pool")                    # (HW, S+1): [mean/W | mean/H | mean/HW]
    eh, ew = fpar("eh"), fpar("ew")        # (H, HW), (W, HW) 0/1 expansions

    # ---- pooling: per channel (256-lane aligned slices), batched over TB ----
    y_dir, c_avg, c_max = [], [], []
    for ch in range(c):
        xc = x_ref[:, ch * hw:(ch + 1) * hw].astype(f32)       # (TB, HW) dense
        yc = mm_exact(xc, pool)                                # (TB, S+1)
        y_dir.append(yc[:, :s])
        c_avg.append(yc[:, s:s + 1])
        c_max.append(jnp.max(xc, axis=1, keepdims=True))
    y_dir = jnp.concatenate(y_dir, axis=1)                     # (TB, C*S)
    c_avg = jnp.concatenate(c_avg, axis=1)                     # (TB, C)
    c_max = jnp.concatenate(c_max, axis=1)                     # (TB, C)

    # ---- conv1 + conv_hw (channel mixing via host-built kron(w, I_S)) ----
    h1 = _gelu(mm(y_dir, "k1") + fpar("b1a"))                  # (TB, MIP*S)
    z = _gelu(mm(h1, "k2") + fpar("b1b"))                      # (TB, S)
    t1 = _gelu(mm(z, "k3") + fpar("bha"))                      # (TB, MIP*S)
    a_att = jax.nn.sigmoid(mm(t1, "k4") + fpar("bhb"))         # (TB, C*S)

    # ---- channel branch: conv2 + conv_c (tiny) ----
    h2 = _gelu(mm(c_avg, "w2aa") + mm(c_max, "w2am") + fpar("b2a"))   # (TB, 2MIP)
    cca = _gelu(mm(h2, "w2ba") + fpar("b2ba"))                 # (TB, C)
    ccm = _gelu(mm(h2, "w2bb") + fpar("b2bb"))                 # (TB, C)

    def conv_c(v):
        t = _gelu(mm(v, "wca") + fpar("bca"))                  # (TB, MIP)
        return mm(t, "wcb") + fpar("bcb")                      # (TB, C)

    g = jax.nn.sigmoid(conv_c(cca)) * jax.nn.sigmoid(conv_c(ccm))     # (TB, C)

    # ---- rebuild att + multiply + dense 256-lane-aligned stores ----
    for ch in range(c):
        a_h = a_att[:, ch * s:ch * s + h]                      # (TB, H)
        a_wg = a_att[:, ch * s + h:(ch + 1) * s] * g[:, ch:ch + 1]    # (TB, W)
        att = mm_exact(a_h, eh) * mm_exact(a_wg, ew)           # (TB, HW)
        xc = x_ref[:, ch * hw:(ch + 1) * hw].astype(f32)
        o_ref[:, ch * hw:(ch + 1) * hw] = (xc * att).astype(o_ref.dtype)


# ------------------------------ host wrappers -------------------------------

def _pack(entries, dtype, row_align):
    """Pack small 2-D arrays into one slab; returns (slab, layout tuple)."""
    ncols = max(a.shape[1] for _, a in entries)
    ncols = -(-ncols // 128) * 128
    layout, r = [], 0
    for name, a in entries:
        layout.append((name, r, a.shape[0], a.shape[1]))
        r += -(-a.shape[0] // row_align) * row_align
    slab = np.zeros((max(row_align, r), ncols), np.float32)
    for (name, r0, nr, nc), (_, a) in zip(layout, entries):
        slab[r0:r0 + nr, :nc] = a
    return jnp.asarray(slab, dtype), tuple(layout)


def _prepare_constants(params, h, w):
    p = {k: np.asarray(v, np.float32) for k, v in zip(PARAM_NAMES, params)}
    c = p["w1a"].shape[1]
    hw, s = h * w, h + w
    pix = np.arange(hw)

    # pooling matrix with the 1/W, 1/H, 1/(H*W) scales folded in (item 7)
    pool = np.zeros((hw, s + 1), np.float32)
    pool[pix, pix // w] = 1.0 / w                      # means over W -> cols [0, H)
    pool[pix, h + pix % w] = 1.0 / h                   # means over H -> cols [H, H+W)
    pool[:, s] = 1.0 / hw                              # global mean  -> col S
    eh = (pix[None, :] // w == np.arange(h)[:, None]).astype(np.float32)   # (H, HW)
    ew = (pix[None, :] % w == np.arange(w)[:, None]).astype(np.float32)    # (W, HW)

    eye_s = np.eye(s, dtype=np.float32)
    rep = lambda b: np.repeat(b[:, 0], s)[None, :]     # (out,1) bias -> (1, out*S)
    row = lambda b: b[:, 0][None, :]                   # (out,1) bias -> (1, out)

    f32_entries = [
        ("pool", pool), ("eh", eh), ("ew", ew),
        ("b1a", rep(p["b1a"])), ("b1b", rep(p["b1b"])),
        ("bha", rep(p["bha"])), ("bhb", rep(p["bhb"])),
        ("b2a", row(p["b2a"])), ("b2ba", row(p["b2b_a"])), ("b2bb", row(p["b2b_b"])),
        ("bca", row(p["bca"])), ("bcb", row(p["bcb"])),
    ]
    bf16_entries = [
        ("k1", np.kron(p["w1a"].T, eye_s)),            # (C*S,   MIP*S)
        ("k2", np.kron(p["w1b"].T, eye_s)),            # (MIP*S, S)
        ("k3", np.kron(p["wha"].T, eye_s)),            # (S,     MIP*S)
        ("k4", np.kron(p["whb"].T, eye_s)),            # (MIP*S, C*S)
        ("w2aa", p["w2a_avg"].T), ("w2am", p["w2a_max"].T),
        ("w2ba", p["w2b_a"].T), ("w2bb", p["w2b_b"].T),
        ("wca", p["wca"].T), ("wcb", p["wcb"].T),
    ]
    slab_f, lay_f = _pack(f32_entries, jnp.float32, 8)
    slab_b, lay_b = _pack(bf16_entries, jnp.bfloat16, 16)
    return slab_f, slab_b, lay_f, lay_b, c


def _vmem_limit_bytes():
    try:
        cap = int(pltpu.get_tpu_info().vmem_capacity_bytes)
    except Exception:
        cap = 64 << 20          # conservative (v7x) if the query is unavailable
    return int(min(0.7 * cap, 96 << 20))


def _pick_tb(n, bytes_per_sample, vmem_limit, target_block_bytes=2 << 20):
    """Samples per grid step: ~1-2 MiB per buffer hits ~85% of HBM roofline;
    keep the double-buffered in+out blocks + temporaries inside the scoped
    VMEM limit.  No forced splitting on single-TC parts (review item 5)."""
    cap = min(n,
              max(8, target_block_bytes // bytes_per_sample),
              max(8, (vmem_limit // 2) // (8 * bytes_per_sample)))
    best = 0
    for d in range(1, int(cap) + 1):
        # second-minor block dim must be a multiple of 8 or the full dim
        if n % d == 0 and (d % 8 == 0 or d == n):
            best = d
    return best if best else n


@partial(jax.jit, static_argnames=("lay_f", "lay_b", "dims", "tb", "vmem_limit"))
def _taja_call(x_flat, slab_f, slab_b, *, lay_f, lay_b, dims, tb, vmem_limit):
    n, chw = x_flat.shape
    kernel = partial(taja_kernel, dims, lay_f, lay_b)
    const = lambda a: pl.BlockSpec(a.shape, lambda b: (0, 0))
    return pl.pallas_call(
        kernel,
        out_shape=jax.ShapeDtypeStruct((n, chw), x_flat.dtype),
        grid_spec=pltpu.PrefetchScalarGridSpec(
            num_scalar_prefetch=0,
            grid=(n // tb,),
            in_specs=[pl.BlockSpec((tb, chw), lambda b: (b, 0)),
                      const(slab_f), const(slab_b)],
            out_specs=pl.BlockSpec((tb, chw), lambda b: (b, 0)),
        ),
        compiler_params=pltpu.CompilerParams(
            dimension_semantics=("parallel",),   # grid steps shard across TCs on v7x
            vmem_limit_bytes=vmem_limit),
    )(x_flat, slab_f, slab_b)


def taja_pallas(x, params):
    n, c, h, w = x.shape
    slab_f, slab_b, lay_f, lay_b, c_p = _prepare_constants(params, h, w)
    assert c_p == c
    vmem_limit = _vmem_limit_bytes()
    tb = _pick_tb(n, c * h * w * x.dtype.itemsize, vmem_limit)
    # host-side reshape to the lane-dense flat (N, C*H*W) layout is free
    out = _taja_call(x.reshape(n, c * h * w), slab_f, slab_b,
                     lay_f=lay_f, lay_b=lay_b, dims=(h, w, c),
                     tb=tb, vmem_limit=vmem_limit)
    return out.reshape(n, c, h, w)


# ---------------------------- pure-JAX reference ----------------------------

@jax.jit
def taja_reference(x, params):
    p = dict(zip(PARAM_NAMES, params))
    gelu = lambda v: jax.nn.gelu(v, approximate=False)
    bf16 = jnp.bfloat16

    def mm(eq, a, b):   # same bf16-input matmul contract as the kernel
        return jnp.einsum(eq, a.astype(bf16), b.astype(bf16),
                          preferred_element_type=jnp.float32)

    n, c, h, w = x.shape
    x_h = jnp.mean(x, axis=3)                        # (n,c,h)
    x_w = jnp.mean(x, axis=2)                        # (n,c,w)
    y = jnp.concatenate([x_h, x_w], axis=2)          # (n,c,h+w)

    t = gelu(mm("mc,ncs->nms", p["w1a"], y) + p["b1a"][None])
    z = gelu(mm("om,nms->nos", p["w1b"], t) + p["b1b"][None])       # (n,1,h+w)

    t = gelu(p["wha"][None] * z + p["bha"][None])                   # (n,mip,h+w)
    a = jax.nn.sigmoid(mm("om,nms->nos", p["whb"], t) + p["bhb"][None])  # (n,c,h+w)
    a_h, a_w = a[:, :, :h], a[:, :, h:]

    c_avg = jnp.mean(x, axis=(2, 3))[..., None]      # (n,c,1)
    c_max = jnp.max(x, axis=(2, 3))[..., None]       # (n,c,1)
    h2 = gelu(mm("mc,ncs->nms", p["w2a_avg"], c_avg)
              + mm("mc,ncs->nms", p["w2a_max"], c_max) + p["b2a"][None])
    cca = gelu(mm("cm,nms->ncs", p["w2b_a"], h2) + p["b2b_a"][None])
    ccm = gelu(mm("cm,nms->ncs", p["w2b_b"], h2) + p["b2b_b"][None])

    def conv_c(v):
        t = gelu(mm("mc,ncs->nms", p["wca"], v) + p["bca"][None])
        return mm("om,nms->nos", p["wcb"], t) + p["bcb"][None]

    a_ca = jax.nn.sigmoid(conv_c(cca))               # (n,c,1)
    a_cm = jax.nn.sigmoid(conv_c(ccm))               # (n,c,1)

    att = (a_h[:, :, :, None] * a_w[:, :, None, :]
           * a_ca[:, :, :, None] * a_cm[:, :, :, None])
    return x * att


# ------------------------------- init helpers -------------------------------

def init_taja_params(key, inp, oup, reduction=4, eps=1e-5):
    assert oup == inp, "`identity * att` requires oup == inp"
    mip = max(8, inp // reduction)
    kit = iter(jax.random.split(key, 64))

    def conv(out_c, in_c):               # PyTorch Conv2d(k=1) default init
        bound = 1.0 / np.sqrt(in_c)
        wgt = jax.random.uniform(next(kit), (out_c, in_c), jnp.float32, -bound, bound)
        b = jax.random.uniform(next(kit), (out_c,), jnp.float32, -bound, bound)
        return wgt, b

    def bn(c):                           # eval-mode BN params / running stats
        gamma = jax.random.uniform(next(kit), (c,), jnp.float32, 0.5, 1.5)
        beta = 0.1 * jax.random.normal(next(kit), (c,), jnp.float32)
        mean = 0.1 * jax.random.normal(next(kit), (c,), jnp.float32)
        var = jax.random.uniform(next(kit), (c,), jnp.float32, 0.5, 1.5)
        return gamma, beta, mean, var

    def fold(wgt, b, stats):             # fold conv bias + BN into (W', b')
        gamma, beta, mean, var = stats
        s = gamma / jnp.sqrt(var + eps)
        return wgt * s[:, None], (b - mean) * s + beta

    col = lambda v: v.reshape(-1, 1)

    w1a, b1a = fold(*conv(mip, inp), bn(mip))               # conv1
    w1b, b1b = fold(*conv(1, mip), bn(1))
    wha, bha = fold(*conv(mip, 1), bn(mip))                 # conv_hw
    whb, bhb = conv(oup, mip)
    w2a, b2a = fold(*conv(2 * mip, 2 * inp), bn(2 * mip))   # conv2
    w2b, b2b = fold(*conv(2 * inp, 2 * mip), bn(2 * inp))
    wca, bca = fold(*conv(mip, inp), bn(mip))               # conv_c
    wcb, bcb = conv(oup, mip)

    pd = dict(
        w1a=w1a, b1a=col(b1a), w1b=w1b, b1b=col(b1b),
        wha=wha, bha=col(bha), whb=whb, bhb=col(bhb),
        w2a_avg=w2a[:, :inp], w2a_max=w2a[:, inp:], b2a=col(b2a),
        w2b_a=w2b[:inp, :], b2b_a=col(b2b[:inp]),
        w2b_b=w2b[inp:, :], b2b_b=col(b2b[inp:]),
        wca=wca, bca=col(bca), wcb=wcb, bcb=col(bcb),
    )
    return tuple(pd[name] for name in PARAM_NAMES)


if __name__ == "__main__":
    key = jax.random.PRNGKey(0)
    kx, kp = jax.random.split(key)
    N, C, H, W = 2, 4, 16, 16                      # inp == oup == 4, mip == 8
    x = jax.random.normal(kx, (N, C, H, W), jnp.float32)
    params = init_taja_params(kp, inp=C, oup=C, reduction=4)

    out = jax.block_until_ready(taja_pallas(x, params))
    ref = jax.block_until_ready(taja_reference(x, params))

    np.testing.assert_allclose(np.asarray(out), np.asarray(ref),
                               rtol=2e-3, atol=2e-3)
    print("KERNEL_OK")
</pallas_src>

<mosaic_0001>
module attributes {stable_mosaic.version = 11 : i64} {
  func.func @taja_kernel(%arg0: i32, %arg1: memref<2x1024xf32, #tpu.memory_space<vmem>>, %arg2: memref<360x256xf32, #tpu.memory_space<vmem>>, %arg3: memref<768x256xbf16, #tpu.memory_space<vmem>>, %arg4: memref<2x1024xf32, #tpu.memory_space<vmem>>) attributes {dimension_semantics = [#tpu.dimension_semantics<parallel>], iteration_bounds = array<i64: 1>, scalar_prefetch = 0 : i64, scratch_operands = 0 : i64, tpu.core_type = #tpu.core_type<tc>, window_params = [{transform_indices = @transform_0, window_bounds = array<i64: 2, 1024>}, {pipeline_mode = #tpu.pipeline_mode<synchronous>, transform_indices = @transform_1, window_bounds = array<i64: 360, 256>}, {pipeline_mode = #tpu.pipeline_mode<synchronous>, transform_indices = @transform_2, window_bounds = array<i64: 768, 256>}, {transform_indices = @transform_3, window_bounds = array<i64: 2, 1024>}]} {
    %c0 = arith.constant 0 : index
    %c0_0 = arith.constant 0 : index
    %0 = vector.load %arg2[%c0, %c0_0] : memref<360x256xf32, #tpu.memory_space<vmem>>, vector<256x33xf32>
    %c256 = arith.constant 256 : index
    %c0_1 = arith.constant 0 : index
    %1 = vector.load %arg2[%c256, %c0_1] : memref<360x256xf32, #tpu.memory_space<vmem>>, vector<16x256xf32>
    %c272 = arith.constant 272 : index
    %c0_2 = arith.constant 0 : index
    %2 = vector.load %arg2[%c272, %c0_2] : memref<360x256xf32, #tpu.memory_space<vmem>>, vector<16x256xf32>
    %c0_3 = arith.constant 0 : index
    %c0_4 = arith.constant 0 : index
    %3 = vector.load %arg1[%c0_3, %c0_4] : memref<2x1024xf32, #tpu.memory_space<vmem>>, vector<2x256xf32>
    %cst = arith.constant dense<0.000000e+00> : vector<2x33xf32>
    %4 = tpu.matmul %3, %0, %cst {dimension_numbers = #tpu.dot_dimension_numbers<[1], [0], [0], [1], [0, 0, 1, 1], [], []>, precision = #tpu.contract_precision<fp32>} : vector<2x256xf32>, vector<256x33xf32>, vector<2x33xf32> -> vector<2x33xf32>
    %5 = vector.extract_strided_slice %4 {offsets = [0, 0], sizes = [2, 32], strides = [1, 1]} : vector<2x33xf32> to vector<2x32xf32>
    %6 = vector.extract_strided_slice %4 {offsets = [0, 32], sizes = [2, 1], strides = [1, 1]} : vector<2x33xf32> to vector<2x1xf32>
    %cst_5 = arith.constant dense<0xFF800000> : vector<2xf32>
    %7 = vector.multi_reduction <maximumf>, %3, %cst_5 [1] : vector<2x256xf32> to vector<2xf32>
    %8 = vector.shape_cast %7 : vector<2xf32> to vector<2x1xf32>
    %c0_6 = arith.constant 0 : index
    %c256_7 = arith.constant 256 : index
    %9 = vector.load %arg1[%c0_6, %c256_7] : memref<2x1024xf32, #tpu.memory_space<vmem>>, vector<2x256xf32>
    %cst_8 = arith.constant dense<0.000000e+00> : vector<2x33xf32>
    %10 = tpu.matmul %9, %0, %cst_8 {dimension_numbers = #tpu.dot_dimension_numbers<[1], [0], [0], [1], [0, 0, 1, 1], [], []>, precision = #tpu.contract_precision<fp32>} : vector<2x256xf32>, vector<256x33xf32>, vector<2x33xf32> -> vector<2x33xf32>
    %11 = vector.extract_strided_slice %10 {offsets = [0, 0], sizes = [2, 32], strides = [1, 1]} : vector<2x33xf32> to vector<2x32xf32>
    %12 = vector.extract_strided_slice %10 {offsets = [0, 32], sizes = [2, 1], strides = [1, 1]} : vector<2x33xf32> to vector<2x1xf32>
    %cst_9 = arith.constant dense<0xFF800000> : vector<2xf32>
    %13 = vector.multi_reduction <maximumf>, %9, %cst_9 [1] : vector<2x256xf32> to vector<2xf32>
    %14 = vector.shape_cast %13 : vector<2xf32> to vector<2x1xf32>
    %c0_10 = arith.constant 0 : index
    %c512 = arith.constant 512 : index
    %15 = vector.load %arg1[%c0_10, %c512] : memref<2x1024xf32, #tpu.memory_space<vmem>>, vector<2x256xf32>
    %cst_11 = arith.constant dense<0.000000e+00> : vector<2x33xf32>
    %16 = tpu.matmul %15, %0, %cst_11 {dimension_numbers = #tpu.dot_dimension_numbers<[1], [0], [0], [1], [0, 0, 1, 1], [], []>, precision = #tpu.contract_precision<fp32>} : vector<2x256xf32>, vector<256x33xf32>, vector<2x33xf32> -> vector<2x33xf32>
    %17 = vector.extract_strided_slice %16 {offsets = [0, 0], sizes = [2, 32], strides = [1, 1]} : vector<2x33xf32> to vector<2x32xf32>
    %18 = vector.extract_strided_slice %16 {offsets = [0, 32], sizes = [2, 1], strides = [1, 1]} : vector<2x33xf32> to vector<2x1xf32>
    %cst_12 = arith.constant dense<0xFF800000> : vector<2xf32>
    %19 = vector.multi_reduction <maximumf>, %15, %cst_12 [1] : vector<2x256xf32> to vector<2xf32>
    %20 = vector.shape_cast %19 : vector<2xf32> to vector<2x1xf32>
    %c0_13 = arith.constant 0 : index
    %c768 = arith.constant 768 : index
    %21 = vector.load %arg1[%c0_13, %c768] : memref<2x1024xf32, #tpu.memory_space<vmem>>, vector<2x256xf32>
    %cst_14 = arith.constant dense<0.000000e+00> : vector<2x33xf32>
    %22 = tpu.matmul %21, %0, %cst_14 {dimension_numbers = #tpu.dot_dimension_numbers<[1], [0], [0], [1], [0, 0, 1, 1], [], []>, precision = #tpu.contract_precision<fp32>} : vector<2x256xf32>, vector<256x33xf32>, vector<2x33xf32> -> vector<2x33xf32>
    %23 = vector.extract_strided_slice %22 {offsets = [0, 0], sizes = [2, 32], strides = [1, 1]} : vector<2x33xf32> to vector<2x32xf32>
    %24 = vector.extract_strided_slice %22 {offsets = [0, 32], sizes = [2, 1], strides = [1, 1]} : vector<2x33xf32> to vector<2x1xf32>
    %cst_15 = arith.constant dense<0xFF800000> : vector<2xf32>
    %25 = vector.multi_reduction <maximumf>, %21, %cst_15 [1] : vector<2x256xf32> to vector<2xf32>
    %26 = vector.shape_cast %25 : vector<2xf32> to vector<2x1xf32>
    %27 = tpu.concatenate %5, %11, %17, %23 in 1 : vector<2x32xf32>, vector<2x32xf32>, vector<2x32xf32>, vector<2x32xf32> -> vector<2x128xf32>
    %28 = tpu.concatenate %6, %12, %18, %24 in 1 : vector<2x1xf32>, vector<2x1xf32>, vector<2x1xf32>, vector<2x1xf32> -> vector<2x4xf32>
    %29 = tpu.concatenate %8, %14, %20, %26 in 1 : vector<2x1xf32>, vector<2x1xf32>, vector<2x1xf32>, vector<2x1xf32> -> vector<2x4xf32>
    %30 = arith.truncf %27 : vector<2x128xf32> to vector<2x128xbf16>
    %c0_16 = arith.constant 0 : index
    %c0_17 = arith.constant 0 : index
    %31 = vector.load %arg3[%c0_16, %c0_17] : memref<768x256xbf16, #tpu.memory_space<vmem>>, vector<128x256xbf16>
    %cst_18 = arith.constant dense<0.000000e+00> : vector<2x256xf32>
    %32 = tpu.matmul %30, %31, %cst_18 {dimension_numbers = #tpu.dot_dimension_numbers<[1], [0], [0], [1], [0, 0, 1, 1], [], []>} : vector<2x128xbf16>, vector<128x256xbf16>, vector<2x256xf32> -> vector<2x256xf32>
    %c288 = arith.constant 288 : index
    %c0_19 = arith.constant 0 : index
    %33 = vector.load %arg2[%c288, %c0_19] : memref<360x256xf32, #tpu.memory_space<vmem>>, vector<1x256xf32>
    %34 = vector.broadcast %33 : vector<1x256xf32> to vector<2x256xf32>
    %35 = arith.addf %32, %34 : vector<2x256xf32>
    %cst_20 = arith.constant 5.000000e-01 : f32
    %36 = vector.broadcast %cst_20 : f32 to vector<2x256xf32>
    %37 = arith.mulf %36, %35 : vector<2x256xf32>
    %cst_21 = arith.constant 0.707106769 : f32
    %38 = vector.broadcast %cst_21 : f32 to vector<2x256xf32>
    %39 = arith.mulf %35, %38 : vector<2x256xf32>
    %cst_22 = arith.constant 0.000000e+00 : f32
    %40 = vector.broadcast %cst_22 : f32 to vector<2x256xf32>
    %41 = arith.cmpf olt, %39, %40 : vector<2x256xf32>
    %cst_23 = arith.constant -1.000000e+00 : f32
    %cst_24 = arith.constant 1.000000e+00 : f32
    %42 = vector.broadcast %cst_23 : f32 to vector<2x256xf32>
    %43 = vector.broadcast %cst_24 : f32 to vector<2x256xf32>
    %44 = arith.select %41, %42, %43 : vector<2x256xi1>, vector<2x256xf32>
    %45 = arith.mulf %39, %44 : vector<2x256xf32>
    %cst_25 = arith.constant 0.327591091 : f32
    %46 = vector.broadcast %cst_25 : f32 to vector<2x256xf32>
    %47 = arith.mulf %46, %45 : vector<2x256xf32>
    %cst_26 = arith.constant 1.000000e+00 : f32
    %48 = vector.broadcast %cst_26 : f32 to vector<2x256xf32>
    %49 = arith.addf %48, %47 : vector<2x256xf32>
    %50 = tpu.reciprocal %49 {approx = true} : vector<2x256xf32> -> vector<2x256xf32>
    %51 = arith.mulf %49, %50 : vector<2x256xf32>
    %cst_27 = arith.constant 2.000000e+00 : f32
    %52 = vector.broadcast %cst_27 : f32 to vector<2x256xf32>
    %53 = arith.subf %52, %51 : vector<2x256xf32>
    %54 = arith.mulf %50, %53 : vector<2x256xf32>
    %cst_28 = arith.constant 1.06140542 : f32
    %55 = vector.broadcast %cst_28 : f32 to vector<2x256xf32>
    %56 = arith.mulf %55, %54 : vector<2x256xf32>
    %cst_29 = arith.constant -1.45315206 : f32
    %57 = vector.broadcast %cst_29 : f32 to vector<2x256xf32>
    %58 = arith.addf %56, %57 : vector<2x256xf32>
    %59 = arith.mulf %58, %54 : vector<2x256xf32>
    %cst_30 = arith.constant 1.42141378 : f32
    %60 = vector.broadcast %cst_30 : f32 to vector<2x256xf32>
    %61 = arith.addf %59, %60 : vector<2x256xf32>
    %62 = arith.mulf %61, %54 : vector<2x256xf32>
    %cst_31 = arith.constant -0.284496725 : f32
    %63 = vector.broadcast %cst_31 : f32 to vector<2x256xf32>
    %64 = arith.addf %62, %63 : vector<2x256xf32>
    %65 = arith.mulf %64, %54 : vector<2x256xf32>
    %cst_32 = arith.constant 0.254829586 : f32
    %66 = vector.broadcast %cst_32 : f32 to vector<2x256xf32>
    %67 = arith.addf %65, %66 : vector<2x256xf32>
    %68 = arith.mulf %67, %54 : vector<2x256xf32>
    %cst_33 = arith.constant 0.000000e+00 : f32
    %69 = vector.broadcast %cst_33 : f32 to vector<2x256xf32>
    %70 = arith.subf %69, %45 : vector<2x256xf32>
    %71 = arith.mulf %70, %45 : vector<2x256xf32>
    %72 = math.exp %71 : vector<2x256xf32>
    %73 = arith.mulf %68, %72 : vector<2x256xf32>
    %cst_34 = arith.constant 1.000000e+00 : f32
    %74 = vector.broadcast %cst_34 : f32 to vector<2x256xf32>
    %75 = arith.subf %74, %73 : vector<2x256xf32>
    %76 = arith.mulf %44, %75 : vector<2x256xf32>
    %cst_35 = arith.constant 1.000000e+00 : f32
    %77 = vector.broadcast %cst_35 : f32 to vector<2x256xf32>
    %78 = arith.addf %77, %76 : vector<2x256xf32>
    %79 = arith.mulf %37, %78 : vector<2x256xf32>
    %80 = arith.truncf %79 : vector<2x256xf32> to vector<2x256xbf16>
    %c128 = arith.constant 128 : index
    %c0_36 = arith.constant 0 : index
    %81 = vector.load %arg3[%c128, %c0_36] : memref<768x256xbf16, #tpu.memory_space<vmem>>, vector<256x32xbf16>
    %cst_37 = arith.constant dense<0.000000e+00> : vector<2x32xf32>
    %82 = tpu.matmul %80, %81, %cst_37 {dimension_numbers = #tpu.dot_dimension_numbers<[1], [0], [0], [1], [0, 0, 1, 1], [], []>} : vector<2x256xbf16>, vector<256x32xbf16>, vector<2x32xf32> -> vector<2x32xf32>
    %c296 = arith.constant 296 : index
    %c0_38 = arith.constant 0 : index
    %83 = vector.load %arg2[%c296, %c0_38] : memref<360x256xf32, #tpu.memory_space<vmem>>, vector<1x32xf32>
    %84 = vector.broadcast %83 : vector<1x32xf32> to vector<2x32xf32>
    %85 = arith.addf %82, %84 : vector<2x32xf32>
    %cst_39 = arith.constant 5.000000e-01 : f32
    %86 = vector.broadcast %cst_39 : f32 to vector<2x32xf32>
    %87 = arith.mulf %86, %85 : vector<2x32xf32>
    %cst_40 = arith.constant 0.707106769 : f32
    %88 = vector.broadcast %cst_40 : f32 to vector<2x32xf32>
    %89 = arith.mulf %85, %88 : vector<2x32xf32>
    %cst_41 = arith.constant 0.000000e+00 : f32
    %90 = vector.broadcast %cst_41 : f32 to vector<2x32xf32>
    %91 = arith.cmpf olt, %89, %90 : vector<2x32xf32>
    %cst_42 = arith.constant -1.000000e+00 : f32
    %cst_43 = arith.constant 1.000000e+00 : f32
    %92 = vector.broadcast %cst_42 : f32 to vector<2x32xf32>
    %93 = vector.broadcast %cst_43 : f32 to vector<2x32xf32>
    %94 = arith.select %91, %92, %93 : vector<2x32xi1>, vector<2x32xf32>
    %95 = arith.mulf %89, %94 : vector<2x32xf32>
    %cst_44 = arith.constant 0.327591091 : f32
    %96 = vector.broadcast %cst_44 : f32 to vector<2x32xf32>
    %97 = arith.mulf %96, %95 : vector<2x32xf32>
    %cst_45 = arith.constant 1.000000e+00 : f32
    %98 = vector.broadcast %cst_45 : f32 to vector<2x32xf32>
    %99 = arith.addf %98, %97 : vector<2x32xf32>
    %100 = tpu.reciprocal %99 {approx = true} : vector<2x32xf32> -> vector<2x32xf32>
    %101 = arith.mulf %99, %100 : vector<2x32xf32>
    %cst_46 = arith.constant 2.000000e+00 : f32
    %102 = vector.broadcast %cst_46 : f32 to vector<2x32xf32>
    %103 = arith.subf %102, %101 : vector<2x32xf32>
    %104 = arith.mulf %100, %103 : vector<2x32xf32>
    %cst_47 = arith.constant 1.06140542 : f32
    %105 = vector.broadcast %cst_47 : f32 to vector<2x32xf32>
    %106 = arith.mulf %105, %104 : vector<2x32xf32>
    %cst_48 = arith.constant -1.45315206 : f32
    %107 = vector.broadcast %cst_48 : f32 to vector<2x32xf32>
    %108 = arith.addf %106, %107 : vector<2x32xf32>
    %109 = arith.mulf %108, %104 : vector<2x32xf32>
    %cst_49 = arith.constant 1.42141378 : f32
    %110 = vector.broadcast %cst_49 : f32 to vector<2x32xf32>
    %111 = arith.addf %109, %110 : vector<2x32xf32>
    %112 = arith.mulf %111, %104 : vector<2x32xf32>
    %cst_50 = arith.constant -0.284496725 : f32
    %113 = vector.broadcast %cst_50 : f32 to vector<2x32xf32>
    %114 = arith.addf %112, %113 : vector<2x32xf32>
    %115 = arith.mulf %114, %104 : vector<2x32xf32>
    %cst_51 = arith.constant 0.254829586 : f32
    %116 = vector.broadcast %cst_51 : f32 to vector<2x32xf32>
    %117 = arith.addf %115, %116 : vector<2x32xf32>
    %118 = arith.mulf %117, %104 : vector<2x32xf32>
    %cst_52 = arith.constant 0.000000e+00 : f32
    %119 = vector.broadcast %cst_52 : f32 to vector<2x32xf32>
    %120 = arith.subf %119, %95 : vector<2x32xf32>
    %121 = arith.mulf %120, %95 : vector<2x32xf32>
    %122 = math.exp %121 : vector<2x32xf32>
    %123 = arith.mulf %118, %122 : vector<2x32xf32>
    %cst_53 = arith.constant 1.000000e+00 : f32
    %124 = vector.broadcast %cst_53 : f32 to vector<2x32xf32>
    %125 = arith.subf %124, %123 : vector<2x32xf32>
    %126 = arith.mulf %94, %125 : vector<2x32xf32>
    %cst_54 = arith.constant 1.000000e+00 : f32
    %127 = vector.broadcast %cst_54 : f32 to vector<2x32xf32>
    %128 = arith.addf %127, %126 : vector<2x32xf32>
    %129 = arith.mulf %87, %128 : vector<2x32xf32>
    %130 = arith.truncf %129 : vector<2x32xf32> to vector<2x32xbf16>
    %c384 = arith.constant 384 : index
    %c0_55 = arith.constant 0 : index
    %131 = vector.load %arg3[%c384, %c0_55] : memref<768x256xbf16, #tpu.memory_space<vmem>>, vector<32x256xbf16>
    %cst_56 = arith.constant dense<0.000000e+00> : vector<2x256xf32>
    %132 = tpu.matmul %130, %131, %cst_56 {dimension_numbers = #tpu.dot_dimension_numbers<[1], [0], [0], [1], [0, 0, 1, 1], [], []>} : vector<2x32xbf16>, vector<32x256xbf16>, vector<2x256xf32> -> vector<2x256xf32>
    %c304 = arith.constant 304 : index
    %c0_57 = arith.constant 0 : index
    %133 = vector.load %arg2[%c304, %c0_57] : memref<360x256xf32, #tpu.memory_space<vmem>>, vector<1x256xf32>
    %134 = vector.broadcast %133 : vector<1x256xf32> to vector<2x256xf32>
    %135 = arith.addf %132, %134 : vector<2x256xf32>
    %cst_58 = arith.constant 5.000000e-01 : f32
    %136 = vector.broadcast %cst_58 : f32 to vector<2x256xf32>
    %137 = arith.mulf %136, %135 : vector<2x256xf32>
    %cst_59 = arith.constant 0.707106769 : f32
    %138 = vector.broadcast %cst_59 : f32 to vector<2x256xf32>
    %139 = arith.mulf %135, %138 : vector<2x256xf32>
    %cst_60 = arith.constant 0.000000e+00 : f32
    %140 = vector.broadcast %cst_60 : f32 to vector<2x256xf32>
    %141 = arith.cmpf olt, %139, %140 : vector<2x256xf32>
    %cst_61 = arith.constant -1.000000e+00 : f32
    %cst_62 = arith.constant 1.000000e+00 : f32
    %142 = vector.broadcast %cst_61 : f32 to vector<2x256xf32>
    %143 = vector.broadcast %cst_62 : f32 to vector<2x256xf32>
    %144 = arith.select %141, %142, %143 : vector<2x256xi1>, vector<2x256xf32>
    %145 = arith.mulf %139, %144 : vector<2x256xf32>
    %cst_63 = arith.constant 0.327591091 : f32
    %146 = vector.broadcast %cst_63 : f32 to vector<2x256xf32>
    %147 = arith.mulf %146, %145 : vector<2x256xf32>
    %cst_64 = arith.constant 1.000000e+00 : f32
    %148 = vector.broadcast %cst_64 : f32 to vector<2x256xf32>
    %149 = arith.addf %148, %147 : vector<2x256xf32>
    %150 = tpu.reciprocal %149 {approx = true} : vector<2x256xf32> -> vector<2x256xf32>
    %151 = arith.mulf %149, %150 : vector<2x256xf32>
    %cst_65 = arith.constant 2.000000e+00 : f32
    %152 = vector.broadcast %cst_65 : f32 to vector<2x256xf32>
    %153 = arith.subf %152, %151 : vector<2x256xf32>
    %154 = arith.mulf %150, %153 : vector<2x256xf32>
    %cst_66 = arith.constant 1.06140542 : f32
    %155 = vector.broadcast %cst_66 : f32 to vector<2x256xf32>
    %156 = arith.mulf %155, %154 : vector<2x256xf32>
    %cst_67 = arith.constant -1.45315206 : f32
    %157 = vector.broadcast %cst_67 : f32 to vector<2x256xf32>
    %158 = arith.addf %156, %157 : vector<2x256xf32>
    %159 = arith.mulf %158, %154 : vector<2x256xf32>
    %cst_68 = arith.constant 1.42141378 : f32
    %160 = vector.broadcast %cst_68 : f32 to vector<2x256xf32>
    %161 = arith.addf %159, %160 : vector<2x256xf32>
    %162 = arith.mulf %161, %154 : vector<2x256xf32>
    %cst_69 = arith.constant -0.284496725 : f32
    %163 = vector.broadcast %cst_69 : f32 to vector<2x256xf32>
    %164 = arith.addf %162, %163 : vector<2x256xf32>
    %165 = arith.mulf %164, %154 : vector<2x256xf32>
    %cst_70 = arith.constant 0.254829586 : f32
    %166 = vector.broadcast %cst_70 : f32 to vector<2x256xf32>
    %167 = arith.addf %165, %166 : vector<2x256xf32>
    %168 = arith.mulf %167, %154 : vector<2x256xf32>
    %cst_71 = arith.constant 0.000000e+00 : f32
    %169 = vector.broadcast %cst_71 : f32 to vector<2x256xf32>
    %170 = arith.subf %169, %145 : vector<2x256xf32>
    %171 = arith.mulf %170, %145 : vector<2x256xf32>
    %172 = math.exp %171 : vector<2x256xf32>
    %173 = arith.mulf %168, %172 : vector<2x256xf32>
    %cst_72 = arith.constant 1.000000e+00 : f32
    %174 = vector.broadcast %cst_72 : f32 to vector<2x256xf32>
    %175 = arith.subf %174, %173 : vector<2x256xf32>
    %176 = arith.mulf %144, %175 : vector<2x256xf32>
    %cst_73 = arith.constant 1.000000e+00 : f32
    %177 = vector.broadcast %cst_73 : f32 to vector<2x256xf32>
    %178 = arith.addf %177, %176 : vector<2x256xf32>
    %179 = arith.mulf %137, %178 : vector<2x256xf32>
    %180 = arith.truncf %179 : vector<2x256xf32> to vector<2x256xbf16>
    %c416 = arith.constant 416 : index
    %c0_74 = arith.constant 0 : index
    %181 = vector.load %arg3[%c416, %c0_74] : memref<768x256xbf16, #tpu.memory_space<vmem>>, vector<256x128xbf16>
    %cst_75 = arith.constant dense<0.000000e+00> : vector<2x128xf32>
    %182 = tpu.matmul %180, %181, %cst_75 {dimension_numbers = #tpu.dot_dimension_numbers<[1], [0], [0], [1], [0, 0, 1, 1], [], []>} : vector<2x256xbf16>, vector<256x128xbf16>, vector<2x128xf32> -> vector<2x128xf32>
    %c312 = arith.constant 312 : index
    %c0_76 = arith.constant 0 : index
    %183 = vector.load %arg2[%c312, %c0_76] : memref<360x256xf32, #tpu.memory_space<vmem>>, vector<1x128xf32>
    %184 = vector.broadcast %183 : vector<1x128xf32> to vector<2x128xf32>
    %185 = arith.addf %182, %184 : vector<2x128xf32>
    %186 = arith.negf %185 : vector<2x128xf32>
    %187 = math.exp %186 : vector<2x128xf32>
    %cst_77 = arith.constant 1.000000e+00 : f32
    %188 = vector.broadcast %cst_77 : f32 to vector<2x128xf32>
    %189 = arith.addf %188, %187 : vector<2x128xf32>
    %190 = arith.divf %188, %189 : vector<2x128xf32>
    %191 = arith.truncf %28 : vector<2x4xf32> to vector<2x4xbf16>
    %c672 = arith.constant 672 : index
    %c0_78 = arith.constant 0 : index
    %192 = vector.load %arg3[%c672, %c0_78] : memref<768x256xbf16, #tpu.memory_space<vmem>>, vector<4x16xbf16>
    %cst_79 = arith.constant dense<0.000000e+00> : vector<2x16xf32>
    %193 = tpu.matmul %191, %192, %cst_79 {dimension_numbers = #tpu.dot_dimension_numbers<[1], [0], [0], [1], [0, 0, 1, 1], [], []>} : vector<2x4xbf16>, vector<4x16xbf16>, vector<2x16xf32> -> vector<2x16xf32>
    %194 = arith.truncf %29 : vector<2x4xf32> to vector<2x4xbf16>
    %c688 = arith.constant 688 : index
    %c0_80 = arith.constant 0 : index
    %195 = vector.load %arg3[%c688, %c0_80] : memref<768x256xbf16, #tpu.memory_space<vmem>>, vector<4x16xbf16>
    %cst_81 = arith.constant dense<0.000000e+00> : vector<2x16xf32>
    %196 = tpu.matmul %194, %195, %cst_81 {dimension_numbers = #tpu.dot_dimension_numbers<[1], [0], [0], [1], [0, 0, 1, 1], [], []>} : vector<2x4xbf16>, vector<4x16xbf16>, vector<2x16xf32> -> vector<2x16xf32>
    %197 = arith.addf %193, %196 : vector<2x16xf32>
    %c320 = arith.constant 320 : index
    %c0_82 = arith.constant 0 : index
    %198 = vector.load %arg2[%c320, %c0_82] : memref<360x256xf32, #tpu.memory_space<vmem>>, vector<1x16xf32>
    %199 = vector.broadcast %198 : vector<1x16xf32> to vector<2x16xf32>
    %200 = arith.addf %197, %199 : vector<2x16xf32>
    %cst_83 = arith.constant 5.000000e-01 : f32
    %201 = vector.broadcast %cst_83 : f32 to vector<2x16xf32>
    %202 = arith.mulf %201, %200 : vector<2x16xf32>
    %cst_84 = arith.constant 0.707106769 : f32
    %203 = vector.broadcast %cst_84 : f32 to vector<2x16xf32>
    %204 = arith.mulf %200, %203 : vector<2x16xf32>
    %cst_85 = arith.constant 0.000000e+00 : f32
    %205 = vector.broadcast %cst_85 : f32 to vector<2x16xf32>
    %206 = arith.cmpf olt, %204, %205 : vector<2x16xf32>
    %cst_86 = arith.constant -1.000000e+00 : f32
    %cst_87 = arith.constant 1.000000e+00 : f32
    %207 = vector.broadcast %cst_86 : f32 to vector<2x16xf32>
    %208 = vector.broadcast %cst_87 : f32 to vector<2x16xf32>
    %209 = arith.select %206, %207, %208 : vector<2x16xi1>, vector<2x16xf32>
    %210 = arith.mulf %204, %209 : vector<2x16xf32>
    %cst_88 = arith.constant 0.327591091 : f32
    %211 = vector.broadcast %cst_88 : f32 to vector<2x16xf32>
    %212 = arith.mulf %211, %210 : vector<2x16xf32>
    %cst_89 = arith.constant 1.000000e+00 : f32
    %213 = vector.broadcast %cst_89 : f32 to vector<2x16xf32>
    %214 = arith.addf %213, %212 : vector<2x16xf32>
    %215 = tpu.reciprocal %214 {approx = true} : vector<2x16xf32> -> vector<2x16xf32>
    %216 = arith.mulf %214, %215 : vector<2x16xf32>
    %cst_90 = arith.constant 2.000000e+00 : f32
    %217 = vector.broadcast %cst_90 : f32 to vector<2x16xf32>
    %218 = arith.subf %217, %216 : vector<2x16xf32>
    %219 = arith.mulf %215, %218 : vector<2x16xf32>
    %cst_91 = arith.constant 1.06140542 : f32
    %220 = vector.broadcast %cst_91 : f32 to vector<2x16xf32>
    %221 = arith.mulf %220, %219 : vector<2x16xf32>
    %cst_92 = arith.constant -1.45315206 : f32
    %222 = vector.broadcast %cst_92 : f32 to vector<2x16xf32>
    %223 = arith.addf %221, %222 : vector<2x16xf32>
    %224 = arith.mulf %223, %219 : vector<2x16xf32>
    %cst_93 = arith.constant 1.42141378 : f32
    %225 = vector.broadcast %cst_93 : f32 to vector<2x16xf32>
    %226 = arith.addf %224, %225 : vector<2x16xf32>
    %227 = arith.mulf %226, %219 : vector<2x16xf32>
    %cst_94 = arith.constant -0.284496725 : f32
    %228 = vector.broadcast %cst_94 : f32 to vector<2x16xf32>
    %229 = arith.addf %227, %228 : vector<2x16xf32>
    %230 = arith.mulf %229, %219 : vector<2x16xf32>
    %cst_95 = arith.constant 0.254829586 : f32
    %231 = vector.broadcast %cst_95 : f32 to vector<2x16xf32>
    %232 = arith.addf %230, %231 : vector<2x16xf32>
    %233 = arith.mulf %232, %219 : vector<2x16xf32>
    %cst_96 = arith.constant 0.000000e+00 : f32
    %234 = vector.broadcast %cst_96 : f32 to vector<2x16xf32>
    %235 = arith.subf %234, %210 : vector<2x16xf32>
    %236 = arith.mulf %235, %210 : vector<2x16xf32>
    %237 = math.exp %236 : vector<2x16xf32>
    %238 = arith.mulf %233, %237 : vector<2x16xf32>
    %cst_97 = arith.constant 1.000000e+00 : f32
    %239 = vector.broadcast %cst_97 : f32 to vector<2x16xf32>
    %240 = arith.subf %239, %238 : vector<2x16xf32>
    %241 = arith.mulf %209, %240 : vector<2x16xf32>
    %cst_98 = arith.constant 1.000000e+00 : f32
    %242 = vector.broadcast %cst_98 : f32 to vector<2x16xf32>
    %243 = arith.addf %242, %241 : vector<2x16xf32>
    %244 = arith.mulf %202, %243 : vector<2x16xf32>
    %245 = arith.truncf %244 : vector<2x16xf32> to vector<2x16xbf16>
    %c704 = arith.constant 704 : index
    %c0_99 = arith.constant 0 : index
    %246 = vector.load %arg3[%c704, %c0_99] : memref<768x256xbf16, #tpu.memory_space<vmem>>, vector<16x4xbf16>
    %cst_100 = arith.constant dense<0.000000e+00> : vector<2x4xf32>
    %247 = tpu.matmul %245, %246, %cst_100 {dimension_numbers = #tpu.dot_dimension_numbers<[1], [0], [0], [1], [0, 0, 1, 1], [], []>} : vector<2x16xbf16>, vector<16x4xbf16>, vector<2x4xf32> -> vector<2x4xf32>
    %c328 = arith.constant 328 : index
    %c0_101 = arith.constant 0 : index
    %248 = vector.load %arg2[%c328, %c0_101] : memref<360x256xf32, #tpu.memory_space<vmem>>, vector<1x4xf32>
    %249 = vector.broadcast %248 : vector<1x4xf32> to vector<2x4xf32>
    %250 = arith.addf %247, %249 : vector<2x4xf32>
    %cst_102 = arith.constant 5.000000e-01 : f32
    %251 = vector.broadcast %cst_102 : f32 to vector<2x4xf32>
    %252 = arith.mulf %251, %250 : vector<2x4xf32>
    %cst_103 = arith.constant 0.707106769 : f32
    %253 = vector.broadcast %cst_103 : f32 to vector<2x4xf32>
    %254 = arith.mulf %250, %253 : vector<2x4xf32>
    %cst_104 = arith.constant 0.000000e+00 : f32
    %255 = vector.broadcast %cst_104 : f32 to vector<2x4xf32>
    %256 = arith.cmpf olt, %254, %255 : vector<2x4xf32>
    %cst_105 = arith.constant -1.000000e+00 : f32
    %cst_106 = arith.constant 1.000000e+00 : f32
    %257 = vector.broadcast %cst_105 : f32 to vector<2x4xf32>
    %258 = vector.broadcast %cst_106 : f32 to vector<2x4xf32>
    %259 = arith.select %256, %257, %258 : vector<2x4xi1>, vector<2x4xf32>
    %260 = arith.mulf %254, %259 : vector<2x4xf32>
    %cst_107 = arith.constant 0.327591091 : f32
    %261 = vector.broadcast %cst_107 : f32 to vector<2x4xf32>
    %262 = arith.mulf %261, %260 : vector<2x4xf32>
    %cst_108 = arith.constant 1.000000e+00 : f32
    %263 = vector.broadcast %cst_108 : f32 to vector<2x4xf32>
    %264 = arith.addf %263, %262 : vector<2x4xf32>
    %265 = tpu.reciprocal %264 {approx = true} : vector<2x4xf32> -> vector<2x4xf32>
    %266 = arith.mulf %264, %265 : vector<2x4xf32>
    %cst_109 = arith.constant 2.000000e+00 : f32
    %267 = vector.broadcast %cst_109 : f32 to vector<2x4xf32>
    %268 = arith.subf %267, %266 : vector<2x4xf32>
    %269 = arith.mulf %265, %268 : vector<2x4xf32>
    %cst_110 = arith.constant 1.06140542 : f32
    %270 = vector.broadcast %cst_110 : f32 to vector<2x4xf32>
    %271 = arith.mulf %270, %269 : vector<2x4xf32>
    %cst_111 = arith.constant -1.45315206 : f32
    %272 = vector.broadcast %cst_111 : f32 to vector<2x4xf32>
    %273 = arith.addf %271, %272 : vector<2x4xf32>
    %274 = arith.mulf %273, %269 : vector<2x4xf32>
    %cst_112 = arith.constant 1.42141378 : f32
    %275 = vector.broadcast %cst_112 : f32 to vector<2x4xf32>
    %276 = arith.addf %274, %275 : vector<2x4xf32>
    %277 = arith.mulf %276, %269 : vector<2x4xf32>
    %cst_113 = arith.constant -0.284496725 : f32
    %278 = vector.broadcast %cst_113 : f32 to vector<2x4xf32>
    %279 = arith.addf %277, %278 : vector<2x4xf32>
    %280 = arith.mulf %279, %269 : vector<2x4xf32>
    %cst_114 = arith.constant 0.254829586 : f32
    %281 = vector.broadcast %cst_114 : f32 to vector<2x4xf32>
    %282 = arith.addf %280, %281 : vector<2x4xf32>
    %283 = arith.mulf %282, %269 : vector<2x4xf32>
    %cst_115 = arith.constant 0.000000e+00 : f32
    %284 = vector.broadcast %cst_115 : f32 to vector<2x4xf32>
    %285 = arith.subf %284, %260 : vector<2x4xf32>
    %286 = arith.mulf %285, %260 : vector<2x4xf32>
    %287 = math.exp %286 : vector<2x4xf32>
    %288 = arith.mulf %283, %287 : vector<2x4xf32>
    %cst_116 = arith.constant 1.000000e+00 : f32
    %289 = vector.broadcast %cst_116 : f32 to vector<2x4xf32>
    %290 = arith.subf %289, %288 : vector<2x4xf32>
    %291 = arith.mulf %259, %290 : vector<2x4xf32>
    %cst_117 = arith.constant 1.000000e+00 : f32
    %292 = vector.broadcast %cst_117 : f32 to vector<2x4xf32>
    %293 = arith.addf %292, %291 : vector<2x4xf32>
    %294 = arith.mulf %252, %293 : vector<2x4xf32>
    %295 = arith.truncf %244 : vector<2x16xf32> to vector<2x16xbf16>
    %c720 = arith.constant 720 : index
    %c0_118 = arith.constant 0 : index
    %296 = vector.load %arg3[%c720, %c0_118] : memref<768x256xbf16, #tpu.memory_space<vmem>>, vector<16x4xbf16>
    %cst_119 = arith.constant dense<0.000000e+00> : vector<2x4xf32>
    %297 = tpu.matmul %295, %296, %cst_119 {dimension_numbers = #tpu.dot_dimension_numbers<[1], [0], [0], [1], [0, 0, 1, 1], [], []>} : vector<2x16xbf16>, vector<16x4xbf16>, vector<2x4xf32> -> vector<2x4xf32>
    %c336 = arith.constant 336 : index
    %c0_120 = arith.constant 0 : index
    %298 = vector.load %arg2[%c336, %c0_120] : memref<360x256xf32, #tpu.memory_space<vmem>>, vector<1x4xf32>
    %299 = vector.broadcast %298 : vector<1x4xf32> to vector<2x4xf32>
    %300 = arith.addf %297, %299 : vector<2x4xf32>
    %cst_121 = arith.constant 5.000000e-01 : f32
    %301 = vector.broadcast %cst_121 : f32 to vector<2x4xf32>
    %302 = arith.mulf %301, %300 : vector<2x4xf32>
    %cst_122 = arith.constant 0.707106769 : f32
    %303 = vector.broadcast %cst_122 : f32 to vector<2x4xf32>
    %304 = arith.mulf %300, %303 : vector<2x4xf32>
    %cst_123 = arith.constant 0.000000e+00 : f32
    %305 = vector.broadcast %cst_123 : f32 to vector<2x4xf32>
    %306 = arith.cmpf olt, %304, %305 : vector<2x4xf32>
    %cst_124 = arith.constant -1.000000e+00 : f32
    %cst_125 = arith.constant 1.000000e+00 : f32
    %307 = vector.broadcast %cst_124 : f32 to vector<2x4xf32>
    %308 = vector.broadcast %cst_125 : f32 to vector<2x4xf32>
    %309 = arith.select %306, %307, %308 : vector<2x4xi1>, vector<2x4xf32>
    %310 = arith.mulf %304, %309 : vector<2x4xf32>
    %cst_126 = arith.constant 0.327591091 : f32
    %311 = vector.broadcast %cst_126 : f32 to vector<2x4xf32>
    %312 = arith.mulf %311, %310 : vector<2x4xf32>
    %cst_127 = arith.constant 1.000000e+00 : f32
    %313 = vector.broadcast %cst_127 : f32 to vector<2x4xf32>
    %314 = arith.addf %313, %312 : vector<2x4xf32>
    %315 = tpu.reciprocal %314 {approx = true} : vector<2x4xf32> -> vector<2x4xf32>
    %316 = arith.mulf %314, %315 : vector<2x4xf32>
    %cst_128 = arith.constant 2.000000e+00 : f32
    %317 = vector.broadcast %cst_128 : f32 to vector<2x4xf32>
    %318 = arith.subf %317, %316 : vector<2x4xf32>
    %319 = arith.mulf %315, %318 : vector<2x4xf32>
    %cst_129 = arith.constant 1.06140542 : f32
    %320 = vector.broadcast %cst_129 : f32 to vector<2x4xf32>
    %321 = arith.mulf %320, %319 : vector<2x4xf32>
    %cst_130 = arith.constant -1.45315206 : f32
    %322 = vector.broadcast %cst_130 : f32 to vector<2x4xf32>
    %323 = arith.addf %321, %322 : vector<2x4xf32>
    %324 = arith.mulf %323, %319 : vector<2x4xf32>
    %cst_131 = arith.constant 1.42141378 : f32
    %325 = vector.broadcast %cst_131 : f32 to vector<2x4xf32>
    %326 = arith.addf %324, %325 : vector<2x4xf32>
    %327 = arith.mulf %326, %319 : vector<2x4xf32>
    %cst_132 = arith.constant -0.284496725 : f32
    %328 = vector.broadcast %cst_132 : f32 to vector<2x4xf32>
    %329 = arith.addf %327, %328 : vector<2x4xf32>
    %330 = arith.mulf %329, %319 : vector<2x4xf32>
    %cst_133 = arith.constant 0.254829586 : f32
    %331 = vector.broadcast %cst_133 : f32 to vector<2x4xf32>
    %332 = arith.addf %330, %331 : vector<2x4xf32>
    %333 = arith.mulf %332, %319 : vector<2x4xf32>
    %cst_134 = arith.constant 0.000000e+00 : f32
    %334 = vector.broadcast %cst_134 : f32 to vector<2x4xf32>
    %335 = arith.subf %334, %310 : vector<2x4xf32>
    %336 = arith.mulf %335, %310 : vector<2x4xf32>
    %337 = math.exp %336 : vector<2x4xf32>
    %338 = arith.mulf %333, %337 : vector<2x4xf32>
    %cst_135 = arith.constant 1.000000e+00 : f32
    %339 = vector.broadcast %cst_135 : f32 to vector<2x4xf32>
    %340 = arith.subf %339, %338 : vector<2x4xf32>
    %341 = arith.mulf %309, %340 : vector<2x4xf32>
    %cst_136 = arith.constant 1.000000e+00 : f32
    %342 = vector.broadcast %cst_136 : f32 to vector<2x4xf32>
    %343 = arith.addf %342, %341 : vector<2x4xf32>
    %344 = arith.mulf %302, %343 : vector<2x4xf32>
    %345 = arith.truncf %294 : vector<2x4xf32> to vector<2x4xbf16>
    %c736 = arith.constant 736 : index
    %c0_137 = arith.constant 0 : index
    %346 = vector.load %arg3[%c736, %c0_137] : memref<768x256xbf16, #tpu.memory_space<vmem>>, vector<4x8xbf16>
    %cst_138 = arith.constant dense<0.000000e+00> : vector<2x8xf32>
    %347 = tpu.matmul %345, %346, %cst_138 {dimension_numbers = #tpu.dot_dimension_numbers<[1], [0], [0], [1], [0, 0, 1, 1], [], []>} : vector<2x4xbf16>, vector<4x8xbf16>, vector<2x8xf32> -> vector<2x8xf32>
    %c344 = arith.constant 344 : index
    %c0_139 = arith.constant 0 : index
    %348 = vector.load %arg2[%c344, %c0_139] : memref<360x256xf32, #tpu.memory_space<vmem>>, vector<1x8xf32>
    %349 = vector.broadcast %348 : vector<1x8xf32> to vector<2x8xf32>
    %350 = arith.addf %347, %349 : vector<2x8xf32>
    %cst_140 = arith.constant 5.000000e-01 : f32
    %351 = vector.broadcast %cst_140 : f32 to vector<2x8xf32>
    %352 = arith.mulf %351, %350 : vector<2x8xf32>
    %cst_141 = arith.constant 0.707106769 : f32
    %353 = vector.broadcast %cst_141 : f32 to vector<2x8xf32>
    %354 = arith.mulf %350, %353 : vector<2x8xf32>
    %cst_142 = arith.constant 0.000000e+00 : f32
    %355 = vector.broadcast %cst_142 : f32 to vector<2x8xf32>
    %356 = arith.cmpf olt, %354, %355 : vector<2x8xf32>
    %cst_143 = arith.constant -1.000000e+00 : f32
    %cst_144 = arith.constant 1.000000e+00 : f32
    %357 = vector.broadcast %cst_143 : f32 to vector<2x8xf32>
    %358 = vector.broadcast %cst_144 : f32 to vector<2x8xf32>
    %359 = arith.select %356, %357, %358 : vector<2x8xi1>, vector<2x8xf32>
    %360 = arith.mulf %354, %359 : vector<2x8xf32>
    %cst_145 = arith.constant 0.327591091 : f32
    %361 = vector.broadcast %cst_145 : f32 to vector<2x8xf32>
    %362 = arith.mulf %361, %360 : vector<2x8xf32>
    %cst_146 = arith.constant 1.000000e+00 : f32
    %363 = vector.broadcast %cst_146 : f32 to vector<2x8xf32>
    %364 = arith.addf %363, %362 : vector<2x8xf32>
    %365 = tpu.reciprocal %364 {approx = true} : vector<2x8xf32> -> vector<2x8xf32>
    %366 = arith.mulf %364, %365 : vector<2x8xf32>
    %cst_147 = arith.constant 2.000000e+00 : f32
    %367 = vector.broadcast %cst_147 : f32 to vector<2x8xf32>
    %368 = arith.subf %367, %366 : vector<2x8xf32>
    %369 = arith.mulf %365, %368 : vector<2x8xf32>
    %cst_148 = arith.constant 1.06140542 : f32
    %370 = vector.broadcast %cst_148 : f32 to vector<2x8xf32>
    %371 = arith.mulf %370, %369 : vector<2x8xf32>
    %cst_149 = arith.constant -1.45315206 : f32
    %372 = vector.broadcast %cst_149 : f32 to vector<2x8xf32>
    %373 = arith.addf %371, %372 : vector<2x8xf32>
    %374 = arith.mulf %373, %369 : vector<2x8xf32>
    %cst_150 = arith.constant 1.42141378 : f32
    %375 = vector.broadcast %cst_150 : f32 to vector<2x8xf32>
    %376 = arith.addf %374, %375 : vector<2x8xf32>
    %377 = arith.mulf %376, %369 : vector<2x8xf32>
    %cst_151 = arith.constant -0.284496725 : f32
    %378 = vector.broadcast %cst_151 : f32 to vector<2x8xf32>
    %379 = arith.addf %377, %378 : vector<2x8xf32>
    %380 = arith.mulf %379, %369 : vector<2x8xf32>
    %cst_152 = arith.constant 0.254829586 : f32
    %381 = vector.broadcast %cst_152 : f32 to vector<2x8xf32>
    %382 = arith.addf %380, %381 : vector<2x8xf32>
    %383 = arith.mulf %382, %369 : vector<2x8xf32>
    %cst_153 = arith.constant 0.000000e+00 : f32
    %384 = vector.broadcast %cst_153 : f32 to vector<2x8xf32>
    %385 = arith.subf %384, %360 : vector<2x8xf32>
    %386 = arith.mulf %385, %360 : vector<2x8xf32>
    %387 = math.exp %386 : vector<2x8xf32>
    %388 = arith.mulf %383, %387 : vector<2x8xf32>
    %cst_154 = arith.constant 1.000000e+00 : f32
    %389 = vector.broadcast %cst_154 : f32 to vector<2x8xf32>
    %390 = arith.subf %389, %388 : vector<2x8xf32>
    %391 = arith.mulf %359, %390 : vector<2x8xf32>
    %cst_155 = arith.constant 1.000000e+00 : f32
    %392 = vector.broadcast %cst_155 : f32 to vector<2x8xf32>
    %393 = arith.addf %392, %391 : vector<2x8xf32>
    %394 = arith.mulf %352, %393 : vector<2x8xf32>
    %395 = arith.truncf %394 : vector<2x8xf32> to vector<2x8xbf16>
    %c752 = arith.constant 752 : index
    %c0_156 = arith.constant 0 : index
    %396 = vector.load %arg3[%c752, %c0_156] : memref<768x256xbf16, #tpu.memory_space<vmem>>, vector<8x4xbf16>
    %cst_157 = arith.constant dense<0.000000e+00> : vector<2x4xf32>
    %397 = tpu.matmul %395, %396, %cst_157 {dimension_numbers = #tpu.dot_dimension_numbers<[1], [0], [0], [1], [0, 0, 1, 1], [], []>} : vector<2x8xbf16>, vector<8x4xbf16>, vector<2x4xf32> -> vector<2x4xf32>
    %c352 = arith.constant 352 : index
    %c0_158 = arith.constant 0 : index
    %398 = vector.load %arg2[%c352, %c0_158] : memref<360x256xf32, #tpu.memory_space<vmem>>, vector<1x4xf32>
    %399 = vector.broadcast %398 : vector<1x4xf32> to vector<2x4xf32>
    %400 = arith.addf %397, %399 : vector<2x4xf32>
    %401 = arith.negf %400 : vector<2x4xf32>
    %402 = math.exp %401 : vector<2x4xf32>
    %cst_159 = arith.constant 1.000000e+00 : f32
    %403 = vector.broadcast %cst_159 : f32 to vector<2x4xf32>
    %404 = arith.addf %403, %402 : vector<2x4xf32>
    %405 = arith.divf %403, %404 : vector<2x4xf32>
    %406 = arith.truncf %344 : vector<2x4xf32> to vector<2x4xbf16>
    %c736_160 = arith.constant 736 : index
    %c0_161 = arith.constant 0 : index
    %407 = vector.load %arg3[%c736_160, %c0_161] : memref<768x256xbf16, #tpu.memory_space<vmem>>, vector<4x8xbf16>
    %cst_162 = arith.constant dense<0.000000e+00> : vector<2x8xf32>
    %408 = tpu.matmul %406, %407, %cst_162 {dimension_numbers = #tpu.dot_dimension_numbers<[1], [0], [0], [1], [0, 0, 1, 1], [], []>} : vector<2x4xbf16>, vector<4x8xbf16>, vector<2x8xf32> -> vector<2x8xf32>
    %c344_163 = arith.constant 344 : index
    %c0_164 = arith.constant 0 : index
    %409 = vector.load %arg2[%c344_163, %c0_164] : memref<360x256xf32, #tpu.memory_space<vmem>>, vector<1x8xf32>
    %410 = vector.broadcast %409 : vector<1x8xf32> to vector<2x8xf32>
    %411 = arith.addf %408, %410 : vector<2x8xf32>
    %cst_165 = arith.constant 5.000000e-01 : f32
    %412 = vector.broadcast %cst_165 : f32 to vector<2x8xf32>
    %413 = arith.mulf %412, %411 : vector<2x8xf32>
    %cst_166 = arith.constant 0.707106769 : f32
    %414 = vector.broadcast %cst_166 : f32 to vector<2x8xf32>
    %415 = arith.mulf %411, %414 : vector<2x8xf32>
    %cst_167 = arith.constant 0.000000e+00 : f32
    %416 = vector.broadcast %cst_167 : f32 to vector<2x8xf32>
    %417 = arith.cmpf olt, %415, %416 : vector<2x8xf32>
    %cst_168 = arith.constant -1.000000e+00 : f32
    %cst_169 = arith.constant 1.000000e+00 : f32
    %418 = vector.broadcast %cst_168 : f32 to vector<2x8xf32>
    %419 = vector.broadcast %cst_169 : f32 to vector<2x8xf32>
    %420 = arith.select %417, %418, %419 : vector<2x8xi1>, vector<2x8xf32>
    %421 = arith.mulf %415, %420 : vector<2x8xf32>
    %cst_170 = arith.constant 0.327591091 : f32
    %422 = vector.broadcast %cst_170 : f32 to vector<2x8xf32>
    %423 = arith.mulf %422, %421 : vector<2x8xf32>
    %cst_171 = arith.constant 1.000000e+00 : f32
    %424 = vector.broadcast %cst_171 : f32 to vector<2x8xf32>
    %425 = arith.addf %424, %423 : vector<2x8xf32>
    %426 = tpu.reciprocal %425 {approx = true} : vector<2x8xf32> -> vector<2x8xf32>
    %427 = arith.mulf %425, %426 : vector<2x8xf32>
    %cst_172 = arith.constant 2.000000e+00 : f32
    %428 = vector.broadcast %cst_172 : f32 to vector<2x8xf32>
    %429 = arith.subf %428, %427 : vector<2x8xf32>
    %430 = arith.mulf %426, %429 : vector<2x8xf32>
    %cst_173 = arith.constant 1.06140542 : f32
    %431 = vector.broadcast %cst_173 : f32 to vector<2x8xf32>
    %432 = arith.mulf %431, %430 : vector<2x8xf32>
    %cst_174 = arith.constant -1.45315206 : f32
    %433 = vector.broadcast %cst_174 : f32 to vector<2x8xf32>
    %434 = arith.addf %432, %433 : vector<2x8xf32>
    %435 = arith.mulf %434, %430 : vector<2x8xf32>
    %cst_175 = arith.constant 1.42141378 : f32
    %436 = vector.broadcast %cst_175 : f32 to vector<2x8xf32>
    %437 = arith.addf %435, %436 : vector<2x8xf32>
    %438 = arith.mulf %437, %430 : vector<2x8xf32>
    %cst_176 = arith.constant -0.284496725 : f32
    %439 = vector.broadcast %cst_176 : f32 to vector<2x8xf32>
    %440 = arith.addf %438, %439 : vector<2x8xf32>
    %441 = arith.mulf %440, %430 : vector<2x8xf32>
    %cst_177 = arith.constant 0.254829586 : f32
    %442 = vector.broadcast %cst_177 : f32 to vector<2x8xf32>
    %443 = arith.addf %441, %442 : vector<2x8xf32>
    %444 = arith.mulf %443, %430 : vector<2x8xf32>
    %cst_178 = arith.constant 0.000000e+00 : f32
    %445 = vector.broadcast %cst_178 : f32 to vector<2x8xf32>
    %446 = arith.subf %445, %421 : vector<2x8xf32>
    %447 = arith.mulf %446, %421 : vector<2x8xf32>
    %448 = math.exp %447 : vector<2x8xf32>
    %449 = arith.mulf %444, %448 : vector<2x8xf32>
    %cst_179 = arith.constant 1.000000e+00 : f32
    %450 = vector.broadcast %cst_179 : f32 to vector<2x8xf32>
    %451 = arith.subf %450, %449 : vector<2x8xf32>
    %452 = arith.mulf %420, %451 : vector<2x8xf32>
    %cst_180 = arith.constant 1.000000e+00 : f32
    %453 = vector.broadcast %cst_180 : f32 to vector<2x8xf32>
    %454 = arith.addf %453, %452 : vector<2x8xf32>
    %455 = arith.mulf %413, %454 : vector<2x8xf32>
    %456 = arith.truncf %455 : vector<2x8xf32> to vector<2x8xbf16>
    %c752_181 = arith.constant 752 : index
    %c0_182 = arith.constant 0 : index
    %457 = vector.load %arg3[%c752_181, %c0_182] : memref<768x256xbf16, #tpu.memory_space<vmem>>, vector<8x4xbf16>
    %cst_183 = arith.constant dense<0.000000e+00> : vector<2x4xf32>
    %458 = tpu.matmul %456, %457, %cst_183 {dimension_numbers = #tpu.dot_dimension_numbers<[1], [0], [0], [1], [0, 0, 1, 1], [], []>} : vector<2x8xbf16>, vector<8x4xbf16>, vector<2x4xf32> -> vector<2x4xf32>
    %c352_184 = arith.constant 352 : index
    %c0_185 = arith.constant 0 : index
    %459 = vector.load %arg2[%c352_184, %c0_185] : memref<360x256xf32, #tpu.memory_space<vmem>>, vector<1x4xf32>
    %460 = vector.broadcast %459 : vector<1x4xf32> to vector<2x4xf32>
    %461 = arith.addf %458, %460 : vector<2x4xf32>
    %462 = arith.negf %461 : vector<2x4xf32>
    %463 = math.exp %462 : vector<2x4xf32>
    %cst_186 = arith.constant 1.000000e+00 : f32
    %464 = vector.broadcast %cst_186 : f32 to vector<2x4xf32>
    %465 = arith.addf %464, %463 : vector<2x4xf32>
    %466 = arith.divf %464, %465 : vector<2x4xf32>
    %467 = arith.mulf %405, %466 : vector<2x4xf32>
    %468 = vector.extract_strided_slice %190 {offsets = [0, 0], sizes = [2, 16], strides = [1, 1]} : vector<2x128xf32> to vector<2x16xf32>
    %469 = vector.extract_strided_slice %190 {offsets = [0, 16], sizes = [2, 16], strides = [1, 1]} : vector<2x128xf32> to vector<2x16xf32>
    %470 = vector.extract_strided_slice %467 {offsets = [0, 0], sizes = [2, 1], strides = [1, 1]} : vector<2x4xf32> to vector<2x1xf32>
    %471 = vector.broadcast %470 : vector<2x1xf32> to vector<2x16xf32>
    %472 = arith.mulf %469, %471 : vector<2x16xf32>
    %cst_187 = arith.constant dense<0.000000e+00> : vector<2x256xf32>
    %473 = tpu.matmul %468, %1, %cst_187 {dimension_numbers = #tpu.dot_dimension_numbers<[1], [0], [0], [1], [0, 0, 1, 1], [], []>, precision = #tpu.contract_precision<fp32>} : vector<2x16xf32>, vector<16x256xf32>, vector<2x256xf32> -> vector<2x256xf32>
    %cst_188 = arith.constant dense<0.000000e+00> : vector<2x256xf32>
    %474 = tpu.matmul %472, %2, %cst_188 {dimension_numbers = #tpu.dot_dimension_numbers<[1], [0], [0], [1], [0, 0, 1, 1], [], []>, precision = #tpu.contract_precision<fp32>} : vector<2x16xf32>, vector<16x256xf32>, vector<2x256xf32> -> vector<2x256xf32>
    %475 = arith.mulf %473, %474 : vector<2x256xf32>
    %c0_189 = arith.constant 0 : index
    %c0_190 = arith.constant 0 : index
    %476 = vector.load %arg1[%c0_189, %c0_190] : memref<2x1024xf32, #tpu.memory_space<vmem>>, vector<2x256xf32>
    %477 = arith.mulf %476, %475 : vector<2x256xf32>
    %c0_191 = arith.constant 0 : index
    %c0_192 = arith.constant 0 : index
    %478 = vector.load %arg4[%c0_191, %c0_192] : memref<2x1024xf32, #tpu.memory_space<vmem>>, vector<2x256xf32>
    tpu.vector_store %arg4[%c0_191, %c0_192], %477 {strides = array<i32>} : memref<2x1024xf32, #tpu.memory_space<vmem>>, vector<2x256xf32>,
    %479 = vector.extract_strided_slice %190 {offsets = [0, 32], sizes = [2, 16], strides = [1, 1]} : vector<2x128xf32> to vector<2x16xf32>
    %480 = vector.extract_strided_slice %190 {offsets = [0, 48], sizes = [2, 16], strides = [1, 1]} : vector<2x128xf32> to vector<2x16xf32>
    %481 = vector.extract_strided_slice %467 {offsets = [0, 1], sizes = [2, 1], strides = [1, 1]} : vector<2x4xf32> to vector<2x1xf32>
    %482 = vector.broadcast %481 : vector<2x1xf32> to vector<2x16xf32>
    %483 = arith.mulf %480, %482 : vector<2x16xf32>
    %cst_193 = arith.constant dense<0.000000e+00> : vector<2x256xf32>
    %484 = tpu.matmul %479, %1, %cst_193 {dimension_numbers = #tpu.dot_dimension_numbers<[1], [0], [0], [1], [0, 0, 1, 1], [], []>, precision = #tpu.contract_precision<fp32>} : vector<2x16xf32>, vector<16x256xf32>, vector<2x256xf32> -> vector<2x256xf32>
    %cst_194 = arith.constant dense<0.000000e+00> : vector<2x256xf32>
    %485 = tpu.matmul %483, %2, %cst_194 {dimension_numbers = #tpu.dot_dimension_numbers<[1], [0], [0], [1], [0, 0, 1, 1], [], []>, precision = #tpu.contract_precision<fp32>} : vector<2x16xf32>, vector<16x256xf32>, vector<2x256xf32> -> vector<2x256xf32>
    %486 = arith.mulf %484, %485 : vector<2x256xf32>
    %c0_195 = arith.constant 0 : index
    %c256_196 = arith.constant 256 : index
    %487 = vector.load %arg1[%c0_195, %c256_196] : memref<2x1024xf32, #tpu.memory_space<vmem>>, vector<2x256xf32>
    %488 = arith.mulf %487, %486 : vector<2x256xf32>
    %c0_197 = arith.constant 0 : index
    %c256_198 = arith.constant 256 : index
    %489 = vector.load %arg4[%c0_197, %c256_198] : memref<2x1024xf32, #tpu.memory_space<vmem>>, vector<2x256xf32>
    tpu.vector_store %arg4[%c0_197, %c256_198], %488 {strides = array<i32>} : memref<2x1024xf32, #tpu.memory_space<vmem>>, vector<2x256xf32>,
    %490 = vector.extract_strided_slice %190 {offsets = [0, 64], sizes = [2, 16], strides = [1, 1]} : vector<2x128xf32> to vector<2x16xf32>
    %491 = vector.extract_strided_slice %190 {offsets = [0, 80], sizes = [2, 16], strides = [1, 1]} : vector<2x128xf32> to vector<2x16xf32>
    %492 = vector.extract_strided_slice %467 {offsets = [0, 2], sizes = [2, 1], strides = [1, 1]} : vector<2x4xf32> to vector<2x1xf32>
    %493 = vector.broadcast %492 : vector<2x1xf32> to vector<2x16xf32>
    %494 = arith.mulf %491, %493 : vector<2x16xf32>
    %cst_199 = arith.constant dense<0.000000e+00> : vector<2x256xf32>
    %495 = tpu.matmul %490, %1, %cst_199 {dimension_numbers = #tpu.dot_dimension_numbers<[1], [0], [0], [1], [0, 0, 1, 1], [], []>, precision = #tpu.contract_precision<fp32>} : vector<2x16xf32>, vector<16x256xf32>, vector<2x256xf32> -> vector<2x256xf32>
    %cst_200 = arith.constant dense<0.000000e+00> : vector<2x256xf32>
    %496 = tpu.matmul %494, %2, %cst_200 {dimension_numbers = #tpu.dot_dimension_numbers<[1], [0], [0], [1], [0, 0, 1, 1], [], []>, precision = #tpu.contract_precision<fp32>} : vector<2x16xf32>, vector<16x256xf32>, vector<2x256xf32> -> vector<2x256xf32>
    %497 = arith.mulf %495, %496 : vector<2x256xf32>
    %c0_201 = arith.constant 0 : index
    %c512_202 = arith.constant 512 : index
    %498 = vector.load %arg1[%c0_201, %c512_202] : memref<2x1024xf32, #tpu.memory_space<vmem>>, vector<2x256xf32>
    %499 = arith.mulf %498, %497 : vector<2x256xf32>
    %c0_203 = arith.constant 0 : index
    %c512_204 = arith.constant 512 : index
    %500 = vector.load %arg4[%c0_203, %c512_204] : memref<2x1024xf32, #tpu.memory_space<vmem>>, vector<2x256xf32>
    tpu.vector_store %arg4[%c0_203, %c512_204], %499 {strides = array<i32>} : memref<2x1024xf32, #tpu.memory_space<vmem>>, vector<2x256xf32>,
    %501 = vector.extract_strided_slice %190 {offsets = [0, 96], sizes = [2, 16], strides = [1, 1]} : vector<2x128xf32> to vector<2x16xf32>
    %502 = vector.extract_strided_slice %190 {offsets = [0, 112], sizes = [2, 16], strides = [1, 1]} : vector<2x128xf32> to vector<2x16xf32>
    %503 = vector.extract_strided_slice %467 {offsets = [0, 3], sizes = [2, 1], strides = [1, 1]} : vector<2x4xf32> to vector<2x1xf32>
    %504 = vector.broadcast %503 : vector<2x1xf32> to vector<2x16xf32>
    %505 = arith.mulf %502, %504 : vector<2x16xf32>
    %cst_205 = arith.constant dense<0.000000e+00> : vector<2x256xf32>
    %506 = tpu.matmul %501, %1, %cst_205 {dimension_numbers = #tpu.dot_dimension_numbers<[1], [0], [0], [1], [0, 0, 1, 1], [], []>, precision = #tpu.contract_precision<fp32>} : vector<2x16xf32>, vector<16x256xf32>, vector<2x256xf32> -> vector<2x256xf32>
    %cst_206 = arith.constant dense<0.000000e+00> : vector<2x256xf32>
    %507 = tpu.matmul %505, %2, %cst_206 {dimension_numbers = #tpu.dot_dimension_numbers<[1], [0], [0], [1], [0, 0, 1, 1], [], []>, precision = #tpu.contract_precision<fp32>} : vector<2x16xf32>, vector<16x256xf32>, vector<2x256xf32> -> vector<2x256xf32>
    %508 = arith.mulf %506, %507 : vector<2x256xf32>
    %c0_207 = arith.constant 0 : index
    %c768_208 = arith.constant 768 : index
    %509 = vector.load %arg1[%c0_207, %c768_208] : memref<2x1024xf32, #tpu.memory_space<vmem>>, vector<2x256xf32>
    %510 = arith.mulf %509, %508 : vector<2x256xf32>
    %c0_209 = arith.constant 0 : index
    %c768_210 = arith.constant 768 : index
    %511 = vector.load %arg4[%c0_209, %c768_210] : memref<2x1024xf32, #tpu.memory_space<vmem>>, vector<2x256xf32>
    tpu.vector_store %arg4[%c0_209, %c768_210], %510 {strides = array<i32>} : memref<2x1024xf32, #tpu.memory_space<vmem>>, vector<2x256xf32>,
    return
  }
  func.func @transform_0(%arg0: i32) -> (i32, i32) {
    %c0_i32 = arith.constant 0 : i32
    %c0_i32_0 = arith.constant 0 : i32
    return %arg0, %c0_i32 : i32, i32
  }
  func.func @transform_1(%arg0: i32) -> (i32, i32) {
    %c0_i32 = arith.constant 0 : i32
    %c0_i32_0 = arith.constant 0 : i32
    %c0_i32_1 = arith.constant 0 : i32
    return %c0_i32, %c0_i32_0 : i32, i32
  }
  func.func @transform_2(%arg0: i32) -> (i32, i32) {
    %c0_i32 = arith.constant 0 : i32
    %c0_i32_0 = arith.constant 0 : i32
    %c0_i32_1 = arith.constant 0 : i32
    return %c0_i32, %c0_i32_0 : i32, i32
  }
  func.func @transform_3(%arg0: i32) -> (i32, i32) {
    %c0_i32 = arith.constant 0 : i32
    %c0_i32_0 = arith.constant 0 : i32
    return %arg0, %c0_i32 : i32, i32
  }
}

</mosaic_0001>

<llo_original>
// kernel: _taja_call.1
$region0: #{_taja_call.1}
  #allocation0 [shape = 'u32[]', space=smem, size = 0x4, offset = 0x4, fixed_abs, tag = 'smem constant byte address 0x4 - core index']
  #allocation1 [shape = 'u32[144,128]{1,0:T(1,128)}', space=vmem, size = 0x12000, scoped, tag = 'internal scratch']
  %s0 = inlined_call_operand.hbm [shape: f32[2,1024], index: 0, kind: input, shape index: {}]
  %s1 = inlined_call_operand.hbm [shape: f32[360,256], index: 1, kind: input, shape index: {}]
  %s2 = inlined_call_operand.hbm [shape: bf16[768,256], index: 2, kind: input, shape index: {}]
  %s3 = inlined_call_operand.hbm [shape: f32[2,1024], index: 3, kind: output, shape index: {}]
  %s4 = sld [smem:[#allocation0]]
  $region34: #{_taja_call.1} parent=0
    _
  %s6 = ssub.s32 1, %s4
  %s7 = scalar_select 0, %s6, %s4
  $region1: #{_taja_call.1} parent=0
    #allocation2 [shape = 'u8[8192]{0}', space=vmem, size = 0x2000, scoped, tag = 'input window, operand 0, single buffered']
    #allocation3 [shape = 's32[1]{0}', space=sflag, size = 0x4, scoped, tag = 'scoped memory for _taja_call.1']
    #allocation4 [shape = 's32[1]{0}', space=sflag, size = 0x4, scoped, tag = 'scoped memory for _taja_call.1']
    #allocation5 [shape = 'u8[368640]{0}', space=vmem, size = 0x5a000, scoped, tag = 'input window, operand 1, single buffered']
    #allocation6 [shape = 's32[1]{0}', space=sflag, size = 0x4, scoped, tag = 'scoped memory for _taja_call.1']
    #allocation7 [shape = 'u8[393216]{0}', space=vmem, size = 0x60000, scoped, tag = 'input window, operand 2, single buffered']
    #allocation8 [shape = 'u8[8192]{0}', space=vmem, size = 0x2000, scoped, tag = 'output window, operand 0, single buffered']
    %8 = vsyncpa [#allocation3], 0
    %9 = vsyncpa [#allocation6], 0
    %10 = vsyncpa [#allocation4], 0
    // Predicated region
    $region2: #{_taja_call.1} parent=1 // pred_check
      _
    $region3: #{_taja_call.1} parent=1 // pred_check_branch
      %12 = sbr.rel (0) target = $region5
    $region4: #{_taja_call.1} parent=1 // pred_region
      %s14 = ssub.s32 256, 256
      %15 = vsyncadd [#allocation3], %s14
      %s17 = sshll.u32 [#allocation2], 4
      %s18 = int_to_ptr.vmem [resolvable:$true] %s17
      %20 = dma.hbm_to_vmem [thread:$0]  %s0, 256, %s18, [#allocation3]
    $region5: #{_taja_call.1} parent=1 // pred_fallthru
      _
    // Predicated region
    $region6: #{_taja_call.1} parent=1 // pred_check
      _
    $region7: #{_taja_call.1} parent=1 // pred_check_branch
      %22 = sbr.rel (0) target = $region9
    $region8: #{_taja_call.1} parent=1 // pred_region
      %s24 = ssub.s32 11520, 11520
      %25 = vsyncadd [#allocation6], %s24
      %s26 = sshll.u32 [#allocation5], 4
      %s27 = int_to_ptr.vmem [resolvable:$true] %s26
      %32 = dma.hbm_to_vmem [thread:$0]  %s1, 11520, %s27, [#allocation6], 256, 256, 16
    $region9: #{_taja_call.1} parent=1 // pred_fallthru
      _
    // Predicated region
    $region10: #{_taja_call.1} parent=1 // pred_check
      _
    $region11: #{_taja_call.1} parent=1 // pred_check_branch
      %34 = sbr.rel (0) target = $region13
    $region12: #{_taja_call.1} parent=1 // pred_region
      %s36 = ssub.s32 12288, 12288
      %37 = vsyncadd [#allocation6], %s36
      %s38 = sshll.u32 [#allocation7], 4
      %s39 = int_to_ptr.vmem [resolvable:$true] %s38
      %44 = dma.hbm_to_vmem [thread:$0]  %s2, 12288, %s39, [#allocation6], 128, 128, 8
    $region13: #{_taja_call.1} parent=1 // pred_fallthru
      _
    // Predicated region
    $region14: #{_taja_call.1} parent=1 // pred_check
      _
    $region15: #{_taja_call.1} parent=1 // pred_check_branch
      %46 = sbr.rel (0) target = $region17
    $region16: #{_taja_call.1} parent=1 // pred_region
      %47 = dma.done [#allocation3], 256
    $region17: #{_taja_call.1} parent=1 // pred_fallthru
      _
    // Predicated region
    $region18: #{_taja_call.1} parent=1 // pred_check
      _
    $region19: #{_taja_call.1} parent=1 // pred_check_branch
      %49 = sbr.rel (0) target = $region21
    $region20: #{_taja_call.1} parent=1 // pred_region
      %50 = dma.done [#allocation6], 11520
    $region21: #{_taja_call.1} parent=1 // pred_fallthru
      _
    // Predicated region
    $region22: #{_taja_call.1} parent=1 // pred_check
      _
    $region23: #{_taja_call.1} parent=1 // pred_check_branch
      %52 = sbr.rel (0) target = $region25
    $region24: #{_taja_call.1} parent=1 // pred_region
      %53 = dma.done [#allocation6], 12288
    $region25: #{_taja_call.1} parent=1 // pred_fallthru
      _
    %v55 = vld [vmem:[#allocation5] sm:$0xff]
    %v56 = vld [vmem:[#allocation5 + $0x10] sm:$0xff]
    %v57 = vld [vmem:[#allocation5 + $0x20] sm:$0xff]
    %v58 = vld [vmem:[#allocation5 + $0x30] sm:$0xff]
    %v59 = vld [vmem:[#allocation5 + $0x40] sm:$0xff]
    %v60 = vld [vmem:[#allocation5 + $0x50] sm:$0xff]
    %v61 = vld [vmem:[#allocation5 + $0x60] sm:$0xff]
    %v62 = vld [vmem:[#allocation5 + $0x70] sm:$0xff]
    %v63 = vld [vmem:[#allocation5 + $0x80] sm:$0xff]
    %v64 = vld [vmem:[#allocation5 + $0x90] sm:$0xff]
    %v65 = vld [vmem:[#allocation5 + $0xa0] sm:$0xff]
    %v66 = vld [vmem:[#allocation5 + $0xb0] sm:$0xff]
    %v67 = vld [vmem:[#allocation5 + $0xc0] sm:$0xff]
    %v68 = vld [vmem:[#allocation5 + $0xd0] sm:$0xff]
    %v69 = vld [vmem:[#allocation5 + $0xe0] sm:$0xff]
    %v70 = vld [vmem:[#allocation5 + $0xf0] sm:$0xff]
    %v71 = vld [vmem:[#allocation5 + $0x100] sm:$0xff]
    %v72 = vld [vmem:[#allocation5 + $0x110] sm:$0xff]
    %v73 = vld [vmem:[#allocation5 + $0x120] sm:$0xff]
    %v74 = vld [vmem:[#allocation5 + $0x130] sm:$0xff]
    %v75 = vld [vmem:[#allocation5 + $0x140] sm:$0xff]
    %v76 = vld [vmem:[#allocation5 + $0x150] sm:$0xff]
    %v77 = vld [vmem:[#allocation5 + $0x160] sm:$0xff]
    %v78 = vld [vmem:[#allocation5 + $0x170] sm:$0xff]
    %v79 = vld [vmem:[#allocation5 + $0x180] sm:$0xff]
    %v80 = vld [vmem:[#allocation5 + $0x190] sm:$0xff]
    %v81 = vld [vmem:[#allocation5 + $0x1a0] sm:$0xff]
    %v82 = vld [vmem:[#allocation5 + $0x1b0] sm:$0xff]
    %v83 = vld [vmem:[#allocation5 + $0x1c0] sm:$0xff]
    %v84 = vld [vmem:[#allocation5 + $0x1d0] sm:$0xff]
    %v85 = vld [vmem:[#allocation5 + $0x1e0] sm:$0xff]
    %v86 = vld [vmem:[#allocation5 + $0x1f0] sm:$0xff]
    %v87 = vld [vmem:[#allocation5 + $0x200] sm:$0xff]
    %v88 = vld [vmem:[#allocation5 + $0x208] sm:$0xff]
    %v89 = vld [vmem:[#allocation5 + $0x210] sm:$0xff]
    %v90 = vld [vmem:[#allocation5 + $0x218] sm:$0xff]
    %v91 = vld [vmem:[#allocation5 + $0x220] sm:$0xff]
    %v92 = vld [vmem:[#allocation5 + $0x228] sm:$0xff]
    %v93 = vld [vmem:[#allocation5 + $0x230] sm:$0xff]
    %v94 = vld [vmem:[#allocation5 + $0x238] sm:$0xff]
    %v95 = vld [vmem:[#allocation2] sm:$0xf]
    %v98 = vunpack.c.l.s4 1983009808
    %v99 = vunpack.c.0.s8 %v98
    %v100 = vlaneseq
    %v101 = vshrl.u32 %v100, 7
    %v102 = vsub.s32 %v99, %v101
    %v103 = vrot.slane %v95, %v102
    %v104 = vcombine.high %v103, %v103
    %107 = vmatprep.subr.mxu0 0.0
    %v108 = vand.u32 %v55, 4294901760
    %109 = vmatpush1.msra.mxu0 %v108
    %110 = vmatprep.subr.mxu0 0.0
    %v111 = vand.u32 %v56, 4294901760
    %112 = vmatpush1.msra.mxu0 %v111
    %113 = vmatprep.subr.mxu0 0.0
    %v114 = vand.u32 %v57, 4294901760
    %115 = vmatpush1.msra.mxu0 %v114
    %116 = vmatprep.subr.mxu0 0.0
    %v117 = vand.u32 %v58, 4294901760
    %118 = vmatpush1.msra.mxu0 %v117
    %119 = vmatprep.subr.mxu0 0.0
    %v120 = vand.u32 %v59, 4294901760
    %121 = vmatpush1.msra.mxu0 %v120
    %122 = vmatprep.subr.mxu0 0.0
    %v123 = vand.u32 %v60, 4294901760
    %124 = vmatpush1.msra.mxu0 %v123
    %125 = vmatprep.subr.mxu0 0.0
    %v126 = vand.u32 %v61, 4294901760
    %127 = vmatpush1.msra.mxu0 %v126
    %128 = vmatprep.subr.mxu0 0.0
    %v129 = vand.u32 %v62, 4294901760
    %130 = vmatpush1.msra.mxu0 %v129
    %131 = vmatprep.subr.mxu0 0.0
    %v132 = vand.u32 %v63, 4294901760
    %133 = vmatpush1.msra.mxu0 %v132
    %134 = vmatprep.subr.mxu0 0.0
    %v135 = vand.u32 %v64, 4294901760
    %136 = vmatpush1.msra.mxu0 %v135
    %137 = vmatprep.subr.mxu0 0.0
    %v138 = vand.u32 %v65, 4294901760
    %139 = vmatpush1.msra.mxu0 %v138
    %140 = vmatprep.subr.mxu0 0.0
    %v141 = vand.u32 %v66, 4294901760
    %142 = vmatpush1.msra.mxu0 %v141
    %143 = vmatprep.subr.mxu0 0.0
    %v144 = vand.u32 %v67, 4294901760
    %145 = vmatpush1.msra.mxu0 %v144
    %146 = vmatprep.subr.mxu0 0.0
    %v147 = vand.u32 %v68, 4294901760
    %148 = vmatpush1.msra.mxu0 %v147
    %149 = vmatprep.subr.mxu0 0.0
    %v150 = vand.u32 %v69, 4294901760
    %151 = vmatpush1.msra.mxu0 %v150
    %152 = vmatprep.subr.mxu0 0.0
    %v153 = vand.u32 %v70, 4294901760
    %154 = vmatpush1.msra.mxu0 %v153
    %155 = vmatprep.subr.mxu0 0.0
    %v156 = vand.u32 %v71, 4294901760
    %157 = vmatpush1.msra.mxu0 %v156
    %158 = vmatprep.subr.mxu0 0.0
    %v159 = vand.u32 %v72, 4294901760
    %160 = vmatpush1.msra.mxu0 %v159
    %161 = vmatprep.subr.mxu0 0.0
    %v162 = vand.u32 %v73, 4294901760
    %163 = vmatpush1.msra.mxu0 %v162
    %164 = vmatprep.subr.mxu0 0.0
    %v165 = vand.u32 %v74, 4294901760
    %166 = vmatpush1.msra.mxu0 %v165
    %167 = vmatprep.subr.mxu0 0.0
    %v168 = vand.u32 %v75, 4294901760
    %169 = vmatpush1.msra.mxu0 %v168
    %170 = vmatprep.subr.mxu0 0.0
    %v171 = vand.u32 %v76, 4294901760
    %172 = vmatpush1.msra.mxu0 %v171
    %173 = vmatprep.subr.mxu0 0.0
    %v174 = vand.u32 %v77, 4294901760
    %175 = vmatpush1.msra.mxu0 %v174
    %176 = vmatprep.subr.mxu0 0.0
    %v177 = vand.u32 %v78, 4294901760
    %178 = vmatpush1.msra.mxu0 %v177
    %179 = vmatprep.subr.mxu0 0.0
    %v180 = vand.u32 %v79, 4294901760
    %181 = vmatpush1.msra.mxu0 %v180
    %182 = vmatprep.subr.mxu0 0.0
    %v183 = vand.u32 %v80, 4294901760
    %184 = vmatpush1.msra.mxu0 %v183
    %185 = vmatprep.subr.mxu0 0.0
    %v186 = vand.u32 %v81, 4294901760
    %187 = vmatpush1.msra.mxu0 %v186
    %188 = vmatprep.subr.mxu0 0.0
    %v189 = vand.u32 %v82, 4294901760
    %190 = vmatpush1.msra.mxu0 %v189
    %191 = vmatprep.subr.mxu0 0.0
    %v192 = vand.u32 %v83, 4294901760
    %193 = vmatpush1.msra.mxu0 %v192
    %194 = vmatprep.subr.mxu0 0.0
    %v195 = vand.u32 %v84, 4294901760
    %196 = vmatpush1.msra.mxu0 %v195
    %197 = vmatprep.subr.mxu0 0.0
    %v198 = vand.u32 %v85, 4294901760
    %199 = vmatpush1.msra.mxu0 %v198
    %200 = vmatprep.subr.mxu0 0.0
    %v201 = vand.u32 %v86, 4294901760
    %202 = vmatpush1.msra.mxu0 %v201
    %v203 = vand.u32 %v104, 4294901760
    %v204 = vsub.f32 %v104, %v203
    %v205 = vand.u32 %v204, 4294901760
    %v206 = vsub.f32 %v204, %v205
    %v207 = vand.u32 %v206, 4294901760
    %208 = vmatprep.mubr.f32.mxu0 %v207
    %v209 = vand.u32 %v103, 4294901760
    %v210 = vsub.f32 %v103, %v209
    %v211 = vand.u32 %v210, 4294901760
    %v212 = vsub.f32 %v210, %v211
    %v213 = vand.u32 %v212, 4294901760
    %214 = vmatmul.mubr.f32.gmra.mrb[0].mxu0 %v213
    %v215 = vpop.f32.mrb[0].mxu0
    %v216 = vadd.f32 0.0, %v215
    %v217 = vpop.f32.mrb[0].mxu0
    %218 = vdwg.mxu0
    %219 = vmatprep.subr.mxu0 0.0
    %v220 = vand.u32 %v55, 4294901760
    %v221 = vsub.f32 %v55, %v220
    %v222 = vand.u32 %v221, 4294901760
    %v223 = vsub.f32 %v221, %v222
    %v224 = vand.u32 %v223, 4294901760
    %225 = vmatpush1.msra.mxu0 %v224
    %226 = vmatprep.subr.mxu0 0.0
    %v227 = vand.u32 %v56, 4294901760
    %v228 = vsub.f32 %v56, %v227
    %v229 = vand.u32 %v228, 4294901760
    %v230 = vsub.f32 %v228, %v229
    %v231 = vand.u32 %v230, 4294901760
    %232 = vmatpush1.msra.mxu0 %v231
    %233 = vmatprep.subr.mxu0 0.0
    %v234 = vand.u32 %v57, 4294901760
    %v235 = vsub.f32 %v57, %v234
    %v236 = vand.u32 %v235, 4294901760
    %v237 = vsub.f32 %v235, %v236
    %v238 = vand.u32 %v237, 4294901760
    %239 = vmatpush1.msra.mxu0 %v238
    %240 = vmatprep.subr.mxu0 0.0
    %v241 = vand.u32 %v58, 4294901760
    %v242 = vsub.f32 %v58, %v241
    %v243 = vand.u32 %v242, 4294901760
    %v244 = vsub.f32 %v242, %v243
    %v245 = vand.u32 %v244, 4294901760
    %246 = vmatpush1.msra.mxu0 %v245
    %247 = vmatprep.subr.mxu0 0.0
    %v248 = vand.u32 %v59, 4294901760
    %v249 = vsub.f32 %v59, %v248
    %v250 = vand.u32 %v249, 4294901760
    %v251 = vsub.f32 %v249, %v250
    %v252 = vand.u32 %v251, 4294901760
    %253 = vmatpush1.msra.mxu0 %v252
    %254 = vmatprep.subr.mxu0 0.0
    %v255 = vand.u32 %v60, 4294901760
    %v256 = vsub.f32 %v60, %v255
    %v257 = vand.u32 %v256, 4294901760
    %v258 = vsub.f32 %v256, %v257
    %v259 = vand.u32 %v258, 4294901760
    %260 = vmatpush1.msra.mxu0 %v259
    %261 = vmatprep.subr.mxu0 0.0
    %v262 = vand.u32 %v61, 4294901760
    %v263 = vsub.f32 %v61, %v262
    %v264 = vand.u32 %v263, 4294901760
    %v265 = vsub.f32 %v263, %v264
    %v266 = vand.u32 %v265, 4294901760
    %267 = vmatpush1.msra.mxu0 %v266
    %268 = vmatprep.subr.mxu0 0.0
    %v269 = vand.u32 %v62, 4294901760
    %v270 = vsub.f32 %v62, %v269
    %v271 = vand.u32 %v270, 4294901760
    %v272 = vsub.f32 %v270, %v271
    %v273 = vand.u32 %v272, 4294901760
    %274 = vmatpush1.msra.mxu0 %v273
    %275 = vmatprep.subr.mxu0 0.0
    %v276 = vand.u32 %v63, 4294901760
    %v277 = vsub.f32 %v63, %v276
    %v278 = vand.u32 %v277, 4294901760
    %v279 = vsub.f32 %v277, %v278
    %v280 = vand.u32 %v279, 4294901760
    %281 = vmatpush1.msra.mxu0 %v280
    %282 = vmatprep.subr.mxu0 0.0
    %v283 = vand.u32 %v64, 4294901760
    %v284 = vsub.f32 %v64, %v283
    %v285 = vand.u32 %v284, 4294901760
    %v286 = vsub.f32 %v284, %v285
    %v287 = vand.u32 %v286, 4294901760
    %288 = vmatpush1.msra.mxu0 %v287
    %289 = vmatprep.subr.mxu0 0.0
    %v290 = vand.u32 %v65, 4294901760
    %v291 = vsub.f32 %v65, %v290
    %v292 = vand.u32 %v291, 4294901760
    %v293 = vsub.f32 %v291, %v292
    %v294 = vand.u32 %v293, 4294901760
    %295 = vmatpush1.msra.mxu0 %v294
    %296 = vmatprep.subr.mxu0 0.0
    %v297 = vand.u32 %v66, 4294901760
    %v298 = vsub.f32 %v66, %v297
    %v299 = vand.u32 %v298, 4294901760
    %v300 = vsub.f32 %v298, %v299
    %v301 = vand.u32 %v300, 4294901760
    %302 = vmatpush1.msra.mxu0 %v301
    %303 = vmatprep.subr.mxu0 0.0
    %v304 = vand.u32 %v67, 4294901760
    %v305 = vsub.f32 %v67, %v304
    %v306 = vand.u32 %v305, 4294901760
    %v307 = vsub.f32 %v305, %v306
    %v308 = vand.u32 %v307, 4294901760
    %309 = vmatpush1.msra.mxu0 %v308
    %310 = vmatprep.subr.mxu0 0.0
    %v311 = vand.u32 %v68, 4294901760
    %v312 = vsub.f32 %v68, %v311
    %v313 = vand.u32 %v312, 4294901760
    %v314 = vsub.f32 %v312, %v313
    %v315 = vand.u32 %v314, 4294901760
    %316 = vmatpush1.msra.mxu0 %v315
    %317 = vmatprep.subr.mxu0 0.0
    %v318 = vand.u32 %v69, 4294901760
    %v319 = vsub.f32 %v69, %v318
    %v320 = vand.u32 %v319, 4294901760
    %v321 = vsub.f32 %v319, %v320
    %v322 = vand.u32 %v321, 4294901760
    %323 = vmatpush1.msra.mxu0 %v322
    %324 = vmatprep.subr.mxu0 0.0
    %v325 = vand.u32 %v70, 4294901760
    %v326 = vsub.f32 %v70, %v325
    %v327 = vand.u32 %v326, 4294901760
    %v328 = vsub.f32 %v326, %v327
    %v329 = vand.u32 %v328, 4294901760
    %330 = vmatpush1.msra.mxu0 %v329
    %331 = vmatprep.subr.mxu0 0.0
    %v332 = vand.u32 %v71, 4294901760
    %v333 = vsub.f32 %v71, %v332
    %v334 = vand.u32 %v333, 4294901760
    %v335 = vsub.f32 %v333, %v334
    %v336 = vand.u32 %v335, 4294901760
    %337 = vmatpush1.msra.mxu0 %v336
    %338 = vmatprep.subr.mxu0 0.0
    %v339 = vand.u32 %v72, 4294901760
    %v340 = vsub.f32 %v72, %v339
    %v341 = vand.u32 %v340, 4294901760
    %v342 = vsub.f32 %v340, %v341
    %v343 = vand.u32 %v342, 4294901760
    %344 = vmatpush1.msra.mxu0 %v343
    %345 = vmatprep.subr.mxu0 0.0
    %v346 = vand.u32 %v73, 4294901760
    %v347 = vsub.f32 %v73, %v346
    %v348 = vand.u32 %v347, 4294901760
    %v349 = vsub.f32 %v347, %v348
    %v350 = vand.u32 %v349, 4294901760
    %351 = vmatpush1.msra.mxu0 %v350
    %352 = vmatprep.subr.mxu0 0.0
    %v353 = vand.u32 %v74, 4294901760
    %v354 = vsub.f32 %v74, %v353
    %v355 = vand.u32 %v354, 4294901760
    %v356 = vsub.f32 %v354, %v355
    %v357 = vand.u32 %v356, 4294901760
    %358 = vmatpush1.msra.mxu0 %v357
    %359 = vmatprep.subr.mxu0 0.0
    %v360 = vand.u32 %v75, 4294901760
    %v361 = vsub.f32 %v75, %v360
    %v362 = vand.u32 %v361, 4294901760
    %v363 = vsub.f32 %v361, %v362
    %v364 = vand.u32 %v363, 4294901760
    %365 = vmatpush1.msra.mxu0 %v364
    %366 = vmatprep.subr.mxu0 0.0
    %v367 = vand.u32 %v76, 4294901760
    %v368 = vsub.f32 %v76, %v367
    %v369 = vand.u32 %v368, 4294901760
    %v370 = vsub.f32 %v368, %v369
    %v371 = vand.u32 %v370, 4294901760
    %372 = vmatpush1.msra.mxu0 %v371
    %373 = vmatprep.subr.mxu0 0.0
    %v374 = vand.u32 %v77, 4294901760
    %v375 = vsub.f32 %v77, %v374
    %v376 = vand.u32 %v375, 4294901760
    %v377 = vsub.f32 %v375, %v376
    %v378 = vand.u32 %v377, 4294901760
    %379 = vmatpush1.msra.mxu0 %v378
    %380 = vmatprep.subr.mxu0 0.0
    %v381 = vand.u32 %v78, 4294901760
    %v382 = vsub.f32 %v78, %v381
    %v383 = vand.u32 %v382, 4294901760
    %v384 = vsub.f32 %v382, %v383
    %v385 = vand.u32 %v384, 4294901760
    %386 = vmatpush1.msra.mxu0 %v385
    %387 = vmatprep.subr.mxu0 0.0
    %v388 = vand.u32 %v79, 4294901760
    %v389 = vsub.f32 %v79, %v388
    %v390 = vand.u32 %v389, 4294901760
    %v391 = vsub.f32 %v389, %v390
    %v392 = vand.u32 %v391, 4294901760
    %393 = vmatpush1.msra.mxu0 %v392
    %394 = vmatprep.subr.mxu0 0.0
    %v395 = vand.u32 %v80, 4294901760
    %v396 = vsub.f32 %v80, %v395
    %v397 = vand.u32 %v396, 4294901760
    %v398 = vsub.f32 %v396, %v397
    %v399 = vand.u32 %v398, 4294901760
    %400 = vmatpush1.msra.mxu0 %v399
    %401 = vmatprep.subr.mxu0 0.0
    %v402 = vand.u32 %v81, 4294901760
    %v403 = vsub.f32 %v81, %v402
    %v404 = vand.u32 %v403, 4294901760
    %v405 = vsub.f32 %v403, %v404
    %v406 = vand.u32 %v405, 4294901760
    %407 = vmatpush1.msra.mxu0 %v406
    %408 = vmatprep.subr.mxu0 0.0
    %v409 = vand.u32 %v82, 4294901760
    %v410 = vsub.f32 %v82, %v409
    %v411 = vand.u32 %v410, 4294901760
    %v412 = vsub.f32 %v410, %v411
    %v413 = vand.u32 %v412, 4294901760
    %414 = vmatpush1.msra.mxu0 %v413
    %415 = vmatprep.subr.mxu0 0.0
    %v416 = vand.u32 %v83, 4294901760
    %v417 = vsub.f32 %v83, %v416
    %v418 = vand.u32 %v417, 4294901760
    %v419 = vsub.f32 %v417, %v418
    %v420 = vand.u32 %v419, 4294901760
    %421 = vmatpush1.msra.mxu0 %v420
    %422 = vmatprep.subr.mxu0 0.0
    %v423 = vand.u32 %v84, 4294901760
    %v424 = vsub.f32 %v84, %v423
    %v425 = vand.u32 %v424, 4294901760
    %v426 = vsub.f32 %v424, %v425
    %v427 = vand.u32 %v426, 4294901760
    %428 = vmatpush1.msra.mxu0 %v427
    %429 = vmatprep.subr.mxu0 0.0
    %v430 = vand.u32 %v85, 4294901760
    %v431 = vsub.f32 %v85, %v430
    %v432 = vand.u32 %v431, 4294901760
    %v433 = vsub.f32 %v431, %v432
    %v434 = vand.u32 %v433, 4294901760
    %435 = vmatpush1.msra.mxu0 %v434
    %436 = vmatprep.subr.mxu0 0.0
    %v437 = vand.u32 %v86, 4294901760
    %v438 = vsub.f32 %v86, %v437
    %v439 = vand.u32 %v438, 4294901760
    %v440 = vsub.f32 %v438, %v439
    %v441 = vand.u32 %v440, 4294901760
    %442 = vmatpush1.msra.mxu0 %v441
    %v443 = vand.u32 %v104, 4294901760
    %444 = vmatprep.mubr.f32.mxu0 %v443
    %v445 = vand.u32 %v103, 4294901760
    %446 = vmatmul.mubr.f32.gmra.mrb[0].mxu0 %v445
    %v447 = vpop.f32.mrb[0].mxu0
    %v448 = vadd.f32 %v216, %v447
    %v449 = vpop.f32.mrb[0].mxu0
    %450 = vdwg.mxu0
    %451 = vmatprep.subr.mxu0 0.0
    %v452 = vand.u32 %v55, 4294901760
    %v453 = vsub.f32 %v55, %v452
    %454 = vmatpush1.msra.mxu0 %v453
    %455 = vmatprep.subr.mxu0 0.0
    %v456 = vand.u32 %v56, 4294901760
    %v457 = vsub.f32 %v56, %v456
    %458 = vmatpush1.msra.mxu0 %v457
    %459 = vmatprep.subr.mxu0 0.0
    %v460 = vand.u32 %v57, 4294901760
    %v461 = vsub.f32 %v57, %v460
    %462 = vmatpush1.msra.mxu0 %v461
    %463 = vmatprep.subr.mxu0 0.0
    %v464 = vand.u32 %v58, 4294901760
    %v465 = vsub.f32 %v58, %v464
    %466 = vmatpush1.msra.mxu0 %v465
    %467 = vmatprep.subr.mxu0 0.0
    %v468 = vand.u32 %v59, 4294901760
    %v469 = vsub.f32 %v59, %v468
    %470 = vmatpush1.msra.mxu0 %v469
    %471 = vmatprep.subr.mxu0 0.0
    %v472 = vand.u32 %v60, 4294901760
    %v473 = vsub.f32 %v60, %v472
    %474 = vmatpush1.msra.mxu0 %v473
    %475 = vmatprep.subr.mxu0 0.0
    %v476 = vand.u32 %v61, 4294901760
    %v477 = vsub.f32 %v61, %v476
    %478 = vmatpush1.msra.mxu0 %v477
    %479 = vmatprep.subr.mxu0 0.0
    %v480 = vand.u32 %v62, 4294901760
    %v481 = vsub.f32 %v62, %v480
    %482 = vmatpush1.msra.mxu0 %v481
    %483 = vmatprep.subr.mxu0 0.0
    %v484 = vand.u32 %v63, 4294901760
    %v485 = vsub.f32 %v63, %v484
    %486 = vmatpush1.msra.mxu0 %v485
    %487 = vmatprep.subr.mxu0 0.0
    %v488 = vand.u32 %v64, 4294901760
    %v489 = vsub.f32 %v64, %v488
    %490 = vmatpush1.msra.mxu0 %v489
    %491 = vmatprep.subr.mxu0 0.0
    %v492 = vand.u32 %v65, 4294901760
    %v493 = vsub.f32 %v65, %v492
    %494 = vmatpush1.msra.mxu0 %v493
    %495 = vmatprep.subr.mxu0 0.0
    %v496 = vand.u32 %v66, 4294901760
    %v497 = vsub.f32 %v66, %v496
    %498 = vmatpush1.msra.mxu0 %v497
    %499 = vmatprep.subr.mxu0 0.0
    %v500 = vand.u32 %v67, 4294901760
    %v501 = vsub.f32 %v67, %v500
    %502 = vmatpush1.msra.mxu0 %v501
    %503 = vmatprep.subr.mxu0 0.0
    %v504 = vand.u32 %v68, 4294901760
    %v505 = vsub.f32 %v68, %v504
    %506 = vmatpush1.msra.mxu0 %v505
    %507 = vmatprep.subr.mxu0 0.0
    %v508 = vand.u32 %v69, 4294901760
    %v509 = vsub.f32 %v69, %v508
    %510 = vmatpush1.msra.mxu0 %v509
    %511 = vmatprep.subr.mxu0 0.0
    %v512 = vand.u32 %v70, 4294901760
    %v513 = vsub.f32 %v70, %v512
    %514 = vmatpush1.msra.mxu0 %v513
    %515 = vmatprep.subr.mxu0 0.0
    %v516 = vand.u32 %v71, 4294901760
    %v517 = vsub.f32 %v71, %v516
    %518 = vmatpush1.msra.mxu0 %v517
    %519 = vmatprep.subr.mxu0 0.0
    %v520 = vand.u32 %v72, 4294901760
    %v521 = vsub.f32 %v72, %v520
    %522 = vmatpush1.msra.mxu0 %v521
    %523 = vmatprep.subr.mxu0 0.0
    %v524 = vand.u32 %v73, 4294901760
    %v525 = vsub.f32 %v73, %v524
    %526 = vmatpush1.msra.mxu0 %v525
    %527 = vmatprep.subr.mxu0 0.0
    %v528 = vand.u32 %v74, 4294901760
    %v529 = vsub.f32 %v74, %v528
    %530 = vmatpush1.msra.mxu0 %v529
    %531 = vmatprep.subr.mxu0 0.0
    %v532 = vand.u32 %v75, 4294901760
    %v533 = vsub.f32 %v75, %v532
    %534 = vmatpush1.msra.mxu0 %v533
    %535 = vmatprep.subr.mxu0 0.0
    %v536 = vand.u32 %v76, 4294901760
    %v537 = vsub.f32 %v76, %v536
    %538 = vmatpush1.msra.mxu0 %v537
    %539 = vmatprep.subr.mxu0 0.0
    %v540 = vand.u32 %v77, 4294901760
    %v541 = vsub.f32 %v77, %v540
    %542 = vmatpush1.msra.mxu0 %v541
    %543 = vmatprep.subr.mxu0 0.0
    %v544 = vand.u32 %v78, 4294901760
    %v545 = vsub.f32 %v78, %v544
    %546 = vmatpush1.msra.mxu0 %v545
    %547 = vmatprep.subr.mxu0 0.0
    %v548 = vand.u32 %v79, 4294901760
    %v549 = vsub.f32 %v79, %v548
    %550 = vmatpush1.msra.mxu0 %v549
    %551 = vmatprep.subr.mxu0 0.0
    %v552 = vand.u32 %v80, 4294901760
    %v553 = vsub.f32 %v80, %v552
    %554 = vmatpush1.msra.mxu0 %v553
    %555 = vmatprep.subr.mxu0 0.0
    %v556 = vand.u32 %v81, 4294901760
    %v557 = vsub.f32 %v81, %v556
    %558 = vmatpush1.msra.mxu0 %v557
    %559 = vmatprep.subr.mxu0 0.0
    %v560 = vand.u32 %v82, 4294901760
    %v561 = vsub.f32 %v82, %v560
    %562 = vmatpush1.msra.mxu0 %v561
    %563 = vmatprep.subr.mxu0 0.0
    %v564 = vand.u32 %v83, 4294901760
    %v565 = vsub.f32 %v83, %v564
    %566 = vmatpush1.msra.mxu0 %v565
    %567 = vmatprep.subr.mxu0 0.0
    %v568 = vand.u32 %v84, 4294901760
    %v569 = vsub.f32 %v84, %v568
    %570 = vmatpush1.msra.mxu0 %v569
    %571 = vmatprep.subr.mxu0 0.0
    %v572 = vand.u32 %v85, 4294901760
    %v573 = vsub.f32 %v85, %v572
    %574 = vmatpush1.msra.mxu0 %v573
    %575 = vmatprep.subr.mxu0 0.0
    %v576 = vand.u32 %v86, 4294901760
    %v577 = vsub.f32 %v86, %v576
    %578 = vmatpush1.msra.mxu0 %v577
    %v579 = vand.u32 %v104, 4294901760
    %v580 = vsub.f32 %v104, %v579
    %581 = vmatprep.mubr.f32.mxu0 %v580
    %v582 = vand.u32 %v103, 4294901760
    %v583 = vsub.f32 %v103, %v582
    %584 = vmatmul.mubr.f32.gmra.mrb[0].mxu0 %v583
    %v585 = vpop.f32.mrb[0].mxu0
    %v586 = vadd.f32 %v448, %v585
    %v587 = vpop.f32.mrb[0].mxu0
    %588 = vdwg.mxu0
    %589 = vmatprep.subr.mxu0 0.0
    %v590 = vand.u32 %v55, 4294901760
    %591 = vmatpush1.msra.mxu0 %v590
    %592 = vmatprep.subr.mxu0 0.0
    %v593 = vand.u32 %v56, 4294901760
    %594 = vmatpush1.msra.mxu0 %v593
    %595 = vmatprep.subr.mxu0 0.0
    %v596 = vand.u32 %v57, 4294901760
    %597 = vmatpush1.msra.mxu0 %v596
    %598 = vmatprep.subr.mxu0 0.0
    %v599 = vand.u32 %v58, 4294901760
    %600 = vmatpush1.msra.mxu0 %v599
    %601 = vmatprep.subr.mxu0 0.0
    %v602 = vand.u32 %v59, 4294901760
    %603 = vmatpush1.msra.mxu0 %v602
    %604 = vmatprep.subr.mxu0 0.0
    %v605 = vand.u32 %v60, 4294901760
    %606 = vmatpush1.msra.mxu0 %v605
    %607 = vmatprep.subr.mxu0 0.0
    %v608 = vand.u32 %v61, 4294901760
    %609 = vmatpush1.msra.mxu0 %v608
    %610 = vmatprep.subr.mxu0 0.0
    %v611 = vand.u32 %v62, 4294901760
    %612 = vmatpush1.msra.mxu0 %v611
    %613 = vmatprep.subr.mxu0 0.0
    %v614 = vand.u32 %v63, 4294901760
    %615 = vmatpush1.msra.mxu0 %v614
    %616 = vmatprep.subr.mxu0 0.0
    %v617 = vand.u32 %v64, 4294901760
    %618 = vmatpush1.msra.mxu0 %v617
    %619 = vmatprep.subr.mxu0 0.0
    %v620 = vand.u32 %v65, 4294901760
    %621 = vmatpush1.msra.mxu0 %v620
    %622 = vmatprep.subr.mxu0 0.0
    %v623 = vand.u32 %v66, 4294901760
    %624 = vmatpush1.msra.mxu0 %v623
    %625 = vmatprep.subr.mxu0 0.0
    %v626 = vand.u32 %v67, 4294901760
    %627 = vmatpush1.msra.mxu0 %v626
    %628 = vmatprep.subr.mxu0 0.0
    %v629 = vand.u32 %v68, 4294901760
    %630 = vmatpush1.msra.mxu0 %v629
    %631 = vmatprep.subr.mxu0 0.0
    %v632 = vand.u32 %v69, 4294901760
    %633 = vmatpush1.msra.mxu0 %v632
    %634 = vmatprep.subr.mxu0 0.0
    %v635 = vand.u32 %v70, 4294901760
    %636 = vmatpush1.msra.mxu0 %v635
    %637 = vmatprep.subr.mxu0 0.0
    %v638 = vand.u32 %v71, 4294901760
    %639 = vmatpush1.msra.mxu0 %v638
    %640 = vmatprep.subr.mxu0 0.0
    %v641 = vand.u32 %v72, 4294901760
    %642 = vmatpush1.msra.mxu0 %v641
    %643 = vmatprep.subr.mxu0 0.0
    %v644 = vand.u32 %v73, 4294901760
    %645 = vmatpush1.msra.mxu0 %v644
    %646 = vmatprep.subr.mxu0 0.0
    %v647 = vand.u32 %v74, 4294901760
    %648 = vmatpush1.msra.mxu0 %v647
    %649 = vmatprep.subr.mxu0 0.0
    %v650 = vand.u32 %v75, 4294901760
    %651 = vmatpush1.msra.mxu0 %v650
    %652 = vmatprep.subr.mxu0 0.0
    %v653 = vand.u32 %v76, 4294901760
    %654 = vmatpush1.msra.mxu0 %v653
    %655 = vmatprep.subr.mxu0 0.0
    %v656 = vand.u32 %v77, 4294901760
    %657 = vmatpush1.msra.mxu0 %v656
    %658 = vmatprep.subr.mxu0 0.0
    %v659 = vand.u32 %v78, 4294901760
    %660 = vmatpush1.msra.mxu0 %v659
    %661 = vmatprep.subr.mxu0 0.0
    %v662 = vand.u32 %v79, 4294901760
    %663 = vmatpush1.msra.mxu0 %v662
    %664 = vmatprep.subr.mxu0 0.0
    %v665 = vand.u32 %v80, 4294901760
    %666 = vmatpush1.msra.mxu0 %v665
    %667 = vmatprep.subr.mxu0 0.0
    %v668 = vand.u32 %v81, 4294901760
    %669 = vmatpush1.msra.mxu0 %v668
    %670 = vmatprep.subr.mxu0 0.0
    %v671 = vand.u32 %v82, 4294901760
    %672 = vmatpush1.msra.mxu0 %v671
    %673 = vmatprep.subr.mxu0 0.0
    %v674 = vand.u32 %v83, 4294901760
    %675 = vmatpush1.msra.mxu0 %v674
    %676 = vmatprep.subr.mxu0 0.0
    %v677 = vand.u32 %v84, 4294901760
    %678 = vmatpush1.msra.mxu0 %v677
    %679 = vmatprep.subr.mxu0 0.0
    %v680 = vand.u32 %v85, 4294901760
    %681 = vmatpush1.msra.mxu0 %v680
    %682 = vmatprep.subr.mxu0 0.0
    %v683 = vand.u32 %v86, 4294901760
    %684 = vmatpush1.msra.mxu0 %v683
    %v685 = vand.u32 %v104, 4294901760
    %v686 = vsub.f32 %v104, %v685
    %v687 = vand.u32 %v686, 4294901760
    %688 = vmatprep.mubr.f32.mxu0 %v687
    %v689 = vand.u32 %v103, 4294901760
    %v690 = vsub.f32 %v103, %v689
    %v691 = vand.u32 %v690, 4294901760
    %692 = vmatmul.mubr.f32.gmra.mrb[0].mxu0 %v691
    %v693 = vpop.f32.mrb[0].mxu0
    %v694 = vadd.f32 %v586, %v693
    %v695 = vpop.f32.mrb[0].mxu0
    %696 = vdwg.mxu0
    %697 = vmatprep.subr.mxu0 0.0
    %v698 = vand.u32 %v55, 4294901760
    %v699 = vsub.f32 %v55, %v698
    %v700 = vand.u32 %v699, 4294901760
    %701 = vmatpush1.msra.mxu0 %v700
    %702 = vmatprep.subr.mxu0 0.0
    %v703 = vand.u32 %v56, 4294901760
    %v704 = vsub.f32 %v56, %v703
    %v705 = vand.u32 %v704, 4294901760
    %706 = vmatpush1.msra.mxu0 %v705
    %707 = vmatprep.subr.mxu0 0.0
    %v708 = vand.u32 %v57, 4294901760
    %v709 = vsub.f32 %v57, %v708
    %v710 = vand.u32 %v709, 4294901760
    %711 = vmatpush1.msra.mxu0 %v710
    %712 = vmatprep.subr.mxu0 0.0
    %v713 = vand.u32 %v58, 4294901760
    %v714 = vsub.f32 %v58, %v713
    %v715 = vand.u32 %v714, 4294901760
    %716 = vmatpush1.msra.mxu0 %v715
    %717 = vmatprep.subr.mxu0 0.0
    %v718 = vand.u32 %v59, 4294901760
    %v719 = vsub.f32 %v59, %v718
    %v720 = vand.u32 %v719, 4294901760
    %721 = vmatpush1.msra.mxu0 %v720
    %722 = vmatprep.subr.mxu0 0.0
    %v723 = vand.u32 %v60, 4294901760
    %v724 = vsub.f32 %v60, %v723
    %v725 = vand.u32 %v724, 4294901760
    %726 = vmatpush1.msra.mxu0 %v725
    %727 = vmatprep.subr.mxu0 0.0
    %v728 = vand.u32 %v61, 4294901760
    %v729 = vsub.f32 %v61, %v728
    %v730 = vand.u32 %v729, 4294901760
    %731 = vmatpush1.msra.mxu0 %v730
    %732 = vmatprep.subr.mxu0 0.0
    %v733 = vand.u32 %v62, 4294901760
    %v734 = vsub.f32 %v62, %v733
    %v735 = vand.u32 %v734, 4294901760
    %736 = vmatpush1.msra.mxu0 %v735
    %737 = vmatprep.subr.mxu0 0.0
    %v738 = vand.u32 %v63, 4294901760
    %v739 = vsub.f32 %v63, %v738
    %v740 = vand.u32 %v739, 4294901760
    %741 = vmatpush1.msra.mxu0 %v740
    %742 = vmatprep.subr.mxu0 0.0
    %v743 = vand.u32 %v64, 4294901760
    %v744 = vsub.f32 %v64, %v743
    %v745 = vand.u32 %v744, 4294901760
    %746 = vmatpush1.msra.mxu0 %v745
    %747 = vmatprep.subr.mxu0 0.0
    %v748 = vand.u32 %v65, 4294901760
    %v749 = vsub.f32 %v65, %v748
    %v750 = vand.u32 %v749, 4294901760
    %751 = vmatpush1.msra.mxu0 %v750
    %752 = vmatprep.subr.mxu0 0.0
    %v753 = vand.u32 %v66, 4294901760
    %v754 = vsub.f32 %v66, %v753
    %v755 = vand.u32 %v754, 4294901760
    %756 = vmatpush1.msra.mxu0 %v755
    %757 = vmatprep.subr.mxu0 0.0
    %v758 = vand.u32 %v67, 4294901760
    %v759 = vsub.f32 %v67, %v758
    %v760 = vand.u32 %v759, 4294901760
    %761 = vmatpush1.msra.mxu0 %v760
    %762 = vmatprep.subr.mxu0 0.0
    %v763 = vand.u32 %v68, 4294901760
    %v764 = vsub.f32 %v68, %v763
    %v765 = vand.u32 %v764, 4294901760
    %766 = vmatpush1.msra.mxu0 %v765
    %767 = vmatprep.subr.mxu0 0.0
    %v768 = vand.u32 %v69, 4294901760
    %v769 = vsub.f32 %v69, %v768
    %v770 = vand.u32 %v769, 4294901760
    %771 = vmatpush1.msra.mxu0 %v770
    %772 = vmatprep.subr.mxu0 0.0
    %v773 = vand.u32 %v70, 4294901760
    %v774 = vsub.f32 %v70, %v773
    %v775 = vand.u32 %v774, 4294901760
    %776 = vmatpush1.msra.mxu0 %v775
    %777 = vmatprep.subr.mxu0 0.0
    %v778 = vand.u32 %v71, 4294901760
    %v779 = vsub.f32 %v71, %v778
    %v780 = vand.u32 %v779, 4294901760
    %781 = vmatpush1.msra.mxu0 %v780
    %782 = vmatprep.subr.mxu0 0.0
    %v783 = vand.u32 %v72, 4294901760
    %v784 = vsub.f32 %v72, %v783
    %v785 = vand.u32 %v784, 4294901760
    %786 = vmatpush1.msra.mxu0 %v785
    %787 = vmatprep.subr.mxu0 0.0
    %v788 = vand.u32 %v73, 4294901760
    %v789 = vsub.f32 %v73, %v788
    %v790 = vand.u32 %v789, 4294901760
    %791 = vmatpush1.msra.mxu0 %v790
    %792 = vmatprep.subr.mxu0 0.0
    %v793 = vand.u32 %v74, 4294901760
    %v794 = vsub.f32 %v74, %v793
    %v795 = vand.u32 %v794, 4294901760
    %796 = vmatpush1.msra.mxu0 %v795
    %797 = vmatprep.subr.mxu0 0.0
    %v798 = vand.u32 %v75, 4294901760
    %v799 = vsub.f32 %v75, %v798
    %v800 = vand.u32 %v799, 4294901760
    %801 = vmatpush1.msra.mxu0 %v800
    %802 = vmatprep.subr.mxu0 0.0
    %v803 = vand.u32 %v76, 4294901760
    %v804 = vsub.f32 %v76, %v803
    %v805 = vand.u32 %v804, 4294901760
    %806 = vmatpush1.msra.mxu0 %v805
    %807 = vmatprep.subr.mxu0 0.0
    %v808 = vand.u32 %v77, 4294901760
    %v809 = vsub.f32 %v77, %v808
    %v810 = vand.u32 %v809, 4294901760
    %811 = vmatpush1.msra.mxu0 %v810
    %812 = vmatprep.subr.mxu0 0.0
    %v813 = vand.u32 %v78, 4294901760
    %v814 = vsub.f32 %v78, %v813
    %v815 = vand.u32 %v814, 4294901760
    %816 = vmatpush1.msra.mxu0 %v815
    %817 = vmatprep.subr.mxu0 0.0
    %v818 = vand.u32 %v79, 4294901760
    %v819 = vsub.f32 %v79, %v818
    %v820 = vand.u32 %v819, 4294901760
    %821 = vmatpush1.msra.mxu0 %v820
    %822 = vmatprep.subr.mxu0 0.0
    %v823 = vand.u32 %v80, 4294901760
    %v824 = vsub.f32 %v80, %v823
    %v825 = vand.u32 %v824, 4294901760
    %826 = vmatpush1.msra.mxu0 %v825
    %827 = vmatprep.subr.mxu0 0.0
    %v828 = vand.u32 %v81, 4294901760
    %v829 = vsub.f32 %v81, %v828
    %v830 = vand.u32 %v829, 4294901760
    %831 = vmatpush1.msra.mxu0 %v830
    %832 = vmatprep.subr.mxu0 0.0
    %v833 = vand.u32 %v82, 4294901760
    %v834 = vsub.f32 %v82, %v833
    %v835 = vand.u32 %v834, 4294901760
    %836 = vmatpush1.msra.mxu0 %v835
    %837 = vmatprep.subr.mxu0 0.0
    %v838 = vand.u32 %v83, 4294901760
    %v839 = vsub.f32 %v83, %v838
    %v840 = vand.u32 %v839, 4294901760
    %841 = vmatpush1.msra.mxu0 %v840
    %842 = vmatprep.subr.mxu0 0.0
    %v843 = vand.u32 %v84, 4294901760
    %v844 = vsub.f32 %v84, %v843
    %v845 = vand.u32 %v844, 4294901760
    %846 = vmatpush1.msra.mxu0 %v845
    %847 = vmatprep.subr.mxu0 0.0
    %v848 = vand.u32 %v85, 4294901760
    %v849 = vsub.f32 %v85, %v848
    %v850 = vand.u32 %v849, 4294901760
    %851 = vmatpush1.msra.mxu0 %v850
    %852 = vmatprep.subr.mxu0 0.0
    %v853 = vand.u32 %v86, 4294901760
    %v854 = vsub.f32 %v86, %v853
    %v855 = vand.u32 %v854, 4294901760
    %856 = vmatpush1.msra.mxu0 %v855
    %v857 = vand.u32 %v104, 4294901760
    %858 = vmatprep.mubr.f32.mxu0 %v857
    %v859 = vand.u32 %v103, 4294901760
    %860 = vmatmul.mubr.f32.gmra.mrb[0].mxu0 %v859
    %v861 = vpop.f32.mrb[0].mxu0
    %v862 = vadd.f32 %v694, %v861
    %v863 = vpop.f32.mrb[0].mxu0
    %864 = vdwg.mxu0
    %865 = vmatprep.subr.mxu0 0.0
    %v866 = vand.u32 %v55, 4294901760
    %867 = vmatpush1.msra.mxu0 %v866
    %868 = vmatprep.subr.mxu0 0.0
    %v869 = vand.u32 %v56, 4294901760
    %870 = vmatpush1.msra.mxu0 %v869
    %871 = vmatprep.subr.mxu0 0.0
    %v872 = vand.u32 %v57, 4294901760
    %873 = vmatpush1.msra.mxu0 %v872
    %874 = vmatprep.subr.mxu0 0.0
    %v875 = vand.u32 %v58, 4294901760
    %876 = vmatpush1.msra.mxu0 %v875
    %877 = vmatprep.subr.mxu0 0.0
    %v878 = vand.u32 %v59, 4294901760
    %879 = vmatpush1.msra.mxu0 %v878
    %880 = vmatprep.subr.mxu0 0.0
    %v881 = vand.u32 %v60, 4294901760
    %882 = vmatpush1.msra.mxu0 %v881
    %883 = vmatprep.subr.mxu0 0.0
    %v884 = vand.u32 %v61, 4294901760
    %885 = vmatpush1.msra.mxu0 %v884
    %886 = vmatprep.subr.mxu0 0.0
    %v887 = vand.u32 %v62, 4294901760
    %888 = vmatpush1.msra.mxu0 %v887
    %889 = vmatprep.subr.mxu0 0.0
    %v890 = vand.u32 %v63, 4294901760
    %891 = vmatpush1.msra.mxu0 %v890
    %892 = vmatprep.subr.mxu0 0.0
    %v893 = vand.u32 %v64, 4294901760
    %894 = vmatpush1.msra.mxu0 %v893
    %895 = vmatprep.subr.mxu0 0.0
    %v896 = vand.u32 %v65, 4294901760
    %897 = vmatpush1.msra.mxu0 %v896
    %898 = vmatprep.subr.mxu0 0.0
    %v899 = vand.u32 %v66, 4294901760
    %900 = vmatpush1.msra.mxu0 %v899
    %901 = vmatprep.subr.mxu0 0.0
    %v902 = vand.u32 %v67, 4294901760
    %903 = vmatpush1.msra.mxu0 %v902
    %904 = vmatprep.subr.mxu0 0.0
    %v905 = vand.u32 %v68, 4294901760
    %906 = vmatpush1.msra.mxu0 %v905
    %907 = vmatprep.subr.mxu0 0.0
    %v908 = vand.u32 %v69, 4294901760
    %909 = vmatpush1.msra.mxu0 %v908
    %910 = vmatprep.subr.mxu0 0.0
    %v911 = vand.u32 %v70, 4294901760
    %912 = vmatpush1.msra.mxu0 %v911
    %913 = vmatprep.subr.mxu0 0.0
    %v914 = vand.u32 %v71, 4294901760
    %915 = vmatpush1.msra.mxu0 %v914
    %916 = vmatprep.subr.mxu0 0.0
    %v917 = vand.u32 %v72, 4294901760
    %918 = vmatpush1.msra.mxu0 %v917
    %919 = vmatprep.subr.mxu0 0.0
    %v920 = vand.u32 %v73, 4294901760
    %921 = vmatpush1.msra.mxu0 %v920
    %922 = vmatprep.subr.mxu0 0.0
    %v923 = vand.u32 %v74, 4294901760
    %924 = vmatpush1.msra.mxu0 %v923
    %925 = vmatprep.subr.mxu0 0.0
    %v926 = vand.u32 %v75, 4294901760
    %927 = vmatpush1.msra.mxu0 %v926
    %928 = vmatprep.subr.mxu0 0.0
    %v929 = vand.u32 %v76, 4294901760
    %930 = vmatpush1.msra.mxu0 %v929
    %931 = vmatprep.subr.mxu0 0.0
    %v932 = vand.u32 %v77, 4294901760
    %933 = vmatpush1.msra.mxu0 %v932
    %934 = vmatprep.subr.mxu0 0.0
    %v935 = vand.u32 %v78, 4294901760
    %936 = vmatpush1.msra.mxu0 %v935
    %937 = vmatprep.subr.mxu0 0.0
    %v938 = vand.u32 %v79, 4294901760
    %939 = vmatpush1.msra.mxu0 %v938
    %940 = vmatprep.subr.mxu0 0.0
    %v941 = vand.u32 %v80, 4294901760
    %942 = vmatpush1.msra.mxu0 %v941
    %943 = vmatprep.subr.mxu0 0.0
    %v944 = vand.u32 %v81, 4294901760
    %945 = vmatpush1.msra.mxu0 %v944
    %946 = vmatprep.subr.mxu0 0.0
    %v947 = vand.u32 %v82, 4294901760
    %948 = vmatpush1.msra.mxu0 %v947
    %949 = vmatprep.subr.mxu0 0.0
    %v950 = vand.u32 %v83, 4294901760
    %951 = vmatpush1.msra.mxu0 %v950
    %952 = vmatprep.subr.mxu0 0.0
    %v953 = vand.u32 %v84, 4294901760
    %954 = vmatpush1.msra.mxu0 %v953
    %955 = vmatprep.subr.mxu0 0.0
    %v956 = vand.u32 %v85, 4294901760
    %957 = vmatpush1.msra.mxu0 %v956
    %958 = vmatprep.subr.mxu0 0.0
    %v959 = vand.u32 %v86, 4294901760
    %960 = vmatpush1.msra.mxu0 %v959
    %v961 = vand.u32 %v104, 4294901760
    %962 = vmatprep.mubr.f32.mxu0 %v961
    %v963 = vand.u32 %v103, 4294901760
    %964 = vmatmul.mubr.f32.gmra.mrb[0].mxu0 %v963
    %v965 = vpop.f32.mrb[0].mxu0
    %v966 = vadd.f32 %v862, %v965
    %v967 = vpop.f32.mrb[0].mxu0
    %968 = vdwg.mxu0
    %vm969 = vcmask 1041408
    %v970 = vsel %vm969, %v103, -inf
    %v971 = vsel %vm969, %v104, -inf
    %v972 = vmax.f32 %v970, %v971
    %973 = vmax.xlane.f32.xlu0 %v972
    %v974 = vpop.xlane.xlu0 %973
    %v975 = vld [vmem:[#allocation2 + $0x4] sm:$0xf]
    %v978 = vunpack.c.l.s4 1983009808
    %v979 = vunpack.c.0.s8 %v978
    %v980 = vlaneseq
    %v981 = vshrl.u32 %v980, 7
    %v982 = vsub.s32 %v979, %v981
    %v983 = vrot.slane %v975, %v982
    %v984 = vcombine.high %v983, %v983
    %987 = vmatprep.subr.mxu0 0.0
    %v988 = vand.u32 %v55, 4294901760
    %989 = vmatpush1.msra.mxu0 %v988
    %990 = vmatprep.subr.mxu0 0.0
    %v991 = vand.u32 %v56, 4294901760
    %992 = vmatpush1.msra.mxu0 %v991
    %993 = vmatprep.subr.mxu0 0.0
    %v994 = vand.u32 %v57, 4294901760
    %995 = vmatpush1.msra.mxu0 %v994
    %996 = vmatprep.subr.mxu0 0.0
    %v997 = vand.u32 %v58, 4294901760
    %998 = vmatpush1.msra.mxu0 %v997
    %999 = vmatprep.subr.mxu0 0.0
    %v1000 = vand.u32 %v59, 4294901760
    %1001 = vmatpush1.msra.mxu0 %v1000
    %1002 = vmatprep.subr.mxu0 0.0
    %v1003 = vand.u32 %v60, 4294901760
    %1004 = vmatpush1.msra.mxu0 %v1003
    %1005 = vmatprep.subr.mxu0 0.0
    %v1006 = vand.u32 %v61, 4294901760
    %1007 = vmatpush1.msra.mxu0 %v1006
    %1008 = vmatprep.subr.mxu0 0.0
    %v1009 = vand.u32 %v62, 4294901760
    %1010 = vmatpush1.msra.mxu0 %v1009
    %1011 = vmatprep.subr.mxu0 0.0
    %v1012 = vand.u32 %v63, 4294901760
    %1013 = vmatpush1.msra.mxu0 %v1012
    %1014 = vmatprep.subr.mxu0 0.0
    %v1015 = vand.u32 %v64, 4294901760
    %1016 = vmatpush1.msra.mxu0 %v1015
    %1017 = vmatprep.subr.mxu0 0.0
    %v1018 = vand.u32 %v65, 4294901760
    %1019 = vmatpush1.msra.mxu0 %v1018
    %1020 = vmatprep.subr.mxu0 0.0
    %v1021 = vand.u32 %v66, 4294901760
    %1022 = vmatpush1.msra.mxu0 %v1021
    %1023 = vmatprep.subr.mxu0 0.0
    %v1024 = vand.u32 %v67, 4294901760
    %1025 = vmatpush1.msra.mxu0 %v1024
    %1026 = vmatprep.subr.mxu0 0.0
    %v1027 = vand.u32 %v68, 4294901760
    %1028 = vmatpush1.msra.mxu0 %v1027
    %1029 = vmatprep.subr.mxu0 0.0
    %v1030 = vand.u32 %v69, 4294901760
    %1031 = vmatpush1.msra.mxu0 %v1030
    %1032 = vmatprep.subr.mxu0 0.0
    %v1033 = vand.u32 %v70, 4294901760
    %1034 = vmatpush1.msra.mxu0 %v1033
    %1035 = vmatprep.subr.mxu0 0.0
    %v1036 = vand.u32 %v71, 4294901760
    %1037 = vmatpush1.msra.mxu0 %v1036
    %1038 = vmatprep.subr.mxu0 0.0
    %v1039 = vand.u32 %v72, 4294901760
    %1040 = vmatpush1.msra.mxu0 %v1039
    %1041 = vmatprep.subr.mxu0 0.0
    %v1042 = vand.u32 %v73, 4294901760
    %1043 = vmatpush1.msra.mxu0 %v1042
    %1044 = vmatprep.subr.mxu0 0.0
    %v1045 = vand.u32 %v74, 4294901760
    %1046 = vmatpush1.msra.mxu0 %v1045
    %1047 = vmatprep.subr.mxu0 0.0
    %v1048 = vand.u32 %v75, 4294901760
    %1049 = vmatpush1.msra.mxu0 %v1048
    %1050 = vmatprep.subr.mxu0 0.0
    %v1051 = vand.u32 %v76, 4294901760
    %1052 = vmatpush1.msra.mxu0 %v1051
    %1053 = vmatprep.subr.mxu0 0.0
    %v1054 = vand.u32 %v77, 4294901760
    %1055 = vmatpush1.msra.mxu0 %v1054
    %1056 = vmatprep.subr.mxu0 0.0
    %v1057 = vand.u32 %v78, 4294901760
    %1058 = vmatpush1.msra.mxu0 %v1057
    %1059 = vmatprep.subr.mxu0 0.0
    %v1060 = vand.u32 %v79, 4294901760
    %1061 = vmatpush1.msra.mxu0 %v1060
    %1062 = vmatprep.subr.mxu0 0.0
    %v1063 = vand.u32 %v80, 4294901760
    %1064 = vmatpush1.msra.mxu0 %v1063
    %1065 = vmatprep.subr.mxu0 0.0
    %v1066 = vand.u32 %v81, 4294901760
    %1067 = vmatpush1.msra.mxu0 %v1066
    %1068 = vmatprep.subr.mxu0 0.0
    %v1069 = vand.u32 %v82, 4294901760
    %1070 = vmatpush1.msra.mxu0 %v1069
    %1071 = vmatprep.subr.mxu0 0.0
    %v1072 = vand.u32 %v83, 4294901760
    %1073 = vmatpush1.msra.mxu0 %v1072
    %1074 = vmatprep.subr.mxu0 0.0
    %v1075 = vand.u32 %v84, 4294901760
    %1076 = vmatpush1.msra.mxu0 %v1075
    %1077 = vmatprep.subr.mxu0 0.0
    %v1078 = vand.u32 %v85, 4294901760
    %1079 = vmatpush1.msra.mxu0 %v1078
    %1080 = vmatprep.subr.mxu0 0.0
    %v1081 = vand.u32 %v86, 4294901760
    %1082 = vmatpush1.msra.mxu0 %v1081
    %v1083 = vand.u32 %v984, 4294901760
    %v1084 = vsub.f32 %v984, %v1083
    %v1085 = vand.u32 %v1084, 4294901760
    %v1086 = vsub.f32 %v1084, %v1085
    %v1087 = vand.u32 %v1086, 4294901760
    %1088 = vmatprep.mubr.f32.mxu0 %v1087
    %v1089 = vand.u32 %v983, 4294901760
    %v1090 = vsub.f32 %v983, %v1089
    %v1091 = vand.u32 %v1090, 4294901760
    %v1092 = vsub.f32 %v1090, %v1091
    %v1093 = vand.u32 %v1092, 4294901760
    %1094 = vmatmul.mubr.f32.gmra.mrb[0].mxu0 %v1093
    %v1095 = vpop.f32.mrb[0].mxu0
    %v1096 = vadd.f32 0.0, %v1095
    %v1097 = vpop.f32.mrb[0].mxu0
    %1098 = vdwg.mxu0
    %1099 = vmatprep.subr.mxu0 0.0
    %v1100 = vand.u32 %v55, 4294901760
    %v1101 = vsub.f32 %v55, %v1100
    %v1102 = vand.u32 %v1101, 4294901760
    %v1103 = vsub.f32 %v1101, %v1102
    %v1104 = vand.u32 %v1103, 4294901760
    %1105 = vmatpush1.msra.mxu0 %v1104
    %1106 = vmatprep.subr.mxu0 0.0
    %v1107 = vand.u32 %v56, 4294901760
    %v1108 = vsub.f32 %v56, %v1107
    %v1109 = vand.u32 %v1108, 4294901760
    %v1110 = vsub.f32 %v1108, %v1109
    %v1111 = vand.u32 %v1110, 4294901760
    %1112 = vmatpush1.msra.mxu0 %v1111
    %1113 = vmatprep.subr.mxu0 0.0
    %v1114 = vand.u32 %v57, 4294901760
    %v1115 = vsub.f32 %v57, %v1114
    %v1116 = vand.u32 %v1115, 4294901760
    %v1117 = vsub.f32 %v1115, %v1116
    %v1118 = vand.u32 %v1117, 4294901760
    %1119 = vmatpush1.msra.mxu0 %v1118
    %1120 = vmatprep.subr.mxu0 0.0
    %v1121 = vand.u32 %v58, 4294901760
    %v1122 = vsub.f32 %v58, %v1121
    %v1123 = vand.u32 %v1122, 4294901760
    %v1124 = vsub.f32 %v1122, %v1123
    %v1125 = vand.u32 %v1124, 4294901760
    %1126 = vmatpush1.msra.mxu0 %v1125
    %1127 = vmatprep.subr.mxu0 0.0
    %v1128 = vand.u32 %v59, 4294901760
    %v1129 = vsub.f32 %v59, %v1128
    %v1130 = vand.u32 %v1129, 4294901760
    %v1131 = vsub.f32 %v1129, %v1130
    %v1132 = vand.u32 %v1131, 4294901760
    %1133 = vmatpush1.msra.mxu0 %v1132
    %1134 = vmatprep.subr.mxu0 0.0
    %v1135 = vand.u32 %v60, 4294901760
    %v1136 = vsub.f32 %v60, %v1135
    %v1137 = vand.u32 %v1136, 4294901760
    %v1138 = vsub.f32 %v1136, %v1137
    %v1139 = vand.u32 %v1138, 4294901760
    %1140 = vmatpush1.msra.mxu0 %v1139
    %1141 = vmatprep.subr.mxu0 0.0
    %v1142 = vand.u32 %v61, 4294901760
    %v1143 = vsub.f32 %v61, %v1142
    %v1144 = vand.u32 %v1143, 4294901760
    %v1145 = vsub.f32 %v1143, %v1144
    %v1146 = vand.u32 %v1145, 4294901760
    %1147 = vmatpush1.msra.mxu0 %v1146
    %1148 = vmatprep.subr.mxu0 0.0
    %v1149 = vand.u32 %v62, 4294901760
    %v1150 = vsub.f32 %v62, %v1149
    %v1151 = vand.u32 %v1150, 4294901760
    %v1152 = vsub.f32 %v1150, %v1151
    %v1153 = vand.u32 %v1152, 4294901760
    %1154 = vmatpush1.msra.mxu0 %v1153
    %1155 = vmatprep.subr.mxu0 0.0
    %v1156 = vand.u32 %v63, 4294901760
    %v1157 = vsub.f32 %v63, %v1156
    %v1158 = vand.u32 %v1157, 4294901760
    %v1159 = vsub.f32 %v1157, %v1158
    %v1160 = vand.u32 %v1159, 4294901760
    %1161 = vmatpush1.msra.mxu0 %v1160
    %1162 = vmatprep.subr.mxu0 0.0
    %v1163 = vand.u32 %v64, 4294901760
    %v1164 = vsub.f32 %v64, %v1163
    %v1165 = vand.u32 %v1164, 4294901760
    %v1166 = vsub.f32 %v1164, %v1165
    %v1167 = vand.u32 %v1166, 4294901760
    %1168 = vmatpush1.msra.mxu0 %v1167
    %1169 = vmatprep.subr.mxu0 0.0
    %v1170 = vand.u32 %v65, 4294901760
    %v1171 = vsub.f32 %v65, %v1170
    %v1172 = vand.u32 %v1171, 4294901760
    %v1173 = vsub.f32 %v1171, %v1172
    %v1174 = vand.u32 %v1173, 4294901760
    %1175 = vmatpush1.msra.mxu0 %v1174
    %1176 = vmatprep.subr.mxu0 0.0
    %v1177 = vand.u32 %v66, 4294901760
    %v1178 = vsub.f32 %v66, %v1177
    %v1179 = vand.u32 %v1178, 4294901760
    %v1180 = vsub.f32 %v1178, %v1179
    %v1181 = vand.u32 %v1180, 4294901760
    %1182 = vmatpush1.msra.mxu0 %v1181
    %1183 = vmatprep.subr.mxu0 0.0
    %v1184 = vand.u32 %v67, 4294901760
    %v1185 = vsub.f32 %v67, %v1184
    %v1186 = vand.u32 %v1185, 4294901760
    %v1187 = vsub.f32 %v1185, %v1186
    %v1188 = vand.u32 %v1187, 4294901760
    %1189 = vmatpush1.msra.mxu0 %v1188
    %1190 = vmatprep.subr.mxu0 0.0
    %v1191 = vand.u32 %v68, 4294901760
    %v1192 = vsub.f32 %v68, %v1191
    %v1193 = vand.u32 %v1192, 4294901760
    %v1194 = vsub.f32 %v1192, %v1193
    %v1195 = vand.u32 %v1194, 4294901760
    %1196 = vmatpush1.msra.mxu0 %v1195
    %1197 = vmatprep.subr.mxu0 0.0
    %v1198 = vand.u32 %v69, 4294901760
    %v1199 = vsub.f32 %v69, %v1198
    %v1200 = vand.u32 %v1199, 4294901760
    %v1201 = vsub.f32 %v1199, %v1200
    %v1202 = vand.u32 %v1201, 4294901760
    %1203 = vmatpush1.msra.mxu0 %v1202
    %1204 = vmatprep.subr.mxu0 0.0
    %v1205 = vand.u32 %v70, 4294901760
    %v1206 = vsub.f32 %v70, %v1205
    %v1207 = vand.u32 %v1206, 4294901760
    %v1208 = vsub.f32 %v1206, %v1207
    %v1209 = vand.u32 %v1208, 4294901760
    %1210 = vmatpush1.msra.mxu0 %v1209
    %1211 = vmatprep.subr.mxu0 0.0
    %v1212 = vand.u32 %v71, 4294901760
    %v1213 = vsub.f32 %v71, %v1212
    %v1214 = vand.u32 %v1213, 4294901760
    %v1215 = vsub.f32 %v1213, %v1214
    %v1216 = vand.u32 %v1215, 4294901760
    %1217 = vmatpush1.msra.mxu0 %v1216
    %1218 = vmatprep.subr.mxu0 0.0
    %v1219 = vand.u32 %v72, 4294901760
    %v1220 = vsub.f32 %v72, %v1219
    %v1221 = vand.u32 %v1220, 4294901760
    %v1222 = vsub.f32 %v1220, %v1221
    %v1223 = vand.u32 %v1222, 4294901760
    %1224 = vmatpush1.msra.mxu0 %v1223
    %1225 = vmatprep.subr.mxu0 0.0
    %v1226 = vand.u32 %v73, 4294901760
    %v1227 = vsub.f32 %v73, %v1226
    %v1228 = vand.u32 %v1227, 4294901760
    %v1229 = vsub.f32 %v1227, %v1228
    %v1230 = vand.u32 %v1229, 4294901760
    %1231 = vmatpush1.msra.mxu0 %v1230
    %1232 = vmatprep.subr.mxu0 0.0
    %v1233 = vand.u32 %v74, 4294901760
    %v1234 = vsub.f32 %v74, %v1233
    %v1235 = vand.u32 %v1234, 4294901760
    %v1236 = vsub.f32 %v1234, %v1235
    %v1237 = vand.u32 %v1236, 4294901760
    %1238 = vmatpush1.msra.mxu0 %v1237
    %1239 = vmatprep.subr.mxu0 0.0
    %v1240 = vand.u32 %v75, 4294901760
    %v1241 = vsub.f32 %v75, %v1240
    %v1242 = vand.u32 %v1241, 4294901760
    %v1243 = vsub.f32 %v1241, %v1242
    %v1244 = vand.u32 %v1243, 4294901760
    %1245 = vmatpush1.msra.mxu0 %v1244
    %1246 = vmatprep.subr.mxu0 0.0
    %v1247 = vand.u32 %v76, 4294901760
    %v1248 = vsub.f32 %v76, %v1247
    %v1249 = vand.u32 %v1248, 4294901760
    %v1250 = vsub.f32 %v1248, %v1249
    %v1251 = vand.u32 %v1250, 4294901760
    %1252 = vmatpush1.msra.mxu0 %v1251
    %1253 = vmatprep.subr.mxu0 0.0
    %v1254 = vand.u32 %v77, 4294901760
    %v1255 = vsub.f32 %v77, %v1254
    %v1256 = vand.u32 %v1255, 4294901760
    %v1257 = vsub.f32 %v1255, %v1256
    %v1258 = vand.u32 %v1257, 4294901760
    %1259 = vmatpush1.msra.mxu0 %v1258
    %1260 = vmatprep.subr.mxu0 0.0
    %v1261 = vand.u32 %v78, 4294901760
    %v1262 = vsub.f32 %v78, %v1261
    %v1263 = vand.u32 %v1262, 4294901760
    %v1264 = vsub.f32 %v1262, %v1263
    %v1265 = vand.u32 %v1264, 4294901760
    %1266 = vmatpush1.msra.mxu0 %v1265
    %1267 = vmatprep.subr.mxu0 0.0
    %v1268 = vand.u32 %v79, 4294901760
    %v1269 = vsub.f32 %v79, %v1268
    %v1270 = vand.u32 %v1269, 4294901760
    %v1271 = vsub.f32 %v1269, %v1270
    %v1272 = vand.u32 %v1271, 4294901760
    %1273 = vmatpush1.msra.mxu0 %v1272
    %1274 = vmatprep.subr.mxu0 0.0
    %v1275 = vand.u32 %v80, 4294901760
    %v1276 = vsub.f32 %v80, %v1275
    %v1277 = vand.u32 %v1276, 4294901760
    %v1278 = vsub.f32 %v1276, %v1277
    %v1279 = vand.u32 %v1278, 4294901760
    %1280 = vmatpush1.msra.mxu0 %v1279
    %1281 = vmatprep.subr.mxu0 0.0
    %v1282 = vand.u32 %v81, 4294901760
    %v1283 = vsub.f32 %v81, %v1282
    %v1284 = vand.u32 %v1283, 4294901760
    %v1285 = vsub.f32 %v1283, %v1284
    %v1286 = vand.u32 %v1285, 4294901760
    %1287 = vmatpush1.msra.mxu0 %v1286
    %1288 = vmatprep.subr.mxu0 0.0
    %v1289 = vand.u32 %v82, 4294901760
    %v1290 = vsub.f32 %v82, %v1289
    %v1291 = vand.u32 %v1290, 4294901760
    %v1292 = vsub.f32 %v1290, %v1291
    %v1293 = vand.u32 %v1292, 4294901760
    %1294 = vmatpush1.msra.mxu0 %v1293
    %1295 = vmatprep.subr.mxu0 0.0
    %v1296 = vand.u32 %v83, 4294901760
    %v1297 = vsub.f32 %v83, %v1296
    %v1298 = vand.u32 %v1297, 4294901760
    %v1299 = vsub.f32 %v1297, %v1298
    %v1300 = vand.u32 %v1299, 4294901760
    %1301 = vmatpush1.msra.mxu0 %v1300
    %1302 = vmatprep.subr.mxu0 0.0
    %v1303 = vand.u32 %v84, 4294901760
    %v1304 = vsub.f32 %v84, %v1303
    %v1305 = vand.u32 %v1304, 4294901760
    %v1306 = vsub.f32 %v1304, %v1305
    %v1307 = vand.u32 %v1306, 4294901760
    %1308 = vmatpush1.msra.mxu0 %v1307
    %1309 = vmatprep.subr.mxu0 0.0
    %v1310 = vand.u32 %v85, 4294901760
    %v1311 = vsub.f32 %v85, %v1310
    %v1312 = vand.u32 %v1311, 4294901760
    %v1313 = vsub.f32 %v1311, %v1312
    %v1314 = vand.u32 %v1313, 4294901760
    %1315 = vmatpush1.msra.mxu0 %v1314
    %1316 = vmatprep.subr.mxu0 0.0
    %v1317 = vand.u32 %v86, 4294901760
    %v1318 = vsub.f32 %v86, %v1317
    %v1319 = vand.u32 %v1318, 4294901760
    %v1320 = vsub.f32 %v1318, %v1319
    %v1321 = vand.u32 %v1320, 4294901760
    %1322 = vmatpush1.msra.mxu0 %v1321
    %v1323 = vand.u32 %v984, 4294901760
    %1324 = vmatprep.mubr.f32.mxu0 %v1323
    %v1325 = vand.u32 %v983, 4294901760
    %1326 = vmatmul.mubr.f32.gmra.mrb[0].mxu0 %v1325
    %v1327 = vpop.f32.mrb[0].mxu0
    %v1328 = vadd.f32 %v1096, %v1327
    %v1329 = vpop.f32.mrb[0].mxu0
    %1330 = vdwg.mxu0
    %1331 = vmatprep.subr.mxu0 0.0
    %v1332 = vand.u32 %v55, 4294901760
    %v1333 = vsub.f32 %v55, %v1332
    %1334 = vmatpush1.msra.mxu0 %v1333
    %1335 = vmatprep.subr.mxu0 0.0
    %v1336 = vand.u32 %v56, 4294901760
    %v1337 = vsub.f32 %v56, %v1336
    %1338 = vmatpush1.msra.mxu0 %v1337
    %1339 = vmatprep.subr.mxu0 0.0
    %v1340 = vand.u32 %v57, 4294901760
    %v1341 = vsub.f32 %v57, %v1340
    %1342 = vmatpush1.msra.mxu0 %v1341
    %1343 = vmatprep.subr.mxu0 0.0
    %v1344 = vand.u32 %v58, 4294901760
    %v1345 = vsub.f32 %v58, %v1344
    %1346 = vmatpush1.msra.mxu0 %v1345
    %1347 = vmatprep.subr.mxu0 0.0
    %v1348 = vand.u32 %v59, 4294901760
    %v1349 = vsub.f32 %v59, %v1348
    %1350 = vmatpush1.msra.mxu0 %v1349
    %1351 = vmatprep.subr.mxu0 0.0
    %v1352 = vand.u32 %v60, 4294901760
    %v1353 = vsub.f32 %v60, %v1352
    %1354 = vmatpush1.msra.mxu0 %v1353
    %1355 = vmatprep.subr.mxu0 0.0
    %v1356 = vand.u32 %v61, 4294901760
    %v1357 = vsub.f32 %v61, %v1356
    %1358 = vmatpush1.msra.mxu0 %v1357
    %1359 = vmatprep.subr.mxu0 0.0
    %v1360 = vand.u32 %v62, 4294901760
    %v1361 = vsub.f32 %v62, %v1360
    %1362 = vmatpush1.msra.mxu0 %v1361
    %1363 = vmatprep.subr.mxu0 0.0
    %v1364 = vand.u32 %v63, 4294901760
    %v1365 = vsub.f32 %v63, %v1364
    %1366 = vmatpush1.msra.mxu0 %v1365
    %1367 = vmatprep.subr.mxu0 0.0
    %v1368 = vand.u32 %v64, 4294901760
    %v1369 = vsub.f32 %v64, %v1368
    %1370 = vmatpush1.msra.mxu0 %v1369
    %1371 = vmatprep.subr.mxu0 0.0
    %v1372 = vand.u32 %v65, 4294901760
    %v1373 = vsub.f32 %v65, %v1372
    %1374 = vmatpush1.msra.mxu0 %v1373
    %1375 = vmatprep.subr.mxu0 0.0
    %v1376 = vand.u32 %v66, 4294901760
    %v1377 = vsub.f32 %v66, %v1376
    %1378 = vmatpush1.msra.mxu0 %v1377
    %1379 = vmatprep.subr.mxu0 0.0
    %v1380 = vand.u32 %v67, 4294901760
    %v1381 = vsub.f32 %v67, %v1380
    %1382 = vmatpush1.msra.mxu0 %v1381
    %1383 = vmatprep.subr.mxu0 0.0
    %v1384 = vand.u32 %v68, 4294901760
    %v1385 = vsub.f32 %v68, %v1384
    %1386 = vmatpush1.msra.mxu0 %v1385
    %1387 = vmatprep.subr.mxu0 0.0
    %v1388 = vand.u32 %v69, 4294901760
    %v1389 = vsub.f32 %v69, %v1388
    %1390 = vmatpush1.msra.mxu0 %v1389
    %1391 = vmatprep.subr.mxu0 0.0
    %v1392 = vand.u32 %v70, 4294901760
    %v1393 = vsub.f32 %v70, %v1392
    %1394 = vmatpush1.msra.mxu0 %v1393
    %1395 = vmatprep.subr.mxu0 0.0
    %v1396 = vand.u32 %v71, 4294901760
    %v1397 = vsub.f32 %v71, %v1396
    %1398 = vmatpush1.msra.mxu0 %v1397
    %1399 = vmatprep.subr.mxu0 0.0
    %v1400 = vand.u32 %v72, 4294901760
    %v1401 = vsub.f32 %v72, %v1400
    %1402 = vmatpush1.msra.mxu0 %v1401
    %1403 = vmatprep.subr.mxu0 0.0
    %v1404 = vand.u32 %v73, 4294901760
    %v1405 = vsub.f32 %v73, %v1404
    %1406 = vmatpush1.msra.mxu0 %v1405
    %1407 = vmatprep.subr.mxu0 0.0
    %v1408 = vand.u32 %v74, 4294901760
    %v1409 = vsub.f32 %v74, %v1408
    %1410 = vmatpush1.msra.mxu0 %v1409
    %1411 = vmatprep.subr.mxu0 0.0
    %v1412 = vand.u32 %v75, 4294901760
    %v1413 = vsub.f32 %v75, %v1412
    %1414 = vmatpush1.msra.mxu0 %v1413
    %1415 = vmatprep.subr.mxu0 0.0
    %v1416 = vand.u32 %v76, 4294901760
    %v1417 = vsub.f32 %v76, %v1416
    %1418 = vmatpush1.msra.mxu0 %v1417
    %1419 = vmatprep.subr.mxu0 0.0
    %v1420 = vand.u32 %v77, 4294901760
    %v1421 = vsub.f32 %v77, %v1420
    %1422 = vmatpush1.msra.mxu0 %v1421
    %1423 = vmatprep.subr.mxu0 0.0
    %v1424 = vand.u32 %v78, 4294901760
    %v1425 = vsub.f32 %v78, %v1424
    %1426 = vmatpush1.msra.mxu0 %v1425
    %1427 = vmatprep.subr.mxu0 0.0
    %v1428 = vand.u32 %v79, 4294901760
    %v1429 = vsub.f32 %v79, %v1428
    %1430 = vmatpush1.msra.mxu0 %v1429
    %1431 = vmatprep.subr.mxu0 0.0
    %v1432 = vand.u32 %v80, 4294901760
    %v1433 = vsub.f32 %v80, %v1432
    %1434 = vmatpush1.msra.mxu0 %v1433
    %1435 = vmatprep.subr.mxu0 0.0
    %v1436 = vand.u32 %v81, 4294901760
    %v1437 = vsub.f32 %v81, %v1436
    %1438 = vmatpush1.msra.mxu0 %v1437
    %1439 = vmatprep.subr.mxu0 0.0
    %v1440 = vand.u32 %v82, 4294901760
    %v1441 = vsub.f32 %v82, %v1440
    %1442 = vmatpush1.msra.mxu0 %v1441
    %1443 = vmatprep.subr.mxu0 0.0
    %v1444 = vand.u32 %v83, 4294901760
    %v1445 = vsub.f32 %v83, %v1444
    %1446 = vmatpush1.msra.mxu0 %v1445
    %1447 = vmatprep.subr.mxu0 0.0
    %v1448 = vand.u32 %v84, 4294901760
    %v1449 = vsub.f32 %v84, %v1448
    %1450 = vmatpush1.msra.mxu0 %v1449
    %1451 = vmatprep.subr.mxu0 0.0
    %v1452 = vand.u32 %v85, 4294901760
    %v1453 = vsub.f32 %v85, %v1452
    %1454 = vmatpush1.msra.mxu0 %v1453
    %1455 = vmatprep.subr.mxu0 0.0
    %v1456 = vand.u32 %v86, 4294901760
    %v1457 = vsub.f32 %v86, %v1456
    %1458 = vmatpush1.msra.mxu0 %v1457
    %v1459 = vand.u32 %v984, 4294901760
    %v1460 = vsub.f32 %v984, %v1459
    %1461 = vmatprep.mubr.f32.mxu0 %v1460
    %v1462 = vand.u32 %v983, 4294901760
    %v1463 = vsub.f32 %v983, %v1462
    %1464 = vmatmul.mubr.f32.gmra.mrb[0].mxu0 %v1463
    %v1465 = vpop.f32.mrb[0].mxu0
    %v1466 = vadd.f32 %v1328, %v1465
    %v1467 = vpop.f32.mrb[0].mxu0
    %1468 = vdwg.mxu0
    %1469 = vmatprep.subr.mxu0 0.0
    %v1470 = vand.u32 %v55, 4294901760
    %1471 = vmatpush1.msra.mxu0 %v1470
    %1472 = vmatprep.subr.mxu0 0.0
    %v1473 = vand.u32 %v56, 4294901760
    %1474 = vmatpush1.msra.mxu0 %v1473
    %1475 = vmatprep.subr.mxu0 0.0
    %v1476 = vand.u32 %v57, 4294901760
    %1477 = vmatpush1.msra.mxu0 %v1476
    %1478 = vmatprep.subr.mxu0 0.0
    %v1479 = vand.u32 %v58, 4294901760
    %1480 = vmatpush1.msra.mxu0 %v1479
    %1481 = vmatprep.subr.mxu0 0.0
    %v1482 = vand.u32 %v59, 4294901760
    %1483 = vmatpush1.msra.mxu0 %v1482
    %1484 = vmatprep.subr.mxu0 0.0
    %v1485 = vand.u32 %v60, 4294901760
    %1486 = vmatpush1.msra.mxu0 %v1485
    %1487 = vmatprep.subr.mxu0 0.0
    %v1488 = vand.u32 %v61, 4294901760
    %1489 = vmatpush1.msra.mxu0 %v1488
    %1490 = vmatprep.subr.mxu0 0.0
    %v1491 = vand.u32 %v62, 4294901760
    %1492 = vmatpush1.msra.mxu0 %v1491
    %1493 = vmatprep.subr.mxu0 0.0
    %v1494 = vand.u32 %v63, 4294901760
    %1495 = vmatpush1.msra.mxu0 %v1494
    %1496 = vmatprep.subr.mxu0 0.0
    %v1497 = vand.u32 %v64, 4294901760
    %1498 = vmatpush1.msra.mxu0 %v1497
    %1499 = vmatprep.subr.mxu0 0.0
    %v1500 = vand.u32 %v65, 4294901760
    %1501 = vmatpush1.msra.mxu0 %v1500
    %1502 = vmatprep.subr.mxu0 0.0
    %v1503 = vand.u32 %v66, 4294901760
    %1504 = vmatpush1.msra.mxu0 %v1503
    %1505 = vmatprep.subr.mxu0 0.0
    %v1506 = vand.u32 %v67, 4294901760
    %1507 = vmatpush1.msra.mxu0 %v1506
    %1508 = vmatprep.subr.mxu0 0.0
    %v1509 = vand.u32 %v68, 4294901760
    %1510 = vmatpush1.msra.mxu0 %v1509
    %1511 = vmatprep.subr.mxu0 0.0
    %v1512 = vand.u32 %v69, 4294901760
    %1513 = vmatpush1.msra.mxu0 %v1512
    %1514 = vmatprep.subr.mxu0 0.0
    %v1515 = vand.u32 %v70, 4294901760
    %1516 = vmatpush1.msra.mxu0 %v1515
    %1517 = vmatprep.subr.mxu0 0.0
    %v1518 = vand.u32 %v71, 4294901760
    %1519 = vmatpush1.msra.mxu0 %v1518
    %1520 = vmatprep.subr.mxu0 0.0
    %v1521 = vand.u32 %v72, 4294901760
    %1522 = vmatpush1.msra.mxu0 %v1521
    %1523 = vmatprep.subr.mxu0 0.0
    %v1524 = vand.u32 %v73, 4294901760
    %1525 = vmatpush1.msra.mxu0 %v1524
    %1526 = vmatprep.subr.mxu0 0.0
    %v1527 = vand.u32 %v74, 4294901760
    %1528 = vmatpush1.msra.mxu0 %v1527
    %1529 = vmatprep.subr.mxu0 0.0
    %v1530 = vand.u32 %v75, 4294901760
    %1531 = vmatpush1.msra.mxu0 %v1530
    %1532 = vmatprep.subr.mxu0 0.0
    %v1533 = vand.u32 %v76, 4294901760
    %1534 = vmatpush1.msra.mxu0 %v1533
    %1535 = vmatprep.subr.mxu0 0.0
    %v1536 = vand.u32 %v77, 4294901760
    %1537 = vmatpush1.msra.mxu0 %v1536
    %1538 = vmatprep.subr.mxu0 0.0
    %v1539 = vand.u32 %v78, 4294901760
    %1540 = vmatpush1.msra.mxu0 %v1539
    %1541 = vmatprep.subr.mxu0 0.0
    %v1542 = vand.u32 %v79, 4294901760
    %1543 = vmatpush1.msra.mxu0 %v1542
    %1544 = vmatprep.subr.mxu0 0.0
    %v1545 = vand.u32 %v80, 4294901760
    %1546 = vmatpush1.msra.mxu0 %v1545
    %1547 = vmatprep.subr.mxu0 0.0
    %v1548 = vand.u32 %v81, 4294901760
    %1549 = vmatpush1.msra.mxu0 %v1548
    %1550 = vmatprep.subr.mxu0 0.0
    %v1551 = vand.u32 %v82, 4294901760
    %1552 = vmatpush1.msra.mxu0 %v1551
    %1553 = vmatprep.subr.mxu0 0.0
    %v1554 = vand.u32 %v83, 4294901760
    %1555 = vmatpush1.msra.mxu0 %v1554
    %1556 = vmatprep.subr.mxu0 0.0
    %v1557 = vand.u32 %v84, 4294901760
    %1558 = vmatpush1.msra.mxu0 %v1557
    %1559 = vmatprep.subr.mxu0 0.0
    %v1560 = vand.u32 %v85, 4294901760
    %1561 = vmatpush1.msra.mxu0 %v1560
    %1562 = vmatprep.subr.mxu0 0.0
    %v1563 = vand.u32 %v86, 4294901760
    %1564 = vmatpush1.msra.mxu0 %v1563
    %v1565 = vand.u32 %v984, 4294901760
    %v1566 = vsub.f32 %v984, %v1565
    %v1567 = vand.u32 %v1566, 4294901760
    %1568 = vmatprep.mubr.f32.mxu0 %v1567
    %v1569 = vand.u32 %v983, 4294901760
    %v1570 = vsub.f32 %v983, %v1569
    %v1571 = vand.u32 %v1570, 4294901760
    %1572 = vmatmul.mubr.f32.gmra.mrb[0].mxu0 %v1571
    %v1573 = vpop.f32.mrb[0].mxu0
    %v1574 = vadd.f32 %v1466, %v1573
    %v1575 = vpop.f32.mrb[0].mxu0
    %1576 = vdwg.mxu0
    %1577 = vmatprep.subr.mxu0 0.0
    %v1578 = vand.u32 %v55, 4294901760
    %v1579 = vsub.f32 %v55, %v1578
    %v1580 = vand.u32 %v1579, 4294901760
    %1581 = vmatpush1.msra.mxu0 %v1580
    %1582 = vmatprep.subr.mxu0 0.0
    %v1583 = vand.u32 %v56, 4294901760
    %v1584 = vsub.f32 %v56, %v1583
    %v1585 = vand.u32 %v1584, 4294901760
    %1586 = vmatpush1.msra.mxu0 %v1585
    %1587 = vmatprep.subr.mxu0 0.0
    %v1588 = vand.u32 %v57, 4294901760
    %v1589 = vsub.f32 %v57, %v1588
    %v1590 = vand.u32 %v1589, 4294901760
    %1591 = vmatpush1.msra.mxu0 %v1590
    %1592 = vmatprep.subr.mxu0 0.0
    %v1593 = vand.u32 %v58, 4294901760
    %v1594 = vsub.f32 %v58, %v1593
    %v1595 = vand.u32 %v1594, 4294901760
    %1596 = vmatpush1.msra.mxu0 %v1595
    %1597 = vmatprep.subr.mxu0 0.0
    %v1598 = vand.u32 %v59, 4294901760
    %v1599 = vsub.f32 %v59, %v1598
    %v1600 = vand.u32 %v1599, 4294901760
    %1601 = vmatpush1.msra.mxu0 %v1600
    %1602 = vmatprep.subr.mxu0 0.0
    %v1603 = vand.u32 %v60, 4294901760
    %v1604 = vsub.f32 %v60, %v1603
    %v1605 = vand.u32 %v1604, 4294901760
    %1606 = vmatpush1.msra.mxu0 %v1605
    %1607 = vmatprep.subr.mxu0 0.0
    %v1608 = vand.u32 %v61, 4294901760
    %v1609 = vsub.f32 %v61, %v1608
    %v1610 = vand.u32 %v1609, 4294901760
    %1611 = vmatpush1.msra.mxu0 %v1610
    %1612 = vmatprep.subr.mxu0 0.0
    %v1613 = vand.u32 %v62, 4294901760
    %v1614 = vsub.f32 %v62, %v1613
    %v1615 = vand.u32 %v1614, 4294901760
    %1616 = vmatpush1.msra.mxu0 %v1615
    %1617 = vmatprep.subr.mxu0 0.0
    %v1618 = vand.u32 %v63, 4294901760
    %v1619 = vsub.f32 %v63, %v1618
    %v1620 = vand.u32 %v1619, 4294901760
    %1621 = vmatpush1.msra.mxu0 %v1620
    %1622 = vmatprep.subr.mxu0 0.0
    %v1623 = vand.u32 %v64, 4294901760
    %v1624 = vsub.f32 %v64, %v1623
    %v1625 = vand.u32 %v1624, 4294901760
    %1626 = vmatpush1.msra.mxu0 %v1625
    %1627 = vmatprep.subr.mxu0 0.0
    %v1628 = vand.u32 %v65, 4294901760
    %v1629 = vsub.f32 %v65, %v1628
    %v1630 = vand.u32 %v1629, 4294901760
    %1631 = vmatpush1.msra.mxu0 %v1630
    %1632 = vmatprep.subr.mxu0 0.0
    %v1633 = vand.u32 %v66, 4294901760
    %v1634 = vsub.f32 %v66, %v1633
    %v1635 = vand.u32 %v1634, 4294901760
    %1636 = vmatpush1.msra.mxu0 %v1635
    %1637 = vmatprep.subr.mxu0 0.0
    %v1638 = vand.u32 %v67, 4294901760
    %v1639 = vsub.f32 %v67, %v1638
    %v1640 = vand.u32 %v1639, 4294901760
    %1641 = vmatpush1.msra.mxu0 %v1640
    %1642 = vmatprep.subr.mxu0 0.0
    %v1643 = vand.u32 %v68, 4294901760
    %v1644 = vsub.f32 %v68, %v1643
    %v1645 = vand.u32 %v1644, 4294901760
    %1646 = vmatpush1.msra.mxu0 %v1645
    %1647 = vmatprep.subr.mxu0 0.0
    %v1648 = vand.u32 %v69, 4294901760
    %v1649 = vsub.f32 %v69, %v1648
    %v1650 = vand.u32 %v1649, 4294901760
    %1651 = vmatpush1.msra.mxu0 %v1650
    %1652 = vmatprep.subr.mxu0 0.0
    %v1653 = vand.u32 %v70, 4294901760
    %v1654 = vsub.f32 %v70, %v1653
    %v1655 = vand.u32 %v1654, 4294901760
    %1656 = vmatpush1.msra.mxu0 %v1655
    %1657 = vmatprep.subr.mxu0 0.0
    %v1658 = vand.u32 %v71, 4294901760
    %v1659 = vsub.f32 %v71, %v1658
    %v1660 = vand.u32 %v1659, 4294901760
    %1661 = vmatpush1.msra.mxu0 %v1660
    %1662 = vmatprep.subr.mxu0 0.0
    %v1663 = vand.u32 %v72, 4294901760
    %v1664 = vsub.f32 %v72, %v1663
    %v1665 = vand.u32 %v1664, 4294901760
    %1666 = vmatpush1.msra.mxu0 %v1665
    %1667 = vmatprep.subr.mxu0 0.0
    %v1668 = vand.u32 %v73, 4294901760
    %v1669 = vsub.f32 %v73, %v1668
    %v1670 = vand.u32 %v1669, 4294901760
    %1671 = vmatpush1.msra.mxu0 %v1670
    %1672 = vmatprep.subr.mxu0 0.0
    %v1673 = vand.u32 %v74, 4294901760
    %v1674 = vsub.f32 %v74, %v1673
    %v1675 = vand.u32 %v1674, 4294901760
    %1676 = vmatpush1.msra.mxu0 %v1675
    %1677 = vmatprep.subr.mxu0 0.0
    %v1678 = vand.u32 %v75, 4294901760
    %v1679 = vsub.f32 %v75, %v1678
    %v1680 = vand.u32 %v1679, 4294901760
    %1681 = vmatpush1.msra.mxu0 %v1680
    %1682 = vmatprep.subr.mxu0 0.0
    %v1683 = vand.u32 %v76, 4294901760
    %v1684 = vsub.f32 %v76, %v1683
    %v1685 = vand.u32 %v1684, 4294901760
    %1686 = vmatpush1.msra.mxu0 %v1685
    %1687 = vmatprep.subr.mxu0 0.0
    %v1688 = vand.u32 %v77, 4294901760
    %v1689 = vsub.f32 %v77, %v1688
    %v1690 = vand.u32 %v1689, 4294901760
    %1691 = vmatpush1.msra.mxu0 %v1690
    %1692 = vmatprep.subr.mxu0 0.0
    %v1693 = vand.u32 %v78, 4294901760
    %v1694 = vsub.f32 %v78, %v1693
    %v1695 = vand.u32 %v1694, 4294901760
    %1696 = vmatpush1.msra.mxu0 %v1695
    %1697 = vmatprep.subr.mxu0 0.0
    %v1698 = vand.u32 %v79, 4294901760
    %v1699 = vsub.f32 %v79, %v1698
    %v1700 = vand.u32 %v1699, 4294901760
    %1701 = vmatpush1.msra.mxu0 %v1700
    %1702 = vmatprep.subr.mxu0 0.0
    %v1703 = vand.u32 %v80, 4294901760
    %v1704 = vsub.f32 %v80, %v1703
    %v1705 = vand.u32 %v1704, 4294901760
    %1706 = vmatpush1.msra.mxu0 %v1705
    %1707 = vmatprep.subr.mxu0 0.0
    %v1708 = vand.u32 %v81, 4294901760
    %v1709 = vsub.f32 %v81, %v1708
    %v1710 = vand.u32 %v1709, 4294901760
    %1711 = vmatpush1.msra.mxu0 %v1710
    %1712 = vmatprep.subr.mxu0 0.0
    %v1713 = vand.u32 %v82, 4294901760
    %v1714 = vsub.f32 %v82, %v1713
    %v1715 = vand.u32 %v1714, 4294901760
    %1716 = vmatpush1.msra.mxu0 %v1715
    %1717 = vmatprep.subr.mxu0 0.0
    %v1718 = vand.u32 %v83, 4294901760
    %v1719 = vsub.f32 %v83, %v1718
    %v1720 = vand.u32 %v1719, 4294901760
    %1721 = vmatpush1.msra.mxu0 %v1720
    %1722 = vmatprep.subr.mxu0 0.0
    %v1723 = vand.u32 %v84, 4294901760
    %v1724 = vsub.f32 %v84, %v1723
    %v1725 = vand.u32 %v1724, 4294901760
    %1726 = vmatpush1.msra.mxu0 %v1725
    %1727 = vmatprep.subr.mxu0 0.0
    %v1728 = vand.u32 %v85, 4294901760
    %v1729 = vsub.f32 %v85, %v1728
    %v1730 = vand.u32 %v1729, 4294901760
    %1731 = vmatpush1.msra.mxu0 %v1730
    %1732 = vmatprep.subr.mxu0 0.0
    %v1733 = vand.u32 %v86, 4294901760
    %v1734 = vsub.f32 %v86, %v1733
    %v1735 = vand.u32 %v1734, 4294901760
    %1736 = vmatpush1.msra.mxu0 %v1735
    %v1737 = vand.u32 %v984, 4294901760
    %1738 = vmatprep.mubr.f32.mxu0 %v1737
    %v1739 = vand.u32 %v983, 4294901760
    %1740 = vmatmul.mubr.f32.gmra.mrb[0].mxu0 %v1739
    %v1741 = vpop.f32.mrb[0].mxu0
    %v1742 = vadd.f32 %v1574, %v1741
    %v1743 = vpop.f32.mrb[0].mxu0
    %1744 = vdwg.mxu0
    %1745 = vmatprep.subr.mxu0 0.0
    %v1746 = vand.u32 %v55, 4294901760
    %1747 = vmatpush1.msra.mxu0 %v1746
    %1748 = vmatprep.subr.mxu0 0.0
    %v1749 = vand.u32 %v56, 4294901760
    %1750 = vmatpush1.msra.mxu0 %v1749
    %1751 = vmatprep.subr.mxu0 0.0
    %v1752 = vand.u32 %v57, 4294901760
    %1753 = vmatpush1.msra.mxu0 %v1752
    %1754 = vmatprep.subr.mxu0 0.0
    %v1755 = vand.u32 %v58, 4294901760
    %1756 = vmatpush1.msra.mxu0 %v1755
    %1757 = vmatprep.subr.mxu0 0.0
    %v1758 = vand.u32 %v59, 4294901760
    %1759 = vmatpush1.msra.mxu0 %v1758
    %1760 = vmatprep.subr.mxu0 0.0
    %v1761 = vand.u32 %v60, 4294901760
    %1762 = vmatpush1.msra.mxu0 %v1761
    %1763 = vmatprep.subr.mxu0 0.0
    %v1764 = vand.u32 %v61, 4294901760
    %1765 = vmatpush1.msra.mxu0 %v1764
    %1766 = vmatprep.subr.mxu0 0.0
    %v1767 = vand.u32 %v62, 4294901760
    %1768 = vmatpush1.msra.mxu0 %v1767
    %1769 = vmatprep.subr.mxu0 0.0
    %v1770 = vand.u32 %v63, 4294901760
    %1771 = vmatpush1.msra.mxu0 %v1770
    %1772 = vmatprep.subr.mxu0 0.0
    %v1773 = vand.u32 %v64, 4294901760
    %1774 = vmatpush1.msra.mxu0 %v1773
    %1775 = vmatprep.subr.mxu0 0.0
    %v1776 = vand.u32 %v65, 4294901760
    %1777 = vmatpush1.msra.mxu0 %v1776
    %1778 = vmatprep.subr.mxu0 0.0
    %v1779 = vand.u32 %v66, 4294901760
    %1780 = vmatpush1.msra.mxu0 %v1779
    %1781 = vmatprep.subr.mxu0 0.0
    %v1782 = vand.u32 %v67, 4294901760
    %1783 = vmatpush1.msra.mxu0 %v1782
    %1784 = vmatprep.subr.mxu0 0.0
    %v1785 = vand.u32 %v68, 4294901760
    %1786 = vmatpush1.msra.mxu0 %v1785
    %1787 = vmatprep.subr.mxu0 0.0
    %v1788 = vand.u32 %v69, 4294901760
    %1789 = vmatpush1.msra.mxu0 %v1788
    %1790 = vmatprep.subr.mxu0 0.0
    %v1791 = vand.u32 %v70, 4294901760
    %1792 = vmatpush1.msra.mxu0 %v1791
    %1793 = vmatprep.subr.mxu0 0.0
    %v1794 = vand.u32 %v71, 4294901760
    %1795 = vmatpush1.msra.mxu0 %v1794
    %1796 = vmatprep.subr.mxu0 0.0
    %v1797 = vand.u32 %v72, 4294901760
    %1798 = vmatpush1.msra.mxu0 %v1797
    %1799 = vmatprep.subr.mxu0 0.0
    %v1800 = vand.u32 %v73, 4294901760
    %1801 = vmatpush1.msra.mxu0 %v1800
    %1802 = vmatprep.subr.mxu0 0.0
    %v1803 = vand.u32 %v74, 4294901760
    %1804 = vmatpush1.msra.mxu0 %v1803
    %1805 = vmatprep.subr.mxu0 0.0
    %v1806 = vand.u32 %v75, 4294901760
    %1807 = vmatpush1.msra.mxu0 %v1806
    %1808 = vmatprep.subr.mxu0 0.0
    %v1809 = vand.u32 %v76, 4294901760
    %1810 = vmatpush1.msra.mxu0 %v1809
    %1811 = vmatprep.subr.mxu0 0.0
    %v1812 = vand.u32 %v77, 4294901760
    %1813 = vmatpush1.msra.mxu0 %v1812
    %1814 = vmatprep.subr.mxu0 0.0
    %v1815 = vand.u32 %v78, 4294901760
    %1816 = vmatpush1.msra.mxu0 %v1815
    %1817 = vmatprep.subr.mxu0 0.0
    %v1818 = vand.u32 %v79, 4294901760
    %1819 = vmatpush1.msra.mxu0 %v1818
    %1820 = vmatprep.subr.mxu0 0.0
    %v1821 = vand.u32 %v80, 4294901760
    %1822 = vmatpush1.msra.mxu0 %v1821
    %1823 = vmatprep.subr.mxu0 0.0
    %v1824 = vand.u32 %v81, 4294901760
    %1825 = vmatpush1.msra.mxu0 %v1824
    %1826 = vmatprep.subr.mxu0 0.0
    %v1827 = vand.u32 %v82, 4294901760
    %1828 = vmatpush1.msra.mxu0 %v1827
    %1829 = vmatprep.subr.mxu0 0.0
    %v1830 = vand.u32 %v83, 4294901760
    %1831 = vmatpush1.msra.mxu0 %v1830
    %1832 = vmatprep.subr.mxu0 0.0
    %v1833 = vand.u32 %v84, 4294901760
    %1834 = vmatpush1.msra.mxu0 %v1833
    %1835 = vmatprep.subr.mxu0 0.0
    %v1836 = vand.u32 %v85, 4294901760
    %1837 = vmatpush1.msra.mxu0 %v1836
    %1838 = vmatprep.subr.mxu0 0.0
    %v1839 = vand.u32 %v86, 4294901760
    %1840 = vmatpush1.msra.mxu0 %v1839
    %v1841 = vand.u32 %v984, 4294901760
    %1842 = vmatprep.mubr.f32.mxu0 %v1841
    %v1843 = vand.u32 %v983, 4294901760
    %1844 = vmatmul.mubr.f32.gmra.mrb[0].mxu0 %v1843
    %v1845 = vpop.f32.mrb[0].mxu0
    %v1846 = vadd.f32 %v1742, %v1845
    %v1847 = vpop.f32.mrb[0].mxu0
    %1848 = vdwg.mxu0
    %v1849 = vsel %vm969, %v983, -inf
    %v1850 = vsel %vm969, %v984, -inf
    %v1851 = vmax.f32 %v1849, %v1850
    %1852 = vmax.xlane.f32.xlu0 %v1851
    %v1853 = vpop.xlane.xlu0 %1852
    %v1854 = vld [vmem:[#allocation2 + $0x8] sm:$0xf]
    %v1857 = vunpack.c.l.s4 1983009808
    %v1858 = vunpack.c.0.s8 %v1857
    %v1859 = vlaneseq
    %v1860 = vshrl.u32 %v1859, 7
    %v1861 = vsub.s32 %v1858, %v1860
    %v1862 = vrot.slane %v1854, %v1861
    %v1863 = vcombine.high %v1862, %v1862
    %1866 = vmatprep.subr.mxu0 0.0
    %v1867 = vand.u32 %v55, 4294901760
    %1868 = vmatpush1.msra.mxu0 %v1867
    %1869 = vmatprep.subr.mxu0 0.0
    %v1870 = vand.u32 %v56, 4294901760
    %1871 = vmatpush1.msra.mxu0 %v1870
    %1872 = vmatprep.subr.mxu0 0.0
    %v1873 = vand.u32 %v57, 4294901760
    %1874 = vmatpush1.msra.mxu0 %v1873
    %1875 = vmatprep.subr.mxu0 0.0
    %v1876 = vand.u32 %v58, 4294901760
    %1877 = vmatpush1.msra.mxu0 %v1876
    %1878 = vmatprep.subr.mxu0 0.0
    %v1879 = vand.u32 %v59, 4294901760
    %1880 = vmatpush1.msra.mxu0 %v1879
    %1881 = vmatprep.subr.mxu0 0.0
    %v1882 = vand.u32 %v60, 4294901760
    %1883 = vmatpush1.msra.mxu0 %v1882
    %1884 = vmatprep.subr.mxu0 0.0
    %v1885 = vand.u32 %v61, 4294901760
    %1886 = vmatpush1.msra.mxu0 %v1885
    %1887 = vmatprep.subr.mxu0 0.0
    %v1888 = vand.u32 %v62, 4294901760
    %1889 = vmatpush1.msra.mxu0 %v1888
    %1890 = vmatprep.subr.mxu0 0.0
    %v1891 = vand.u32 %v63, 4294901760
    %1892 = vmatpush1.msra.mxu0 %v1891
    %1893 = vmatprep.subr.mxu0 0.0
    %v1894 = vand.u32 %v64, 4294901760
    %1895 = vmatpush1.msra.mxu0 %v1894
    %1896 = vmatprep.subr.mxu0 0.0
    %v1897 = vand.u32 %v65, 4294901760
    %1898 = vmatpush1.msra.mxu0 %v1897
    %1899 = vmatprep.subr.mxu0 0.0
    %v1900 = vand.u32 %v66, 4294901760
    %1901 = vmatpush1.msra.mxu0 %v1900
    %1902 = vmatprep.subr.mxu0 0.0
    %v1903 = vand.u32 %v67, 4294901760
    %1904 = vmatpush1.msra.mxu0 %v1903
    %1905 = vmatprep.subr.mxu0 0.0
    %v1906 = vand.u32 %v68, 4294901760
    %1907 = vmatpush1.msra.mxu0 %v1906
    %1908 = vmatprep.subr.mxu0 0.0
    %v1909 = vand.u32 %v69, 4294901760
    %1910 = vmatpush1.msra.mxu0 %v1909
    %1911 = vmatprep.subr.mxu0 0.0
    %v1912 = vand.u32 %v70, 4294901760
    %1913 = vmatpush1.msra.mxu0 %v1912
    %1914 = vmatprep.subr.mxu0 0.0
    %v1915 = vand.u32 %v71, 4294901760
    %1916 = vmatpush1.msra.mxu0 %v1915
    %1917 = vmatprep.subr.mxu0 0.0
    %v1918 = vand.u32 %v72, 4294901760
    %1919 = vmatpush1.msra.mxu0 %v1918
    %1920 = vmatprep.subr.mxu0 0.0
    %v1921 = vand.u32 %v73, 4294901760
    %1922 = vmatpush1.msra.mxu0 %v1921
    %1923 = vmatprep.subr.mxu0 0.0
    %v1924 = vand.u32 %v74, 4294901760
    %1925 = vmatpush1.msra.mxu0 %v1924
    %1926 = vmatprep.subr.mxu0 0.0
    %v1927 = vand.u32 %v75, 4294901760
    %1928 = vmatpush1.msra.mxu0 %v1927
    %1929 = vmatprep.subr.mxu0 0.0
    %v1930 = vand.u32 %v76, 4294901760
    %1931 = vmatpush1.msra.mxu0 %v1930
    %1932 = vmatprep.subr.mxu0 0.0
    %v1933 = vand.u32 %v77, 4294901760
    %1934 = vmatpush1.msra.mxu0 %v1933
    %1935 = vmatprep.subr.mxu0 0.0
    %v1936 = vand.u32 %v78, 4294901760
    %1937 = vmatpush1.msra.mxu0 %v1936
    %1938 = vmatprep.subr.mxu0 0.0
    %v1939 = vand.u32 %v79, 4294901760
    %1940 = vmatpush1.msra.mxu0 %v1939
    %1941 = vmatprep.subr.mxu0 0.0
    %v1942 = vand.u32 %v80, 4294901760
    %1943 = vmatpush1.msra.mxu0 %v1942
    %1944 = vmatprep.subr.mxu0 0.0
    %v1945 = vand.u32 %v81, 4294901760
    %1946 = vmatpush1.msra.mxu0 %v1945
    %1947 = vmatprep.subr.mxu0 0.0
    %v1948 = vand.u32 %v82, 4294901760
    %1949 = vmatpush1.msra.mxu0 %v1948
    %1950 = vmatprep.subr.mxu0 0.0
    %v1951 = vand.u32 %v83, 4294901760
    %1952 = vmatpush1.msra.mxu0 %v1951
    %1953 = vmatprep.subr.mxu0 0.0
    %v1954 = vand.u32 %v84, 4294901760
    %1955 = vmatpush1.msra.mxu0 %v1954
    %1956 = vmatprep.subr.mxu0 0.0
    %v1957 = vand.u32 %v85, 4294901760
    %1958 = vmatpush1.msra.mxu0 %v1957
    %1959 = vmatprep.subr.mxu0 0.0
    %v1960 = vand.u32 %v86, 4294901760
    %1961 = vmatpush1.msra.mxu0 %v1960
    %v1962 = vand.u32 %v1863, 4294901760
    %v1963 = vsub.f32 %v1863, %v1962
    %v1964 = vand.u32 %v1963, 4294901760
    %v1965 = vsub.f32 %v1963, %v1964
    %v1966 = vand.u32 %v1965, 4294901760
    %1967 = vmatprep.mubr.f32.mxu0 %v1966
    %v1968 = vand.u32 %v1862, 4294901760
    %v1969 = vsub.f32 %v1862, %v1968
    %v1970 = vand.u32 %v1969, 4294901760
    %v1971 = vsub.f32 %v1969, %v1970
    %v1972 = vand.u32 %v1971, 4294901760
    %1973 = vmatmul.mubr.f32.gmra.mrb[0].mxu0 %v1972
    %v1974 = vpop.f32.mrb[0].mxu0
    %v1975 = vadd.f32 0.0, %v1974
    %v1976 = vpop.f32.mrb[0].mxu0
    %1977 = vdwg.mxu0
    %1978 = vmatprep.subr.mxu0 0.0
    %v1979 = vand.u32 %v55, 4294901760
    %v1980 = vsub.f32 %v55, %v1979
    %v1981 = vand.u32 %v1980, 4294901760
    %v1982 = vsub.f32 %v1980, %v1981
    %v1983 = vand.u32 %v1982, 4294901760
    %1984 = vmatpush1.msra.mxu0 %v1983
    %1985 = vmatprep.subr.mxu0 0.0
    %v1986 = vand.u32 %v56, 4294901760
    %v1987 = vsub.f32 %v56, %v1986
    %v1988 = vand.u32 %v1987, 4294901760
    %v1989 = vsub.f32 %v1987, %v1988
    %v1990 = vand.u32 %v1989, 4294901760
    %1991 = vmatpush1.msra.mxu0 %v1990
    %1992 = vmatprep.subr.mxu0 0.0
    %v1993 = vand.u32 %v57, 4294901760
    %v1994 = vsub.f32 %v57, %v1993
    %v1995 = vand.u32 %v1994, 4294901760
    %v1996 = vsub.f32 %v1994, %v1995
    %v1997 = vand.u32 %v1996, 4294901760
    %1998 = vmatpush1.msra.mxu0 %v1997
    %1999 = vmatprep.subr.mxu0 0.0
    %v2000 = vand.u32 %v58, 4294901760
    %v2001 = vsub.f32 %v58, %v2000
    %v2002 = vand.u32 %v2001, 4294901760
    %v2003 = vsub.f32 %v2001, %v2002
    %v2004 = vand.u32 %v2003, 4294901760
    %2005 = vmatpush1.msra.mxu0 %v2004
    %2006 = vmatprep.subr.mxu0 0.0
    %v2007 = vand.u32 %v59, 4294901760
    %v2008 = vsub.f32 %v59, %v2007
    %v2009 = vand.u32 %v2008, 4294901760
    %v2010 = vsub.f32 %v2008, %v2009
    %v2011 = vand.u32 %v2010, 4294901760
    %2012 = vmatpush1.msra.mxu0 %v2011
    %2013 = vmatprep.subr.mxu0 0.0
    %v2014 = vand.u32 %v60, 4294901760
    %v2015 = vsub.f32 %v60, %v2014
    %v2016 = vand.u32 %v2015, 4294901760
    %v2017 = vsub.f32 %v2015, %v2016
    %v2018 = vand.u32 %v2017, 4294901760
    %2019 = vmatpush1.msra.mxu0 %v2018
    %2020 = vmatprep.subr.mxu0 0.0
    %v2021 = vand.u32 %v61, 4294901760
    %v2022 = vsub.f32 %v61, %v2021
    %v2023 = vand.u32 %v2022, 4294901760
    %v2024 = vsub.f32 %v2022, %v2023
    %v2025 = vand.u32 %v2024, 4294901760
    %2026 = vmatpush1.msra.mxu0 %v2025
    %2027 = vmatprep.subr.mxu0 0.0
    %v2028 = vand.u32 %v62, 4294901760
    %v2029 = vsub.f32 %v62, %v2028
    %v2030 = vand.u32 %v2029, 4294901760
    %v2031 = vsub.f32 %v2029, %v2030
    %v2032 = vand.u32 %v2031, 4294901760
    %2033 = vmatpush1.msra.mxu0 %v2032
    %2034 = vmatprep.subr.mxu0 0.0
    %v2035 = vand.u32 %v63, 4294901760
    %v2036 = vsub.f32 %v63, %v2035
    %v2037 = vand.u32 %v2036, 4294901760
    %v2038 = vsub.f32 %v2036, %v2037
    %v2039 = vand.u32 %v2038, 4294901760
    %2040 = vmatpush1.msra.mxu0 %v2039
    %2041 = vmatprep.subr.mxu0 0.0
    %v2042 = vand.u32 %v64, 4294901760
    %v2043 = vsub.f32 %v64, %v2042
    %v2044 = vand.u32 %v2043, 4294901760
    %v2045 = vsub.f32 %v2043, %v2044
    %v2046 = vand.u32 %v2045, 4294901760
    %2047 = vmatpush1.msra.mxu0 %v2046
    %2048 = vmatprep.subr.mxu0 0.0
    %v2049 = vand.u32 %v65, 4294901760
    %v2050 = vsub.f32 %v65, %v2049
    %v2051 = vand.u32 %v2050, 4294901760
    %v2052 = vsub.f32 %v2050, %v2051
    %v2053 = vand.u32 %v2052, 4294901760
    %2054 = vmatpush1.msra.mxu0 %v2053
    %2055 = vmatprep.subr.mxu0 0.0
    %v2056 = vand.u32 %v66, 4294901760
    %v2057 = vsub.f32 %v66, %v2056
    %v2058 = vand.u32 %v2057, 4294901760
    %v2059 = vsub.f32 %v2057, %v2058
    %v2060 = vand.u32 %v2059, 4294901760
    %2061 = vmatpush1.msra.mxu0 %v2060
    %2062 = vmatprep.subr.mxu0 0.0
    %v2063 = vand.u32 %v67, 4294901760
    %v2064 = vsub.f32 %v67, %v2063
    %v2065 = vand.u32 %v2064, 4294901760
    %v2066 = vsub.f32 %v2064, %v2065
    %v2067 = vand.u32 %v2066, 4294901760
    %2068 = vmatpush1.msra.mxu0 %v2067
    %2069 = vmatprep.subr.mxu0 0.0
    %v2070 = vand.u32 %v68, 4294901760
    %v2071 = vsub.f32 %v68, %v2070
    %v2072 = vand.u32 %v2071, 4294901760
    %v2073 = vsub.f32 %v2071, %v2072
    %v2074 = vand.u32 %v2073, 4294901760
    %2075 = vmatpush1.msra.mxu0 %v2074
    %2076 = vmatprep.subr.mxu0 0.0
    %v2077 = vand.u32 %v69, 4294901760
    %v2078 = vsub.f32 %v69, %v2077
    %v2079 = vand.u32 %v2078, 4294901760
    %v2080 = vsub.f32 %v2078, %v2079
    %v2081 = vand.u32 %v2080, 4294901760
    %2082 = vmatpush1.msra.mxu0 %v2081
    %2083 = vmatprep.subr.mxu0 0.0
    %v2084 = vand.u32 %v70, 4294901760
    %v2085 = vsub.f32 %v70, %v2084
    %v2086 = vand.u32 %v2085, 4294901760
    %v2087 = vsub.f32 %v2085, %v2086
    %v2088 = vand.u32 %v2087, 4294901760
    %2089 = vmatpush1.msra.mxu0 %v2088
    %2090 = vmatprep.subr.mxu0 0.0
    %v2091 = vand.u32 %v71, 4294901760
    %v2092 = vsub.f32 %v71, %v2091
    %v2093 = vand.u32 %v2092, 4294901760
    %v2094 = vsub.f32 %v2092, %v2093
    %v2095 = vand.u32 %v2094, 4294901760
    %2096 = vmatpush1.msra.mxu0 %v2095
    %2097 = vmatprep.subr.mxu0 0.0
    %v2098 = vand.u32 %v72, 4294901760
    %v2099 = vsub.f32 %v72, %v2098
    %v2100 = vand.u32 %v2099, 4294901760
    %v2101 = vsub.f32 %v2099, %v2100
    %v2102 = vand.u32 %v2101, 4294901760
    %2103 = vmatpush1.msra.mxu0 %v2102
    %2104 = vmatprep.subr.mxu0 0.0
    %v2105 = vand.u32 %v73, 4294901760
    %v2106 = vsub.f32 %v73, %v2105
    %v2107 = vand.u32 %v2106, 4294901760
    %v2108 = vsub.f32 %v2106, %v2107
    %v2109 = vand.u32 %v2108, 4294901760
    %2110 = vmatpush1.msra.mxu0 %v2109
    %2111 = vmatprep.subr.mxu0 0.0
    %v2112 = vand.u32 %v74, 4294901760
    %v2113 = vsub.f32 %v74, %v2112
    %v2114 = vand.u32 %v2113, 4294901760
    %v2115 = vsub.f32 %v2113, %v2114
    %v2116 = vand.u32 %v2115, 4294901760
    %2117 = vmatpush1.msra.mxu0 %v2116
    %2118 = vmatprep.subr.mxu0 0.0
    %v2119 = vand.u32 %v75, 4294901760
    %v2120 = vsub.f32 %v75, %v2119
    %v2121 = vand.u32 %v2120, 4294901760
    %v2122 = vsub.f32 %v2120, %v2121
    %v2123 = vand.u32 %v2122, 4294901760
    %2124 = vmatpush1.msra.mxu0 %v2123
    %2125 = vmatprep.subr.mxu0 0.0
    %v2126 = vand.u32 %v76, 4294901760
    %v2127 = vsub.f32 %v76, %v2126
    %v2128 = vand.u32 %v2127, 4294901760
    %v2129 = vsub.f32 %v2127, %v2128
    %v2130 = vand.u32 %v2129, 4294901760
    %2131 = vmatpush1.msra.mxu0 %v2130
    %2132 = vmatprep.subr.mxu0 0.0
    %v2133 = vand.u32 %v77, 4294901760
    %v2134 = vsub.f32 %v77, %v2133
    %v2135 = vand.u32 %v2134, 4294901760
    %v2136 = vsub.f32 %v2134, %v2135
    %v2137 = vand.u32 %v2136, 4294901760
    %2138 = vmatpush1.msra.mxu0 %v2137
    %2139 = vmatprep.subr.mxu0 0.0
    %v2140 = vand.u32 %v78, 4294901760
    %v2141 = vsub.f32 %v78, %v2140
    %v2142 = vand.u32 %v2141, 4294901760
    %v2143 = vsub.f32 %v2141, %v2142
    %v2144 = vand.u32 %v2143, 4294901760
    %2145 = vmatpush1.msra.mxu0 %v2144
    %2146 = vmatprep.subr.mxu0 0.0
    %v2147 = vand.u32 %v79, 4294901760
    %v2148 = vsub.f32 %v79, %v2147
    %v2149 = vand.u32 %v2148, 4294901760
    %v2150 = vsub.f32 %v2148, %v2149
    %v2151 = vand.u32 %v2150, 4294901760
    %2152 = vmatpush1.msra.mxu0 %v2151
    %2153 = vmatprep.subr.mxu0 0.0
    %v2154 = vand.u32 %v80, 4294901760
    %v2155 = vsub.f32 %v80, %v2154
    %v2156 = vand.u32 %v2155, 4294901760
    %v2157 = vsub.f32 %v2155, %v2156
    %v2158 = vand.u32 %v2157, 4294901760
    %2159 = vmatpush1.msra.mxu0 %v2158
    %2160 = vmatprep.subr.mxu0 0.0
    %v2161 = vand.u32 %v81, 4294901760
    %v2162 = vsub.f32 %v81, %v2161
    %v2163 = vand.u32 %v2162, 4294901760
    %v2164 = vsub.f32 %v2162, %v2163
    %v2165 = vand.u32 %v2164, 4294901760
    %2166 = vmatpush1.msra.mxu0 %v2165
    %2167 = vmatprep.subr.mxu0 0.0
    %v2168 = vand.u32 %v82, 4294901760
    %v2169 = vsub.f32 %v82, %v2168
    %v2170 = vand.u32 %v2169, 4294901760
    %v2171 = vsub.f32 %v2169, %v2170
    %v2172 = vand.u32 %v2171, 4294901760
    %2173 = vmatpush1.msra.mxu0 %v2172
    %2174 = vmatprep.subr.mxu0 0.0
    %v2175 = vand.u32 %v83, 4294901760
    %v2176 = vsub.f32 %v83, %v2175
    %v2177 = vand.u32 %v2176, 4294901760
    %v2178 = vsub.f32 %v2176, %v2177
    %v2179 = vand.u32 %v2178, 4294901760
    %2180 = vmatpush1.msra.mxu0 %v2179
    %2181 = vmatprep.subr.mxu0 0.0
    %v2182 = vand.u32 %v84, 4294901760
    %v2183 = vsub.f32 %v84, %v2182
    %v2184 = vand.u32 %v2183, 4294901760
    %v2185 = vsub.f32 %v2183, %v2184
    %v2186 = vand.u32 %v2185, 4294901760
    %2187 = vmatpush1.msra.mxu0 %v2186
    %2188 = vmatprep.subr.mxu0 0.0
    %v2189 = vand.u32 %v85, 4294901760
    %v2190 = vsub.f32 %v85, %v2189
    %v2191 = vand.u32 %v2190, 4294901760
    %v2192 = vsub.f32 %v2190, %v2191
    %v2193 = vand.u32 %v2192, 4294901760
    %2194 = vmatpush1.msra.mxu0 %v2193
    %2195 = vmatprep.subr.mxu0 0.0
    %v2196 = vand.u32 %v86, 4294901760
    %v2197 = vsub.f32 %v86, %v2196
    %v2198 = vand.u32 %v2197, 4294901760
    %v2199 = vsub.f32 %v2197, %v2198
    %v2200 = vand.u32 %v2199, 4294901760
    %2201 = vmatpush1.msra.mxu0 %v2200
    %v2202 = vand.u32 %v1863, 4294901760
    %2203 = vmatprep.mubr.f32.mxu0 %v2202
    %v2204 = vand.u32 %v1862, 4294901760
    %2205 = vmatmul.mubr.f32.gmra.mrb[0].mxu0 %v2204
    %v2206 = vpop.f32.mrb[0].mxu0
    %v2207 = vadd.f32 %v1975, %v2206
    %v2208 = vpop.f32.mrb[0].mxu0
    %2209 = vdwg.mxu0
    %2210 = vmatprep.subr.mxu0 0.0
    %v2211 = vand.u32 %v55, 4294901760
    %v2212 = vsub.f32 %v55, %v2211
    %2213 = vmatpush1.msra.mxu0 %v2212
    %2214 = vmatprep.subr.mxu0 0.0
    %v2215 = vand.u32 %v56, 4294901760
    %v2216 = vsub.f32 %v56, %v2215
    %2217 = vmatpush1.msra.mxu0 %v2216
    %2218 = vmatprep.subr.mxu0 0.0
    %v2219 = vand.u32 %v57, 4294901760
    %v2220 = vsub.f32 %v57, %v2219
    %2221 = vmatpush1.msra.mxu0 %v2220
    %2222 = vmatprep.subr.mxu0 0.0
    %v2223 = vand.u32 %v58, 4294901760
    %v2224 = vsub.f32 %v58, %v2223
    %2225 = vmatpush1.msra.mxu0 %v2224
    %2226 = vmatprep.subr.mxu0 0.0
    %v2227 = vand.u32 %v59, 4294901760
    %v2228 = vsub.f32 %v59, %v2227
    %2229 = vmatpush1.msra.mxu0 %v2228
    %2230 = vmatprep.subr.mxu0 0.0
    %v2231 = vand.u32 %v60, 4294901760
    %v2232 = vsub.f32 %v60, %v2231
    %2233 = vmatpush1.msra.mxu0 %v2232
    %2234 = vmatprep.subr.mxu0 0.0
    %v2235 = vand.u32 %v61, 4294901760
    %v2236 = vsub.f32 %v61, %v2235
    %2237 = vmatpush1.msra.mxu0 %v2236
    %2238 = vmatprep.subr.mxu0 0.0
    %v2239 = vand.u32 %v62, 4294901760
    %v2240 = vsub.f32 %v62, %v2239
    %2241 = vmatpush1.msra.mxu0 %v2240
    %2242 = vmatprep.subr.mxu0 0.0
    %v2243 = vand.u32 %v63, 4294901760
    %v2244 = vsub.f32 %v63, %v2243
    %2245 = vmatpush1.msra.mxu0 %v2244
    %2246 = vmatprep.subr.mxu0 0.0
    %v2247 = vand.u32 %v64, 4294901760
    %v2248 = vsub.f32 %v64, %v2247
    %2249 = vmatpush1.msra.mxu0 %v2248
    %2250 = vmatprep.subr.mxu0 0.0
    %v2251 = vand.u32 %v65, 4294901760
    %v2252 = vsub.f32 %v65, %v2251
    %2253 = vmatpush1.msra.mxu0 %v2252
    %2254 = vmatprep.subr.mxu0 0.0
    %v2255 = vand.u32 %v66, 4294901760
    %v2256 = vsub.f32 %v66, %v2255
    %2257 = vmatpush1.msra.mxu0 %v2256
    %2258 = vmatprep.subr.mxu0 0.0
    %v2259 = vand.u32 %v67, 4294901760
    %v2260 = vsub.f32 %v67, %v2259
    %2261 = vmatpush1.msra.mxu0 %v2260
    %2262 = vmatprep.subr.mxu0 0.0
    %v2263 = vand.u32 %v68, 4294901760
    %v2264 = vsub.f32 %v68, %v2263
    %2265 = vmatpush1.msra.mxu0 %v2264
    %2266 = vmatprep.subr.mxu0 0.0
    %v2267 = vand.u32 %v69, 4294901760
    %v2268 = vsub.f32 %v69, %v2267
    %2269 = vmatpush1.msra.mxu0 %v2268
    %2270 = vmatprep.subr.mxu0 0.0
    %v2271 = vand.u32 %v70, 4294901760
    %v2272 = vsub.f32 %v70, %v2271
    %2273 = vmatpush1.msra.mxu0 %v2272
    %2274 = vmatprep.subr.mxu0 0.0
    %v2275 = vand.u32 %v71, 4294901760
    %v2276 = vsub.f32 %v71, %v2275
    %2277 = vmatpush1.msra.mxu0 %v2276
    %2278 = vmatprep.subr.mxu0 0.0
    %v2279 = vand.u32 %v72, 4294901760
    %v2280 = vsub.f32 %v72, %v2279
    %2281 = vmatpush1.msra.mxu0 %v2280
    %2282 = vmatprep.subr.mxu0 0.0
    %v2283 = vand.u32 %v73, 4294901760
    %v2284 = vsub.f32 %v73, %v2283
    %2285 = vmatpush1.msra.mxu0 %v2284
    %2286 = vmatprep.subr.mxu0 0.0
    %v2287 = vand.u32 %v74, 4294901760
    %v2288 = vsub.f32 %v74, %v2287
    %2289 = vmatpush1.msra.mxu0 %v2288
    %2290 = vmatprep.subr.mxu0 0.0
    %v2291 = vand.u32 %v75, 4294901760
    %v2292 = vsub.f32 %v75, %v2291
    %2293 = vmatpush1.msra.mxu0 %v2292
    %2294 = vmatprep.subr.mxu0 0.0
    %v2295 = vand.u32 %v76, 4294901760
    %v2296 = vsub.f32 %v76, %v2295
    %2297 = vmatpush1.msra.mxu0 %v2296
    %2298 = vmatprep.subr.mxu0 0.0
    %v2299 = vand.u32 %v77, 4294901760
    %v2300 = vsub.f32 %v77, %v2299
    %2301 = vmatpush1.msra.mxu0 %v2300
    %2302 = vmatprep.subr.mxu0 0.0
    %v2303 = vand.u32 %v78, 4294901760
    %v2304 = vsub.f32 %v78, %v2303
    %2305 = vmatpush1.msra.mxu0 %v2304
    %2306 = vmatprep.subr.mxu0 0.0
    %v2307 = vand.u32 %v79, 4294901760
    %v2308 = vsub.f32 %v79, %v2307
    %2309 = vmatpush1.msra.mxu0 %v2308
    %2310 = vmatprep.subr.mxu0 0.0
    %v2311 = vand.u32 %v80, 4294901760
    %v2312 = vsub.f32 %v80, %v2311
    %2313 = vmatpush1.msra.mxu0 %v2312
    %2314 = vmatprep.subr.mxu0 0.0
    %v2315 = vand.u32 %v81, 4294901760
    %v2316 = vsub.f32 %v81, %v2315
    %2317 = vmatpush1.msra.mxu0 %v2316
    %2318 = vmatprep.subr.mxu0 0.0
    %v2319 = vand.u32 %v82, 4294901760
    %v2320 = vsub.f32 %v82, %v2319
    %2321 = vmatpush1.msra.mxu0 %v2320
    %2322 = vmatprep.subr.mxu0 0.0
    %v2323 = vand.u32 %v83, 4294901760
    %v2324 = vsub.f32 %v83, %v2323
    %2325 = vmatpush1.msra.mxu0 %v2324
    %2326 = vmatprep.subr.mxu0 0.0
    %v2327 = vand.u32 %v84, 4294901760
    %v2328 = vsub.f32 %v84, %v2327
    %2329 = vmatpush1.msra.mxu0 %v2328
    %2330 = vmatprep.subr.mxu0 0.0
    %v2331 = vand.u32 %v85, 4294901760
    %v2332 = vsub.f32 %v85, %v2331
    %2333 = vmatpush1.msra.mxu0 %v2332
    %2334 = vmatprep.subr.mxu0 0.0
    %v2335 = vand.u32 %v86, 4294901760
    %v2336 = vsub.f32 %v86, %v2335
    %2337 = vmatpush1.msra.mxu0 %v2336
    %v2338 = vand.u32 %v1863, 4294901760
    %v2339 = vsub.f32 %v1863, %v2338
    %2340 = vmatprep.mubr.f32.mxu0 %v2339
    %v2341 = vand.u32 %v1862, 4294901760
    %v2342 = vsub.f32 %v1862, %v2341
    %2343 = vmatmul.mubr.f32.gmra.mrb[0].mxu0 %v2342
    %v2344 = vpop.f32.mrb[0].mxu0
    %v2345 = vadd.f32 %v2207, %v2344
    %v2346 = vpop.f32.mrb[0].mxu0
    %2347 = vdwg.mxu0
    %2348 = vmatprep.subr.mxu0 0.0
    %v2349 = vand.u32 %v55, 4294901760
    %2350 = vmatpush1.msra.mxu0 %v2349
    %2351 = vmatprep.subr.mxu0 0.0
    %v2352 = vand.u32 %v56, 4294901760
    %2353 = vmatpush1.msra.mxu0 %v2352
    %2354 = vmatprep.subr.mxu0 0.0
    %v2355 = vand.u32 %v57, 4294901760
    %2356 = vmatpush1.msra.mxu0 %v2355
    %2357 = vmatprep.subr.mxu0 0.0
    %v2358 = vand.u32 %v58, 4294901760
    %2359 = vmatpush1.msra.mxu0 %v2358
    %2360 = vmatprep.subr.mxu0 0.0
    %v2361 = vand.u32 %v59, 4294901760
    %2362 = vmatpush1.msra.mxu0 %v2361
    %2363 = vmatprep.subr.mxu0 0.0
    %v2364 = vand.u32 %v60, 4294901760
    %2365 = vmatpush1.msra.mxu0 %v2364
    %2366 = vmatprep.subr.mxu0 0.0
    %v2367 = vand.u32 %v61, 4294901760
    %2368 = vmatpush1.msra.mxu0 %v2367
    %2369 = vmatprep.subr.mxu0 0.0
    %v2370 = vand.u32 %v62, 4294901760
    %2371 = vmatpush1.msra.mxu0 %v2370
    %2372 = vmatprep.subr.mxu0 0.0
    %v2373 = vand.u32 %v63, 4294901760
    %2374 = vmatpush1.msra.mxu0 %v2373
    %2375 = vmatprep.subr.mxu0 0.0
    %v2376 = vand.u32 %v64, 4294901760
    %2377 = vmatpush1.msra.mxu0 %v2376
    %2378 = vmatprep.subr.mxu0 0.0
    %v2379 = vand.u32 %v65, 4294901760
    %2380 = vmatpush1.msra.mxu0 %v2379
    %2381 = vmatprep.subr.mxu0 0.0
    %v2382 = vand.u32 %v66, 4294901760
    %2383 = vmatpush1.msra.mxu0 %v2382
    %2384 = vmatprep.subr.mxu0 0.0
    %v2385 = vand.u32 %v67, 4294901760
    %2386 = vmatpush1.msra.mxu0 %v2385
    %2387 = vmatprep.subr.mxu0 0.0
    %v2388 = vand.u32 %v68, 4294901760
    %2389 = vmatpush1.msra.mxu0 %v2388
    %2390 = vmatprep.subr.mxu0 0.0
    %v2391 = vand.u32 %v69, 4294901760
    %2392 = vmatpush1.msra.mxu0 %v2391
    %2393 = vmatprep.subr.mxu0 0.0
    %v2394 = vand.u32 %v70, 4294901760
    %2395 = vmatpush1.msra.mxu0 %v2394
    %2396 = vmatprep.subr.mxu0 0.0
    %v2397 = vand.u32 %v71, 4294901760
    %2398 = vmatpush1.msra.mxu0 %v2397
    %2399 = vmatprep.subr.mxu0 0.0
    %v2400 = vand.u32 %v72, 4294901760
    %2401 = vmatpush1.msra.mxu0 %v2400
    %2402 = vmatprep.subr.mxu0 0.0
    %v2403 = vand.u32 %v73, 4294901760
    %2404 = vmatpush1.msra.mxu0 %v2403
    %2405 = vmatprep.subr.mxu0 0.0
    %v2406 = vand.u32 %v74, 4294901760
    %2407 = vmatpush1.msra.mxu0 %v2406
    %2408 = vmatprep.subr.mxu0 0.0
    %v2409 = vand.u32 %v75, 4294901760
    %2410 = vmatpush1.msra.mxu0 %v2409
    %2411 = vmatprep.subr.mxu0 0.0
    %v2412 = vand.u32 %v76, 4294901760
    %2413 = vmatpush1.msra.mxu0 %v2412
    %2414 = vmatprep.subr.mxu0 0.0
    %v2415 = vand.u32 %v77, 4294901760
    %2416 = vmatpush1.msra.mxu0 %v2415
    %2417 = vmatprep.subr.mxu0 0.0
    %v2418 = vand.u32 %v78, 4294901760
    %2419 = vmatpush1.msra.mxu0 %v2418
    %2420 = vmatprep.subr.mxu0 0.0
    %v2421 = vand.u32 %v79, 4294901760
    %2422 = vmatpush1.msra.mxu0 %v2421
    %2423 = vmatprep.subr.mxu0 0.0
    %v2424 = vand.u32 %v80, 4294901760
    %2425 = vmatpush1.msra.mxu0 %v2424
    %2426 = vmatprep.subr.mxu0 0.0
    %v2427 = vand.u32 %v81, 4294901760
    %2428 = vmatpush1.msra.mxu0 %v2427
    %2429 = vmatprep.subr.mxu0 0.0
    %v2430 = vand.u32 %v82, 4294901760
    %2431 = vmatpush1.msra.mxu0 %v2430
    %2432 = vmatprep.subr.mxu0 0.0
    %v2433 = vand.u32 %v83, 4294901760
    %2434 = vmatpush1.msra.mxu0 %v2433
    %2435 = vmatprep.subr.mxu0 0.0
    %v2436 = vand.u32 %v84, 4294901760
    %2437 = vmatpush1.msra.mxu0 %v2436
    %2438 = vmatprep.subr.mxu0 0.0
    %v2439 = vand.u32 %v85, 4294901760
    %2440 = vmatpush1.msra.mxu0 %v2439
    %2441 = vmatprep.subr.mxu0 0.0
    %v2442 = vand.u32 %v86, 4294901760
    %2443 = vmatpush1.msra.mxu0 %v2442
    %v2444 = vand.u32 %v1863, 4294901760
    %v2445 = vsub.f32 %v1863, %v2444
    %v2446 = vand.u32 %v2445, 4294901760
    %2447 = vmatprep.mubr.f32.mxu0 %v2446
    %v2448 = vand.u32 %v1862, 4294901760
    %v2449 = vsub.f32 %v1862, %v2448
    %v2450 = vand.u32 %v2449, 4294901760
    %2451 = vmatmul.mubr.f32.gmra.mrb[0].mxu0 %v2450
    %v2452 = vpop.f32.mrb[0].mxu0
    %v2453 = vadd.f32 %v2345, %v2452
    %v2454 = vpop.f32.mrb[0].mxu0
    %2455 = vdwg.mxu0
    %2456 = vmatprep.subr.mxu0 0.0
    %v2457 = vand.u32 %v55, 4294901760
    %v2458 = vsub.f32 %v55, %v2457
    %v2459 = vand.u32 %v2458, 4294901760
    %2460 = vmatpush1.msra.mxu0 %v2459
    %2461 = vmatprep.subr.mxu0 0.0
    %v2462 = vand.u32 %v56, 4294901760
    %v2463 = vsub.f32 %v56, %v2462
    %v2464 = vand.u32 %v2463, 4294901760
    %2465 = vmatpush1.msra.mxu0 %v2464
    %2466 = vmatprep.subr.mxu0 0.0
    %v2467 = vand.u32 %v57, 4294901760
    %v2468 = vsub.f32 %v57, %v2467
    %v2469 = vand.u32 %v2468, 4294901760
    %2470 = vmatpush1.msra.mxu0 %v2469
    %2471 = vmatprep.subr.mxu0 0.0
    %v2472 = vand.u32 %v58, 4294901760
    %v2473 = vsub.f32 %v58, %v2472
    %v2474 = vand.u32 %v2473, 4294901760
    %2475 = vmatpush1.msra.mxu0 %v2474
    %2476 = vmatprep.subr.mxu0 0.0
    %v2477 = vand.u32 %v59, 4294901760
    %v2478 = vsub.f32 %v59, %v2477
    %v2479 = vand.u32 %v2478, 4294901760
    %2480 = vmatpush1.msra.mxu0 %v2479
    %2481 = vmatprep.subr.mxu0 0.0
    %v2482 = vand.u32 %v60, 4294901760
    %v2483 = vsub.f32 %v60, %v2482
    %v2484 = vand.u32 %v2483, 4294901760
    %2485 = vmatpush1.msra.mxu0 %v2484
    %2486 = vmatprep.subr.mxu0 0.0
    %v2487 = vand.u32 %v61, 4294901760
    %v2488 = vsub.f32 %v61, %v2487
    %v2489 = vand.u32 %v2488, 4294901760
    %2490 = vmatpush1.msra.mxu0 %v2489
    %2491 = vmatprep.subr.mxu0 0.0
    %v2492 = vand.u32 %v62, 4294901760
    %v2493 = vsub.f32 %v62, %v2492
    %v2494 = vand.u32 %v2493, 4294901760
    %2495 = vmatpush1.msra.mxu0 %v2494
    %2496 = vmatprep.subr.mxu0 0.0
    %v2497 = vand.u32 %v63, 4294901760
    %v2498 = vsub.f32 %v63, %v2497
    %v2499 = vand.u32 %v2498, 4294901760
    %2500 = vmatpush1.msra.mxu0 %v2499
    %2501 = vmatprep.subr.mxu0 0.0
    %v2502 = vand.u32 %v64, 4294901760
    %v2503 = vsub.f32 %v64, %v2502
    %v2504 = vand.u32 %v2503, 4294901760
    %2505 = vmatpush1.msra.mxu0 %v2504
    %2506 = vmatprep.subr.mxu0 0.0
    %v2507 = vand.u32 %v65, 4294901760
    %v2508 = vsub.f32 %v65, %v2507
    %v2509 = vand.u32 %v2508, 4294901760
    %2510 = vmatpush1.msra.mxu0 %v2509
    %2511 = vmatprep.subr.mxu0 0.0
    %v2512 = vand.u32 %v66, 4294901760
    %v2513 = vsub.f32 %v66, %v2512
    %v2514 = vand.u32 %v2513, 4294901760
    %2515 = vmatpush1.msra.mxu0 %v2514
    %2516 = vmatprep.subr.mxu0 0.0
    %v2517 = vand.u32 %v67, 4294901760
    %v2518 = vsub.f32 %v67, %v2517
    %v2519 = vand.u32 %v2518, 4294901760
    %2520 = vmatpush1.msra.mxu0 %v2519
    %2521 = vmatprep.subr.mxu0 0.0
    %v2522 = vand.u32 %v68, 4294901760
    %v2523 = vsub.f32 %v68, %v2522
    %v2524 = vand.u32 %v2523, 4294901760
    %2525 = vmatpush1.msra.mxu0 %v2524
    %2526 = vmatprep.subr.mxu0 0.0
    %v2527 = vand.u32 %v69, 4294901760
    %v2528 = vsub.f32 %v69, %v2527
    %v2529 = vand.u32 %v2528, 4294901760
    %2530 = vmatpush1.msra.mxu0 %v2529
    %2531 = vmatprep.subr.mxu0 0.0
    %v2532 = vand.u32 %v70, 4294901760
    %v2533 = vsub.f32 %v70, %v2532
    %v2534 = vand.u32 %v2533, 4294901760
    %2535 = vmatpush1.msra.mxu0 %v2534
    %2536 = vmatprep.subr.mxu0 0.0
    %v2537 = vand.u32 %v71, 4294901760
    %v2538 = vsub.f32 %v71, %v2537
    %v2539 = vand.u32 %v2538, 4294901760
    %2540 = vmatpush1.msra.mxu0 %v2539
    %2541 = vmatprep.subr.mxu0 0.0
    %v2542 = vand.u32 %v72, 4294901760
    %v2543 = vsub.f32 %v72, %v2542
    %v2544 = vand.u32 %v2543, 4294901760
    %2545 = vmatpush1.msra.mxu0 %v2544
    %2546 = vmatprep.subr.mxu0 0.0
    %v2547 = vand.u32 %v73, 4294901760
    %v2548 = vsub.f32 %v73, %v2547
    %v2549 = vand.u32 %v2548, 4294901760
    %2550 = vmatpush1.msra.mxu0 %v2549
    %2551 = vmatprep.subr.mxu0 0.0
    %v2552 = vand.u32 %v74, 4294901760
    %v2553 = vsub.f32 %v74, %v2552
    %v2554 = vand.u32 %v2553, 4294901760
    %2555 = vmatpush1.msra.mxu0 %v2554
    %2556 = vmatprep.subr.mxu0 0.0
    %v2557 = vand.u32 %v75, 4294901760
    %v2558 = vsub.f32 %v75, %v2557
    %v2559 = vand.u32 %v2558, 4294901760
    %2560 = vmatpush1.msra.mxu0 %v2559
    %2561 = vmatprep.subr.mxu0 0.0
    %v2562 = vand.u32 %v76, 4294901760
    %v2563 = vsub.f32 %v76, %v2562
    %v2564 = vand.u32 %v2563, 4294901760
    %2565 = vmatpush1.msra.mxu0 %v2564
    %2566 = vmatprep.subr.mxu0 0.0
    %v2567 = vand.u32 %v77, 4294901760
    %v2568 = vsub.f32 %v77, %v2567
    %v2569 = vand.u32 %v2568, 4294901760
    %2570 = vmatpush1.msra.mxu0 %v2569
    %2571 = vmatprep.subr.mxu0 0.0
    %v2572 = vand.u32 %v78, 4294901760
    %v2573 = vsub.f32 %v78, %v2572
    %v2574 = vand.u32 %v2573, 4294901760
    %2575 = vmatpush1.msra.mxu0 %v2574
    %2576 = vmatprep.subr.mxu0 0.0
    %v2577 = vand.u32 %v79, 4294901760
    %v2578 = vsub.f32 %v79, %v2577
    %v2579 = vand.u32 %v2578, 4294901760
    %2580 = vmatpush1.msra.mxu0 %v2579
    %2581 = vmatprep.subr.mxu0 0.0
    %v2582 = vand.u32 %v80, 4294901760
    %v2583 = vsub.f32 %v80, %v2582
    %v2584 = vand.u32 %v2583, 4294901760
    %2585 = vmatpush1.msra.mxu0 %v2584
    %2586 = vmatprep.subr.mxu0 0.0
    %v2587 = vand.u32 %v81, 4294901760
    %v2588 = vsub.f32 %v81, %v2587
    %v2589 = vand.u32 %v2588, 4294901760
    %2590 = vmatpush1.msra.mxu0 %v2589
    %2591 = vmatprep.subr.mxu0 0.0
    %v2592 = vand.u32 %v82, 4294901760
    %v2593 = vsub.f32 %v82, %v2592
    %v2594 = vand.u32 %v2593, 4294901760
    %2595 = vmatpush1.msra.mxu0 %v2594
    %2596 = vmatprep.subr.mxu0 0.0
    %v2597 = vand.u32 %v83, 4294901760
    %v2598 = vsub.f32 %v83, %v2597
    %v2599 = vand.u32 %v2598, 4294901760
    %2600 = vmatpush1.msra.mxu0 %v2599
    %2601 = vmatprep.subr.mxu0 0.0
    %v2602 = vand.u32 %v84, 4294901760
    %v2603 = vsub.f32 %v84, %v2602
    %v2604 = vand.u32 %v2603, 4294901760
    %2605 = vmatpush1.msra.mxu0 %v2604
    %2606 = vmatprep.subr.mxu0 0.0
    %v2607 = vand.u32 %v85, 4294901760
    %v2608 = vsub.f32 %v85, %v2607
    %v2609 = vand.u32 %v2608, 4294901760
    %2610 = vmatpush1.msra.mxu0 %v2609
    %2611 = vmatprep.subr.mxu0 0.0
    %v2612 = vand.u32 %v86, 4294901760
    %v2613 = vsub.f32 %v86, %v2612
    %v2614 = vand.u32 %v2613, 4294901760
    %2615 = vmatpush1.msra.mxu0 %v2614
    %v2616 = vand.u32 %v1863, 4294901760
    %2617 = vmatprep.mubr.f32.mxu0 %v2616
    %v2618 = vand.u32 %v1862, 4294901760
    %2619 = vmatmul.mubr.f32.gmra.mrb[0].mxu0 %v2618
    %v2620 = vpop.f32.mrb[0].mxu0
    %v2621 = vadd.f32 %v2453, %v2620
    %v2622 = vpop.f32.mrb[0].mxu0
    %2623 = vdwg.mxu0
    %2624 = vmatprep.subr.mxu0 0.0
    %v2625 = vand.u32 %v55, 4294901760
    %2626 = vmatpush1.msra.mxu0 %v2625
    %2627 = vmatprep.subr.mxu0 0.0
    %v2628 = vand.u32 %v56, 4294901760
    %2629 = vmatpush1.msra.mxu0 %v2628
    %2630 = vmatprep.subr.mxu0 0.0
    %v2631 = vand.u32 %v57, 4294901760
    %2632 = vmatpush1.msra.mxu0 %v2631
    %2633 = vmatprep.subr.mxu0 0.0
    %v2634 = vand.u32 %v58, 4294901760
    %2635 = vmatpush1.msra.mxu0 %v2634
    %2636 = vmatprep.subr.mxu0 0.0
    %v2637 = vand.u32 %v59, 4294901760
    %2638 = vmatpush1.msra.mxu0 %v2637
    %2639 = vmatprep.subr.mxu0 0.0
    %v2640 = vand.u32 %v60, 4294901760
    %2641 = vmatpush1.msra.mxu0 %v2640
    %2642 = vmatprep.subr.mxu0 0.0
    %v2643 = vand.u32 %v61, 4294901760
    %2644 = vmatpush1.msra.mxu0 %v2643
    %2645 = vmatprep.subr.mxu0 0.0
    %v2646 = vand.u32 %v62, 4294901760
    %2647 = vmatpush1.msra.mxu0 %v2646
    %2648 = vmatprep.subr.mxu0 0.0
    %v2649 = vand.u32 %v63, 4294901760
    %2650 = vmatpush1.msra.mxu0 %v2649
    %2651 = vmatprep.subr.mxu0 0.0
    %v2652 = vand.u32 %v64, 4294901760
    %2653 = vmatpush1.msra.mxu0 %v2652
    %2654 = vmatprep.subr.mxu0 0.0
    %v2655 = vand.u32 %v65, 4294901760
    %2656 = vmatpush1.msra.mxu0 %v2655
    %2657 = vmatprep.subr.mxu0 0.0
    %v2658 = vand.u32 %v66, 4294901760
    %2659 = vmatpush1.msra.mxu0 %v2658
    %2660 = vmatprep.subr.mxu0 0.0
    %v2661 = vand.u32 %v67, 4294901760
    %2662 = vmatpush1.msra.mxu0 %v2661
    %2663 = vmatprep.subr.mxu0 0.0
    %v2664 = vand.u32 %v68, 4294901760
    %2665 = vmatpush1.msra.mxu0 %v2664
    %2666 = vmatprep.subr.mxu0 0.0
    %v2667 = vand.u32 %v69, 4294901760
    %2668 = vmatpush1.msra.mxu0 %v2667
    %2669 = vmatprep.subr.mxu0 0.0
    %v2670 = vand.u32 %v70, 4294901760
    %2671 = vmatpush1.msra.mxu0 %v2670
    %2672 = vmatprep.subr.mxu0 0.0
    %v2673 = vand.u32 %v71, 4294901760
    %2674 = vmatpush1.msra.mxu0 %v2673
    %2675 = vmatprep.subr.mxu0 0.0
    %v2676 = vand.u32 %v72, 4294901760
    %2677 = vmatpush1.msra.mxu0 %v2676
    %2678 = vmatprep.subr.mxu0 0.0
    %v2679 = vand.u32 %v73, 4294901760
    %2680 = vmatpush1.msra.mxu0 %v2679
    %2681 = vmatprep.subr.mxu0 0.0
    %v2682 = vand.u32 %v74, 4294901760
    %2683 = vmatpush1.msra.mxu0 %v2682
    %2684 = vmatprep.subr.mxu0 0.0
    %v2685 = vand.u32 %v75, 4294901760
    %2686 = vmatpush1.msra.mxu0 %v2685
    %2687 = vmatprep.subr.mxu0 0.0
    %v2688 = vand.u32 %v76, 4294901760
    %2689 = vmatpush1.msra.mxu0 %v2688
    %2690 = vmatprep.subr.mxu0 0.0
    %v2691 = vand.u32 %v77, 4294901760
    %2692 = vmatpush1.msra.mxu0 %v2691
    %2693 = vmatprep.subr.mxu0 0.0
    %v2694 = vand.u32 %v78, 4294901760
    %2695 = vmatpush1.msra.mxu0 %v2694
    %2696 = vmatprep.subr.mxu0 0.0
    %v2697 = vand.u32 %v79, 4294901760
    %2698 = vmatpush1.msra.mxu0 %v2697
    %2699 = vmatprep.subr.mxu0 0.0
    %v2700 = vand.u32 %v80, 4294901760
    %2701 = vmatpush1.msra.mxu0 %v2700
    %2702 = vmatprep.subr.mxu0 0.0
    %v2703 = vand.u32 %v81, 4294901760
    %2704 = vmatpush1.msra.mxu0 %v2703
    %2705 = vmatprep.subr.mxu0 0.0
    %v2706 = vand.u32 %v82, 4294901760
    %2707 = vmatpush1.msra.mxu0 %v2706
    %2708 = vmatprep.subr.mxu0 0.0
    %v2709 = vand.u32 %v83, 4294901760
    %2710 = vmatpush1.msra.mxu0 %v2709
    %2711 = vmatprep.subr.mxu0 0.0
    %v2712 = vand.u32 %v84, 4294901760
    %2713 = vmatpush1.msra.mxu0 %v2712
    %2714 = vmatprep.subr.mxu0 0.0
    %v2715 = vand.u32 %v85, 4294901760
    %2716 = vmatpush1.msra.mxu0 %v2715
    %2717 = vmatprep.subr.mxu0 0.0
    %v2718 = vand.u32 %v86, 4294901760
    %2719 = vmatpush1.msra.mxu0 %v2718
    %v2720 = vand.u32 %v1863, 4294901760
    %2721 = vmatprep.mubr.f32.mxu0 %v2720
    %v2722 = vand.u32 %v1862, 4294901760
    %2723 = vmatmul.mubr.f32.gmra.mrb[0].mxu0 %v2722
    %v2724 = vpop.f32.mrb[0].mxu0
    %v2725 = vadd.f32 %v2621, %v2724
    %v2726 = vpop.f32.mrb[0].mxu0
    %2727 = vdwg.mxu0
    %v2728 = vsel %vm969, %v1862, -inf
    %v2729 = vsel %vm969, %v1863, -inf
    %v2730 = vmax.f32 %v2728, %v2729
    %2731 = vmax.xlane.f32.xlu0 %v2730
    %v2732 = vpop.xlane.xlu0 %2731
    %v2733 = vld [vmem:[#allocation2 + $0xc] sm:$0xf]
    %v2736 = vunpack.c.l.s4 1983009808
    %v2737 = vunpack.c.0.s8 %v2736
    %v2738 = vlaneseq
    %v2739 = vshrl.u32 %v2738, 7
    %v2740 = vsub.s32 %v2737, %v2739
    %v2741 = vrot.slane %v2733, %v2740
    %v2742 = vcombine.high %v2741, %v2741
    %2745 = vmatprep.subr.mxu0 0.0
    %v2746 = vand.u32 %v55, 4294901760
    %2747 = vmatpush1.msra.mxu0 %v2746
    %2748 = vmatprep.subr.mxu0 0.0
    %v2749 = vand.u32 %v56, 4294901760
    %2750 = vmatpush1.msra.mxu0 %v2749
    %2751 = vmatprep.subr.mxu0 0.0
    %v2752 = vand.u32 %v57, 4294901760
    %2753 = vmatpush1.msra.mxu0 %v2752
    %2754 = vmatprep.subr.mxu0 0.0
    %v2755 = vand.u32 %v58, 4294901760
    %2756 = vmatpush1.msra.mxu0 %v2755
    %2757 = vmatprep.subr.mxu0 0.0
    %v2758 = vand.u32 %v59, 4294901760
    %2759 = vmatpush1.msra.mxu0 %v2758
    %2760 = vmatprep.subr.mxu0 0.0
    %v2761 = vand.u32 %v60, 4294901760
    %2762 = vmatpush1.msra.mxu0 %v2761
    %2763 = vmatprep.subr.mxu0 0.0
    %v2764 = vand.u32 %v61, 4294901760
    %2765 = vmatpush1.msra.mxu0 %v2764
    %2766 = vmatprep.subr.mxu0 0.0
    %v2767 = vand.u32 %v62, 4294901760
    %2768 = vmatpush1.msra.mxu0 %v2767
    %2769 = vmatprep.subr.mxu0 0.0
    %v2770 = vand.u32 %v63, 4294901760
    %2771 = vmatpush1.msra.mxu0 %v2770
    %2772 = vmatprep.subr.mxu0 0.0
    %v2773 = vand.u32 %v64, 4294901760
    %2774 = vmatpush1.msra.mxu0 %v2773
    %2775 = vmatprep.subr.mxu0 0.0
    %v2776 = vand.u32 %v65, 4294901760
    %2777 = vmatpush1.msra.mxu0 %v2776
    %2778 = vmatprep.subr.mxu0 0.0
    %v2779 = vand.u32 %v66, 4294901760
    %2780 = vmatpush1.msra.mxu0 %v2779
    %2781 = vmatprep.subr.mxu0 0.0
    %v2782 = vand.u32 %v67, 4294901760
    %2783 = vmatpush1.msra.mxu0 %v2782
    %2784 = vmatprep.subr.mxu0 0.0
    %v2785 = vand.u32 %v68, 4294901760
    %2786 = vmatpush1.msra.mxu0 %v2785
    %2787 = vmatprep.subr.mxu0 0.0
    %v2788 = vand.u32 %v69, 4294901760
    %2789 = vmatpush1.msra.mxu0 %v2788
    %2790 = vmatprep.subr.mxu0 0.0
    %v2791 = vand.u32 %v70, 4294901760
    %2792 = vmatpush1.msra.mxu0 %v2791
    %2793 = vmatprep.subr.mxu0 0.0
    %v2794 = vand.u32 %v71, 4294901760
    %2795 = vmatpush1.msra.mxu0 %v2794
    %2796 = vmatprep.subr.mxu0 0.0
    %v2797 = vand.u32 %v72, 4294901760
    %2798 = vmatpush1.msra.mxu0 %v2797
    %2799 = vmatprep.subr.mxu0 0.0
    %v2800 = vand.u32 %v73, 4294901760
    %2801 = vmatpush1.msra.mxu0 %v2800
    %2802 = vmatprep.subr.mxu0 0.0
    %v2803 = vand.u32 %v74, 4294901760
    %2804 = vmatpush1.msra.mxu0 %v2803
    %2805 = vmatprep.subr.mxu0 0.0
    %v2806 = vand.u32 %v75, 4294901760
    %2807 = vmatpush1.msra.mxu0 %v2806
    %2808 = vmatprep.subr.mxu0 0.0
    %v2809 = vand.u32 %v76, 4294901760
    %2810 = vmatpush1.msra.mxu0 %v2809
    %2811 = vmatprep.subr.mxu0 0.0
    %v2812 = vand.u32 %v77, 4294901760
    %2813 = vmatpush1.msra.mxu0 %v2812
    %2814 = vmatprep.subr.mxu0 0.0
    %v2815 = vand.u32 %v78, 4294901760
    %2816 = vmatpush1.msra.mxu0 %v2815
    %2817 = vmatprep.subr.mxu0 0.0
    %v2818 = vand.u32 %v79, 4294901760
    %2819 = vmatpush1.msra.mxu0 %v2818
    %2820 = vmatprep.subr.mxu0 0.0
    %v2821 = vand.u32 %v80, 4294901760
    %2822 = vmatpush1.msra.mxu0 %v2821
    %2823 = vmatprep.subr.mxu0 0.0
    %v2824 = vand.u32 %v81, 4294901760
    %2825 = vmatpush1.msra.mxu0 %v2824
    %2826 = vmatprep.subr.mxu0 0.0
    %v2827 = vand.u32 %v82, 4294901760
    %2828 = vmatpush1.msra.mxu0 %v2827
    %2829 = vmatprep.subr.mxu0 0.0
    %v2830 = vand.u32 %v83, 4294901760
    %2831 = vmatpush1.msra.mxu0 %v2830
    %2832 = vmatprep.subr.mxu0 0.0
    %v2833 = vand.u32 %v84, 4294901760
    %2834 = vmatpush1.msra.mxu0 %v2833
    %2835 = vmatprep.subr.mxu0 0.0
    %v2836 = vand.u32 %v85, 4294901760
    %2837 = vmatpush1.msra.mxu0 %v2836
    %2838 = vmatprep.subr.mxu0 0.0
    %v2839 = vand.u32 %v86, 4294901760
    %2840 = vmatpush1.msra.mxu0 %v2839
    %v2841 = vand.u32 %v2742, 4294901760
    %v2842 = vsub.f32 %v2742, %v2841
    %v2843 = vand.u32 %v2842, 4294901760
    %v2844 = vsub.f32 %v2842, %v2843
    %v2845 = vand.u32 %v2844, 4294901760
    %2846 = vmatprep.mubr.f32.mxu0 %v2845
    %v2847 = vand.u32 %v2741, 4294901760
    %v2848 = vsub.f32 %v2741, %v2847
    %v2849 = vand.u32 %v2848, 4294901760
    %v2850 = vsub.f32 %v2848, %v2849
    %v2851 = vand.u32 %v2850, 4294901760
    %2852 = vmatmul.mubr.f32.gmra.mrb[0].mxu0 %v2851
    %v2853 = vpop.f32.mrb[0].mxu0
    %v2854 = vadd.f32 0.0, %v2853
    %v2855 = vpop.f32.mrb[0].mxu0
    %2856 = vdwg.mxu0
    %2857 = vmatprep.subr.mxu0 0.0
    %v2858 = vand.u32 %v55, 4294901760
    %v2859 = vsub.f32 %v55, %v2858
    %v2860 = vand.u32 %v2859, 4294901760
    %v2861 = vsub.f32 %v2859, %v2860
    %v2862 = vand.u32 %v2861, 4294901760
    %2863 = vmatpush1.msra.mxu0 %v2862
    %2864 = vmatprep.subr.mxu0 0.0
    %v2865 = vand.u32 %v56, 4294901760
    %v2866 = vsub.f32 %v56, %v2865
    %v2867 = vand.u32 %v2866, 4294901760
    %v2868 = vsub.f32 %v2866, %v2867
    %v2869 = vand.u32 %v2868, 4294901760
    %2870 = vmatpush1.msra.mxu0 %v2869
    %2871 = vmatprep.subr.mxu0 0.0
    %v2872 = vand.u32 %v57, 4294901760
    %v2873 = vsub.f32 %v57, %v2872
    %v2874 = vand.u32 %v2873, 4294901760
    %v2875 = vsub.f32 %v2873, %v2874
    %v2876 = vand.u32 %v2875, 4294901760
    %2877 = vmatpush1.msra.mxu0 %v2876
    %2878 = vmatprep.subr.mxu0 0.0
    %v2879 = vand.u32 %v58, 4294901760
    %v2880 = vsub.f32 %v58, %v2879
    %v2881 = vand.u32 %v2880, 4294901760
    %v2882 = vsub.f32 %v2880, %v2881
    %v2883 = vand.u32 %v2882, 4294901760
    %2884 = vmatpush1.msra.mxu0 %v2883
    %2885 = vmatprep.subr.mxu0 0.0
    %v2886 = vand.u32 %v59, 4294901760
    %v2887 = vsub.f32 %v59, %v2886
    %v2888 = vand.u32 %v2887, 4294901760
    %v2889 = vsub.f32 %v2887, %v2888
    %v2890 = vand.u32 %v2889, 4294901760
    %2891 = vmatpush1.msra.mxu0 %v2890
    %2892 = vmatprep.subr.mxu0 0.0
    %v2893 = vand.u32 %v60, 4294901760
    %v2894 = vsub.f32 %v60, %v2893
    %v2895 = vand.u32 %v2894, 4294901760
    %v2896 = vsub.f32 %v2894, %v2895
    %v2897 = vand.u32 %v2896, 4294901760
    %2898 = vmatpush1.msra.mxu0 %v2897
    %2899 = vmatprep.subr.mxu0 0.0
    %v2900 = vand.u32 %v61, 4294901760
    %v2901 = vsub.f32 %v61, %v2900
    %v2902 = vand.u32 %v2901, 4294901760
    %v2903 = vsub.f32 %v2901, %v2902
    %v2904 = vand.u32 %v2903, 4294901760
    %2905 = vmatpush1.msra.mxu0 %v2904
    %2906 = vmatprep.subr.mxu0 0.0
    %v2907 = vand.u32 %v62, 4294901760
    %v2908 = vsub.f32 %v62, %v2907
    %v2909 = vand.u32 %v2908, 4294901760
    %v2910 = vsub.f32 %v2908, %v2909
    %v2911 = vand.u32 %v2910, 4294901760
    %2912 = vmatpush1.msra.mxu0 %v2911
    %2913 = vmatprep.subr.mxu0 0.0
    %v2914 = vand.u32 %v63, 4294901760
    %v2915 = vsub.f32 %v63, %v2914
    %v2916 = vand.u32 %v2915, 4294901760
    %v2917 = vsub.f32 %v2915, %v2916
    %v2918 = vand.u32 %v2917, 4294901760
    %2919 = vmatpush1.msra.mxu0 %v2918
    %2920 = vmatprep.subr.mxu0 0.0
    %v2921 = vand.u32 %v64, 4294901760
    %v2922 = vsub.f32 %v64, %v2921
    %v2923 = vand.u32 %v2922, 4294901760
    %v2924 = vsub.f32 %v2922, %v2923
    %v2925 = vand.u32 %v2924, 4294901760
    %2926 = vmatpush1.msra.mxu0 %v2925
    %2927 = vmatprep.subr.mxu0 0.0
    %v2928 = vand.u32 %v65, 4294901760
    %v2929 = vsub.f32 %v65, %v2928
    %v2930 = vand.u32 %v2929, 4294901760
    %v2931 = vsub.f32 %v2929, %v2930
    %v2932 = vand.u32 %v2931, 4294901760
    %2933 = vmatpush1.msra.mxu0 %v2932
    %2934 = vmatprep.subr.mxu0 0.0
    %v2935 = vand.u32 %v66, 4294901760
    %v2936 = vsub.f32 %v66, %v2935
    %v2937 = vand.u32 %v2936, 4294901760
    %v2938 = vsub.f32 %v2936, %v2937
    %v2939 = vand.u32 %v2938, 4294901760
    %2940 = vmatpush1.msra.mxu0 %v2939
    %2941 = vmatprep.subr.mxu0 0.0
    %v2942 = vand.u32 %v67, 4294901760
    %v2943 = vsub.f32 %v67, %v2942
    %v2944 = vand.u32 %v2943, 4294901760
    %v2945 = vsub.f32 %v2943, %v2944
    %v2946 = vand.u32 %v2945, 4294901760
    %2947 = vmatpush1.msra.mxu0 %v2946
    %2948 = vmatprep.subr.mxu0 0.0
    %v2949 = vand.u32 %v68, 4294901760
    %v2950 = vsub.f32 %v68, %v2949
    %v2951 = vand.u32 %v2950, 4294901760
    %v2952 = vsub.f32 %v2950, %v2951
    %v2953 = vand.u32 %v2952, 4294901760
    %2954 = vmatpush1.msra.mxu0 %v2953
    %2955 = vmatprep.subr.mxu0 0.0
    %v2956 = vand.u32 %v69, 4294901760
    %v2957 = vsub.f32 %v69, %v2956
    %v2958 = vand.u32 %v2957, 4294901760
    %v2959 = vsub.f32 %v2957, %v2958
    %v2960 = vand.u32 %v2959, 4294901760
    %2961 = vmatpush1.msra.mxu0 %v2960
    %2962 = vmatprep.subr.mxu0 0.0
    %v2963 = vand.u32 %v70, 4294901760
    %v2964 = vsub.f32 %v70, %v2963
    %v2965 = vand.u32 %v2964, 4294901760
    %v2966 = vsub.f32 %v2964, %v2965
    %v2967 = vand.u32 %v2966, 4294901760
    %2968 = vmatpush1.msra.mxu0 %v2967
    %2969 = vmatprep.subr.mxu0 0.0
    %v2970 = vand.u32 %v71, 4294901760
    %v2971 = vsub.f32 %v71, %v2970
    %v2972 = vand.u32 %v2971, 4294901760
    %v2973 = vsub.f32 %v2971, %v2972
    %v2974 = vand.u32 %v2973, 4294901760
    %2975 = vmatpush1.msra.mxu0 %v2974
    %2976 = vmatprep.subr.mxu0 0.0
    %v2977 = vand.u32 %v72, 4294901760
    %v2978 = vsub.f32 %v72, %v2977
    %v2979 = vand.u32 %v2978, 4294901760
    %v2980 = vsub.f32 %v2978, %v2979
    %v2981 = vand.u32 %v2980, 4294901760
    %2982 = vmatpush1.msra.mxu0 %v2981
    %2983 = vmatprep.subr.mxu0 0.0
    %v2984 = vand.u32 %v73, 4294901760
    %v2985 = vsub.f32 %v73, %v2984
    %v2986 = vand.u32 %v2985, 4294901760
    %v2987 = vsub.f32 %v2985, %v2986
    %v2988 = vand.u32 %v2987, 4294901760
    %2989 = vmatpush1.msra.mxu0 %v2988
    %2990 = vmatprep.subr.mxu0 0.0
    %v2991 = vand.u32 %v74, 4294901760
    %v2992 = vsub.f32 %v74, %v2991
    %v2993 = vand.u32 %v2992, 4294901760
    %v2994 = vsub.f32 %v2992, %v2993
    %v2995 = vand.u32 %v2994, 4294901760
    %2996 = vmatpush1.msra.mxu0 %v2995
    %2997 = vmatprep.subr.mxu0 0.0
    %v2998 = vand.u32 %v75, 4294901760
    %v2999 = vsub.f32 %v75, %v2998
    %v3000 = vand.u32 %v2999, 4294901760
    %v3001 = vsub.f32 %v2999, %v3000
    %v3002 = vand.u32 %v3001, 4294901760
    %3003 = vmatpush1.msra.mxu0 %v3002
    %3004 = vmatprep.subr.mxu0 0.0
    %v3005 = vand.u32 %v76, 4294901760
    %v3006 = vsub.f32 %v76, %v3005
    %v3007 = vand.u32 %v3006, 4294901760
    %v3008 = vsub.f32 %v3006, %v3007
    %v3009 = vand.u32 %v3008, 4294901760
    %3010 = vmatpush1.msra.mxu0 %v3009
    %3011 = vmatprep.subr.mxu0 0.0
    %v3012 = vand.u32 %v77, 4294901760
    %v3013 = vsub.f32 %v77, %v3012
    %v3014 = vand.u32 %v3013, 4294901760
    %v3015 = vsub.f32 %v3013, %v3014
    %v3016 = vand.u32 %v3015, 4294901760
    %3017 = vmatpush1.msra.mxu0 %v3016
    %3018 = vmatprep.subr.mxu0 0.0
    %v3019 = vand.u32 %v78, 4294901760
    %v3020 = vsub.f32 %v78, %v3019
    %v3021 = vand.u32 %v3020, 4294901760
    %v3022 = vsub.f32 %v3020, %v3021
    %v3023 = vand.u32 %v3022, 4294901760
    %3024 = vmatpush1.msra.mxu0 %v3023
    %3025 = vmatprep.subr.mxu0 0.0
    %v3026 = vand.u32 %v79, 4294901760
    %v3027 = vsub.f32 %v79, %v3026
    %v3028 = vand.u32 %v3027, 4294901760
    %v3029 = vsub.f32 %v3027, %v3028
    %v3030 = vand.u32 %v3029, 4294901760
    %3031 = vmatpush1.msra.mxu0 %v3030
    %3032 = vmatprep.subr.mxu0 0.0
    %v3033 = vand.u32 %v80, 4294901760
    %v3034 = vsub.f32 %v80, %v3033
    %v3035 = vand.u32 %v3034, 4294901760
    %v3036 = vsub.f32 %v3034, %v3035
    %v3037 = vand.u32 %v3036, 4294901760
    %3038 = vmatpush1.msra.mxu0 %v3037
    %3039 = vmatprep.subr.mxu0 0.0
    %v3040 = vand.u32 %v81, 4294901760
    %v3041 = vsub.f32 %v81, %v3040
    %v3042 = vand.u32 %v3041, 4294901760
    %v3043 = vsub.f32 %v3041, %v3042
    %v3044 = vand.u32 %v3043, 4294901760
    %3045 = vmatpush1.msra.mxu0 %v3044
    %3046 = vmatprep.subr.mxu0 0.0
    %v3047 = vand.u32 %v82, 4294901760
    %v3048 = vsub.f32 %v82, %v3047
    %v3049 = vand.u32 %v3048, 4294901760
    %v3050 = vsub.f32 %v3048, %v3049
    %v3051 = vand.u32 %v3050, 4294901760
    %3052 = vmatpush1.msra.mxu0 %v3051
    %3053 = vmatprep.subr.mxu0 0.0
    %v3054 = vand.u32 %v83, 4294901760
    %v3055 = vsub.f32 %v83, %v3054
    %v3056 = vand.u32 %v3055, 4294901760
    %v3057 = vsub.f32 %v3055, %v3056
    %v3058 = vand.u32 %v3057, 4294901760
    %3059 = vmatpush1.msra.mxu0 %v3058
    %3060 = vmatprep.subr.mxu0 0.0
    %v3061 = vand.u32 %v84, 4294901760
    %v3062 = vsub.f32 %v84, %v3061
    %v3063 = vand.u32 %v3062, 4294901760
    %v3064 = vsub.f32 %v3062, %v3063
    %v3065 = vand.u32 %v3064, 4294901760
    %3066 = vmatpush1.msra.mxu0 %v3065
    %3067 = vmatprep.subr.mxu0 0.0
    %v3068 = vand.u32 %v85, 4294901760
    %v3069 = vsub.f32 %v85, %v3068
    %v3070 = vand.u32 %v3069, 4294901760
    %v3071 = vsub.f32 %v3069, %v3070
    %v3072 = vand.u32 %v3071, 4294901760
    %3073 = vmatpush1.msra.mxu0 %v3072
    %3074 = vmatprep.subr.mxu0 0.0
    %v3075 = vand.u32 %v86, 4294901760
    %v3076 = vsub.f32 %v86, %v3075
    %v3077 = vand.u32 %v3076, 4294901760
    %v3078 = vsub.f32 %v3076, %v3077
    %v3079 = vand.u32 %v3078, 4294901760
    %3080 = vmatpush1.msra.mxu0 %v3079
    %v3081 = vand.u32 %v2742, 4294901760
    %3082 = vmatprep.mubr.f32.mxu0 %v3081
    %v3083 = vand.u32 %v2741, 4294901760
    %3084 = vmatmul.mubr.f32.gmra.mrb[0].mxu0 %v3083
    %v3085 = vpop.f32.mrb[0].mxu0
    %v3086 = vadd.f32 %v2854, %v3085
    %v3087 = vpop.f32.mrb[0].mxu0
    %3088 = vdwg.mxu0
    %3089 = vmatprep.subr.mxu0 0.0
    %v3090 = vand.u32 %v55, 4294901760
    %v3091 = vsub.f32 %v55, %v3090
    %3092 = vmatpush1.msra.mxu0 %v3091
    %3093 = vmatprep.subr.mxu0 0.0
    %v3094 = vand.u32 %v56, 4294901760
    %v3095 = vsub.f32 %v56, %v3094
    %3096 = vmatpush1.msra.mxu0 %v3095
    %3097 = vmatprep.subr.mxu0 0.0
    %v3098 = vand.u32 %v57, 4294901760
    %v3099 = vsub.f32 %v57, %v3098
    %3100 = vmatpush1.msra.mxu0 %v3099
    %3101 = vmatprep.subr.mxu0 0.0
    %v3102 = vand.u32 %v58, 4294901760
    %v3103 = vsub.f32 %v58, %v3102
    %3104 = vmatpush1.msra.mxu0 %v3103
    %3105 = vmatprep.subr.mxu0 0.0
    %v3106 = vand.u32 %v59, 4294901760
    %v3107 = vsub.f32 %v59, %v3106
    %3108 = vmatpush1.msra.mxu0 %v3107
    %3109 = vmatprep.subr.mxu0 0.0
    %v3110 = vand.u32 %v60, 4294901760
    %v3111 = vsub.f32 %v60, %v3110
    %3112 = vmatpush1.msra.mxu0 %v3111
    %3113 = vmatprep.subr.mxu0 0.0
    %v3114 = vand.u32 %v61, 4294901760
    %v3115 = vsub.f32 %v61, %v3114
    %3116 = vmatpush1.msra.mxu0 %v3115
    %3117 = vmatprep.subr.mxu0 0.0
    %v3118 = vand.u32 %v62, 4294901760
    %v3119 = vsub.f32 %v62, %v3118
    %3120 = vmatpush1.msra.mxu0 %v3119
    %3121 = vmatprep.subr.mxu0 0.0
    %v3122 = vand.u32 %v63, 4294901760
    %v3123 = vsub.f32 %v63, %v3122
    %3124 = vmatpush1.msra.mxu0 %v3123
    %3125 = vmatprep.subr.mxu0 0.0
    %v3126 = vand.u32 %v64, 4294901760
    %v3127 = vsub.f32 %v64, %v3126
    %3128 = vmatpush1.msra.mxu0 %v3127
    %3129 = vmatprep.subr.mxu0 0.0
    %v3130 = vand.u32 %v65, 4294901760
    %v3131 = vsub.f32 %v65, %v3130
    %3132 = vmatpush1.msra.mxu0 %v3131
    %3133 = vmatprep.subr.mxu0 0.0
    %v3134 = vand.u32 %v66, 4294901760
    %v3135 = vsub.f32 %v66, %v3134
    %3136 = vmatpush1.msra.mxu0 %v3135
    %3137 = vmatprep.subr.mxu0 0.0
    %v3138 = vand.u32 %v67, 4294901760
    %v3139 = vsub.f32 %v67, %v3138
    %3140 = vmatpush1.msra.mxu0 %v3139
    %3141 = vmatprep.subr.mxu0 0.0
    %v3142 = vand.u32 %v68, 4294901760
    %v3143 = vsub.f32 %v68, %v3142
    %3144 = vmatpush1.msra.mxu0 %v3143
    %3145 = vmatprep.subr.mxu0 0.0
    %v3146 = vand.u32 %v69, 4294901760
    %v3147 = vsub.f32 %v69, %v3146
    %3148 = vmatpush1.msra.mxu0 %v3147
    %3149 = vmatprep.subr.mxu0 0.0
    %v3150 = vand.u32 %v70, 4294901760
    %v3151 = vsub.f32 %v70, %v3150
    %3152 = vmatpush1.msra.mxu0 %v3151
    %3153 = vmatprep.subr.mxu0 0.0
    %v3154 = vand.u32 %v71, 4294901760
    %v3155 = vsub.f32 %v71, %v3154
    %3156 = vmatpush1.msra.mxu0 %v3155
    %3157 = vmatprep.subr.mxu0 0.0
    %v3158 = vand.u32 %v72, 4294901760
    %v3159 = vsub.f32 %v72, %v3158
    %3160 = vmatpush1.msra.mxu0 %v3159
    %3161 = vmatprep.subr.mxu0 0.0
    %v3162 = vand.u32 %v73, 4294901760
    %v3163 = vsub.f32 %v73, %v3162
    %3164 = vmatpush1.msra.mxu0 %v3163
    %3165 = vmatprep.subr.mxu0 0.0
    %v3166 = vand.u32 %v74, 4294901760
    %v3167 = vsub.f32 %v74, %v3166
    %3168 = vmatpush1.msra.mxu0 %v3167
    %3169 = vmatprep.subr.mxu0 0.0
    %v3170 = vand.u32 %v75, 4294901760
    %v3171 = vsub.f32 %v75, %v3170
    %3172 = vmatpush1.msra.mxu0 %v3171
    %3173 = vmatprep.subr.mxu0 0.0
    %v3174 = vand.u32 %v76, 4294901760
    %v3175 = vsub.f32 %v76, %v3174
    %3176 = vmatpush1.msra.mxu0 %v3175
    %3177 = vmatprep.subr.mxu0 0.0
    %v3178 = vand.u32 %v77, 4294901760
    %v3179 = vsub.f32 %v77, %v3178
    %3180 = vmatpush1.msra.mxu0 %v3179
    %3181 = vmatprep.subr.mxu0 0.0
    %v3182 = vand.u32 %v78, 4294901760
    %v3183 = vsub.f32 %v78, %v3182
    %3184 = vmatpush1.msra.mxu0 %v3183
    %3185 = vmatprep.subr.mxu0 0.0
    %v3186 = vand.u32 %v79, 4294901760
    %v3187 = vsub.f32 %v79, %v3186
    %3188 = vmatpush1.msra.mxu0 %v3187
    %3189 = vmatprep.subr.mxu0 0.0
    %v3190 = vand.u32 %v80, 4294901760
    %v3191 = vsub.f32 %v80, %v3190
    %3192 = vmatpush1.msra.mxu0 %v3191
    %3193 = vmatprep.subr.mxu0 0.0
    %v3194 = vand.u32 %v81, 4294901760
    %v3195 = vsub.f32 %v81, %v3194
    %3196 = vmatpush1.msra.mxu0 %v3195
    %3197 = vmatprep.subr.mxu0 0.0
    %v3198 = vand.u32 %v82, 4294901760
    %v3199 = vsub.f32 %v82, %v3198
    %3200 = vmatpush1.msra.mxu0 %v3199
    %3201 = vmatprep.subr.mxu0 0.0
    %v3202 = vand.u32 %v83, 4294901760
    %v3203 = vsub.f32 %v83, %v3202
    %3204 = vmatpush1.msra.mxu0 %v3203
    %3205 = vmatprep.subr.mxu0 0.0
    %v3206 = vand.u32 %v84, 4294901760
    %v3207 = vsub.f32 %v84, %v3206
    %3208 = vmatpush1.msra.mxu0 %v3207
    %3209 = vmatprep.subr.mxu0 0.0
    %v3210 = vand.u32 %v85, 4294901760
    %v3211 = vsub.f32 %v85, %v3210
    %3212 = vmatpush1.msra.mxu0 %v3211
    %3213 = vmatprep.subr.mxu0 0.0
    %v3214 = vand.u32 %v86, 4294901760
    %v3215 = vsub.f32 %v86, %v3214
    %3216 = vmatpush1.msra.mxu0 %v3215
    %v3217 = vand.u32 %v2742, 4294901760
    %v3218 = vsub.f32 %v2742, %v3217
    %3219 = vmatprep.mubr.f32.mxu0 %v3218
    %v3220 = vand.u32 %v2741, 4294901760
    %v3221 = vsub.f32 %v2741, %v3220
    %3222 = vmatmul.mubr.f32.gmra.mrb[0].mxu0 %v3221
    %v3223 = vpop.f32.mrb[0].mxu0
    %v3224 = vadd.f32 %v3086, %v3223
    %v3225 = vpop.f32.mrb[0].mxu0
    %3226 = vdwg.mxu0
    %3227 = vmatprep.subr.mxu0 0.0
    %v3228 = vand.u32 %v55, 4294901760
    %3229 = vmatpush1.msra.mxu0 %v3228
    %3230 = vmatprep.subr.mxu0 0.0
    %v3231 = vand.u32 %v56, 4294901760
    %3232 = vmatpush1.msra.mxu0 %v3231
    %3233 = vmatprep.subr.mxu0 0.0
    %v3234 = vand.u32 %v57, 4294901760
    %3235 = vmatpush1.msra.mxu0 %v3234
    %3236 = vmatprep.subr.mxu0 0.0
    %v3237 = vand.u32 %v58, 4294901760
    %3238 = vmatpush1.msra.mxu0 %v3237
    %3239 = vmatprep.subr.mxu0 0.0
    %v3240 = vand.u32 %v59, 4294901760
    %3241 = vmatpush1.msra.mxu0 %v3240
    %3242 = vmatprep.subr.mxu0 0.0
    %v3243 = vand.u32 %v60, 4294901760
    %3244 = vmatpush1.msra.mxu0 %v3243
    %3245 = vmatprep.subr.mxu0 0.0
    %v3246 = vand.u32 %v61, 4294901760
    %3247 = vmatpush1.msra.mxu0 %v3246
    %3248 = vmatprep.subr.mxu0 0.0
    %v3249 = vand.u32 %v62, 4294901760
    %3250 = vmatpush1.msra.mxu0 %v3249
    %3251 = vmatprep.subr.mxu0 0.0
    %v3252 = vand.u32 %v63, 4294901760
    %3253 = vmatpush1.msra.mxu0 %v3252
    %3254 = vmatprep.subr.mxu0 0.0
    %v3255 = vand.u32 %v64, 4294901760
    %3256 = vmatpush1.msra.mxu0 %v3255
    %3257 = vmatprep.subr.mxu0 0.0
    %v3258 = vand.u32 %v65, 4294901760
    %3259 = vmatpush1.msra.mxu0 %v3258
    %3260 = vmatprep.subr.mxu0 0.0
    %v3261 = vand.u32 %v66, 4294901760
    %3262 = vmatpush1.msra.mxu0 %v3261
    %3263 = vmatprep.subr.mxu0 0.0
    %v3264 = vand.u32 %v67, 4294901760
    %3265 = vmatpush1.msra.mxu0 %v3264
    %3266 = vmatprep.subr.mxu0 0.0
    %v3267 = vand.u32 %v68, 4294901760
    %3268 = vmatpush1.msra.mxu0 %v3267
    %3269 = vmatprep.subr.mxu0 0.0
    %v3270 = vand.u32 %v69, 4294901760
    %3271 = vmatpush1.msra.mxu0 %v3270
    %3272 = vmatprep.subr.mxu0 0.0
    %v3273 = vand.u32 %v70, 4294901760
    %3274 = vmatpush1.msra.mxu0 %v3273
    %3275 = vmatprep.subr.mxu0 0.0
    %v3276 = vand.u32 %v71, 4294901760
    %3277 = vmatpush1.msra.mxu0 %v3276
    %3278 = vmatprep.subr.mxu0 0.0
    %v3279 = vand.u32 %v72, 4294901760
    %3280 = vmatpush1.msra.mxu0 %v3279
    %3281 = vmatprep.subr.mxu0 0.0
    %v3282 = vand.u32 %v73, 4294901760
    %3283 = vmatpush1.msra.mxu0 %v3282
    %3284 = vmatprep.subr.mxu0 0.0
    %v3285 = vand.u32 %v74, 4294901760
    %3286 = vmatpush1.msra.mxu0 %v3285
    %3287 = vmatprep.subr.mxu0 0.0
    %v3288 = vand.u32 %v75, 4294901760
    %3289 = vmatpush1.msra.mxu0 %v3288
    %3290 = vmatprep.subr.mxu0 0.0
    %v3291 = vand.u32 %v76, 4294901760
    %3292 = vmatpush1.msra.mxu0 %v3291
    %3293 = vmatprep.subr.mxu0 0.0
    %v3294 = vand.u32 %v77, 4294901760
    %3295 = vmatpush1.msra.mxu0 %v3294
    %3296 = vmatprep.subr.mxu0 0.0
    %v3297 = vand.u32 %v78, 4294901760
    %3298 = vmatpush1.msra.mxu0 %v3297
    %3299 = vmatprep.subr.mxu0 0.0
    %v3300 = vand.u32 %v79, 4294901760
    %3301 = vmatpush1.msra.mxu0 %v3300
    %3302 = vmatprep.subr.mxu0 0.0
    %v3303 = vand.u32 %v80, 4294901760
    %3304 = vmatpush1.msra.mxu0 %v3303
    %3305 = vmatprep.subr.mxu0 0.0
    %v3306 = vand.u32 %v81, 4294901760
    %3307 = vmatpush1.msra.mxu0 %v3306
    %3308 = vmatprep.subr.mxu0 0.0
    %v3309 = vand.u32 %v82, 4294901760
    %3310 = vmatpush1.msra.mxu0 %v3309
    %3311 = vmatprep.subr.mxu0 0.0
    %v3312 = vand.u32 %v83, 4294901760
    %3313 = vmatpush1.msra.mxu0 %v3312
    %3314 = vmatprep.subr.mxu0 0.0
    %v3315 = vand.u32 %v84, 4294901760
    %3316 = vmatpush1.msra.mxu0 %v3315
    %3317 = vmatprep.subr.mxu0 0.0
    %v3318 = vand.u32 %v85, 4294901760
    %3319 = vmatpush1.msra.mxu0 %v3318
    %3320 = vmatprep.subr.mxu0 0.0
    %v3321 = vand.u32 %v86, 4294901760
    %3322 = vmatpush1.msra.mxu0 %v3321
    %v3323 = vand.u32 %v2742, 4294901760
    %v3324 = vsub.f32 %v2742, %v3323
    %v3325 = vand.u32 %v3324, 4294901760
    %3326 = vmatprep.mubr.f32.mxu0 %v3325
    %v3327 = vand.u32 %v2741, 4294901760
    %v3328 = vsub.f32 %v2741, %v3327
    %v3329 = vand.u32 %v3328, 4294901760
    %3330 = vmatmul.mubr.f32.gmra.mrb[0].mxu0 %v3329
    %v3331 = vpop.f32.mrb[0].mxu0
    %v3332 = vadd.f32 %v3224, %v3331
    %v3333 = vpop.f32.mrb[0].mxu0
    %3334 = vdwg.mxu0
    %3335 = vmatprep.subr.mxu0 0.0
    %v3336 = vand.u32 %v55, 4294901760
    %v3337 = vsub.f32 %v55, %v3336
    %v3338 = vand.u32 %v3337, 4294901760
    %3339 = vmatpush1.msra.mxu0 %v3338
    %3340 = vmatprep.subr.mxu0 0.0
    %v3341 = vand.u32 %v56, 4294901760
    %v3342 = vsub.f32 %v56, %v3341
    %v3343 = vand.u32 %v3342, 4294901760
    %3344 = vmatpush1.msra.mxu0 %v3343
    %3345 = vmatprep.subr.mxu0 0.0
    %v3346 = vand.u32 %v57, 4294901760
    %v3347 = vsub.f32 %v57, %v3346
    %v3348 = vand.u32 %v3347, 4294901760
    %3349 = vmatpush1.msra.mxu0 %v3348
    %3350 = vmatprep.subr.mxu0 0.0
    %v3351 = vand.u32 %v58, 4294901760
    %v3352 = vsub.f32 %v58, %v3351
    %v3353 = vand.u32 %v3352, 4294901760
    %3354 = vmatpush1.msra.mxu0 %v3353
    %3355 = vmatprep.subr.mxu0 0.0
    %v3356 = vand.u32 %v59, 4294901760
    %v3357 = vsub.f32 %v59, %v3356
    %v3358 = vand.u32 %v3357, 4294901760
    %3359 = vmatpush1.msra.mxu0 %v3358
    %3360 = vmatprep.subr.mxu0 0.0
    %v3361 = vand.u32 %v60, 4294901760
    %v3362 = vsub.f32 %v60, %v3361
    %v3363 = vand.u32 %v3362, 4294901760
    %3364 = vmatpush1.msra.mxu0 %v3363
    %3365 = vmatprep.subr.mxu0 0.0
    %v3366 = vand.u32 %v61, 4294901760
    %v3367 = vsub.f32 %v61, %v3366
    %v3368 = vand.u32 %v3367, 4294901760
    %3369 = vmatpush1.msra.mxu0 %v3368
    %3370 = vmatprep.subr.mxu0 0.0
    %v3371 = vand.u32 %v62, 4294901760
    %v3372 = vsub.f32 %v62, %v3371
    %v3373 = vand.u32 %v3372, 4294901760
    %3374 = vmatpush1.msra.mxu0 %v3373
    %3375 = vmatprep.subr.mxu0 0.0
    %v3376 = vand.u32 %v63, 4294901760
    %v3377 = vsub.f32 %v63, %v3376
    %v3378 = vand.u32 %v3377, 4294901760
    %3379 = vmatpush1.msra.mxu0 %v3378
    %3380 = vmatprep.subr.mxu0 0.0
    %v3381 = vand.u32 %v64, 4294901760
    %v3382 = vsub.f32 %v64, %v3381
    %v3383 = vand.u32 %v3382, 4294901760
    %3384 = vmatpush1.msra.mxu0 %v3383
    %3385 = vmatprep.subr.mxu0 0.0
    %v3386 = vand.u32 %v65, 4294901760
    %v3387 = vsub.f32 %v65, %v3386
    %v3388 = vand.u32 %v3387, 4294901760
    %3389 = vmatpush1.msra.mxu0 %v3388
    %3390 = vmatprep.subr.mxu0 0.0
    %v3391 = vand.u32 %v66, 4294901760
    %v3392 = vsub.f32 %v66, %v3391
    %v3393 = vand.u32 %v3392, 4294901760
    %3394 = vmatpush1.msra.mxu0 %v3393
    %3395 = vmatprep.subr.mxu0 0.0
    %v3396 = vand.u32 %v67, 4294901760
    %v3397 = vsub.f32 %v67, %v3396
    %v3398 = vand.u32 %v3397, 4294901760
    %3399 = vmatpush1.msra.mxu0 %v3398
    %3400 = vmatprep.subr.mxu0 0.0
    %v3401 = vand.u32 %v68, 4294901760
    %v3402 = vsub.f32 %v68, %v3401
    %v3403 = vand.u32 %v3402, 4294901760
    %3404 = vmatpush1.msra.mxu0 %v3403
    %3405 = vmatprep.subr.mxu0 0.0
    %v3406 = vand.u32 %v69, 4294901760
    %v3407 = vsub.f32 %v69, %v3406
    %v3408 = vand.u32 %v3407, 4294901760
    %3409 = vmatpush1.msra.mxu0 %v3408
    %3410 = vmatprep.subr.mxu0 0.0
    %v3411 = vand.u32 %v70, 4294901760
    %v3412 = vsub.f32 %v70, %v3411
    %v3413 = vand.u32 %v3412, 4294901760
    %3414 = vmatpush1.msra.mxu0 %v3413
    %3415 = vmatprep.subr.mxu0 0.0
    %v3416 = vand.u32 %v71, 4294901760
    %v3417 = vsub.f32 %v71, %v3416
    %v3418 = vand.u32 %v3417, 4294901760
    %3419 = vmatpush1.msra.mxu0 %v3418
    %3420 = vmatprep.subr.mxu0 0.0
    %v3421 = vand.u32 %v72, 4294901760
    %v3422 = vsub.f32 %v72, %v3421
    %v3423 = vand.u32 %v3422, 4294901760
    %3424 = vmatpush1.msra.mxu0 %v3423
    %3425 = vmatprep.subr.mxu0 0.0
    %v3426 = vand.u32 %v73, 4294901760
    %v3427 = vsub.f32 %v73, %v3426
    %v3428 = vand.u32 %v3427, 4294901760
    %3429 = vmatpush1.msra.mxu0 %v3428
    %3430 = vmatprep.subr.mxu0 0.0
    %v3431 = vand.u32 %v74, 4294901760
    %v3432 = vsub.f32 %v74, %v3431
    %v3433 = vand.u32 %v3432, 4294901760
    %3434 = vmatpush1.msra.mxu0 %v3433
    %3435 = vmatprep.subr.mxu0 0.0
    %v3436 = vand.u32 %v75, 4294901760
    %v3437 = vsub.f32 %v75, %v3436
    %v3438 = vand.u32 %v3437, 4294901760
    %3439 = vmatpush1.msra.mxu0 %v3438
    %3440 = vmatprep.subr.mxu0 0.0
    %v3441 = vand.u32 %v76, 4294901760
    %v3442 = vsub.f32 %v76, %v3441
    %v3443 = vand.u32 %v3442, 4294901760
    %3444 = vmatpush1.msra.mxu0 %v3443
    %3445 = vmatprep.subr.mxu0 0.0
    %v3446 = vand.u32 %v77, 4294901760
    %v3447 = vsub.f32 %v77, %v3446
    %v3448 = vand.u32 %v3447, 4294901760
    %3449 = vmatpush1.msra.mxu0 %v3448
    %3450 = vmatprep.subr.mxu0 0.0
    %v3451 = vand.u32 %v78, 4294901760
    %v3452 = vsub.f32 %v78, %v3451
    %v3453 = vand.u32 %v3452, 4294901760
    %3454 = vmatpush1.msra.mxu0 %v3453
    %3455 = vmatprep.subr.mxu0 0.0
    %v3456 = vand.u32 %v79, 4294901760
    %v3457 = vsub.f32 %v79, %v3456
    %v3458 = vand.u32 %v3457, 4294901760
    %3459 = vmatpush1.msra.mxu0 %v3458
    %3460 = vmatprep.subr.mxu0 0.0
    %v3461 = vand.u32 %v80, 4294901760
    %v3462 = vsub.f32 %v80, %v3461
    %v3463 = vand.u32 %v3462, 4294901760
    %3464 = vmatpush1.msra.mxu0 %v3463
    %3465 = vmatprep.subr.mxu0 0.0
    %v3466 = vand.u32 %v81, 4294901760
    %v3467 = vsub.f32 %v81, %v3466
    %v3468 = vand.u32 %v3467, 4294901760
    %3469 = vmatpush1.msra.mxu0 %v3468
    %3470 = vmatprep.subr.mxu0 0.0
    %v3471 = vand.u32 %v82, 4294901760
    %v3472 = vsub.f32 %v82, %v3471
    %v3473 = vand.u32 %v3472, 4294901760
    %3474 = vmatpush1.msra.mxu0 %v3473
    %3475 = vmatprep.subr.mxu0 0.0
    %v3476 = vand.u32 %v83, 4294901760
    %v3477 = vsub.f32 %v83, %v3476
    %v3478 = vand.u32 %v3477, 4294901760
    %3479 = vmatpush1.msra.mxu0 %v3478
    %3480 = vmatprep.subr.mxu0 0.0
    %v3481 = vand.u32 %v84, 4294901760
    %v3482 = vsub.f32 %v84, %v3481
    %v3483 = vand.u32 %v3482, 4294901760
    %3484 = vmatpush1.msra.mxu0 %v3483
    %3485 = vmatprep.subr.mxu0 0.0
    %v3486 = vand.u32 %v85, 4294901760
    %v3487 = vsub.f32 %v85, %v3486
    %v3488 = vand.u32 %v3487, 4294901760
    %3489 = vmatpush1.msra.mxu0 %v3488
    %3490 = vmatprep.subr.mxu0 0.0
    %v3491 = vand.u32 %v86, 4294901760
    %v3492 = vsub.f32 %v86, %v3491
    %v3493 = vand.u32 %v3492, 4294901760
    %3494 = vmatpush1.msra.mxu0 %v3493
    %v3495 = vand.u32 %v2742, 4294901760
    %3496 = vmatprep.mubr.f32.mxu0 %v3495
    %v3497 = vand.u32 %v2741, 4294901760
    %3498 = vmatmul.mubr.f32.gmra.mrb[0].mxu0 %v3497
    %v3499 = vpop.f32.mrb[0].mxu0
    %v3500 = vadd.f32 %v3332, %v3499
    %v3501 = vpop.f32.mrb[0].mxu0
    %3502 = vdwg.mxu0
    %3503 = vmatprep.subr.mxu0 0.0
    %v3504 = vand.u32 %v55, 4294901760
    %3505 = vmatpush1.msra.mxu0 %v3504
    %3506 = vmatprep.subr.mxu0 0.0
    %v3507 = vand.u32 %v56, 4294901760
    %3508 = vmatpush1.msra.mxu0 %v3507
    %3509 = vmatprep.subr.mxu0 0.0
    %v3510 = vand.u32 %v57, 4294901760
    %3511 = vmatpush1.msra.mxu0 %v3510
    %3512 = vmatprep.subr.mxu0 0.0
    %v3513 = vand.u32 %v58, 4294901760
    %3514 = vmatpush1.msra.mxu0 %v3513
    %3515 = vmatprep.subr.mxu0 0.0
    %v3516 = vand.u32 %v59, 4294901760
    %3517 = vmatpush1.msra.mxu0 %v3516
    %3518 = vmatprep.subr.mxu0 0.0
    %v3519 = vand.u32 %v60, 4294901760
    %3520 = vmatpush1.msra.mxu0 %v3519
    %3521 = vmatprep.subr.mxu0 0.0
    %v3522 = vand.u32 %v61, 4294901760
    %3523 = vmatpush1.msra.mxu0 %v3522
    %3524 = vmatprep.subr.mxu0 0.0
    %v3525 = vand.u32 %v62, 4294901760
    %3526 = vmatpush1.msra.mxu0 %v3525
    %3527 = vmatprep.subr.mxu0 0.0
    %v3528 = vand.u32 %v63, 4294901760
    %3529 = vmatpush1.msra.mxu0 %v3528
    %3530 = vmatprep.subr.mxu0 0.0
    %v3531 = vand.u32 %v64, 4294901760
    %3532 = vmatpush1.msra.mxu0 %v3531
    %3533 = vmatprep.subr.mxu0 0.0
    %v3534 = vand.u32 %v65, 4294901760
    %3535 = vmatpush1.msra.mxu0 %v3534
    %3536 = vmatprep.subr.mxu0 0.0
    %v3537 = vand.u32 %v66, 4294901760
    %3538 = vmatpush1.msra.mxu0 %v3537
    %3539 = vmatprep.subr.mxu0 0.0
    %v3540 = vand.u32 %v67, 4294901760
    %3541 = vmatpush1.msra.mxu0 %v3540
    %3542 = vmatprep.subr.mxu0 0.0
    %v3543 = vand.u32 %v68, 4294901760
    %3544 = vmatpush1.msra.mxu0 %v3543
    %3545 = vmatprep.subr.mxu0 0.0
    %v3546 = vand.u32 %v69, 4294901760
    %3547 = vmatpush1.msra.mxu0 %v3546
    %3548 = vmatprep.subr.mxu0 0.0
    %v3549 = vand.u32 %v70, 4294901760
    %3550 = vmatpush1.msra.mxu0 %v3549
    %3551 = vmatprep.subr.mxu0 0.0
    %v3552 = vand.u32 %v71, 4294901760
    %3553 = vmatpush1.msra.mxu0 %v3552
    %3554 = vmatprep.subr.mxu0 0.0
    %v3555 = vand.u32 %v72, 4294901760
    %3556 = vmatpush1.msra.mxu0 %v3555
    %3557 = vmatprep.subr.mxu0 0.0
    %v3558 = vand.u32 %v73, 4294901760
    %3559 = vmatpush1.msra.mxu0 %v3558
    %3560 = vmatprep.subr.mxu0 0.0
    %v3561 = vand.u32 %v74, 4294901760
    %3562 = vmatpush1.msra.mxu0 %v3561
    %3563 = vmatprep.subr.mxu0 0.0
    %v3564 = vand.u32 %v75, 4294901760
    %3565 = vmatpush1.msra.mxu0 %v3564
    %3566 = vmatprep.subr.mxu0 0.0
    %v3567 = vand.u32 %v76, 4294901760
    %3568 = vmatpush1.msra.mxu0 %v3567
    %3569 = vmatprep.subr.mxu0 0.0
    %v3570 = vand.u32 %v77, 4294901760
    %3571 = vmatpush1.msra.mxu0 %v3570
    %3572 = vmatprep.subr.mxu0 0.0
    %v3573 = vand.u32 %v78, 4294901760
    %3574 = vmatpush1.msra.mxu0 %v3573
    %3575 = vmatprep.subr.mxu0 0.0
    %v3576 = vand.u32 %v79, 4294901760
    %3577 = vmatpush1.msra.mxu0 %v3576
    %3578 = vmatprep.subr.mxu0 0.0
    %v3579 = vand.u32 %v80, 4294901760
    %3580 = vmatpush1.msra.mxu0 %v3579
    %3581 = vmatprep.subr.mxu0 0.0
    %v3582 = vand.u32 %v81, 4294901760
    %3583 = vmatpush1.msra.mxu0 %v3582
    %3584 = vmatprep.subr.mxu0 0.0
    %v3585 = vand.u32 %v82, 4294901760
    %3586 = vmatpush1.msra.mxu0 %v3585
    %3587 = vmatprep.subr.mxu0 0.0
    %v3588 = vand.u32 %v83, 4294901760
    %3589 = vmatpush1.msra.mxu0 %v3588
    %3590 = vmatprep.subr.mxu0 0.0
    %v3591 = vand.u32 %v84, 4294901760
    %3592 = vmatpush1.msra.mxu0 %v3591
    %3593 = vmatprep.subr.mxu0 0.0
    %v3594 = vand.u32 %v85, 4294901760
    %3595 = vmatpush1.msra.mxu0 %v3594
    %3596 = vmatprep.subr.mxu0 0.0
    %v3597 = vand.u32 %v86, 4294901760
    %3598 = vmatpush1.msra.mxu0 %v3597
    %v3599 = vand.u32 %v2742, 4294901760
    %3600 = vmatprep.mubr.f32.mxu0 %v3599
    %v3601 = vand.u32 %v2741, 4294901760
    %3602 = vmatmul.mubr.f32.gmra.mrb[0].mxu0 %v3601
    %v3603 = vpop.f32.mrb[0].mxu0
    %v3604 = vadd.f32 %v3500, %v3603
    %v3605 = vpop.f32.mrb[0].mxu0
    %3606 = vdwg.mxu0
    %v3607 = vsel %vm969, %v2741, -inf
    %v3608 = vsel %vm969, %v2742, -inf
    %v3609 = vmax.f32 %v3607, %v3608
    %3610 = vmax.xlane.f32.xlu0 %v3609
    %v3611 = vpop.xlane.xlu0 %3610
    %3613 = vrot.lane.b32.xlu0 %v1846, 32
    %v3614 = vpop.permute.xlu0 %3613
    %3617 = vrot.lane.b32.xlu0 %v2725, 64
    %v3618 = vpop.permute.xlu0 %3617
    %3621 = vrot.lane.b32.xlu0 %v3604, 96
    %v3622 = vpop.permute.xlu0 %3621
    %vm3624 = vcmask 261120
    %v3625 = vsel %vm3624, %v966, %v3614
    %vm3626 = vcmask 523264
    %v3627 = vsel %vm3626, %v3625, %v3618
    %vm3628 = vcmask 785408
    %v3629 = vsel %vm3628, %v3627, %v3622
    %3631 = vrot.lane.b32.xlu0 %v966, 96
    %v3632 = vpop.permute.xlu0 %3631
    %3634 = vrot.lane.b32.xlu0 %v1846, 97
    %v3635 = vpop.permute.xlu0 %3634
    %3637 = vrot.lane.b32.xlu0 %v2725, 98
    %v3638 = vpop.permute.xlu0 %3637
    %3640 = vrot.lane.b32.xlu0 %v3604, 99
    %v3641 = vpop.permute.xlu0 %3640
    %vm3643 = vcmask 7168
    %v3644 = vsel %vm3643, %v3632, %v3635
    %vm3645 = vcmask 15360
    %v3646 = vsel %vm3645, %v3644, %v3638
    %vm3647 = vcmask 23552
    %v3648 = vsel %vm3647, %v3646, %v3641
    %v3649 = vsel %vm3643, %v974, %v1853
    %v3650 = vsel %vm3645, %v3649, %v2732
    %v3651 = vsel %vm3647, %v3650, %v3611
    %v3652 = vpack.c.bf16 %v3629, %v3629
    %v3653 = vld [vmem:[#allocation7] sm:$0xff]
    %v3654 = vld [vmem:[#allocation7 + $0x8] sm:$0xff]
    %v3655 = vld [vmem:[#allocation7 + $0x10] sm:$0xff]
    %v3656 = vld [vmem:[#allocation7 + $0x18] sm:$0xff]
    %v3657 = vld [vmem:[#allocation7 + $0x20] sm:$0xff]
    %v3658 = vld [vmem:[#allocation7 + $0x28] sm:$0xff]
    %v3659 = vld [vmem:[#allocation7 + $0x30] sm:$0xff]
    %v3660 = vld [vmem:[#allocation7 + $0x38] sm:$0xff]
    %v3661 = vld [vmem:[#allocation7 + $0x40] sm:$0xff]
    %v3662 = vld [vmem:[#allocation7 + $0x48] sm:$0xff]
    %v3663 = vld [vmem:[#allocation7 + $0x50] sm:$0xff]
    %v3664 = vld [vmem:[#allocation7 + $0x58] sm:$0xff]
    %v3665 = vld [vmem:[#allocation7 + $0x60] sm:$0xff]
    %v3666 = vld [vmem:[#allocation7 + $0x68] sm:$0xff]
    %v3667 = vld [vmem:[#allocation7 + $0x70] sm:$0xff]
    %v3668 = vld [vmem:[#allocation7 + $0x78] sm:$0xff]
    %s3669 = scalar_lea.vmem [#allocation5], 576
    %v3670 = vld [vmem:[%s3669] ss:$8 sm:$0x3]
    %v3672 = vlaneseq
    %v3673 = vshrl.u32 %v3672, 7
    %v3674 = vsub.s32 0, %v3673
    %v3675 = vrot.slane %v3670, %v3674
    %v3676 = vlaneseq
    %v3677 = vshrl.u32 %v3676, 7
    %v3678 = vsub.s32 1, %v3677
    %v3679 = vrot.slane %v3670, %v3678
    %v3698 = vunpack.c.l.b16 %v3653
    %v3699 = vunpack.c.h.b16 %v3653
    %v3700 = vunpack.c.l.b16 %v3654
    %v3701 = vunpack.c.h.b16 %v3654
    %v3702 = vunpack.c.l.b16 %v3655
    %v3703 = vunpack.c.h.b16 %v3655
    %v3704 = vunpack.c.l.b16 %v3656
    %v3705 = vunpack.c.h.b16 %v3656
    %v3706 = vunpack.c.l.b16 %v3657
    %v3707 = vunpack.c.h.b16 %v3657
    %v3708 = vunpack.c.l.b16 %v3658
    %v3709 = vunpack.c.h.b16 %v3658
    %v3710 = vunpack.c.l.b16 %v3659
    %v3711 = vunpack.c.h.b16 %v3659
    %v3712 = vunpack.c.l.b16 %v3660
    %v3713 = vunpack.c.h.b16 %v3660
    %v3714 = vunpack.c.l.b16 %v3661
    %v3715 = vunpack.c.h.b16 %v3661
    %v3716 = vunpack.c.l.b16 %v3662
    %v3717 = vunpack.c.h.b16 %v3662
    %v3718 = vunpack.c.l.b16 %v3663
    %v3719 = vunpack.c.h.b16 %v3663
    %v3720 = vunpack.c.l.b16 %v3664
    %v3721 = vunpack.c.h.b16 %v3664
    %v3722 = vunpack.c.l.b16 %v3665
    %v3723 = vunpack.c.h.b16 %v3665
    %v3724 = vunpack.c.l.b16 %v3666
    %v3725 = vunpack.c.h.b16 %v3666
    %v3726 = vunpack.c.l.b16 %v3667
    %v3727 = vunpack.c.h.b16 %v3667
    %v3728 = vunpack.c.l.b16 %v3668
    %v3729 = vunpack.c.h.b16 %v3668
    %v3730 = vpack.c.b16 %v3700, %v3698
    %v3731 = vpack.c.b16 %v3701, %v3699
    %v3732 = vpack.c.b16 %v3704, %v3702
    %v3733 = vpack.c.b16 %v3705, %v3703
    %v3734 = vpack.c.b16 %v3708, %v3706
    %v3735 = vpack.c.b16 %v3709, %v3707
    %v3736 = vpack.c.b16 %v3712, %v3710
    %v3737 = vpack.c.b16 %v3713, %v3711
    %v3738 = vpack.c.b16 %v3716, %v3714
    %v3739 = vpack.c.b16 %v3717, %v3715
    %v3740 = vpack.c.b16 %v3720, %v3718
    %v3741 = vpack.c.b16 %v3721, %v3719
    %v3742 = vpack.c.b16 %v3724, %v3722
    %v3743 = vpack.c.b16 %v3725, %v3723
    %v3744 = vpack.c.b16 %v3728, %v3726
    %v3745 = vpack.c.b16 %v3729, %v3727
    %3762 = vmatprep.subr.bf16.mxu0 %v3731
    %3763 = vmatpush1.bf16.msra.mxu0 %v3730
    %3764 = vmatprep.subr.bf16.mxu0 %v3733
    %3765 = vmatpush1.bf16.msra.mxu0 %v3732
    %3766 = vmatprep.subr.bf16.mxu0 %v3735
    %3767 = vmatpush1.bf16.msra.mxu0 %v3734
    %3768 = vmatprep.subr.bf16.mxu0 %v3737
    %3769 = vmatpush1.bf16.msra.mxu0 %v3736
    %3770 = vmatprep.subr.bf16.mxu0 %v3739
    %3771 = vmatpush1.bf16.msra.mxu0 %v3738
    %3772 = vmatprep.subr.bf16.mxu0 %v3741
    %3773 = vmatpush1.bf16.msra.mxu0 %v3740
    %3774 = vmatprep.subr.bf16.mxu0 %v3743
    %3775 = vmatpush1.bf16.msra.mxu0 %v3742
    %3776 = vmatprep.subr.bf16.mxu0 %v3745
    %3777 = vmatpush1.bf16.msra.mxu0 %v3744
    %3778 = vmatprep.subr.bf16.mxu0 0
    %3779 = vmatpush1.bf16.msra.mxu0 0
    %3780 = vmatprep.subr.bf16.mxu0 0
    %3781 = vmatpush1.bf16.msra.mxu0 0
    %3782 = vmatprep.subr.bf16.mxu0 0
    %3783 = vmatpush1.bf16.msra.mxu0 0
    %3784 = vmatprep.subr.bf16.mxu0 0
    %3785 = vmatpush1.bf16.msra.mxu0 0
    %3786 = vmatprep.subr.bf16.mxu0 0
    %3787 = vmatpush1.bf16.msra.mxu0 0
    %3788 = vmatprep.subr.bf16.mxu0 0
    %3789 = vmatpush1.bf16.msra.mxu0 0
    %3790 = vmatprep.subr.bf16.mxu0 0
    %3791 = vmatpush1.bf16.msra.mxu0 0
    %3792 = vmatprep.subr.bf16.mxu0 0
    %3793 = vmatpush1.bf16.msra.mxu0 0
    %3794 = vmatprep.mubr.bf16.mxu0 0
    %3795 = vmatmul.mubr.bf16.gmra.mrb[0].mxu0 %v3652
    %v3796 = vpop.f32.mrb[0].mxu0
    %v3797 = vadd.f32 %v3675, %v3796
    %v3798 = vpop.f32.mrb[0].mxu0
    %v3799 = vadd.f32 %v3679, %v3798
    %v3800 = vpop.f32.mrb[0].mxu0
    %v3801 = vpop.f32.mrb[0].mxu0
    %3802 = vdwg.mxu0
    %v3803 = vmul.f32 %v3797, 0.5
    %v3804 = vmul.f32 %v3799, 0.5
    %v3805 = vmul.f32 %v3797, 0.70710677
    %v3806 = vmul.f32 %v3799, 0.70710677
    %vm3807 = vcmp.lt.f32.partialorder %v3805, 0.0
    %vm3808 = vcmp.lt.f32.partialorder %v3806, 0.0
    %v3809 = vsel %vm3807, -1.0, 1.0
    %v3810 = vsel %vm3808, -1.0, 1.0
    %v3811 = vmul.f32 %v3805, %v3809
    %v3812 = vmul.f32 %v3806, %v3810
    %v3813 = vmul.f32 %v3811, 0.3275911
    %v3814 = vmul.f32 %v3812, 0.3275911
    %v3815 = vadd.f32 %v3813, 1.0
    %v3816 = vadd.f32 %v3814, 1.0
    %v3817 = vrcp.pop %v3815
    %v3818 = vrcp.pop %v3816
    %v3819 = vmul.f32 %v3815, %v3817
    %v3820 = vmul.f32 %v3816, %v3818
    %v3821 = vsub.f32 2.0, %v3819
    %v3822 = vsub.f32 2.0, %v3820
    %v3823 = vmul.f32 %v3817, %v3821
    %v3824 = vmul.f32 %v3818, %v3822
    %v3825 = vmul.f32 %v3823, 1.0614054
    %v3826 = vmul.f32 %v3824, 1.0614054
    %v3827 = vadd.f32 %v3825, -1.4531521
    %v3828 = vadd.f32 %v3826, -1.4531521
    %v3829 = vmul.f32 %v3827, %v3823
    %v3830 = vmul.f32 %v3828, %v3824
    %v3831 = vadd.f32 %v3829, 1.4214138
    %v3832 = vadd.f32 %v3830, 1.4214138
    %v3833 = vmul.f32 %v3831, %v3823
    %v3834 = vmul.f32 %v3832, %v3824
    %v3835 = vadd.f32 %v3833, -0.28449672
    %v3836 = vadd.f32 %v3834, -0.28449672
    %v3837 = vmul.f32 %v3835, %v3823
    %v3838 = vmul.f32 %v3836, %v3824
    %v3839 = vadd.f32 %v3837, 0.2548296
    %v3840 = vadd.f32 %v3838, 0.2548296
    %v3841 = vmul.f32 %v3839, %v3823
    %v3842 = vmul.f32 %v3840, %v3824
    %v3843 = vsub.f32 0.0, %v3811
    %v3844 = vsub.f32 0.0, %v3812
    %v3845 = vmul.f32 %v3843, %v3811
    %v3846 = vmul.f32 %v3844, %v3812
    %v3847 = vmul.f32 %v3845, 1.442695
    %v3848 = vpow.pop %v3847
    %v3849 = vmul.f32 %v3846, 1.442695
    %v3850 = vpow.pop %v3849
    %v3851 = vmul.f32 %v3841, %v3848
    %v3852 = vmul.f32 %v3842, %v3850
    %v3853 = vsub.f32 1.0, %v3851
    %v3854 = vsub.f32 1.0, %v3852
    %v3855 = vmul.f32 %v3809, %v3853
    %v3856 = vmul.f32 %v3810, %v3854
    %v3857 = vadd.f32 %v3855, 1.0
    %v3858 = vadd.f32 %v3856, 1.0
    %v3859 = vmul.f32 %v3803, %v3857
    %v3860 = vmul.f32 %v3804, %v3858
    %v3861 = vpack.c.bf16 %v3859, %v3859
    %v3862 = vpack.c.bf16 %v3860, %v3860
    %v3863 = vld [vmem:[#allocation7 + $0x80] sm:$0xf]
    %v3864 = vld [vmem:[#allocation7 + $0x88] sm:$0xf]
    %v3865 = vld [vmem:[#allocation7 + $0x90] sm:$0xf]
    %v3866 = vld [vmem:[#allocation7 + $0x98] sm:$0xf]
    %v3867 = vld [vmem:[#allocation7 + $0xa0] sm:$0xf]
    %v3868 = vld [vmem:[#allocation7 + $0xa8] sm:$0xf]
    %v3869 = vld [vmem:[#allocation7 + $0xb0] sm:$0xf]
    %v3870 = vld [vmem:[#allocation7 + $0xb8] sm:$0xf]
    %v3871 = vld [vmem:[#allocation7 + $0xc0] sm:$0xf]
    %v3872 = vld [vmem:[#allocation7 + $0xc8] sm:$0xf]
    %v3873 = vld [vmem:[#allocation7 + $0xd0] sm:$0xf]
    %v3874 = vld [vmem:[#allocation7 + $0xd8] sm:$0xf]
    %v3875 = vld [vmem:[#allocation7 + $0xe0] sm:$0xf]
    %v3876 = vld [vmem:[#allocation7 + $0xe8] sm:$0xf]
    %v3877 = vld [vmem:[#allocation7 + $0xf0] sm:$0xf]
    %v3878 = vld [vmem:[#allocation7 + $0xf8] sm:$0xf]
    %v3879 = vld [vmem:[#allocation7 + $0x100] sm:$0xf]
    %v3880 = vld [vmem:[#allocation7 + $0x108] sm:$0xf]
    %v3881 = vld [vmem:[#allocation7 + $0x110] sm:$0xf]
    %v3882 = vld [vmem:[#allocation7 + $0x118] sm:$0xf]
    %v3883 = vld [vmem:[#allocation7 + $0x120] sm:$0xf]
    %v3884 = vld [vmem:[#allocation7 + $0x128] sm:$0xf]
    %v3885 = vld [vmem:[#allocation7 + $0x130] sm:$0xf]
    %v3886 = vld [vmem:[#allocation7 + $0x138] sm:$0xf]
    %v3887 = vld [vmem:[#allocation7 + $0x140] sm:$0xf]
    %v3888 = vld [vmem:[#allocation7 + $0x148] sm:$0xf]
    %v3889 = vld [vmem:[#allocation7 + $0x150] sm:$0xf]
    %v3890 = vld [vmem:[#allocation7 + $0x158] sm:$0xf]
    %v3891 = vld [vmem:[#allocation7 + $0x160] sm:$0xf]
    %v3892 = vld [vmem:[#allocation7 + $0x168] sm:$0xf]
    %v3893 = vld [vmem:[#allocation7 + $0x170] sm:$0xf]
    %v3894 = vld [vmem:[#allocation7 + $0x178] sm:$0xf]
    %v3895 = vld [vmem:[#allocation5 + $0x250] ss:$0 sm:$0xff]
    %v3928 = vunpack.c.l.b16 %v3863
    %v3929 = vunpack.c.l.b16 %v3864
    %v3930 = vunpack.c.l.b16 %v3865
    %v3931 = vunpack.c.l.b16 %v3866
    %v3932 = vunpack.c.l.b16 %v3867
    %v3933 = vunpack.c.l.b16 %v3868
    %v3934 = vunpack.c.l.b16 %v3869
    %v3935 = vunpack.c.l.b16 %v3870
    %v3936 = vunpack.c.l.b16 %v3871
    %v3937 = vunpack.c.l.b16 %v3872
    %v3938 = vunpack.c.l.b16 %v3873
    %v3939 = vunpack.c.l.b16 %v3874
    %v3940 = vunpack.c.l.b16 %v3875
    %v3941 = vunpack.c.l.b16 %v3876
    %v3942 = vunpack.c.l.b16 %v3877
    %v3943 = vunpack.c.l.b16 %v3878
    %v3944 = vunpack.c.l.b16 %v3879
    %v3945 = vunpack.c.l.b16 %v3880
    %v3946 = vunpack.c.l.b16 %v3881
    %v3947 = vunpack.c.l.b16 %v3882
    %v3948 = vunpack.c.l.b16 %v3883
    %v3949 = vunpack.c.l.b16 %v3884
    %v3950 = vunpack.c.l.b16 %v3885
    %v3951 = vunpack.c.l.b16 %v3886
    %v3952 = vunpack.c.l.b16 %v3887
    %v3953 = vunpack.c.l.b16 %v3888
    %v3954 = vunpack.c.l.b16 %v3889
    %v3955 = vunpack.c.l.b16 %v3890
    %v3956 = vunpack.c.l.b16 %v3891
    %v3957 = vunpack.c.l.b16 %v3892
    %v3958 = vunpack.c.l.b16 %v3893
    %v3959 = vunpack.c.l.b16 %v3894
    %v3960 = vpack.c.b16 %v3929, %v3928
    %v3961 = vpack.c.b16 %v3931, %v3930
    %v3962 = vpack.c.b16 %v3933, %v3932
    %v3963 = vpack.c.b16 %v3935, %v3934
    %v3964 = vpack.c.b16 %v3937, %v3936
    %v3965 = vpack.c.b16 %v3939, %v3938
    %v3966 = vpack.c.b16 %v3941, %v3940
    %v3967 = vpack.c.b16 %v3943, %v3942
    %v3968 = vpack.c.b16 %v3945, %v3944
    %v3969 = vpack.c.b16 %v3947, %v3946
    %v3970 = vpack.c.b16 %v3949, %v3948
    %v3971 = vpack.c.b16 %v3951, %v3950
    %v3972 = vpack.c.b16 %v3953, %v3952
    %v3973 = vpack.c.b16 %v3955, %v3954
    %v3974 = vpack.c.b16 %v3957, %v3956
    %v3975 = vpack.c.b16 %v3959, %v3958
    %3992 = vmatprep.subr.bf16.mxu0 0
    %3993 = vmatpush1.bf16.msra.mxu0 %v3960
    %3994 = vmatprep.subr.bf16.mxu0 0
    %3995 = vmatpush1.bf16.msra.mxu0 %v3961
    %3996 = vmatprep.subr.bf16.mxu0 0
    %3997 = vmatpush1.bf16.msra.mxu0 %v3962
    %3998 = vmatprep.subr.bf16.mxu0 0
    %3999 = vmatpush1.bf16.msra.mxu0 %v3963
    %4000 = vmatprep.subr.bf16.mxu0 0
    %4001 = vmatpush1.bf16.msra.mxu0 %v3964
    %4002 = vmatprep.subr.bf16.mxu0 0
    %4003 = vmatpush1.bf16.msra.mxu0 %v3965
    %4004 = vmatprep.subr.bf16.mxu0 0
    %4005 = vmatpush1.bf16.msra.mxu0 %v3966
    %4006 = vmatprep.subr.bf16.mxu0 0
    %4007 = vmatpush1.bf16.msra.mxu0 %v3967
    %4008 = vmatprep.subr.bf16.mxu0 0
    %4009 = vmatpush1.bf16.msra.mxu0 %v3968
    %4010 = vmatprep.subr.bf16.mxu0 0
    %4011 = vmatpush1.bf16.msra.mxu0 %v3969
    %4012 = vmatprep.subr.bf16.mxu0 0
    %4013 = vmatpush1.bf16.msra.mxu0 %v3970
    %4014 = vmatprep.subr.bf16.mxu0 0
    %4015 = vmatpush1.bf16.msra.mxu0 %v3971
    %4016 = vmatprep.subr.bf16.mxu0 0
    %4017 = vmatpush1.bf16.msra.mxu0 %v3972
    %4018 = vmatprep.subr.bf16.mxu0 0
    %4019 = vmatpush1.bf16.msra.mxu0 %v3973
    %4020 = vmatprep.subr.bf16.mxu0 0
    %4021 = vmatpush1.bf16.msra.mxu0 %v3974
    %4022 = vmatprep.subr.bf16.mxu0 0
    %4023 = vmatpush1.bf16.msra.mxu0 %v3975
    %4024 = vmatprep.mubr.bf16.mxu0 %v3862
    %4025 = vmatmul.mubr.bf16.gmra.mrb[0].mxu0 %v3861
    %v4026 = vpop.f32.mrb[0].mxu0
    %v4027 = vadd.f32 %v3895, %v4026
    %v4028 = vpop.f32.mrb[0].mxu0
    %v4029 = vpop.f32.mrb[0].mxu0
    %v4030 = vpop.f32.mrb[0].mxu0
    %4031 = vdwg.mxu0
    %v4032 = vmul.f32 %v4027, 0.5
    %v4033 = vmul.f32 %v4027, 0.70710677
    %vm4034 = vcmp.lt.f32.partialorder %v4033, 0.0
    %v4035 = vsel %vm4034, -1.0, 1.0
    %v4036 = vmul.f32 %v4033, %v4035
    %v4037 = vmul.f32 %v4036, 0.3275911
    %v4038 = vadd.f32 %v4037, 1.0
    %v4039 = vrcp.pop %v4038
    %v4040 = vmul.f32 %v4038, %v4039
    %v4041 = vsub.f32 2.0, %v4040
    %v4042 = vmul.f32 %v4039, %v4041
    %v4043 = vmul.f32 %v4042, 1.0614054
    %v4044 = vadd.f32 %v4043, -1.4531521
    %v4045 = vmul.f32 %v4044, %v4042
    %v4046 = vadd.f32 %v4045, 1.4214138
    %v4047 = vmul.f32 %v4046, %v4042
    %v4048 = vadd.f32 %v4047, -0.28449672
    %v4049 = vmul.f32 %v4048, %v4042
    %v4050 = vadd.f32 %v4049, 0.2548296
    %v4051 = vmul.f32 %v4050, %v4042
    %v4052 = vsub.f32 0.0, %v4036
    %v4053 = vmul.f32 %v4052, %v4036
    %v4054 = vmul.f32 %v4053, 1.442695
    %v4055 = vpow.pop %v4054
    %v4056 = vmul.f32 %v4051, %v4055
    %v4057 = vsub.f32 1.0, %v4056
    %v4058 = vmul.f32 %v4035, %v4057
    %v4059 = vadd.f32 %v4058, 1.0
    %v4060 = vmul.f32 %v4032, %v4059
    %v4061 = vpack.c.bf16 %v4060, %v4060
    %v4062 = vld [vmem:[#allocation7 + $0x180] sm:$0xff]
    %v4063 = vld [vmem:[#allocation7 + $0x188] sm:$0xff]
    %v4064 = vld [vmem:[#allocation7 + $0x190] sm:$0xff]
    %v4065 = vld [vmem:[#allocation7 + $0x198] sm:$0xff]
    %s4066 = scalar_lea.vmem [#allocation5], 608
    %v4067 = vld [vmem:[%s4066] ss:$8 sm:$0x3]
    %v4069 = vlaneseq
    %v4070 = vshrl.u32 %v4069, 7
    %v4071 = vsub.s32 0, %v4070
    %v4072 = vrot.slane %v4067, %v4071
    %v4073 = vlaneseq
    %v4074 = vshrl.u32 %v4073, 7
    %v4075 = vsub.s32 1, %v4074
    %v4076 = vrot.slane %v4067, %v4075
    %v4083 = vunpack.c.l.b16 %v4062
    %v4084 = vunpack.c.h.b16 %v4062
    %v4085 = vunpack.c.l.b16 %v4063
    %v4086 = vunpack.c.h.b16 %v4063
    %v4087 = vunpack.c.l.b16 %v4064
    %v4088 = vunpack.c.h.b16 %v4064
    %v4089 = vunpack.c.l.b16 %v4065
    %v4090 = vunpack.c.h.b16 %v4065
    %v4091 = vpack.c.b16 %v4085, %v4083
    %v4092 = vpack.c.b16 %v4086, %v4084
    %v4093 = vpack.c.b16 %v4089, %v4087
    %v4094 = vpack.c.b16 %v4090, %v4088
    %v4100 = vsel %vm3624, %v4061, 0
    %4102 = vmatprep.subr.bf16.mxu0 %v4092
    %4103 = vmatpush1.bf16.msra.mxu0 %v4091
    %4104 = vmatprep.subr.bf16.mxu0 %v4094
    %4105 = vmatpush1.bf16.msra.mxu0 %v4093
    %4106 = vmatprep.subr.bf16.mxu0 0
    %4107 = vmatpush1.bf16.msra.mxu0 0
    %4108 = vmatprep.subr.bf16.mxu0 0
    %4109 = vmatpush1.bf16.msra.mxu0 0
    %4110 = vmatprep.subr.bf16.mxu0 0
    %4111 = vmatpush1.bf16.msra.mxu0 0
    %4112 = vmatprep.subr.bf16.mxu0 0
    %4113 = vmatpush1.bf16.msra.mxu0 0
    %4114 = vmatprep.subr.bf16.mxu0 0
    %4115 = vmatpush1.bf16.msra.mxu0 0
    %4116 = vmatprep.subr.bf16.mxu0 0
    %4117 = vmatpush1.bf16.msra.mxu0 0
    %4118 = vmatprep.subr.bf16.mxu0 0
    %4119 = vmatpush1.bf16.msra.mxu0 0
    %4120 = vmatprep.subr.bf16.mxu0 0
    %4121 = vmatpush1.bf16.msra.mxu0 0
    %4122 = vmatprep.subr.bf16.mxu0 0
    %4123 = vmatpush1.bf16.msra.mxu0 0
    %4124 = vmatprep.subr.bf16.mxu0 0
    %4125 = vmatpush1.bf16.msra.mxu0 0
    %4126 = vmatprep.subr.bf16.mxu0 0
    %4127 = vmatpush1.bf16.msra.mxu0 0
    %4128 = vmatprep.subr.bf16.mxu0 0
    %4129 = vmatpush1.bf16.msra.mxu0 0
    %4130 = vmatprep.subr.bf16.mxu0 0
    %4131 = vmatpush1.bf16.msra.mxu0 0
    %4132 = vmatprep.subr.bf16.mxu0 0
    %4133 = vmatpush1.bf16.msra.mxu0 0
    %4134 = vmatprep.mubr.bf16.mxu0 0
    %4135 = vmatmul.mubr.bf16.gmra.mrb[0].mxu0 %v4100
    %v4136 = vpop.f32.mrb[0].mxu0
    %v4137 = vadd.f32 %v4072, %v4136
    %v4138 = vpop.f32.mrb[0].mxu0
    %v4139 = vadd.f32 %v4076, %v4138
    %v4140 = vpop.f32.mrb[0].mxu0
    %v4141 = vpop.f32.mrb[0].mxu0
    %4142 = vdwg.mxu0
    %v4143 = vmul.f32 %v4137, 0.5
    %v4144 = vmul.f32 %v4139, 0.5
    %v4145 = vmul.f32 %v4137, 0.70710677
    %v4146 = vmul.f32 %v4139, 0.70710677
    %vm4147 = vcmp.lt.f32.partialorder %v4145, 0.0
    %vm4148 = vcmp.lt.f32.partialorder %v4146, 0.0
    %v4149 = vsel %vm4147, -1.0, 1.0
    %v4150 = vsel %vm4148, -1.0, 1.0
    %v4151 = vmul.f32 %v4145, %v4149
    %v4152 = vmul.f32 %v4146, %v4150
    %v4153 = vmul.f32 %v4151, 0.3275911
    %v4154 = vmul.f32 %v4152, 0.3275911
    %v4155 = vadd.f32 %v4153, 1.0
    %v4156 = vadd.f32 %v4154, 1.0
    %v4157 = vrcp.pop %v4155
    %v4158 = vrcp.pop %v4156
    %v4159 = vmul.f32 %v4155, %v4157
    %v4160 = vmul.f32 %v4156, %v4158
    %v4161 = vsub.f32 2.0, %v4159
    %v4162 = vsub.f32 2.0, %v4160
    %v4163 = vmul.f32 %v4157, %v4161
    %v4164 = vmul.f32 %v4158, %v4162
    %v4165 = vmul.f32 %v4163, 1.0614054
    %v4166 = vmul.f32 %v4164, 1.0614054
    %v4167 = vadd.f32 %v4165, -1.4531521
    %v4168 = vadd.f32 %v4166, -1.4531521
    %v4169 = vmul.f32 %v4167, %v4163
    %v4170 = vmul.f32 %v4168, %v4164
    %v4171 = vadd.f32 %v4169, 1.4214138
    %v4172 = vadd.f32 %v4170, 1.4214138
    %v4173 = vmul.f32 %v4171, %v4163
    %v4174 = vmul.f32 %v4172, %v4164
    %v4175 = vadd.f32 %v4173, -0.28449672
    %v4176 = vadd.f32 %v4174, -0.28449672
    %v4177 = vmul.f32 %v4175, %v4163
    %v4178 = vmul.f32 %v4176, %v4164
    %v4179 = vadd.f32 %v4177, 0.2548296
    %v4180 = vadd.f32 %v4178, 0.2548296
    %v4181 = vmul.f32 %v4179, %v4163
    %v4182 = vmul.f32 %v4180, %v4164
    %v4183 = vsub.f32 0.0, %v4151
    %v4184 = vsub.f32 0.0, %v4152
    %v4185 = vmul.f32 %v4183, %v4151
    %v4186 = vmul.f32 %v4184, %v4152
    %v4187 = vmul.f32 %v4185, 1.442695
    %v4188 = vpow.pop %v4187
    %v4189 = vmul.f32 %v4186, 1.442695
    %v4190 = vpow.pop %v4189
    %v4191 = vmul.f32 %v4181, %v4188
    %v4192 = vmul.f32 %v4182, %v4190
    %v4193 = vsub.f32 1.0, %v4191
    %v4194 = vsub.f32 1.0, %v4192
    %v4195 = vmul.f32 %v4149, %v4193
    %v4196 = vmul.f32 %v4150, %v4194
    %v4197 = vadd.f32 %v4195, 1.0
    %v4198 = vadd.f32 %v4196, 1.0
    %v4199 = vmul.f32 %v4143, %v4197
    %v4200 = vmul.f32 %v4144, %v4198
    %v4201 = vpack.c.bf16 %v4199, %v4199
    %v4202 = vpack.c.bf16 %v4200, %v4200
    %v4203 = vld [vmem:[#allocation7 + $0x1a0] sm:$0xf]
    %v4204 = vld [vmem:[#allocation7 + $0x1a8] sm:$0xf]
    %v4205 = vld [vmem:[#allocation7 + $0x1b0] sm:$0xf]
    %v4206 = vld [vmem:[#allocation7 + $0x1b8] sm:$0xf]
    %v4207 = vld [vmem:[#allocation7 + $0x1c0] sm:$0xf]
    %v4208 = vld [vmem:[#allocation7 + $0x1c8] sm:$0xf]
    %v4209 = vld [vmem:[#allocation7 + $0x1d0] sm:$0xf]
    %v4210 = vld [vmem:[#allocation7 + $0x1d8] sm:$0xf]
    %v4211 = vld [vmem:[#allocation7 + $0x1e0] sm:$0xf]
    %v4212 = vld [vmem:[#allocation7 + $0x1e8] sm:$0xf]
    %v4213 = vld [vmem:[#allocation7 + $0x1f0] sm:$0xf]
    %v4214 = vld [vmem:[#allocation7 + $0x1f8] sm:$0xf]
    %v4215 = vld [vmem:[#allocation7 + $0x200] sm:$0xf]
    %v4216 = vld [vmem:[#allocation7 + $0x208] sm:$0xf]
    %v4217 = vld [vmem:[#allocation7 + $0x210] sm:$0xf]
    %v4218 = vld [vmem:[#allocation7 + $0x218] sm:$0xf]
    %v4219 = vld [vmem:[#allocation7 + $0x220] sm:$0xf]
    %v4220 = vld [vmem:[#allocation7 + $0x228] sm:$0xf]
    %v4221 = vld [vmem:[#allocation7 + $0x230] sm:$0xf]
    %v4222 = vld [vmem:[#allocation7 + $0x238] sm:$0xf]
    %v4223 = vld [vmem:[#allocation7 + $0x240] sm:$0xf]
    %v4224 = vld [vmem:[#allocation7 + $0x248] sm:$0xf]
    %v4225 = vld [vmem:[#allocation7 + $0x250] sm:$0xf]
    %v4226 = vld [vmem:[#allocation7 + $0x258] sm:$0xf]
    %v4227 = vld [vmem:[#allocation7 + $0x260] sm:$0xf]
    %v4228 = vld [vmem:[#allocation7 + $0x268] sm:$0xf]
    %v4229 = vld [vmem:[#allocation7 + $0x270] sm:$0xf]
    %v4230 = vld [vmem:[#allocation7 + $0x278] sm:$0xf]
    %v4231 = vld [vmem:[#allocation7 + $0x280] sm:$0xf]
    %v4232 = vld [vmem:[#allocation7 + $0x288] sm:$0xf]
    %v4233 = vld [vmem:[#allocation7 + $0x290] sm:$0xf]
    %v4234 = vld [vmem:[#allocation7 + $0x298] sm:$0xf]
    %v4235 = vld [vmem:[#allocation5 + $0x270] ss:$0 sm:$0xff]
    %v4268 = vunpack.c.l.b16 %v4203
    %v4269 = vunpack.c.l.b16 %v4204
    %v4270 = vunpack.c.l.b16 %v4205
    %v4271 = vunpack.c.l.b16 %v4206
    %v4272 = vunpack.c.l.b16 %v4207
    %v4273 = vunpack.c.l.b16 %v4208
    %v4274 = vunpack.c.l.b16 %v4209
    %v4275 = vunpack.c.l.b16 %v4210
    %v4276 = vunpack.c.l.b16 %v4211
    %v4277 = vunpack.c.l.b16 %v4212
    %v4278 = vunpack.c.l.b16 %v4213
    %v4279 = vunpack.c.l.b16 %v4214
    %v4280 = vunpack.c.l.b16 %v4215
    %v4281 = vunpack.c.l.b16 %v4216
    %v4282 = vunpack.c.l.b16 %v4217
    %v4283 = vunpack.c.l.b16 %v4218
    %v4284 = vunpack.c.l.b16 %v4219
    %v4285 = vunpack.c.l.b16 %v4220
    %v4286 = vunpack.c.l.b16 %v4221
    %v4287 = vunpack.c.l.b16 %v4222
    %v4288 = vunpack.c.l.b16 %v4223
    %v4289 = vunpack.c.l.b16 %v4224
    %v4290 = vunpack.c.l.b16 %v4225
    %v4291 = vunpack.c.l.b16 %v4226
    %v4292 = vunpack.c.l.b16 %v4227
    %v4293 = vunpack.c.l.b16 %v4228
    %v4294 = vunpack.c.l.b16 %v4229
    %v4295 = vunpack.c.l.b16 %v4230
    %v4296 = vunpack.c.l.b16 %v4231
    %v4297 = vunpack.c.l.b16 %v4232
    %v4298 = vunpack.c.l.b16 %v4233
    %v4299 = vunpack.c.l.b16 %v4234
    %v4300 = vpack.c.b16 %v4269, %v4268
    %v4301 = vpack.c.b16 %v4271, %v4270
    %v4302 = vpack.c.b16 %v4273, %v4272
    %v4303 = vpack.c.b16 %v4275, %v4274
    %v4304 = vpack.c.b16 %v4277, %v4276
    %v4305 = vpack.c.b16 %v4279, %v4278
    %v4306 = vpack.c.b16 %v4281, %v4280
    %v4307 = vpack.c.b16 %v4283, %v4282
    %v4308 = vpack.c.b16 %v4285, %v4284
    %v4309 = vpack.c.b16 %v4287, %v4286
    %v4310 = vpack.c.b16 %v4289, %v4288
    %v4311 = vpack.c.b16 %v4291, %v4290
    %v4312 = vpack.c.b16 %v4293, %v4292
    %v4313 = vpack.c.b16 %v4295, %v4294
    %v4314 = vpack.c.b16 %v4297, %v4296
    %v4315 = vpack.c.b16 %v4299, %v4298
    %4332 = vmatprep.subr.bf16.mxu0 0
    %4333 = vmatpush1.bf16.msra.mxu0 %v4300
    %4334 = vmatprep.subr.bf16.mxu0 0
    %4335 = vmatpush1.bf16.msra.mxu0 %v4301
    %4336 = vmatprep.subr.bf16.mxu0 0
    %4337 = vmatpush1.bf16.msra.mxu0 %v4302
    %4338 = vmatprep.subr.bf16.mxu0 0
    %4339 = vmatpush1.bf16.msra.mxu0 %v4303
    %4340 = vmatprep.subr.bf16.mxu0 0
    %4341 = vmatpush1.bf16.msra.mxu0 %v4304
    %4342 = vmatprep.subr.bf16.mxu0 0
    %4343 = vmatpush1.bf16.msra.mxu0 %v4305
    %4344 = vmatprep.subr.bf16.mxu0 0
    %4345 = vmatpush1.bf16.msra.mxu0 %v4306
    %4346 = vmatprep.subr.bf16.mxu0 0
    %4347 = vmatpush1.bf16.msra.mxu0 %v4307
    %4348 = vmatprep.subr.bf16.mxu0 0
    %4349 = vmatpush1.bf16.msra.mxu0 %v4308
    %4350 = vmatprep.subr.bf16.mxu0 0
    %4351 = vmatpush1.bf16.msra.mxu0 %v4309
    %4352 = vmatprep.subr.bf16.mxu0 0
    %4353 = vmatpush1.bf16.msra.mxu0 %v4310
    %4354 = vmatprep.subr.bf16.mxu0 0
    %4355 = vmatpush1.bf16.msra.mxu0 %v4311
    %4356 = vmatprep.subr.bf16.mxu0 0
    %4357 = vmatpush1.bf16.msra.mxu0 %v4312
    %4358 = vmatprep.subr.bf16.mxu0 0
    %4359 = vmatpush1.bf16.msra.mxu0 %v4313
    %4360 = vmatprep.subr.bf16.mxu0 0
    %4361 = vmatpush1.bf16.msra.mxu0 %v4314
    %4362 = vmatprep.subr.bf16.mxu0 0
    %4363 = vmatpush1.bf16.msra.mxu0 %v4315
    %4364 = vmatprep.mubr.bf16.mxu0 %v4202
    %4365 = vmatmul.mubr.bf16.gmra.mrb[0].mxu0 %v4201
    %v4366 = vpop.f32.mrb[0].mxu0
    %v4367 = vadd.f32 %v4235, %v4366
    %v4368 = vpop.f32.mrb[0].mxu0
    %v4369 = vpop.f32.mrb[0].mxu0
    %v4370 = vpop.f32.mrb[0].mxu0
    %4371 = vdwg.mxu0
    %v4372 = vxor.u32 %v4367, 2147483648
    %v4373 = vmul.f32 %v4372, 1.442695
    %v4374 = vpow.pop %v4373
    %v4375 = vadd.f32 %v4374, 1.0
    %v4376 = vrcp.pop %v4375
    %v4377 = vmul.f32 1.0, %v4376
    %v4378 = vpack.c.bf16 %v3648, %v3648
    %v4379 = vld [vmem:[#allocation7 + $0x2a0] sm:$0x3]
    %v4380 = vpack.c.bf16 %v3651, %v3651
    %v4381 = vld [vmem:[#allocation7 + $0x2b0] sm:$0x3]
    %vm4382 = vcmask 31744
    %v4384 = vsel %vm4382, %v4380, 0
    %v4387 = vsel %vm969, %v4381, 0
    %4389 = vmatprep.subr.bf16.mxu0 0
    %4390 = vmatpush1.bf16.msra.mxu0 %v4387
    %4391 = vmatprep.subr.bf16.mxu0 0
    %4392 = vmatpush1.bf16.msra.mxu0 0
    %4393 = vmatprep.subr.bf16.mxu0 0
    %4394 = vmatpush1.bf16.msra.mxu0 0
    %4395 = vmatprep.subr.bf16.mxu0 0
    %4396 = vmatpush1.bf16.msra.mxu0 0
    %4397 = vmatprep.subr.bf16.mxu0 0
    %4398 = vmatpush1.bf16.msra.mxu0 0
    %4399 = vmatprep.subr.bf16.mxu0 0
    %4400 = vmatpush1.bf16.msra.mxu0 0
    %4401 = vmatprep.subr.bf16.mxu0 0
    %4402 = vmatpush1.bf16.msra.mxu0 0
    %4403 = vmatprep.subr.bf16.mxu0 0
    %4404 = vmatpush1.bf16.msra.mxu0 0
    %4405 = vmatprep.subr.bf16.mxu0 0
    %4406 = vmatpush1.bf16.msra.mxu0 0
    %4407 = vmatprep.subr.bf16.mxu0 0
    %4408 = vmatpush1.bf16.msra.mxu0 0
    %4409 = vmatprep.subr.bf16.mxu0 0
    %4410 = vmatpush1.bf16.msra.mxu0 0
    %4411 = vmatprep.subr.bf16.mxu0 0
    %4412 = vmatpush1.bf16.msra.mxu0 0
    %4413 = vmatprep.subr.bf16.mxu0 0
    %4414 = vmatpush1.bf16.msra.mxu0 0
    %4415 = vmatprep.subr.bf16.mxu0 0
    %4416 = vmatpush1.bf16.msra.mxu0 0
    %4417 = vmatprep.subr.bf16.mxu0 0
    %4418 = vmatpush1.bf16.msra.mxu0 0
    %4419 = vmatprep.subr.bf16.mxu0 0
    %4420 = vmatpush1.bf16.msra.mxu0 0
    %4421 = vmatprep.mubr.bf16.mxu0 0
    %4422 = vmatmul.mubr.bf16.gmra.mrb[0].mxu0 %v4384
    %v4423 = vpop.f32.mrb[0].mxu0
    %v4424 = vadd.f32 0.0, %v4423
    %v4425 = vpop.f32.mrb[0].mxu0
    %v4426 = vpop.f32.mrb[0].mxu0
    %v4427 = vpop.f32.mrb[0].mxu0
    %4428 = vdwg.mxu0
    %v4430 = vsel %vm4382, %v4378, 0
    %v4433 = vsel %vm969, %v4379, 0
    %4435 = vmatprep.subr.bf16.mxu0 0
    %4436 = vmatpush1.bf16.msra.mxu0 %v4433
    %4437 = vmatprep.subr.bf16.mxu0 0
    %4438 = vmatpush1.bf16.msra.mxu0 0
    %4439 = vmatprep.subr.bf16.mxu0 0
    %4440 = vmatpush1.bf16.msra.mxu0 0
    %4441 = vmatprep.subr.bf16.mxu0 0
    %4442 = vmatpush1.bf16.msra.mxu0 0
    %4443 = vmatprep.subr.bf16.mxu0 0
    %4444 = vmatpush1.bf16.msra.mxu0 0
    %4445 = vmatprep.subr.bf16.mxu0 0
    %4446 = vmatpush1.bf16.msra.mxu0 0
    %4447 = vmatprep.subr.bf16.mxu0 0
    %4448 = vmatpush1.bf16.msra.mxu0 0
    %4449 = vmatprep.subr.bf16.mxu0 0
    %4450 = vmatpush1.bf16.msra.mxu0 0
    %4451 = vmatprep.subr.bf16.mxu0 0
    %4452 = vmatpush1.bf16.msra.mxu0 0
    %4453 = vmatprep.subr.bf16.mxu0 0
    %4454 = vmatpush1.bf16.msra.mxu0 0
    %4455 = vmatprep.subr.bf16.mxu0 0
    %4456 = vmatpush1.bf16.msra.mxu0 0
    %4457 = vmatprep.subr.bf16.mxu0 0
    %4458 = vmatpush1.bf16.msra.mxu0 0
    %4459 = vmatprep.subr.bf16.mxu0 0
    %4460 = vmatpush1.bf16.msra.mxu0 0
    %4461 = vmatprep.subr.bf16.mxu0 0
    %4462 = vmatpush1.bf16.msra.mxu0 0
    %4463 = vmatprep.subr.bf16.mxu0 0
    %4464 = vmatpush1.bf16.msra.mxu0 0
    %4465 = vmatprep.subr.bf16.mxu0 0
    %4466 = vmatpush1.bf16.msra.mxu0 0
    %4467 = vmatprep.mubr.bf16.mxu0 0
    %4468 = vmatmul.mubr.bf16.gmra.mrb[0].mxu0 %v4430
    %v4469 = vpop.f32.mrb[0].mxu0
    %v4470 = vadd.f32 %v4424, %v4469
    %v4471 = vpop.f32.mrb[0].mxu0
    %v4472 = vpop.f32.mrb[0].mxu0
    %v4473 = vpop.f32.mrb[0].mxu0
    %4474 = vdwg.mxu0
    %v4475 = vld [vmem:[#allocation5 + $0x280] ss:$0 sm:$0xff]
    %v4476 = vadd.f32 %v4470, %v4475
    %v4477 = vmul.f32 %v4476, 0.5
    %v4478 = vmul.f32 %v4476, 0.70710677
    %vm4479 = vcmp.lt.f32.partialorder %v4478, 0.0
    %v4480 = vsel %vm4479, -1.0, 1.0
    %v4481 = vmul.f32 %v4478, %v4480
    %v4482 = vmul.f32 %v4481, 0.3275911
    %v4483 = vadd.f32 %v4482, 1.0
    %v4484 = vrcp.pop %v4483
    %v4485 = vmul.f32 %v4483, %v4484
    %v4486 = vsub.f32 2.0, %v4485
    %v4487 = vmul.f32 %v4484, %v4486
    %v4488 = vmul.f32 %v4487, 1.0614054
    %v4489 = vadd.f32 %v4488, -1.4531521
    %v4490 = vmul.f32 %v4489, %v4487
    %v4491 = vadd.f32 %v4490, 1.4214138
    %v4492 = vmul.f32 %v4491, %v4487
    %v4493 = vadd.f32 %v4492, -0.28449672
    %v4494 = vmul.f32 %v4493, %v4487
    %v4495 = vadd.f32 %v4494, 0.2548296
    %v4496 = vmul.f32 %v4495, %v4487
    %v4497 = vsub.f32 0.0, %v4481
    %v4498 = vmul.f32 %v4497, %v4481
    %v4499 = vmul.f32 %v4498, 1.442695
    %v4500 = vpow.pop %v4499
    %v4501 = vmul.f32 %v4496, %v4500
    %v4502 = vsub.f32 1.0, %v4501
    %v4503 = vmul.f32 %v4480, %v4502
    %v4504 = vadd.f32 %v4503, 1.0
    %v4505 = vmul.f32 %v4477, %v4504
    %v4506 = vpack.c.bf16 %v4505, %v4505
    %v4507 = vld [vmem:[#allocation7 + $0x2c0] sm:$0xf]
    %v4508 = vld [vmem:[#allocation7 + $0x2c8] sm:$0xf]
    %v4509 = vld [vmem:[#allocation5 + $0x290] ss:$0 sm:$0xff]
    %v4512 = vunpack.c.l.b16 %v4507
    %v4513 = vunpack.c.l.b16 %v4508
    %v4514 = vpack.c.b16 %v4513, %v4512
    %vm4516 = vcmask 130048
    %v4518 = vsel %vm4516, %v4506, 0
    %4520 = vmatprep.subr.bf16.mxu0 0
    %4521 = vmatpush1.bf16.msra.mxu0 %v4514
    %4522 = vmatprep.subr.bf16.mxu0 0
    %4523 = vmatpush1.bf16.msra.mxu0 0
    %4524 = vmatprep.subr.bf16.mxu0 0
    %4525 = vmatpush1.bf16.msra.mxu0 0
    %4526 = vmatprep.subr.bf16.mxu0 0
    %4527 = vmatpush1.bf16.msra.mxu0 0
    %4528 = vmatprep.subr.bf16.mxu0 0
    %4529 = vmatpush1.bf16.msra.mxu0 0
    %4530 = vmatprep.subr.bf16.mxu0 0
    %4531 = vmatpush1.bf16.msra.mxu0 0
    %4532 = vmatprep.subr.bf16.mxu0 0
    %4533 = vmatpush1.bf16.msra.mxu0 0
    %4534 = vmatprep.subr.bf16.mxu0 0
    %4535 = vmatpush1.bf16.msra.mxu0 0
    %4536 = vmatprep.subr.bf16.mxu0 0
    %4537 = vmatpush1.bf16.msra.mxu0 0
    %4538 = vmatprep.subr.bf16.mxu0 0
    %4539 = vmatpush1.bf16.msra.mxu0 0
    %4540 = vmatprep.subr.bf16.mxu0 0
    %4541 = vmatpush1.bf16.msra.mxu0 0
    %4542 = vmatprep.subr.bf16.mxu0 0
    %4543 = vmatpush1.bf16.msra.mxu0 0
    %4544 = vmatprep.subr.bf16.mxu0 0
    %4545 = vmatpush1.bf16.msra.mxu0 0
    %4546 = vmatprep.subr.bf16.mxu0 0
    %4547 = vmatpush1.bf16.msra.mxu0 0
    %4548 = vmatprep.subr.bf16.mxu0 0
    %4549 = vmatpush1.bf16.msra.mxu0 0
    %4550 = vmatprep.subr.bf16.mxu0 0
    %4551 = vmatpush1.bf16.msra.mxu0 0
    %4552 = vmatprep.mubr.bf16.mxu0 0
    %4553 = vmatmul.mubr.bf16.gmra.mrb[0].mxu0 %v4518
    %v4554 = vpop.f32.mrb[0].mxu0
    %v4555 = vadd.f32 %v4509, %v4554
    %v4556 = vpop.f32.mrb[0].mxu0
    %v4557 = vpop.f32.mrb[0].mxu0
    %v4558 = vpop.f32.mrb[0].mxu0
    %4559 = vdwg.mxu0
    %v4560 = vmul.f32 %v4555, 0.5
    %v4561 = vmul.f32 %v4555, 0.70710677
    %vm4562 = vcmp.lt.f32.partialorder %v4561, 0.0
    %v4563 = vsel %vm4562, -1.0, 1.0
    %v4564 = vmul.f32 %v4561, %v4563
    %v4565 = vmul.f32 %v4564, 0.3275911
    %v4566 = vadd.f32 %v4565, 1.0
    %v4567 = vrcp.pop %v4566
    %v4568 = vmul.f32 %v4566, %v4567
    %v4569 = vsub.f32 2.0, %v4568
    %v4570 = vmul.f32 %v4567, %v4569
    %v4571 = vmul.f32 %v4570, 1.0614054
    %v4572 = vadd.f32 %v4571, -1.4531521
    %v4573 = vmul.f32 %v4572, %v4570
    %v4574 = vadd.f32 %v4573, 1.4214138
    %v4575 = vmul.f32 %v4574, %v4570
    %v4576 = vadd.f32 %v4575, -0.28449672
    %v4577 = vmul.f32 %v4576, %v4570
    %v4578 = vadd.f32 %v4577, 0.2548296
    %v4579 = vmul.f32 %v4578, %v4570
    %v4580 = vsub.f32 0.0, %v4564
    %v4581 = vmul.f32 %v4580, %v4564
    %v4582 = vmul.f32 %v4581, 1.442695
    %v4583 = vpow.pop %v4582
    %v4584 = vmul.f32 %v4579, %v4583
    %v4585 = vsub.f32 1.0, %v4584
    %v4586 = vmul.f32 %v4563, %v4585
    %v4587 = vadd.f32 %v4586, 1.0
    %v4588 = vmul.f32 %v4560, %v4587
    %v4589 = vld [vmem:[#allocation7 + $0x2d0] sm:$0xf]
    %v4590 = vld [vmem:[#allocation7 + $0x2d8] sm:$0xf]
    %v4591 = vld [vmem:[#allocation5 + $0x2a0] ss:$0 sm:$0xff]
    %v4594 = vunpack.c.l.b16 %v4589
    %v4595 = vunpack.c.l.b16 %v4590
    %v4596 = vpack.c.b16 %v4595, %v4594
    %4598 = vmatprep.subr.bf16.mxu0 0
    %4599 = vmatpush1.bf16.msra.mxu0 %v4596
    %4600 = vmatprep.subr.bf16.mxu0 0
    %4601 = vmatpush1.bf16.msra.mxu0 0
    %4602 = vmatprep.subr.bf16.mxu0 0
    %4603 = vmatpush1.bf16.msra.mxu0 0
    %4604 = vmatprep.subr.bf16.mxu0 0
    %4605 = vmatpush1.bf16.msra.mxu0 0
    %4606 = vmatprep.subr.bf16.mxu0 0
    %4607 = vmatpush1.bf16.msra.mxu0 0
    %4608 = vmatprep.subr.bf16.mxu0 0
    %4609 = vmatpush1.bf16.msra.mxu0 0
    %4610 = vmatprep.subr.bf16.mxu0 0
    %4611 = vmatpush1.bf16.msra.mxu0 0
    %4612 = vmatprep.subr.bf16.mxu0 0
    %4613 = vmatpush1.bf16.msra.mxu0 0
    %4614 = vmatprep.subr.bf16.mxu0 0
    %4615 = vmatpush1.bf16.msra.mxu0 0
    %4616 = vmatprep.subr.bf16.mxu0 0
    %4617 = vmatpush1.bf16.msra.mxu0 0
    %4618 = vmatprep.subr.bf16.mxu0 0
    %4619 = vmatpush1.bf16.msra.mxu0 0
    %4620 = vmatprep.subr.bf16.mxu0 0
    %4621 = vmatpush1.bf16.msra.mxu0 0
    %4622 = vmatprep.subr.bf16.mxu0 0
    %4623 = vmatpush1.bf16.msra.mxu0 0
    %4624 = vmatprep.subr.bf16.mxu0 0
    %4625 = vmatpush1.bf16.msra.mxu0 0
    %4626 = vmatprep.subr.bf16.mxu0 0
    %4627 = vmatpush1.bf16.msra.mxu0 0
    %4628 = vmatprep.subr.bf16.mxu0 0
    %4629 = vmatpush1.bf16.msra.mxu0 0
    %4630 = vmatprep.mubr.bf16.mxu0 0
    %4631 = vmatmul.mubr.bf16.gmra.mrb[0].mxu0 %v4518
    %v4632 = vpop.f32.mrb[0].mxu0
    %v4633 = vadd.f32 %v4591, %v4632
    %v4634 = vpop.f32.mrb[0].mxu0
    %v4635 = vpop.f32.mrb[0].mxu0
    %v4636 = vpop.f32.mrb[0].mxu0
    %4637 = vdwg.mxu0
    %v4638 = vmul.f32 %v4633, 0.5
    %v4639 = vmul.f32 %v4633, 0.70710677
    %vm4640 = vcmp.lt.f32.partialorder %v4639, 0.0
    %v4641 = vsel %vm4640, -1.0, 1.0
    %v4642 = vmul.f32 %v4639, %v4641
    %v4643 = vmul.f32 %v4642, 0.3275911
    %v4644 = vadd.f32 %v4643, 1.0
    %v4645 = vrcp.pop %v4644
    %v4646 = vmul.f32 %v4644, %v4645
    %v4647 = vsub.f32 2.0, %v4646
    %v4648 = vmul.f32 %v4645, %v4647
    %v4649 = vmul.f32 %v4648, 1.0614054
    %v4650 = vadd.f32 %v4649, -1.4531521
    %v4651 = vmul.f32 %v4650, %v4648
    %v4652 = vadd.f32 %v4651, 1.4214138
    %v4653 = vmul.f32 %v4652, %v4648
    %v4654 = vadd.f32 %v4653, -0.28449672
    %v4655 = vmul.f32 %v4654, %v4648
    %v4656 = vadd.f32 %v4655, 0.2548296
    %v4657 = vmul.f32 %v4656, %v4648
    %v4658 = vsub.f32 0.0, %v4642
    %v4659 = vmul.f32 %v4658, %v4642
    %v4660 = vmul.f32 %v4659, 1.442695
    %v4661 = vpow.pop %v4660
    %v4662 = vmul.f32 %v4657, %v4661
    %v4663 = vsub.f32 1.0, %v4662
    %v4664 = vmul.f32 %v4641, %v4663
    %v4665 = vadd.f32 %v4664, 1.0
    %v4666 = vmul.f32 %v4638, %v4665
    %v4667 = vpack.c.bf16 %v4588, %v4588
    %v4668 = vld [vmem:[#allocation7 + $0x2e0] sm:$0x3]
    %v4669 = vld [vmem:[#allocation5 + $0x2b0] ss:$0 sm:$0xff]
    %v4671 = vsel %vm4382, %v4667, 0
    %v4674 = vsel %vm969, %v4668, 0
    %4676 = vmatprep.subr.bf16.mxu0 0
    %4677 = vmatpush1.bf16.msra.mxu0 %v4674
    %4678 = vmatprep.subr.bf16.mxu0 0
    %4679 = vmatpush1.bf16.msra.mxu0 0
    %4680 = vmatprep.subr.bf16.mxu0 0
    %4681 = vmatpush1.bf16.msra.mxu0 0
    %4682 = vmatprep.subr.bf16.mxu0 0
    %4683 = vmatpush1.bf16.msra.mxu0 0
    %4684 = vmatprep.subr.bf16.mxu0 0
    %4685 = vmatpush1.bf16.msra.mxu0 0
    %4686 = vmatprep.subr.bf16.mxu0 0
    %4687 = vmatpush1.bf16.msra.mxu0 0
    %4688 = vmatprep.subr.bf16.mxu0 0
    %4689 = vmatpush1.bf16.msra.mxu0 0
    %4690 = vmatprep.subr.bf16.mxu0 0
    %4691 = vmatpush1.bf16.msra.mxu0 0
    %4692 = vmatprep.subr.bf16.mxu0 0
    %4693 = vmatpush1.bf16.msra.mxu0 0
    %4694 = vmatprep.subr.bf16.mxu0 0
    %4695 = vmatpush1.bf16.msra.mxu0 0
    %4696 = vmatprep.subr.bf16.mxu0 0
    %4697 = vmatpush1.bf16.msra.mxu0 0
    %4698 = vmatprep.subr.bf16.mxu0 0
    %4699 = vmatpush1.bf16.msra.mxu0 0
    %4700 = vmatprep.subr.bf16.mxu0 0
    %4701 = vmatpush1.bf16.msra.mxu0 0
    %4702 = vmatprep.subr.bf16.mxu0 0
    %4703 = vmatpush1.bf16.msra.mxu0 0
    %4704 = vmatprep.subr.bf16.mxu0 0
    %4705 = vmatpush1.bf16.msra.mxu0 0
    %4706 = vmatprep.subr.bf16.mxu0 0
    %4707 = vmatpush1.bf16.msra.mxu0 0
    %4708 = vmatprep.mubr.bf16.mxu0 0
    %4709 = vmatmul.mubr.bf16.gmra.mrb[0].mxu0 %v4671
    %v4710 = vpop.f32.mrb[0].mxu0
    %v4711 = vadd.f32 %v4669, %v4710
    %v4712 = vpop.f32.mrb[0].mxu0
    %v4713 = vpop.f32.mrb[0].mxu0
    %v4714 = vpop.f32.mrb[0].mxu0
    %4715 = vdwg.mxu0
    %v4716 = vmul.f32 %v4711, 0.5
    %v4717 = vmul.f32 %v4711, 0.70710677
    %vm4718 = vcmp.lt.f32.partialorder %v4717, 0.0
    %v4719 = vsel %vm4718, -1.0, 1.0
    %v4720 = vmul.f32 %v4717, %v4719
    %v4721 = vmul.f32 %v4720, 0.3275911
    %v4722 = vadd.f32 %v4721, 1.0
    %v4723 = vrcp.pop %v4722
    %v4724 = vmul.f32 %v4722, %v4723
    %v4725 = vsub.f32 2.0, %v4724
    %v4726 = vmul.f32 %v4723, %v4725
    %v4727 = vmul.f32 %v4726, 1.0614054
    %v4728 = vadd.f32 %v4727, -1.4531521
    %v4729 = vmul.f32 %v4728, %v4726
    %v4730 = vadd.f32 %v4729, 1.4214138
    %v4731 = vmul.f32 %v4730, %v4726
    %v4732 = vadd.f32 %v4731, -0.28449672
    %v4733 = vmul.f32 %v4732, %v4726
    %v4734 = vadd.f32 %v4733, 0.2548296
    %v4735 = vmul.f32 %v4734, %v4726
    %v4736 = vsub.f32 0.0, %v4720
    %v4737 = vmul.f32 %v4736, %v4720
    %v4738 = vmul.f32 %v4737, 1.442695
    %v4739 = vpow.pop %v4738
    %v4740 = vmul.f32 %v4735, %v4739
    %v4741 = vsub.f32 1.0, %v4740
    %v4742 = vmul.f32 %v4719, %v4741
    %v4743 = vadd.f32 %v4742, 1.0
    %v4744 = vmul.f32 %v4716, %v4743
    %v4745 = vpack.c.bf16 %v4744, %v4744
    %v4746 = vld [vmem:[#allocation7 + $0x2f0] sm:$0xf]
    %v4747 = vld [vmem:[#allocation5 + $0x2c0] ss:$0 sm:$0xff]
    %vm4748 = vcmask 64512
    %v4750 = vsel %vm4748, %v4745, 0
    %vm4752 = vcmask 1043456
    %v4754 = vsel %vm4752, %v4746, 0
    %4756 = vmatprep.subr.bf16.mxu0 0
    %4757 = vmatpush1.bf16.msra.mxu0 %v4754
    %4758 = vmatprep.subr.bf16.mxu0 0
    %4759 = vmatpush1.bf16.msra.mxu0 0
    %4760 = vmatprep.subr.bf16.mxu0 0
    %4761 = vmatpush1.bf16.msra.mxu0 0
    %4762 = vmatprep.subr.bf16.mxu0 0
    %4763 = vmatpush1.bf16.msra.mxu0 0
    %4764 = vmatprep.subr.bf16.mxu0 0
    %4765 = vmatpush1.bf16.msra.mxu0 0
    %4766 = vmatprep.subr.bf16.mxu0 0
    %4767 = vmatpush1.bf16.msra.mxu0 0
    %4768 = vmatprep.subr.bf16.mxu0 0
    %4769 = vmatpush1.bf16.msra.mxu0 0
    %4770 = vmatprep.subr.bf16.mxu0 0
    %4771 = vmatpush1.bf16.msra.mxu0 0
    %4772 = vmatprep.subr.bf16.mxu0 0
    %4773 = vmatpush1.bf16.msra.mxu0 0
    %4774 = vmatprep.subr.bf16.mxu0 0
    %4775 = vmatpush1.bf16.msra.mxu0 0
    %4776 = vmatprep.subr.bf16.mxu0 0
    %4777 = vmatpush1.bf16.msra.mxu0 0
    %4778 = vmatprep.subr.bf16.mxu0 0
    %4779 = vmatpush1.bf16.msra.mxu0 0
    %4780 = vmatprep.subr.bf16.mxu0 0
    %4781 = vmatpush1.bf16.msra.mxu0 0
    %4782 = vmatprep.subr.bf16.mxu0 0
    %4783 = vmatpush1.bf16.msra.mxu0 0
    %4784 = vmatprep.subr.bf16.mxu0 0
    %4785 = vmatpush1.bf16.msra.mxu0 0
    %4786 = vmatprep.subr.bf16.mxu0 0
    %4787 = vmatpush1.bf16.msra.mxu0 0
    %4788 = vmatprep.mubr.bf16.mxu0 0
    %4789 = vmatmul.mubr.bf16.gmra.mrb[0].mxu0 %v4750
    %v4790 = vpop.f32.mrb[0].mxu0
    %v4791 = vadd.f32 %v4747, %v4790
    %v4792 = vpop.f32.mrb[0].mxu0
    %v4793 = vpop.f32.mrb[0].mxu0
    %v4794 = vpop.f32.mrb[0].mxu0
    %4795 = vdwg.mxu0
    %v4796 = vxor.u32 %v4791, 2147483648
    %v4797 = vmul.f32 %v4796, 1.442695
    %v4798 = vpow.pop %v4797
    %v4799 = vadd.f32 %v4798, 1.0
    %v4800 = vrcp.pop %v4799
    %v4801 = vmul.f32 1.0, %v4800
    %v4802 = vpack.c.bf16 %v4666, %v4666
    %v4804 = vsel %vm4382, %v4802, 0
    %4806 = vmatprep.subr.bf16.mxu0 0
    %4807 = vmatpush1.bf16.msra.mxu0 %v4674
    %4808 = vmatprep.subr.bf16.mxu0 0
    %4809 = vmatpush1.bf16.msra.mxu0 0
    %4810 = vmatprep.subr.bf16.mxu0 0
    %4811 = vmatpush1.bf16.msra.mxu0 0
    %4812 = vmatprep.subr.bf16.mxu0 0
    %4813 = vmatpush1.bf16.msra.mxu0 0
    %4814 = vmatprep.subr.bf16.mxu0 0
    %4815 = vmatpush1.bf16.msra.mxu0 0
    %4816 = vmatprep.subr.bf16.mxu0 0
    %4817 = vmatpush1.bf16.msra.mxu0 0
    %4818 = vmatprep.subr.bf16.mxu0 0
    %4819 = vmatpush1.bf16.msra.mxu0 0
    %4820 = vmatprep.subr.bf16.mxu0 0
    %4821 = vmatpush1.bf16.msra.mxu0 0
    %4822 = vmatprep.subr.bf16.mxu0 0
    %4823 = vmatpush1.bf16.msra.mxu0 0
    %4824 = vmatprep.subr.bf16.mxu0 0
    %4825 = vmatpush1.bf16.msra.mxu0 0
    %4826 = vmatprep.subr.bf16.mxu0 0
    %4827 = vmatpush1.bf16.msra.mxu0 0
    %4828 = vmatprep.subr.bf16.mxu0 0
    %4829 = vmatpush1.bf16.msra.mxu0 0
    %4830 = vmatprep.subr.bf16.mxu0 0
    %4831 = vmatpush1.bf16.msra.mxu0 0
    %4832 = vmatprep.subr.bf16.mxu0 0
    %4833 = vmatpush1.bf16.msra.mxu0 0
    %4834 = vmatprep.subr.bf16.mxu0 0
    %4835 = vmatpush1.bf16.msra.mxu0 0
    %4836 = vmatprep.subr.bf16.mxu0 0
    %4837 = vmatpush1.bf16.msra.mxu0 0
    %4838 = vmatprep.mubr.bf16.mxu0 0
    %4839 = vmatmul.mubr.bf16.gmra.mrb[0].mxu0 %v4804
    %v4840 = vpop.f32.mrb[0].mxu0
    %v4841 = vadd.f32 %v4669, %v4840
    %v4842 = vpop.f32.mrb[0].mxu0
    %v4843 = vpop.f32.mrb[0].mxu0
    %v4844 = vpop.f32.mrb[0].mxu0
    %4845 = vdwg.mxu0
    %v4846 = vmul.f32 %v4841, 0.5
    %v4847 = vmul.f32 %v4841, 0.70710677
    %vm4848 = vcmp.lt.f32.partialorder %v4847, 0.0
    %v4849 = vsel %vm4848, -1.0, 1.0
    %v4850 = vmul.f32 %v4847, %v4849
    %v4851 = vmul.f32 %v4850, 0.3275911
    %v4852 = vadd.f32 %v4851, 1.0
    %v4853 = vrcp.pop %v4852
    %v4854 = vmul.f32 %v4852, %v4853
    %v4855 = vsub.f32 2.0, %v4854
    %v4856 = vmul.f32 %v4853, %v4855
    %v4857 = vmul.f32 %v4856, 1.0614054
    %v4858 = vadd.f32 %v4857, -1.4531521
    %v4859 = vmul.f32 %v4858, %v4856
    %v4860 = vadd.f32 %v4859, 1.4214138
    %v4861 = vmul.f32 %v4860, %v4856
    %v4862 = vadd.f32 %v4861, -0.28449672
    %v4863 = vmul.f32 %v4862, %v4856
    %v4864 = vadd.f32 %v4863, 0.2548296
    %v4865 = vmul.f32 %v4864, %v4856
    %v4866 = vsub.f32 0.0, %v4850
    %v4867 = vmul.f32 %v4866, %v4850
    %v4868 = vmul.f32 %v4867, 1.442695
    %v4869 = vpow.pop %v4868
    %v4870 = vmul.f32 %v4865, %v4869
    %v4871 = vsub.f32 1.0, %v4870
    %v4872 = vmul.f32 %v4849, %v4871
    %v4873 = vadd.f32 %v4872, 1.0
    %v4874 = vmul.f32 %v4846, %v4873
    %v4875 = vpack.c.bf16 %v4874, %v4874
    %v4877 = vsel %vm4748, %v4875, 0
    %4879 = vmatprep.subr.bf16.mxu0 0
    %4880 = vmatpush1.bf16.msra.mxu0 %v4754
    %4881 = vmatprep.subr.bf16.mxu0 0
    %4882 = vmatpush1.bf16.msra.mxu0 0
    %4883 = vmatprep.subr.bf16.mxu0 0
    %4884 = vmatpush1.bf16.msra.mxu0 0
    %4885 = vmatprep.subr.bf16.mxu0 0
    %4886 = vmatpush1.bf16.msra.mxu0 0
    %4887 = vmatprep.subr.bf16.mxu0 0
    %4888 = vmatpush1.bf16.msra.mxu0 0
    %4889 = vmatprep.subr.bf16.mxu0 0
    %4890 = vmatpush1.bf16.msra.mxu0 0
    %4891 = vmatprep.subr.bf16.mxu0 0
    %4892 = vmatpush1.bf16.msra.mxu0 0
    %4893 = vmatprep.subr.bf16.mxu0 0
    %4894 = vmatpush1.bf16.msra.mxu0 0
    %4895 = vmatprep.subr.bf16.mxu0 0
    %4896 = vmatpush1.bf16.msra.mxu0 0
    %4897 = vmatprep.subr.bf16.mxu0 0
    %4898 = vmatpush1.bf16.msra.mxu0 0
    %4899 = vmatprep.subr.bf16.mxu0 0
    %4900 = vmatpush1.bf16.msra.mxu0 0
    %4901 = vmatprep.subr.bf16.mxu0 0
    %4902 = vmatpush1.bf16.msra.mxu0 0
    %4903 = vmatprep.subr.bf16.mxu0 0
    %4904 = vmatpush1.bf16.msra.mxu0 0
    %4905 = vmatprep.subr.bf16.mxu0 0
    %4906 = vmatpush1.bf16.msra.mxu0 0
    %4907 = vmatprep.subr.bf16.mxu0 0
    %4908 = vmatpush1.bf16.msra.mxu0 0
    %4909 = vmatprep.subr.bf16.mxu0 0
    %4910 = vmatpush1.bf16.msra.mxu0 0
    %4911 = vmatprep.mubr.bf16.mxu0 0
    %4912 = vmatmul.mubr.bf16.gmra.mrb[0].mxu0 %v4877
    %v4913 = vpop.f32.mrb[0].mxu0
    %v4914 = vadd.f32 %v4747, %v4913
    %v4915 = vpop.f32.mrb[0].mxu0
    %v4916 = vpop.f32.mrb[0].mxu0
    %v4917 = vpop.f32.mrb[0].mxu0
    %4918 = vdwg.mxu0
    %v4919 = vxor.u32 %v4914, 2147483648
    %v4920 = vmul.f32 %v4919, 1.442695
    %v4921 = vpow.pop %v4920
    %v4922 = vadd.f32 %v4921, 1.0
    %v4923 = vrcp.pop %v4922
    %v4924 = vmul.f32 1.0, %v4923
    %v4925 = vmul.f32 %v4801, %v4924
    %4927 = vset.pattern.permute.xlu0 0
    %4928 = vperm.xlu0 %4927, %v4925
    %v4929 = vpop.permute.xlu0 %4928
    %v4931 = vmul.f32 %v4377, %v4929
    %v4933 = vsel %vm4516, %v4377, 0
    %v4935 = vand.u32 %v88, 4294901760
    %4936 = vmatprep.subr.mxu0 %v4935
    %v4937 = vand.u32 %v87, 4294901760
    %4938 = vmatpush1.msra.mxu0 %v4937
    %v4939 = vand.u32 %v90, 4294901760
    %4940 = vmatprep.subr.mxu0 %v4939
    %v4941 = vand.u32 %v89, 4294901760
    %4942 = vmatpush1.msra.mxu0 %v4941
    %4943 = vmatprep.subr.mxu0 0.0
    %4944 = vmatpush1.msra.mxu0 0.0
    %4945 = vmatprep.subr.mxu0 0.0
    %4946 = vmatpush1.msra.mxu0 0.0
    %4947 = vmatprep.subr.mxu0 0.0
    %4948 = vmatpush1.msra.mxu0 0.0
    %4949 = vmatprep.subr.mxu0 0.0
    %4950 = vmatpush1.msra.mxu0 0.0
    %4951 = vmatprep.subr.mxu0 0.0
    %4952 = vmatpush1.msra.mxu0 0.0
    %4953 = vmatprep.subr.mxu0 0.0
    %4954 = vmatpush1.msra.mxu0 0.0
    %4955 = vmatprep.subr.mxu0 0.0
    %4956 = vmatpush1.msra.mxu0 0.0
    %4957 = vmatprep.subr.mxu0 0.0
    %4958 = vmatpush1.msra.mxu0 0.0
    %4959 = vmatprep.subr.mxu0 0.0
    %4960 = vmatpush1.msra.mxu0 0.0
    %4961 = vmatprep.subr.mxu0 0.0
    %4962 = vmatpush1.msra.mxu0 0.0
    %4963 = vmatprep.subr.mxu0 0.0
    %4964 = vmatpush1.msra.mxu0 0.0
    %4965 = vmatprep.subr.mxu0 0.0
    %4966 = vmatpush1.msra.mxu0 0.0
    %4967 = vmatprep.subr.mxu0 0.0
    %4968 = vmatpush1.msra.mxu0 0.0
    %4969 = vmatprep.subr.mxu0 0.0
    %4970 = vmatpush1.msra.mxu0 0.0
    %4971 = vmatprep.subr.mxu0 0.0
    %4972 = vmatpush1.msra.mxu0 0.0
    %4973 = vmatprep.subr.mxu0 0.0
    %4974 = vmatpush1.msra.mxu0 0.0
    %4975 = vmatprep.subr.mxu0 0.0
    %4976 = vmatpush1.msra.mxu0 0.0
    %4977 = vmatprep.subr.mxu0 0.0
    %4978 = vmatpush1.msra.mxu0 0.0
    %4979 = vmatprep.subr.mxu0 0.0
    %4980 = vmatpush1.msra.mxu0 0.0
    %4981 = vmatprep.subr.mxu0 0.0
    %4982 = vmatpush1.msra.mxu0 0.0
    %4983 = vmatprep.subr.mxu0 0.0
    %4984 = vmatpush1.msra.mxu0 0.0
    %4985 = vmatprep.subr.mxu0 0.0
    %4986 = vmatpush1.msra.mxu0 0.0
    %4987 = vmatprep.subr.mxu0 0.0
    %4988 = vmatpush1.msra.mxu0 0.0
    %4989 = vmatprep.subr.mxu0 0.0
    %4990 = vmatpush1.msra.mxu0 0.0
    %4991 = vmatprep.subr.mxu0 0.0
    %4992 = vmatpush1.msra.mxu0 0.0
    %4993 = vmatprep.subr.mxu0 0.0
    %4994 = vmatpush1.msra.mxu0 0.0
    %4995 = vmatprep.subr.mxu0 0.0
    %4996 = vmatpush1.msra.mxu0 0.0
    %4997 = vmatprep.subr.mxu0 0.0
    %4998 = vmatpush1.msra.mxu0 0.0
    %4999 = vmatprep.subr.mxu0 0.0
    %5000 = vmatpush1.msra.mxu0 0.0
    %5001 = vmatprep.subr.mxu0 0.0
    %5002 = vmatpush1.msra.mxu0 0.0
    %5003 = vmatprep.mubr.f32.mxu0 0.0
    %v5004 = vand.u32 %v4933, 4294901760
    %v5005 = vsub.f32 %v4933, %v5004
    %v5006 = vand.u32 %v5005, 4294901760
    %v5007 = vsub.f32 %v5005, %v5006
    %v5008 = vand.u32 %v5007, 4294901760
    %5009 = vmatmul.mubr.f32.gmra.mrb[0].mxu0 %v5008
    %v5010 = vpop.f32.mrb[0].mxu0
    %v5011 = vadd.f32 0.0, %v5010
    %v5012 = vpop.f32.mrb[0].mxu0
    %v5013 = vadd.f32 0.0, %v5012
    %5014 = vdwg.mxu0
    %v5015 = vand.u32 %v88, 4294901760
    %v5016 = vsub.f32 %v88, %v5015
    %v5017 = vand.u32 %v5016, 4294901760
    %v5018 = vsub.f32 %v5016, %v5017
    %v5019 = vand.u32 %v5018, 4294901760
    %5020 = vmatprep.subr.mxu0 %v5019
    %v5021 = vand.u32 %v87, 4294901760
    %v5022 = vsub.f32 %v87, %v5021
    %v5023 = vand.u32 %v5022, 4294901760
    %v5024 = vsub.f32 %v5022, %v5023
    %v5025 = vand.u32 %v5024, 4294901760
    %5026 = vmatpush1.msra.mxu0 %v5025
    %v5027 = vand.u32 %v90, 4294901760
    %v5028 = vsub.f32 %v90, %v5027
    %v5029 = vand.u32 %v5028, 4294901760
    %v5030 = vsub.f32 %v5028, %v5029
    %v5031 = vand.u32 %v5030, 4294901760
    %5032 = vmatprep.subr.mxu0 %v5031
    %v5033 = vand.u32 %v89, 4294901760
    %v5034 = vsub.f32 %v89, %v5033
    %v5035 = vand.u32 %v5034, 4294901760
    %v5036 = vsub.f32 %v5034, %v5035
    %v5037 = vand.u32 %v5036, 4294901760
    %5038 = vmatpush1.msra.mxu0 %v5037
    %5039 = vmatprep.subr.mxu0 0.0
    %5040 = vmatpush1.msra.mxu0 0.0
    %5041 = vmatprep.subr.mxu0 0.0
    %5042 = vmatpush1.msra.mxu0 0.0
    %5043 = vmatprep.subr.mxu0 0.0
    %5044 = vmatpush1.msra.mxu0 0.0
    %5045 = vmatprep.subr.mxu0 0.0
    %5046 = vmatpush1.msra.mxu0 0.0
    %5047 = vmatprep.subr.mxu0 0.0
    %5048 = vmatpush1.msra.mxu0 0.0
    %5049 = vmatprep.subr.mxu0 0.0
    %5050 = vmatpush1.msra.mxu0 0.0
    %5051 = vmatprep.subr.mxu0 0.0
    %5052 = vmatpush1.msra.mxu0 0.0
    %5053 = vmatprep.subr.mxu0 0.0
    %5054 = vmatpush1.msra.mxu0 0.0
    %5055 = vmatprep.subr.mxu0 0.0
    %5056 = vmatpush1.msra.mxu0 0.0
    %5057 = vmatprep.subr.mxu0 0.0
    %5058 = vmatpush1.msra.mxu0 0.0
    %5059 = vmatprep.subr.mxu0 0.0
    %5060 = vmatpush1.msra.mxu0 0.0
    %5061 = vmatprep.subr.mxu0 0.0
    %5062 = vmatpush1.msra.mxu0 0.0
    %5063 = vmatprep.subr.mxu0 0.0
    %5064 = vmatpush1.msra.mxu0 0.0
    %5065 = vmatprep.subr.mxu0 0.0
    %5066 = vmatpush1.msra.mxu0 0.0
    %5067 = vmatprep.subr.mxu0 0.0
    %5068 = vmatpush1.msra.mxu0 0.0
    %5069 = vmatprep.subr.mxu0 0.0
    %5070 = vmatpush1.msra.mxu0 0.0
    %5071 = vmatprep.subr.mxu0 0.0
    %5072 = vmatpush1.msra.mxu0 0.0
    %5073 = vmatprep.subr.mxu0 0.0
    %5074 = vmatpush1.msra.mxu0 0.0
    %5075 = vmatprep.subr.mxu0 0.0
    %5076 = vmatpush1.msra.mxu0 0.0
    %5077 = vmatprep.subr.mxu0 0.0
    %5078 = vmatpush1.msra.mxu0 0.0
    %5079 = vmatprep.subr.mxu0 0.0
    %5080 = vmatpush1.msra.mxu0 0.0
    %5081 = vmatprep.subr.mxu0 0.0
    %5082 = vmatpush1.msra.mxu0 0.0
    %5083 = vmatprep.subr.mxu0 0.0
    %5084 = vmatpush1.msra.mxu0 0.0
    %5085 = vmatprep.subr.mxu0 0.0
    %5086 = vmatpush1.msra.mxu0 0.0
    %5087 = vmatprep.subr.mxu0 0.0
    %5088 = vmatpush1.msra.mxu0 0.0
    %5089 = vmatprep.subr.mxu0 0.0
    %5090 = vmatpush1.msra.mxu0 0.0
    %5091 = vmatprep.subr.mxu0 0.0
    %5092 = vmatpush1.msra.mxu0 0.0
    %5093 = vmatprep.subr.mxu0 0.0
    %5094 = vmatpush1.msra.mxu0 0.0
    %5095 = vmatprep.subr.mxu0 0.0
    %5096 = vmatpush1.msra.mxu0 0.0
    %5097 = vmatprep.subr.mxu0 0.0
    %5098 = vmatpush1.msra.mxu0 0.0
    %5099 = vmatprep.mubr.f32.mxu0 0.0
    %v5100 = vand.u32 %v4933, 4294901760
    %5101 = vmatmul.mubr.f32.gmra.mrb[0].mxu0 %v5100
    %v5102 = vpop.f32.mrb[0].mxu0
    %v5103 = vadd.f32 %v5011, %v5102
    %v5104 = vpop.f32.mrb[0].mxu0
    %v5105 = vadd.f32 %v5013, %v5104
    %5106 = vdwg.mxu0
    %v5107 = vand.u32 %v88, 4294901760
    %v5108 = vsub.f32 %v88, %v5107
    %5109 = vmatprep.subr.mxu0 %v5108
    %v5110 = vand.u32 %v87, 4294901760
    %v5111 = vsub.f32 %v87, %v5110
    %5112 = vmatpush1.msra.mxu0 %v5111
    %v5113 = vand.u32 %v90, 4294901760
    %v5114 = vsub.f32 %v90, %v5113
    %5115 = vmatprep.subr.mxu0 %v5114
    %v5116 = vand.u32 %v89, 4294901760
    %v5117 = vsub.f32 %v89, %v5116
    %5118 = vmatpush1.msra.mxu0 %v5117
    %5119 = vmatprep.subr.mxu0 0.0
    %5120 = vmatpush1.msra.mxu0 0.0
    %5121 = vmatprep.subr.mxu0 0.0
    %5122 = vmatpush1.msra.mxu0 0.0
    %5123 = vmatprep.subr.mxu0 0.0
    %5124 = vmatpush1.msra.mxu0 0.0
    %5125 = vmatprep.subr.mxu0 0.0
    %5126 = vmatpush1.msra.mxu0 0.0
    %5127 = vmatprep.subr.mxu0 0.0
    %5128 = vmatpush1.msra.mxu0 0.0
    %5129 = vmatprep.subr.mxu0 0.0
    %5130 = vmatpush1.msra.mxu0 0.0
    %5131 = vmatprep.subr.mxu0 0.0
    %5132 = vmatpush1.msra.mxu0 0.0
    %5133 = vmatprep.subr.mxu0 0.0
    %5134 = vmatpush1.msra.mxu0 0.0
    %5135 = vmatprep.subr.mxu0 0.0
    %5136 = vmatpush1.msra.mxu0 0.0
    %5137 = vmatprep.subr.mxu0 0.0
    %5138 = vmatpush1.msra.mxu0 0.0
    %5139 = vmatprep.subr.mxu0 0.0
    %5140 = vmatpush1.msra.mxu0 0.0
    %5141 = vmatprep.subr.mxu0 0.0
    %5142 = vmatpush1.msra.mxu0 0.0
    %5143 = vmatprep.subr.mxu0 0.0
    %5144 = vmatpush1.msra.mxu0 0.0
    %5145 = vmatprep.subr.mxu0 0.0
    %5146 = vmatpush1.msra.mxu0 0.0
    %5147 = vmatprep.subr.mxu0 0.0
    %5148 = vmatpush1.msra.mxu0 0.0
    %5149 = vmatprep.subr.mxu0 0.0
    %5150 = vmatpush1.msra.mxu0 0.0
    %5151 = vmatprep.subr.mxu0 0.0
    %5152 = vmatpush1.msra.mxu0 0.0
    %5153 = vmatprep.subr.mxu0 0.0
    %5154 = vmatpush1.msra.mxu0 0.0
    %5155 = vmatprep.subr.mxu0 0.0
    %5156 = vmatpush1.msra.mxu0 0.0
    %5157 = vmatprep.subr.mxu0 0.0
    %5158 = vmatpush1.msra.mxu0 0.0
    %5159 = vmatprep.subr.mxu0 0.0
    %5160 = vmatpush1.msra.mxu0 0.0
    %5161 = vmatprep.subr.mxu0 0.0
    %5162 = vmatpush1.msra.mxu0 0.0
    %5163 = vmatprep.subr.mxu0 0.0
    %5164 = vmatpush1.msra.mxu0 0.0
    %5165 = vmatprep.subr.mxu0 0.0
    %5166 = vmatpush1.msra.mxu0 0.0
    %5167 = vmatprep.subr.mxu0 0.0
    %5168 = vmatpush1.msra.mxu0 0.0
    %5169 = vmatprep.subr.mxu0 0.0
    %5170 = vmatpush1.msra.mxu0 0.0
    %5171 = vmatprep.subr.mxu0 0.0
    %5172 = vmatpush1.msra.mxu0 0.0
    %5173 = vmatprep.subr.mxu0 0.0
    %5174 = vmatpush1.msra.mxu0 0.0
    %5175 = vmatprep.subr.mxu0 0.0
    %5176 = vmatpush1.msra.mxu0 0.0
    %5177 = vmatprep.subr.mxu0 0.0
    %5178 = vmatpush1.msra.mxu0 0.0
    %5179 = vmatprep.mubr.f32.mxu0 0.0
    %v5180 = vand.u32 %v4933, 4294901760
    %v5181 = vsub.f32 %v4933, %v5180
    %5182 = vmatmul.mubr.f32.gmra.mrb[0].mxu0 %v5181
    %v5183 = vpop.f32.mrb[0].mxu0
    %v5184 = vadd.f32 %v5103, %v5183
    %v5185 = vpop.f32.mrb[0].mxu0
    %v5186 = vadd.f32 %v5105, %v5185
    %5187 = vdwg.mxu0
    %v5188 = vand.u32 %v88, 4294901760
    %5189 = vmatprep.subr.mxu0 %v5188
    %v5190 = vand.u32 %v87, 4294901760
    %5191 = vmatpush1.msra.mxu0 %v5190
    %v5192 = vand.u32 %v90, 4294901760
    %5193 = vmatprep.subr.mxu0 %v5192
    %v5194 = vand.u32 %v89, 4294901760
    %5195 = vmatpush1.msra.mxu0 %v5194
    %5196 = vmatprep.subr.mxu0 0.0
    %5197 = vmatpush1.msra.mxu0 0.0
    %5198 = vmatprep.subr.mxu0 0.0
    %5199 = vmatpush1.msra.mxu0 0.0
    %5200 = vmatprep.subr.mxu0 0.0
    %5201 = vmatpush1.msra.mxu0 0.0
    %5202 = vmatprep.subr.mxu0 0.0
    %5203 = vmatpush1.msra.mxu0 0.0
    %5204 = vmatprep.subr.mxu0 0.0
    %5205 = vmatpush1.msra.mxu0 0.0
    %5206 = vmatprep.subr.mxu0 0.0
    %5207 = vmatpush1.msra.mxu0 0.0
    %5208 = vmatprep.subr.mxu0 0.0
    %5209 = vmatpush1.msra.mxu0 0.0
    %5210 = vmatprep.subr.mxu0 0.0
    %5211 = vmatpush1.msra.mxu0 0.0
    %5212 = vmatprep.subr.mxu0 0.0
    %5213 = vmatpush1.msra.mxu0 0.0
    %5214 = vmatprep.subr.mxu0 0.0
    %5215 = vmatpush1.msra.mxu0 0.0
    %5216 = vmatprep.subr.mxu0 0.0
    %5217 = vmatpush1.msra.mxu0 0.0
    %5218 = vmatprep.subr.mxu0 0.0
    %5219 = vmatpush1.msra.mxu0 0.0
    %5220 = vmatprep.subr.mxu0 0.0
    %5221 = vmatpush1.msra.mxu0 0.0
    %5222 = vmatprep.subr.mxu0 0.0
    %5223 = vmatpush1.msra.mxu0 0.0
    %5224 = vmatprep.subr.mxu0 0.0
    %5225 = vmatpush1.msra.mxu0 0.0
    %5226 = vmatprep.subr.mxu0 0.0
    %5227 = vmatpush1.msra.mxu0 0.0
    %5228 = vmatprep.subr.mxu0 0.0
    %5229 = vmatpush1.msra.mxu0 0.0
    %5230 = vmatprep.subr.mxu0 0.0
    %5231 = vmatpush1.msra.mxu0 0.0
    %5232 = vmatprep.subr.mxu0 0.0
    %5233 = vmatpush1.msra.mxu0 0.0
    %5234 = vmatprep.subr.mxu0 0.0
    %5235 = vmatpush1.msra.mxu0 0.0
    %5236 = vmatprep.subr.mxu0 0.0
    %5237 = vmatpush1.msra.mxu0 0.0
    %5238 = vmatprep.subr.mxu0 0.0
    %5239 = vmatpush1.msra.mxu0 0.0
    %5240 = vmatprep.subr.mxu0 0.0
    %5241 = vmatpush1.msra.mxu0 0.0
    %5242 = vmatprep.subr.mxu0 0.0
    %5243 = vmatpush1.msra.mxu0 0.0
    %5244 = vmatprep.subr.mxu0 0.0
    %5245 = vmatpush1.msra.mxu0 0.0
    %5246 = vmatprep.subr.mxu0 0.0
    %5247 = vmatpush1.msra.mxu0 0.0
    %5248 = vmatprep.subr.mxu0 0.0
    %5249 = vmatpush1.msra.mxu0 0.0
    %5250 = vmatprep.subr.mxu0 0.0
    %5251 = vmatpush1.msra.mxu0 0.0
    %5252 = vmatprep.subr.mxu0 0.0
    %5253 = vmatpush1.msra.mxu0 0.0
    %5254 = vmatprep.subr.mxu0 0.0
    %5255 = vmatpush1.msra.mxu0 0.0
    %5256 = vmatprep.mubr.f32.mxu0 0.0
    %v5257 = vand.u32 %v4933, 4294901760
    %v5258 = vsub.f32 %v4933, %v5257
    %v5259 = vand.u32 %v5258, 4294901760
    %5260 = vmatmul.mubr.f32.gmra.mrb[0].mxu0 %v5259
    %v5261 = vpop.f32.mrb[0].mxu0
    %v5262 = vadd.f32 %v5184, %v5261
    %v5263 = vpop.f32.mrb[0].mxu0
    %v5264 = vadd.f32 %v5186, %v5263
    %5265 = vdwg.mxu0
    %v5266 = vand.u32 %v88, 4294901760
    %v5267 = vsub.f32 %v88, %v5266
    %v5268 = vand.u32 %v5267, 4294901760
    %5269 = vmatprep.subr.mxu0 %v5268
    %v5270 = vand.u32 %v87, 4294901760
    %v5271 = vsub.f32 %v87, %v5270
    %v5272 = vand.u32 %v5271, 4294901760
    %5273 = vmatpush1.msra.mxu0 %v5272
    %v5274 = vand.u32 %v90, 4294901760
    %v5275 = vsub.f32 %v90, %v5274
    %v5276 = vand.u32 %v5275, 4294901760
    %5277 = vmatprep.subr.mxu0 %v5276
    %v5278 = vand.u32 %v89, 4294901760
    %v5279 = vsub.f32 %v89, %v5278
    %v5280 = vand.u32 %v5279, 4294901760
    %5281 = vmatpush1.msra.mxu0 %v5280
    %5282 = vmatprep.subr.mxu0 0.0
    %5283 = vmatpush1.msra.mxu0 0.0
    %5284 = vmatprep.subr.mxu0 0.0
    %5285 = vmatpush1.msra.mxu0 0.0
    %5286 = vmatprep.subr.mxu0 0.0
    %5287 = vmatpush1.msra.mxu0 0.0
    %5288 = vmatprep.subr.mxu0 0.0
    %5289 = vmatpush1.msra.mxu0 0.0
    %5290 = vmatprep.subr.mxu0 0.0
    %5291 = vmatpush1.msra.mxu0 0.0
    %5292 = vmatprep.subr.mxu0 0.0
    %5293 = vmatpush1.msra.mxu0 0.0
    %5294 = vmatprep.subr.mxu0 0.0
    %5295 = vmatpush1.msra.mxu0 0.0
    %5296 = vmatprep.subr.mxu0 0.0
    %5297 = vmatpush1.msra.mxu0 0.0
    %5298 = vmatprep.subr.mxu0 0.0
    %5299 = vmatpush1.msra.mxu0 0.0
    %5300 = vmatprep.subr.mxu0 0.0
    %5301 = vmatpush1.msra.mxu0 0.0
    %5302 = vmatprep.subr.mxu0 0.0
    %5303 = vmatpush1.msra.mxu0 0.0
    %5304 = vmatprep.subr.mxu0 0.0
    %5305 = vmatpush1.msra.mxu0 0.0
    %5306 = vmatprep.subr.mxu0 0.0
    %5307 = vmatpush1.msra.mxu0 0.0
    %5308 = vmatprep.subr.mxu0 0.0
    %5309 = vmatpush1.msra.mxu0 0.0
    %5310 = vmatprep.subr.mxu0 0.0
    %5311 = vmatpush1.msra.mxu0 0.0
    %5312 = vmatprep.subr.mxu0 0.0
    %5313 = vmatpush1.msra.mxu0 0.0
    %5314 = vmatprep.subr.mxu0 0.0
    %5315 = vmatpush1.msra.mxu0 0.0
    %5316 = vmatprep.subr.mxu0 0.0
    %5317 = vmatpush1.msra.mxu0 0.0
    %5318 = vmatprep.subr.mxu0 0.0
    %5319 = vmatpush1.msra.mxu0 0.0
    %5320 = vmatprep.subr.mxu0 0.0
    %5321 = vmatpush1.msra.mxu0 0.0
    %5322 = vmatprep.subr.mxu0 0.0
    %5323 = vmatpush1.msra.mxu0 0.0
    %5324 = vmatprep.subr.mxu0 0.0
    %5325 = vmatpush1.msra.mxu0 0.0
    %5326 = vmatprep.subr.mxu0 0.0
    %5327 = vmatpush1.msra.mxu0 0.0
    %5328 = vmatprep.subr.mxu0 0.0
    %5329 = vmatpush1.msra.mxu0 0.0
    %5330 = vmatprep.subr.mxu0 0.0
    %5331 = vmatpush1.msra.mxu0 0.0
    %5332 = vmatprep.subr.mxu0 0.0
    %5333 = vmatpush1.msra.mxu0 0.0
    %5334 = vmatprep.subr.mxu0 0.0
    %5335 = vmatpush1.msra.mxu0 0.0
    %5336 = vmatprep.subr.mxu0 0.0
    %5337 = vmatpush1.msra.mxu0 0.0
    %5338 = vmatprep.subr.mxu0 0.0
    %5339 = vmatpush1.msra.mxu0 0.0
    %5340 = vmatprep.subr.mxu0 0.0
    %5341 = vmatpush1.msra.mxu0 0.0
    %5342 = vmatprep.mubr.f32.mxu0 0.0
    %v5343 = vand.u32 %v4933, 4294901760
    %5344 = vmatmul.mubr.f32.gmra.mrb[0].mxu0 %v5343
    %v5345 = vpop.f32.mrb[0].mxu0
    %v5346 = vadd.f32 %v5262, %v5345
    %v5347 = vpop.f32.mrb[0].mxu0
    %v5348 = vadd.f32 %v5264, %v5347
    %5349 = vdwg.mxu0
    %v5350 = vand.u32 %v88, 4294901760
    %5351 = vmatprep.subr.mxu0 %v5350
    %v5352 = vand.u32 %v87, 4294901760
    %5353 = vmatpush1.msra.mxu0 %v5352
    %v5354 = vand.u32 %v90, 4294901760
    %5355 = vmatprep.subr.mxu0 %v5354
    %v5356 = vand.u32 %v89, 4294901760
    %5357 = vmatpush1.msra.mxu0 %v5356
    %5358 = vmatprep.subr.mxu0 0.0
    %5359 = vmatpush1.msra.mxu0 0.0
    %5360 = vmatprep.subr.mxu0 0.0
    %5361 = vmatpush1.msra.mxu0 0.0
    %5362 = vmatprep.subr.mxu0 0.0
    %5363 = vmatpush1.msra.mxu0 0.0
    %5364 = vmatprep.subr.mxu0 0.0
    %5365 = vmatpush1.msra.mxu0 0.0
    %5366 = vmatprep.subr.mxu0 0.0
    %5367 = vmatpush1.msra.mxu0 0.0
    %5368 = vmatprep.subr.mxu0 0.0
    %5369 = vmatpush1.msra.mxu0 0.0
    %5370 = vmatprep.subr.mxu0 0.0
    %5371 = vmatpush1.msra.mxu0 0.0
    %5372 = vmatprep.subr.mxu0 0.0
    %5373 = vmatpush1.msra.mxu0 0.0
    %5374 = vmatprep.subr.mxu0 0.0
    %5375 = vmatpush1.msra.mxu0 0.0
    %5376 = vmatprep.subr.mxu0 0.0
    %5377 = vmatpush1.msra.mxu0 0.0
    %5378 = vmatprep.subr.mxu0 0.0
    %5379 = vmatpush1.msra.mxu0 0.0
    %5380 = vmatprep.subr.mxu0 0.0
    %5381 = vmatpush1.msra.mxu0 0.0
    %5382 = vmatprep.subr.mxu0 0.0
    %5383 = vmatpush1.msra.mxu0 0.0
    %5384 = vmatprep.subr.mxu0 0.0
    %5385 = vmatpush1.msra.mxu0 0.0
    %5386 = vmatprep.subr.mxu0 0.0
    %5387 = vmatpush1.msra.mxu0 0.0
    %5388 = vmatprep.subr.mxu0 0.0
    %5389 = vmatpush1.msra.mxu0 0.0
    %5390 = vmatprep.subr.mxu0 0.0
    %5391 = vmatpush1.msra.mxu0 0.0
    %5392 = vmatprep.subr.mxu0 0.0
    %5393 = vmatpush1.msra.mxu0 0.0
    %5394 = vmatprep.subr.mxu0 0.0
    %5395 = vmatpush1.msra.mxu0 0.0
    %5396 = vmatprep.subr.mxu0 0.0
    %5397 = vmatpush1.msra.mxu0 0.0
    %5398 = vmatprep.subr.mxu0 0.0
    %5399 = vmatpush1.msra.mxu0 0.0
    %5400 = vmatprep.subr.mxu0 0.0
    %5401 = vmatpush1.msra.mxu0 0.0
    %5402 = vmatprep.subr.mxu0 0.0
    %5403 = vmatpush1.msra.mxu0 0.0
    %5404 = vmatprep.subr.mxu0 0.0
    %5405 = vmatpush1.msra.mxu0 0.0
    %5406 = vmatprep.subr.mxu0 0.0
    %5407 = vmatpush1.msra.mxu0 0.0
    %5408 = vmatprep.subr.mxu0 0.0
    %5409 = vmatpush1.msra.mxu0 0.0
    %5410 = vmatprep.subr.mxu0 0.0
    %5411 = vmatpush1.msra.mxu0 0.0
    %5412 = vmatprep.subr.mxu0 0.0
    %5413 = vmatpush1.msra.mxu0 0.0
    %5414 = vmatprep.subr.mxu0 0.0
    %5415 = vmatpush1.msra.mxu0 0.0
    %5416 = vmatprep.subr.mxu0 0.0
    %5417 = vmatpush1.msra.mxu0 0.0
    %5418 = vmatprep.mubr.f32.mxu0 0.0
    %v5419 = vand.u32 %v4933, 4294901760
    %5420 = vmatmul.mubr.f32.gmra.mrb[0].mxu0 %v5419
    %v5421 = vpop.f32.mrb[0].mxu0
    %v5422 = vadd.f32 %v5346, %v5421
    %v5423 = vpop.f32.mrb[0].mxu0
    %v5424 = vadd.f32 %v5348, %v5423
    %5425 = vdwg.mxu0
    %5427 = vrot.lane.b32.xlu0 %v4931, 112
    %v5428 = vpop.permute.xlu0 %5427
    %v5429 = vsel %vm4516, %v5428, 0
    %v5431 = vand.u32 %v92, 4294901760
    %5432 = vmatprep.subr.mxu0 %v5431
    %v5433 = vand.u32 %v91, 4294901760
    %5434 = vmatpush1.msra.mxu0 %v5433
    %v5435 = vand.u32 %v94, 4294901760
    %5436 = vmatprep.subr.mxu0 %v5435
    %v5437 = vand.u32 %v93, 4294901760
    %5438 = vmatpush1.msra.mxu0 %v5437
    %5439 = vmatprep.subr.mxu0 0.0
    %5440 = vmatpush1.msra.mxu0 0.0
    %5441 = vmatprep.subr.mxu0 0.0
    %5442 = vmatpush1.msra.mxu0 0.0
    %5443 = vmatprep.subr.mxu0 0.0
    %5444 = vmatpush1.msra.mxu0 0.0
    %5445 = vmatprep.subr.mxu0 0.0
    %5446 = vmatpush1.msra.mxu0 0.0
    %5447 = vmatprep.subr.mxu0 0.0
    %5448 = vmatpush1.msra.mxu0 0.0
    %5449 = vmatprep.subr.mxu0 0.0
    %5450 = vmatpush1.msra.mxu0 0.0
    %5451 = vmatprep.subr.mxu0 0.0
    %5452 = vmatpush1.msra.mxu0 0.0
    %5453 = vmatprep.subr.mxu0 0.0
    %5454 = vmatpush1.msra.mxu0 0.0
    %5455 = vmatprep.subr.mxu0 0.0
    %5456 = vmatpush1.msra.mxu0 0.0
    %5457 = vmatprep.subr.mxu0 0.0
    %5458 = vmatpush1.msra.mxu0 0.0
    %5459 = vmatprep.subr.mxu0 0.0
    %5460 = vmatpush1.msra.mxu0 0.0
    %5461 = vmatprep.subr.mxu0 0.0
    %5462 = vmatpush1.msra.mxu0 0.0
    %5463 = vmatprep.subr.mxu0 0.0
    %5464 = vmatpush1.msra.mxu0 0.0
    %5465 = vmatprep.subr.mxu0 0.0
    %5466 = vmatpush1.msra.mxu0 0.0
    %5467 = vmatprep.subr.mxu0 0.0
    %5468 = vmatpush1.msra.mxu0 0.0
    %5469 = vmatprep.subr.mxu0 0.0
    %5470 = vmatpush1.msra.mxu0 0.0
    %5471 = vmatprep.subr.mxu0 0.0
    %5472 = vmatpush1.msra.mxu0 0.0
    %5473 = vmatprep.subr.mxu0 0.0
    %5474 = vmatpush1.msra.mxu0 0.0
    %5475 = vmatprep.subr.mxu0 0.0
    %5476 = vmatpush1.msra.mxu0 0.0
    %5477 = vmatprep.subr.mxu0 0.0
    %5478 = vmatpush1.msra.mxu0 0.0
    %5479 = vmatprep.subr.mxu0 0.0
    %5480 = vmatpush1.msra.mxu0 0.0
    %5481 = vmatprep.subr.mxu0 0.0
    %5482 = vmatpush1.msra.mxu0 0.0
    %5483 = vmatprep.subr.mxu0 0.0
    %5484 = vmatpush1.msra.mxu0 0.0
    %5485 = vmatprep.subr.mxu0 0.0
    %5486 = vmatpush1.msra.mxu0 0.0
    %5487 = vmatprep.subr.mxu0 0.0
    %5488 = vmatpush1.msra.mxu0 0.0
    %5489 = vmatprep.subr.mxu0 0.0
    %5490 = vmatpush1.msra.mxu0 0.0
    %5491 = vmatprep.subr.mxu0 0.0
    %5492 = vmatpush1.msra.mxu0 0.0
    %5493 = vmatprep.subr.mxu0 0.0
    %5494 = vmatpush1.msra.mxu0 0.0
    %5495 = vmatprep.subr.mxu0 0.0
    %5496 = vmatpush1.msra.mxu0 0.0
    %5497 = vmatprep.subr.mxu0 0.0
    %5498 = vmatpush1.msra.mxu0 0.0
    %5499 = vmatprep.mubr.f32.mxu0 0.0
    %v5500 = vand.u32 %v5429, 4294901760
    %v5501 = vsub.f32 %v5429, %v5500
    %v5502 = vand.u32 %v5501, 4294901760
    %v5503 = vsub.f32 %v5501, %v5502
    %v5504 = vand.u32 %v5503, 4294901760
    %5505 = vmatmul.mubr.f32.gmra.mrb[0].mxu0 %v5504
    %v5506 = vpop.f32.mrb[0].mxu0
    %v5507 = vadd.f32 0.0, %v5506
    %v5508 = vpop.f32.mrb[0].mxu0
    %v5509 = vadd.f32 0.0, %v5508
    %5510 = vdwg.mxu0
    %v5511 = vand.u32 %v92, 4294901760
    %v5512 = vsub.f32 %v92, %v5511
    %v5513 = vand.u32 %v5512, 4294901760
    %v5514 = vsub.f32 %v5512, %v5513
    %v5515 = vand.u32 %v5514, 4294901760
    %5516 = vmatprep.subr.mxu0 %v5515
    %v5517 = vand.u32 %v91, 4294901760
    %v5518 = vsub.f32 %v91, %v5517
    %v5519 = vand.u32 %v5518, 4294901760
    %v5520 = vsub.f32 %v5518, %v5519
    %v5521 = vand.u32 %v5520, 4294901760
    %5522 = vmatpush1.msra.mxu0 %v5521
    %v5523 = vand.u32 %v94, 4294901760
    %v5524 = vsub.f32 %v94, %v5523
    %v5525 = vand.u32 %v5524, 4294901760
    %v5526 = vsub.f32 %v5524, %v5525
    %v5527 = vand.u32 %v5526, 4294901760
    %5528 = vmatprep.subr.mxu0 %v5527
    %v5529 = vand.u32 %v93, 4294901760
    %v5530 = vsub.f32 %v93, %v5529
    %v5531 = vand.u32 %v5530, 4294901760
    %v5532 = vsub.f32 %v5530, %v5531
    %v5533 = vand.u32 %v5532, 4294901760
    %5534 = vmatpush1.msra.mxu0 %v5533
    %5535 = vmatprep.subr.mxu0 0.0
    %5536 = vmatpush1.msra.mxu0 0.0
    %5537 = vmatprep.subr.mxu0 0.0
    %5538 = vmatpush1.msra.mxu0 0.0
    %5539 = vmatprep.subr.mxu0 0.0
    %5540 = vmatpush1.msra.mxu0 0.0
    %5541 = vmatprep.subr.mxu0 0.0
    %5542 = vmatpush1.msra.mxu0 0.0
    %5543 = vmatprep.subr.mxu0 0.0
    %5544 = vmatpush1.msra.mxu0 0.0
    %5545 = vmatprep.subr.mxu0 0.0
    %5546 = vmatpush1.msra.mxu0 0.0
    %5547 = vmatprep.subr.mxu0 0.0
    %5548 = vmatpush1.msra.mxu0 0.0
    %5549 = vmatprep.subr.mxu0 0.0
    %5550 = vmatpush1.msra.mxu0 0.0
    %5551 = vmatprep.subr.mxu0 0.0
    %5552 = vmatpush1.msra.mxu0 0.0
    %5553 = vmatprep.subr.mxu0 0.0
    %5554 = vmatpush1.msra.mxu0 0.0
    %5555 = vmatprep.subr.mxu0 0.0
    %5556 = vmatpush1.msra.mxu0 0.0
    %5557 = vmatprep.subr.mxu0 0.0
    %5558 = vmatpush1.msra.mxu0 0.0
    %5559 = vmatprep.subr.mxu0 0.0
    %5560 = vmatpush1.msra.mxu0 0.0
    %5561 = vmatprep.subr.mxu0 0.0
    %5562 = vmatpush1.msra.mxu0 0.0
    %5563 = vmatprep.subr.mxu0 0.0
    %5564 = vmatpush1.msra.mxu0 0.0
    %5565 = vmatprep.subr.mxu0 0.0
    %5566 = vmatpush1.msra.mxu0 0.0
    %5567 = vmatprep.subr.mxu0 0.0
    %5568 = vmatpush1.msra.mxu0 0.0
    %5569 = vmatprep.subr.mxu0 0.0
    %5570 = vmatpush1.msra.mxu0 0.0
    %5571 = vmatprep.subr.mxu0 0.0
    %5572 = vmatpush1.msra.mxu0 0.0
    %5573 = vmatprep.subr.mxu0 0.0
    %5574 = vmatpush1.msra.mxu0 0.0
    %5575 = vmatprep.subr.mxu0 0.0
    %5576 = vmatpush1.msra.mxu0 0.0
    %5577 = vmatprep.subr.mxu0 0.0
    %5578 = vmatpush1.msra.mxu0 0.0
    %5579 = vmatprep.subr.mxu0 0.0
    %5580 = vmatpush1.msra.mxu0 0.0
    %5581 = vmatprep.subr.mxu0 0.0
    %5582 = vmatpush1.msra.mxu0 0.0
    %5583 = vmatprep.subr.mxu0 0.0
    %5584 = vmatpush1.msra.mxu0 0.0
    %5585 = vmatprep.subr.mxu0 0.0
    %5586 = vmatpush1.msra.mxu0 0.0
    %5587 = vmatprep.subr.mxu0 0.0
    %5588 = vmatpush1.msra.mxu0 0.0
    %5589 = vmatprep.subr.mxu0 0.0
    %5590 = vmatpush1.msra.mxu0 0.0
    %5591 = vmatprep.subr.mxu0 0.0
    %5592 = vmatpush1.msra.mxu0 0.0
    %5593 = vmatprep.subr.mxu0 0.0
    %5594 = vmatpush1.msra.mxu0 0.0
    %5595 = vmatprep.mubr.f32.mxu0 0.0
    %v5596 = vand.u32 %v5429, 4294901760
    %5597 = vmatmul.mubr.f32.gmra.mrb[0].mxu0 %v5596
    %v5598 = vpop.f32.mrb[0].mxu0
    %v5599 = vadd.f32 %v5507, %v5598
    %v5600 = vpop.f32.mrb[0].mxu0
    %v5601 = vadd.f32 %v5509, %v5600
    %5602 = vdwg.mxu0
    %v5603 = vand.u32 %v92, 4294901760
    %v5604 = vsub.f32 %v92, %v5603
    %5605 = vmatprep.subr.mxu0 %v5604
    %v5606 = vand.u32 %v91, 4294901760
    %v5607 = vsub.f32 %v91, %v5606
    %5608 = vmatpush1.msra.mxu0 %v5607
    %v5609 = vand.u32 %v94, 4294901760
    %v5610 = vsub.f32 %v94, %v5609
    %5611 = vmatprep.subr.mxu0 %v5610
    %v5612 = vand.u32 %v93, 4294901760
    %v5613 = vsub.f32 %v93, %v5612
    %5614 = vmatpush1.msra.mxu0 %v5613
    %5615 = vmatprep.subr.mxu0 0.0
    %5616 = vmatpush1.msra.mxu0 0.0
    %5617 = vmatprep.subr.mxu0 0.0
    %5618 = vmatpush1.msra.mxu0 0.0
    %5619 = vmatprep.subr.mxu0 0.0
    %5620 = vmatpush1.msra.mxu0 0.0
    %5621 = vmatprep.subr.mxu0 0.0
    %5622 = vmatpush1.msra.mxu0 0.0
    %5623 = vmatprep.subr.mxu0 0.0
    %5624 = vmatpush1.msra.mxu0 0.0
    %5625 = vmatprep.subr.mxu0 0.0
    %5626 = vmatpush1.msra.mxu0 0.0
    %5627 = vmatprep.subr.mxu0 0.0
    %5628 = vmatpush1.msra.mxu0 0.0
    %5629 = vmatprep.subr.mxu0 0.0
    %5630 = vmatpush1.msra.mxu0 0.0
    %5631 = vmatprep.subr.mxu0 0.0
    %5632 = vmatpush1.msra.mxu0 0.0
    %5633 = vmatprep.subr.mxu0 0.0
    %5634 = vmatpush1.msra.mxu0 0.0
    %5635 = vmatprep.subr.mxu0 0.0
    %5636 = vmatpush1.msra.mxu0 0.0
    %5637 = vmatprep.subr.mxu0 0.0
    %5638 = vmatpush1.msra.mxu0 0.0
    %5639 = vmatprep.subr.mxu0 0.0
    %5640 = vmatpush1.msra.mxu0 0.0
    %5641 = vmatprep.subr.mxu0 0.0
    %5642 = vmatpush1.msra.mxu0 0.0
    %5643 = vmatprep.subr.mxu0 0.0
    %5644 = vmatpush1.msra.mxu0 0.0
    %5645 = vmatprep.subr.mxu0 0.0
    %5646 = vmatpush1.msra.mxu0 0.0
    %5647 = vmatprep.subr.mxu0 0.0
    %5648 = vmatpush1.msra.mxu0 0.0
    %5649 = vmatprep.subr.mxu0 0.0
    %5650 = vmatpush1.msra.mxu0 0.0
    %5651 = vmatprep.subr.mxu0 0.0
    %5652 = vmatpush1.msra.mxu0 0.0
    %5653 = vmatprep.subr.mxu0 0.0
    %5654 = vmatpush1.msra.mxu0 0.0
    %5655 = vmatprep.subr.mxu0 0.0
    %5656 = vmatpush1.msra.mxu0 0.0
    %5657 = vmatprep.subr.mxu0 0.0
    %5658 = vmatpush1.msra.mxu0 0.0
    %5659 = vmatprep.subr.mxu0 0.0
    %5660 = vmatpush1.msra.mxu0 0.0
    %5661 = vmatprep.subr.mxu0 0.0
    %5662 = vmatpush1.msra.mxu0 0.0
    %5663 = vmatprep.subr.mxu0 0.0
    %5664 = vmatpush1.msra.mxu0 0.0
    %5665 = vmatprep.subr.mxu0 0.0
    %5666 = vmatpush1.msra.mxu0 0.0
    %5667 = vmatprep.subr.mxu0 0.0
    %5668 = vmatpush1.msra.mxu0 0.0
    %5669 = vmatprep.subr.mxu0 0.0
    %5670 = vmatpush1.msra.mxu0 0.0
    %5671 = vmatprep.subr.mxu0 0.0
    %5672 = vmatpush1.msra.mxu0 0.0
    %5673 = vmatprep.subr.mxu0 0.0
    %5674 = vmatpush1.msra.mxu0 0.0
    %5675 = vmatprep.mubr.f32.mxu0 0.0
    %v5676 = vand.u32 %v5429, 4294901760
    %v5677 = vsub.f32 %v5429, %v5676
    %5678 = vmatmul.mubr.f32.gmra.mrb[0].mxu0 %v5677
    %v5679 = vpop.f32.mrb[0].mxu0
    %v5680 = vadd.f32 %v5599, %v5679
    %v5681 = vpop.f32.mrb[0].mxu0
    %v5682 = vadd.f32 %v5601, %v5681
    %5683 = vdwg.mxu0
    %v5684 = vand.u32 %v92, 4294901760
    %5685 = vmatprep.subr.mxu0 %v5684
    %v5686 = vand.u32 %v91, 4294901760
    %5687 = vmatpush1.msra.mxu0 %v5686
    %v5688 = vand.u32 %v94, 4294901760
    %5689 = vmatprep.subr.mxu0 %v5688
    %v5690 = vand.u32 %v93, 4294901760
    %5691 = vmatpush1.msra.mxu0 %v5690
    %5692 = vmatprep.subr.mxu0 0.0
    %5693 = vmatpush1.msra.mxu0 0.0
    %5694 = vmatprep.subr.mxu0 0.0
    %5695 = vmatpush1.msra.mxu0 0.0
    %5696 = vmatprep.subr.mxu0 0.0
    %5697 = vmatpush1.msra.mxu0 0.0
    %5698 = vmatprep.subr.mxu0 0.0
    %5699 = vmatpush1.msra.mxu0 0.0
    %5700 = vmatprep.subr.mxu0 0.0
    %5701 = vmatpush1.msra.mxu0 0.0
    %5702 = vmatprep.subr.mxu0 0.0
    %5703 = vmatpush1.msra.mxu0 0.0
    %5704 = vmatprep.subr.mxu0 0.0
    %5705 = vmatpush1.msra.mxu0 0.0
    %5706 = vmatprep.subr.mxu0 0.0
    %5707 = vmatpush1.msra.mxu0 0.0
    %5708 = vmatprep.subr.mxu0 0.0
    %5709 = vmatpush1.msra.mxu0 0.0
    %5710 = vmatprep.subr.mxu0 0.0
    %5711 = vmatpush1.msra.mxu0 0.0
    %5712 = vmatprep.subr.mxu0 0.0
    %5713 = vmatpush1.msra.mxu0 0.0
    %5714 = vmatprep.subr.mxu0 0.0
    %5715 = vmatpush1.msra.mxu0 0.0
    %5716 = vmatprep.subr.mxu0 0.0
    %5717 = vmatpush1.msra.mxu0 0.0
    %5718 = vmatprep.subr.mxu0 0.0
    %5719 = vmatpush1.msra.mxu0 0.0
    %5720 = vmatprep.subr.mxu0 0.0
    %5721 = vmatpush1.msra.mxu0 0.0
    %5722 = vmatprep.subr.mxu0 0.0
    %5723 = vmatpush1.msra.mxu0 0.0
    %5724 = vmatprep.subr.mxu0 0.0
    %5725 = vmatpush1.msra.mxu0 0.0
    %5726 = vmatprep.subr.mxu0 0.0
    %5727 = vmatpush1.msra.mxu0 0.0
    %5728 = vmatprep.subr.mxu0 0.0
    %5729 = vmatpush1.msra.mxu0 0.0
    %5730 = vmatprep.subr.mxu0 0.0
    %5731 = vmatpush1.msra.mxu0 0.0
    %5732 = vmatprep.subr.mxu0 0.0
    %5733 = vmatpush1.msra.mxu0 0.0
    %5734 = vmatprep.subr.mxu0 0.0
    %5735 = vmatpush1.msra.mxu0 0.0
    %5736 = vmatprep.subr.mxu0 0.0
    %5737 = vmatpush1.msra.mxu0 0.0
    %5738 = vmatprep.subr.mxu0 0.0
    %5739 = vmatpush1.msra.mxu0 0.0
    %5740 = vmatprep.subr.mxu0 0.0
    %5741 = vmatpush1.msra.mxu0 0.0
    %5742 = vmatprep.subr.mxu0 0.0
    %5743 = vmatpush1.msra.mxu0 0.0
    %5744 = vmatprep.subr.mxu0 0.0
    %5745 = vmatpush1.msra.mxu0 0.0
    %5746 = vmatprep.subr.mxu0 0.0
    %5747 = vmatpush1.msra.mxu0 0.0
    %5748 = vmatprep.subr.mxu0 0.0
    %5749 = vmatpush1.msra.mxu0 0.0
    %5750 = vmatprep.subr.mxu0 0.0
    %5751 = vmatpush1.msra.mxu0 0.0
    %5752 = vmatprep.mubr.f32.mxu0 0.0
    %v5753 = vand.u32 %v5429, 4294901760
    %v5754 = vsub.f32 %v5429, %v5753
    %v5755 = vand.u32 %v5754, 4294901760
    %5756 = vmatmul.mubr.f32.gmra.mrb[0].mxu0 %v5755
    %v5757 = vpop.f32.mrb[0].mxu0
    %v5758 = vadd.f32 %v5680, %v5757
    %v5759 = vpop.f32.mrb[0].mxu0
    %v5760 = vadd.f32 %v5682, %v5759
    %5761 = vdwg.mxu0
    %v5762 = vand.u32 %v92, 4294901760
    %v5763 = vsub.f32 %v92, %v5762
    %v5764 = vand.u32 %v5763, 4294901760
    %5765 = vmatprep.subr.mxu0 %v5764
    %v5766 = vand.u32 %v91, 4294901760
    %v5767 = vsub.f32 %v91, %v5766
    %v5768 = vand.u32 %v5767, 4294901760
    %5769 = vmatpush1.msra.mxu0 %v5768
    %v5770 = vand.u32 %v94, 4294901760
    %v5771 = vsub.f32 %v94, %v5770
    %v5772 = vand.u32 %v5771, 4294901760
    %5773 = vmatprep.subr.mxu0 %v5772
    %v5774 = vand.u32 %v93, 4294901760
    %v5775 = vsub.f32 %v93, %v5774
    %v5776 = vand.u32 %v5775, 4294901760
    %5777 = vmatpush1.msra.mxu0 %v5776
    %5778 = vmatprep.subr.mxu0 0.0
    %5779 = vmatpush1.msra.mxu0 0.0
    %5780 = vmatprep.subr.mxu0 0.0
    %5781 = vmatpush1.msra.mxu0 0.0
    %5782 = vmatprep.subr.mxu0 0.0
    %5783 = vmatpush1.msra.mxu0 0.0
    %5784 = vmatprep.subr.mxu0 0.0
    %5785 = vmatpush1.msra.mxu0 0.0
    %5786 = vmatprep.subr.mxu0 0.0
    %5787 = vmatpush1.msra.mxu0 0.0
    %5788 = vmatprep.subr.mxu0 0.0
    %5789 = vmatpush1.msra.mxu0 0.0
    %5790 = vmatprep.subr.mxu0 0.0
    %5791 = vmatpush1.msra.mxu0 0.0
    %5792 = vmatprep.subr.mxu0 0.0
    %5793 = vmatpush1.msra.mxu0 0.0
    %5794 = vmatprep.subr.mxu0 0.0
    %5795 = vmatpush1.msra.mxu0 0.0
    %5796 = vmatprep.subr.mxu0 0.0
    %5797 = vmatpush1.msra.mxu0 0.0
    %5798 = vmatprep.subr.mxu0 0.0
    %5799 = vmatpush1.msra.mxu0 0.0
    %5800 = vmatprep.subr.mxu0 0.0
    %5801 = vmatpush1.msra.mxu0 0.0
    %5802 = vmatprep.subr.mxu0 0.0
    %5803 = vmatpush1.msra.mxu0 0.0
    %5804 = vmatprep.subr.mxu0 0.0
    %5805 = vmatpush1.msra.mxu0 0.0
    %5806 = vmatprep.subr.mxu0 0.0
    %5807 = vmatpush1.msra.mxu0 0.0
    %5808 = vmatprep.subr.mxu0 0.0
    %5809 = vmatpush1.msra.mxu0 0.0
    %5810 = vmatprep.subr.mxu0 0.0
    %5811 = vmatpush1.msra.mxu0 0.0
    %5812 = vmatprep.subr.mxu0 0.0
    %5813 = vmatpush1.msra.mxu0 0.0
    %5814 = vmatprep.subr.mxu0 0.0
    %5815 = vmatpush1.msra.mxu0 0.0
    %5816 = vmatprep.subr.mxu0 0.0
    %5817 = vmatpush1.msra.mxu0 0.0
    %5818 = vmatprep.subr.mxu0 0.0
    %5819 = vmatpush1.msra.mxu0 0.0
    %5820 = vmatprep.subr.mxu0 0.0
    %5821 = vmatpush1.msra.mxu0 0.0
    %5822 = vmatprep.subr.mxu0 0.0
    %5823 = vmatpush1.msra.mxu0 0.0
    %5824 = vmatprep.subr.mxu0 0.0
    %5825 = vmatpush1.msra.mxu0 0.0
    %5826 = vmatprep.subr.mxu0 0.0
    %5827 = vmatpush1.msra.mxu0 0.0
    %5828 = vmatprep.subr.mxu0 0.0
    %5829 = vmatpush1.msra.mxu0 0.0
    %5830 = vmatprep.subr.mxu0 0.0
    %5831 = vmatpush1.msra.mxu0 0.0
    %5832 = vmatprep.subr.mxu0 0.0
    %5833 = vmatpush1.msra.mxu0 0.0
    %5834 = vmatprep.subr.mxu0 0.0
    %5835 = vmatpush1.msra.mxu0 0.0
    %5836 = vmatprep.subr.mxu0 0.0
    %5837 = vmatpush1.msra.mxu0 0.0
    %5838 = vmatprep.mubr.f32.mxu0 0.0
    %v5839 = vand.u32 %v5429, 4294901760
    %5840 = vmatmul.mubr.f32.gmra.mrb[0].mxu0 %v5839
    %v5841 = vpop.f32.mrb[0].mxu0
    %v5842 = vadd.f32 %v5758, %v5841
    %v5843 = vpop.f32.mrb[0].mxu0
    %v5844 = vadd.f32 %v5760, %v5843
    %5845 = vdwg.mxu0
    %v5846 = vand.u32 %v92, 4294901760
    %5847 = vmatprep.subr.mxu0 %v5846
    %v5848 = vand.u32 %v91, 4294901760
    %5849 = vmatpush1.msra.mxu0 %v5848
    %v5850 = vand.u32 %v94, 4294901760
    %5851 = vmatprep.subr.mxu0 %v5850
    %v5852 = vand.u32 %v93, 4294901760
    %5853 = vmatpush1.msra.mxu0 %v5852
    %5854 = vmatprep.subr.mxu0 0.0
    %5855 = vmatpush1.msra.mxu0 0.0
    %5856 = vmatprep.subr.mxu0 0.0
    %5857 = vmatpush1.msra.mxu0 0.0
    %5858 = vmatprep.subr.mxu0 0.0
    %5859 = vmatpush1.msra.mxu0 0.0
    %5860 = vmatprep.subr.mxu0 0.0
    %5861 = vmatpush1.msra.mxu0 0.0
    %5862 = vmatprep.subr.mxu0 0.0
    %5863 = vmatpush1.msra.mxu0 0.0
    %5864 = vmatprep.subr.mxu0 0.0
    %5865 = vmatpush1.msra.mxu0 0.0
    %5866 = vmatprep.subr.mxu0 0.0
    %5867 = vmatpush1.msra.mxu0 0.0
    %5868 = vmatprep.subr.mxu0 0.0
    %5869 = vmatpush1.msra.mxu0 0.0
    %5870 = vmatprep.subr.mxu0 0.0
    %5871 = vmatpush1.msra.mxu0 0.0
    %5872 = vmatprep.subr.mxu0 0.0
    %5873 = vmatpush1.msra.mxu0 0.0
    %5874 = vmatprep.subr.mxu0 0.0
    %5875 = vmatpush1.msra.mxu0 0.0
    %5876 = vmatprep.subr.mxu0 0.0
    %5877 = vmatpush1.msra.mxu0 0.0
    %5878 = vmatprep.subr.mxu0 0.0
    %5879 = vmatpush1.msra.mxu0 0.0
    %5880 = vmatprep.subr.mxu0 0.0
    %5881 = vmatpush1.msra.mxu0 0.0
    %5882 = vmatprep.subr.mxu0 0.0
    %5883 = vmatpush1.msra.mxu0 0.0
    %5884 = vmatprep.subr.mxu0 0.0
    %5885 = vmatpush1.msra.mxu0 0.0
    %5886 = vmatprep.subr.mxu0 0.0
    %5887 = vmatpush1.msra.mxu0 0.0
    %5888 = vmatprep.subr.mxu0 0.0
    %5889 = vmatpush1.msra.mxu0 0.0
    %5890 = vmatprep.subr.mxu0 0.0
    %5891 = vmatpush1.msra.mxu0 0.0
    %5892 = vmatprep.subr.mxu0 0.0
    %5893 = vmatpush1.msra.mxu0 0.0
    %5894 = vmatprep.subr.mxu0 0.0
    %5895 = vmatpush1.msra.mxu0 0.0
    %5896 = vmatprep.subr.mxu0 0.0
    %5897 = vmatpush1.msra.mxu0 0.0
    %5898 = vmatprep.subr.mxu0 0.0
    %5899 = vmatpush1.msra.mxu0 0.0
    %5900 = vmatprep.subr.mxu0 0.0
    %5901 = vmatpush1.msra.mxu0 0.0
    %5902 = vmatprep.subr.mxu0 0.0
    %5903 = vmatpush1.msra.mxu0 0.0
    %5904 = vmatprep.subr.mxu0 0.0
    %5905 = vmatpush1.msra.mxu0 0.0
    %5906 = vmatprep.subr.mxu0 0.0
    %5907 = vmatpush1.msra.mxu0 0.0
    %5908 = vmatprep.subr.mxu0 0.0
    %5909 = vmatpush1.msra.mxu0 0.0
    %5910 = vmatprep.subr.mxu0 0.0
    %5911 = vmatpush1.msra.mxu0 0.0
    %5912 = vmatprep.subr.mxu0 0.0
    %5913 = vmatpush1.msra.mxu0 0.0
    %5914 = vmatprep.mubr.f32.mxu0 0.0
    %v5915 = vand.u32 %v5429, 4294901760
    %5916 = vmatmul.mubr.f32.gmra.mrb[0].mxu0 %v5915
    %v5917 = vpop.f32.mrb[0].mxu0
    %v5918 = vadd.f32 %v5842, %v5917
    %v5919 = vpop.f32.mrb[0].mxu0
    %v5920 = vadd.f32 %v5844, %v5919
    %5921 = vdwg.mxu0
    %v5922 = vmul.f32 %v5422, %v5918
    %v5923 = vmul.f32 %v5424, %v5920
    %v5926 = vcombine.low %v5922, %v5923
    %v5928 = vunpack.c.l.s4 1983009808
    %v5929 = vunpack.c.0.s8 %v5928
    %v5930 = vlaneseq
    %v5931 = vshrl.u32 %v5930, 7
    %v5932 = vsub.s32 %v5929, %v5931
    %v5933 = vrot.slane %v5926, %v5932
    %v5935 = vmul.f32 %v95, %v5933
    %5936 = vst [vmem:[#allocation8] sm:$0xf] %v5935
    %5937 = vset.pattern.permute.xlu0 1
    %5938 = vperm.xlu0 %5937, %v4925
    %v5939 = vpop.permute.xlu0 %5938
    %v5941 = vmul.f32 %v4377, %v5939
    %5942 = vrot.lane.b32.xlu0 %v4377, 96
    %v5943 = vpop.permute.xlu0 %5942
    %v5944 = vsel %vm4516, %v5943, 0
    %v5946 = vand.u32 %v88, 4294901760
    %5947 = vmatprep.subr.mxu0 %v5946
    %v5948 = vand.u32 %v87, 4294901760
    %5949 = vmatpush1.msra.mxu0 %v5948
    %v5950 = vand.u32 %v90, 4294901760
    %5951 = vmatprep.subr.mxu0 %v5950
    %v5952 = vand.u32 %v89, 4294901760
    %5953 = vmatpush1.msra.mxu0 %v5952
    %5954 = vmatprep.subr.mxu0 0.0
    %5955 = vmatpush1.msra.mxu0 0.0
    %5956 = vmatprep.subr.mxu0 0.0
    %5957 = vmatpush1.msra.mxu0 0.0
    %5958 = vmatprep.subr.mxu0 0.0
    %5959 = vmatpush1.msra.mxu0 0.0
    %5960 = vmatprep.subr.mxu0 0.0
    %5961 = vmatpush1.msra.mxu0 0.0
    %5962 = vmatprep.subr.mxu0 0.0
    %5963 = vmatpush1.msra.mxu0 0.0
    %5964 = vmatprep.subr.mxu0 0.0
    %5965 = vmatpush1.msra.mxu0 0.0
    %5966 = vmatprep.subr.mxu0 0.0
    %5967 = vmatpush1.msra.mxu0 0.0
    %5968 = vmatprep.subr.mxu0 0.0
    %5969 = vmatpush1.msra.mxu0 0.0
    %5970 = vmatprep.subr.mxu0 0.0
    %5971 = vmatpush1.msra.mxu0 0.0
    %5972 = vmatprep.subr.mxu0 0.0
    %5973 = vmatpush1.msra.mxu0 0.0
    %5974 = vmatprep.subr.mxu0 0.0
    %5975 = vmatpush1.msra.mxu0 0.0
    %5976 = vmatprep.subr.mxu0 0.0
    %5977 = vmatpush1.msra.mxu0 0.0
    %5978 = vmatprep.subr.mxu0 0.0
    %5979 = vmatpush1.msra.mxu0 0.0
    %5980 = vmatprep.subr.mxu0 0.0
    %5981 = vmatpush1.msra.mxu0 0.0
    %5982 = vmatprep.subr.mxu0 0.0
    %5983 = vmatpush1.msra.mxu0 0.0
    %5984 = vmatprep.subr.mxu0 0.0
    %5985 = vmatpush1.msra.mxu0 0.0
    %5986 = vmatprep.subr.mxu0 0.0
    %5987 = vmatpush1.msra.mxu0 0.0
    %5988 = vmatprep.subr.mxu0 0.0
    %5989 = vmatpush1.msra.mxu0 0.0
    %5990 = vmatprep.subr.mxu0 0.0
    %5991 = vmatpush1.msra.mxu0 0.0
    %5992 = vmatprep.subr.mxu0 0.0
    %5993 = vmatpush1.msra.mxu0 0.0
    %5994 = vmatprep.subr.mxu0 0.0
    %5995 = vmatpush1.msra.mxu0 0.0
    %5996 = vmatprep.subr.mxu0 0.0
    %5997 = vmatpush1.msra.mxu0 0.0
    %5998 = vmatprep.subr.mxu0 0.0
    %5999 = vmatpush1.msra.mxu0 0.0
    %6000 = vmatprep.subr.mxu0 0.0
    %6001 = vmatpush1.msra.mxu0 0.0
    %6002 = vmatprep.subr.mxu0 0.0
    %6003 = vmatpush1.msra.mxu0 0.0
    %6004 = vmatprep.subr.mxu0 0.0
    %6005 = vmatpush1.msra.mxu0 0.0
    %6006 = vmatprep.subr.mxu0 0.0
    %6007 = vmatpush1.msra.mxu0 0.0
    %6008 = vmatprep.subr.mxu0 0.0
    %6009 = vmatpush1.msra.mxu0 0.0
    %6010 = vmatprep.subr.mxu0 0.0
    %6011 = vmatpush1.msra.mxu0 0.0
    %6012 = vmatprep.subr.mxu0 0.0
    %6013 = vmatpush1.msra.mxu0 0.0
    %6014 = vmatprep.mubr.f32.mxu0 0.0
    %v6015 = vand.u32 %v5944, 4294901760
    %v6016 = vsub.f32 %v5944, %v6015
    %v6017 = vand.u32 %v6016, 4294901760
    %v6018 = vsub.f32 %v6016, %v6017
    %v6019 = vand.u32 %v6018, 4294901760
    %6020 = vmatmul.mubr.f32.gmra.mrb[0].mxu0 %v6019
    %v6021 = vpop.f32.mrb[0].mxu0
    %v6022 = vadd.f32 0.0, %v6021
    %v6023 = vpop.f32.mrb[0].mxu0
    %v6024 = vadd.f32 0.0, %v6023
    %6025 = vdwg.mxu0
    %v6026 = vand.u32 %v88, 4294901760
    %v6027 = vsub.f32 %v88, %v6026
    %v6028 = vand.u32 %v6027, 4294901760
    %v6029 = vsub.f32 %v6027, %v6028
    %v6030 = vand.u32 %v6029, 4294901760
    %6031 = vmatprep.subr.mxu0 %v6030
    %v6032 = vand.u32 %v87, 4294901760
    %v6033 = vsub.f32 %v87, %v6032
    %v6034 = vand.u32 %v6033, 4294901760
    %v6035 = vsub.f32 %v6033, %v6034
    %v6036 = vand.u32 %v6035, 4294901760
    %6037 = vmatpush1.msra.mxu0 %v6036
    %v6038 = vand.u32 %v90, 4294901760
    %v6039 = vsub.f32 %v90, %v6038
    %v6040 = vand.u32 %v6039, 4294901760
    %v6041 = vsub.f32 %v6039, %v6040
    %v6042 = vand.u32 %v6041, 4294901760
    %6043 = vmatprep.subr.mxu0 %v6042
    %v6044 = vand.u32 %v89, 4294901760
    %v6045 = vsub.f32 %v89, %v6044
    %v6046 = vand.u32 %v6045, 4294901760
    %v6047 = vsub.f32 %v6045, %v6046
    %v6048 = vand.u32 %v6047, 4294901760
    %6049 = vmatpush1.msra.mxu0 %v6048
    %6050 = vmatprep.subr.mxu0 0.0
    %6051 = vmatpush1.msra.mxu0 0.0
    %6052 = vmatprep.subr.mxu0 0.0
    %6053 = vmatpush1.msra.mxu0 0.0
    %6054 = vmatprep.subr.mxu0 0.0
    %6055 = vmatpush1.msra.mxu0 0.0
    %6056 = vmatprep.subr.mxu0 0.0
    %6057 = vmatpush1.msra.mxu0 0.0
    %6058 = vmatprep.subr.mxu0 0.0
    %6059 = vmatpush1.msra.mxu0 0.0
    %6060 = vmatprep.subr.mxu0 0.0
    %6061 = vmatpush1.msra.mxu0 0.0
    %6062 = vmatprep.subr.mxu0 0.0
    %6063 = vmatpush1.msra.mxu0 0.0
    %6064 = vmatprep.subr.mxu0 0.0
    %6065 = vmatpush1.msra.mxu0 0.0
    %6066 = vmatprep.subr.mxu0 0.0
    %6067 = vmatpush1.msra.mxu0 0.0
    %6068 = vmatprep.subr.mxu0 0.0
    %6069 = vmatpush1.msra.mxu0 0.0
    %6070 = vmatprep.subr.mxu0 0.0
    %6071 = vmatpush1.msra.mxu0 0.0
    %6072 = vmatprep.subr.mxu0 0.0
    %6073 = vmatpush1.msra.mxu0 0.0
    %6074 = vmatprep.subr.mxu0 0.0
    %6075 = vmatpush1.msra.mxu0 0.0
    %6076 = vmatprep.subr.mxu0 0.0
    %6077 = vmatpush1.msra.mxu0 0.0
    %6078 = vmatprep.subr.mxu0 0.0
    %6079 = vmatpush1.msra.mxu0 0.0
    %6080 = vmatprep.subr.mxu0 0.0
    %6081 = vmatpush1.msra.mxu0 0.0
    %6082 = vmatprep.subr.mxu0 0.0
    %6083 = vmatpush1.msra.mxu0 0.0
    %6084 = vmatprep.subr.mxu0 0.0
    %6085 = vmatpush1.msra.mxu0 0.0
    %6086 = vmatprep.subr.mxu0 0.0
    %6087 = vmatpush1.msra.mxu0 0.0
    %6088 = vmatprep.subr.mxu0 0.0
    %6089 = vmatpush1.msra.mxu0 0.0
    %6090 = vmatprep.subr.mxu0 0.0
    %6091 = vmatpush1.msra.mxu0 0.0
    %6092 = vmatprep.subr.mxu0 0.0
    %6093 = vmatpush1.msra.mxu0 0.0
    %6094 = vmatprep.subr.mxu0 0.0
    %6095 = vmatpush1.msra.mxu0 0.0
    %6096 = vmatprep.subr.mxu0 0.0
    %6097 = vmatpush1.msra.mxu0 0.0
    %6098 = vmatprep.subr.mxu0 0.0
    %6099 = vmatpush1.msra.mxu0 0.0
    %6100 = vmatprep.subr.mxu0 0.0
    %6101 = vmatpush1.msra.mxu0 0.0
    %6102 = vmatprep.subr.mxu0 0.0
    %6103 = vmatpush1.msra.mxu0 0.0
    %6104 = vmatprep.subr.mxu0 0.0
    %6105 = vmatpush1.msra.mxu0 0.0
    %6106 = vmatprep.subr.mxu0 0.0
    %6107 = vmatpush1.msra.mxu0 0.0
    %6108 = vmatprep.subr.mxu0 0.0
    %6109 = vmatpush1.msra.mxu0 0.0
    %6110 = vmatprep.mubr.f32.mxu0 0.0
    %v6111 = vand.u32 %v5944, 4294901760
    %6112 = vmatmul.mubr.f32.gmra.mrb[0].mxu0 %v6111
    %v6113 = vpop.f32.mrb[0].mxu0
    %v6114 = vadd.f32 %v6022, %v6113
    %v6115 = vpop.f32.mrb[0].mxu0
    %v6116 = vadd.f32 %v6024, %v6115
    %6117 = vdwg.mxu0
    %v6118 = vand.u32 %v88, 4294901760
    %v6119 = vsub.f32 %v88, %v6118
    %6120 = vmatprep.subr.mxu0 %v6119
    %v6121 = vand.u32 %v87, 4294901760
    %v6122 = vsub.f32 %v87, %v6121
    %6123 = vmatpush1.msra.mxu0 %v6122
    %v6124 = vand.u32 %v90, 4294901760
    %v6125 = vsub.f32 %v90, %v6124
    %6126 = vmatprep.subr.mxu0 %v6125
    %v6127 = vand.u32 %v89, 4294901760
    %v6128 = vsub.f32 %v89, %v6127
    %6129 = vmatpush1.msra.mxu0 %v6128
    %6130 = vmatprep.subr.mxu0 0.0
    %6131 = vmatpush1.msra.mxu0 0.0
    %6132 = vmatprep.subr.mxu0 0.0
    %6133 = vmatpush1.msra.mxu0 0.0
    %6134 = vmatprep.subr.mxu0 0.0
    %6135 = vmatpush1.msra.mxu0 0.0
    %6136 = vmatprep.subr.mxu0 0.0
    %6137 = vmatpush1.msra.mxu0 0.0
    %6138 = vmatprep.subr.mxu0 0.0
    %6139 = vmatpush1.msra.mxu0 0.0
    %6140 = vmatprep.subr.mxu0 0.0
    %6141 = vmatpush1.msra.mxu0 0.0
    %6142 = vmatprep.subr.mxu0 0.0
    %6143 = vmatpush1.msra.mxu0 0.0
    %6144 = vmatprep.subr.mxu0 0.0
    %6145 = vmatpush1.msra.mxu0 0.0
    %6146 = vmatprep.subr.mxu0 0.0
    %6147 = vmatpush1.msra.mxu0 0.0
    %6148 = vmatprep.subr.mxu0 0.0
    %6149 = vmatpush1.msra.mxu0 0.0
    %6150 = vmatprep.subr.mxu0 0.0
    %6151 = vmatpush1.msra.mxu0 0.0
    %6152 = vmatprep.subr.mxu0 0.0
    %6153 = vmatpush1.msra.mxu0 0.0
    %6154 = vmatprep.subr.mxu0 0.0
    %6155 = vmatpush1.msra.mxu0 0.0
    %6156 = vmatprep.subr.mxu0 0.0
    %6157 = vmatpush1.msra.mxu0 0.0
    %6158 = vmatprep.subr.mxu0 0.0
    %6159 = vmatpush1.msra.mxu0 0.0
    %6160 = vmatprep.subr.mxu0 0.0
    %6161 = vmatpush1.msra.mxu0 0.0
    %6162 = vmatprep.subr.mxu0 0.0
    %6163 = vmatpush1.msra.mxu0 0.0
    %6164 = vmatprep.subr.mxu0 0.0
    %6165 = vmatpush1.msra.mxu0 0.0
    %6166 = vmatprep.subr.mxu0 0.0
    %6167 = vmatpush1.msra.mxu0 0.0
    %6168 = vmatprep.subr.mxu0 0.0
    %6169 = vmatpush1.msra.mxu0 0.0
    %6170 = vmatprep.subr.mxu0 0.0
    %6171 = vmatpush1.msra.mxu0 0.0
    %6172 = vmatprep.subr.mxu0 0.0
    %6173 = vmatpush1.msra.mxu0 0.0
    %6174 = vmatprep.subr.mxu0 0.0
    %6175 = vmatpush1.msra.mxu0 0.0
    %6176 = vmatprep.subr.mxu0 0.0
    %6177 = vmatpush1.msra.mxu0 0.0
    %6178 = vmatprep.subr.mxu0 0.0
    %6179 = vmatpush1.msra.mxu0 0.0
    %6180 = vmatprep.subr.mxu0 0.0
    %6181 = vmatpush1.msra.mxu0 0.0
    %6182 = vmatprep.subr.mxu0 0.0
    %6183 = vmatpush1.msra.mxu0 0.0
    %6184 = vmatprep.subr.mxu0 0.0
    %6185 = vmatpush1.msra.mxu0 0.0
    %6186 = vmatprep.subr.mxu0 0.0
    %6187 = vmatpush1.msra.mxu0 0.0
    %6188 = vmatprep.subr.mxu0 0.0
    %6189 = vmatpush1.msra.mxu0 0.0
    %6190 = vmatprep.mubr.f32.mxu0 0.0
    %v6191 = vand.u32 %v5944, 4294901760
    %v6192 = vsub.f32 %v5944, %v6191
    %6193 = vmatmul.mubr.f32.gmra.mrb[0].mxu0 %v6192
    %v6194 = vpop.f32.mrb[0].mxu0
    %v6195 = vadd.f32 %v6114, %v6194
    %v6196 = vpop.f32.mrb[0].mxu0
    %v6197 = vadd.f32 %v6116, %v6196
    %6198 = vdwg.mxu0
    %v6199 = vand.u32 %v88, 4294901760
    %6200 = vmatprep.subr.mxu0 %v6199
    %v6201 = vand.u32 %v87, 4294901760
    %6202 = vmatpush1.msra.mxu0 %v6201
    %v6203 = vand.u32 %v90, 4294901760
    %6204 = vmatprep.subr.mxu0 %v6203
    %v6205 = vand.u32 %v89, 4294901760
    %6206 = vmatpush1.msra.mxu0 %v6205
    %6207 = vmatprep.subr.mxu0 0.0
    %6208 = vmatpush1.msra.mxu0 0.0
    %6209 = vmatprep.subr.mxu0 0.0
    %6210 = vmatpush1.msra.mxu0 0.0
    %6211 = vmatprep.subr.mxu0 0.0
    %6212 = vmatpush1.msra.mxu0 0.0
    %6213 = vmatprep.subr.mxu0 0.0
    %6214 = vmatpush1.msra.mxu0 0.0
    %6215 = vmatprep.subr.mxu0 0.0
    %6216 = vmatpush1.msra.mxu0 0.0
    %6217 = vmatprep.subr.mxu0 0.0
    %6218 = vmatpush1.msra.mxu0 0.0
    %6219 = vmatprep.subr.mxu0 0.0
    %6220 = vmatpush1.msra.mxu0 0.0
    %6221 = vmatprep.subr.mxu0 0.0
    %6222 = vmatpush1.msra.mxu0 0.0
    %6223 = vmatprep.subr.mxu0 0.0
    %6224 = vmatpush1.msra.mxu0 0.0
    %6225 = vmatprep.subr.mxu0 0.0
    %6226 = vmatpush1.msra.mxu0 0.0
    %6227 = vmatprep.subr.mxu0 0.0
    %6228 = vmatpush1.msra.mxu0 0.0
    %6229 = vmatprep.subr.mxu0 0.0
    %6230 = vmatpush1.msra.mxu0 0.0
    %6231 = vmatprep.subr.mxu0 0.0
    %6232 = vmatpush1.msra.mxu0 0.0
    %6233 = vmatprep.subr.mxu0 0.0
    %6234 = vmatpush1.msra.mxu0 0.0
    %6235 = vmatprep.subr.mxu0 0.0
    %6236 = vmatpush1.msra.mxu0 0.0
    %6237 = vmatprep.subr.mxu0 0.0
    %6238 = vmatpush1.msra.mxu0 0.0
    %6239 = vmatprep.subr.mxu0 0.0
    %6240 = vmatpush1.msra.mxu0 0.0
    %6241 = vmatprep.subr.mxu0 0.0
    %6242 = vmatpush1.msra.mxu0 0.0
    %6243 = vmatprep.subr.mxu0 0.0
    %6244 = vmatpush1.msra.mxu0 0.0
    %6245 = vmatprep.subr.mxu0 0.0
    %6246 = vmatpush1.msra.mxu0 0.0
    %6247 = vmatprep.subr.mxu0 0.0
    %6248 = vmatpush1.msra.mxu0 0.0
    %6249 = vmatprep.subr.mxu0 0.0
    %6250 = vmatpush1.msra.mxu0 0.0
    %6251 = vmatprep.subr.mxu0 0.0
    %6252 = vmatpush1.msra.mxu0 0.0
    %6253 = vmatprep.subr.mxu0 0.0
    %6254 = vmatpush1.msra.mxu0 0.0
    %6255 = vmatprep.subr.mxu0 0.0
    %6256 = vmatpush1.msra.mxu0 0.0
    %6257 = vmatprep.subr.mxu0 0.0
    %6258 = vmatpush1.msra.mxu0 0.0
    %6259 = vmatprep.subr.mxu0 0.0
    %6260 = vmatpush1.msra.mxu0 0.0
    %6261 = vmatprep.subr.mxu0 0.0
    %6262 = vmatpush1.msra.mxu0 0.0
    %6263 = vmatprep.subr.mxu0 0.0
    %6264 = vmatpush1.msra.mxu0 0.0
    %6265 = vmatprep.subr.mxu0 0.0
    %6266 = vmatpush1.msra.mxu0 0.0
    %6267 = vmatprep.mubr.f32.mxu0 0.0
    %v6268 = vand.u32 %v5944, 4294901760
    %v6269 = vsub.f32 %v5944, %v6268
    %v6270 = vand.u32 %v6269, 4294901760
    %6271 = vmatmul.mubr.f32.gmra.mrb[0].mxu0 %v6270
    %v6272 = vpop.f32.mrb[0].mxu0
    %v6273 = vadd.f32 %v6195, %v6272
    %v6274 = vpop.f32.mrb[0].mxu0
    %v6275 = vadd.f32 %v6197, %v6274
    %6276 = vdwg.mxu0
    %v6277 = vand.u32 %v88, 4294901760
    %v6278 = vsub.f32 %v88, %v6277
    %v6279 = vand.u32 %v6278, 4294901760
    %6280 = vmatprep.subr.mxu0 %v6279
    %v6281 = vand.u32 %v87, 4294901760
    %v6282 = vsub.f32 %v87, %v6281
    %v6283 = vand.u32 %v6282, 4294901760
    %6284 = vmatpush1.msra.mxu0 %v6283
    %v6285 = vand.u32 %v90, 4294901760
    %v6286 = vsub.f32 %v90, %v6285
    %v6287 = vand.u32 %v6286, 4294901760
    %6288 = vmatprep.subr.mxu0 %v6287
    %v6289 = vand.u32 %v89, 4294901760
    %v6290 = vsub.f32 %v89, %v6289
    %v6291 = vand.u32 %v6290, 4294901760
    %6292 = vmatpush1.msra.mxu0 %v6291
    %6293 = vmatprep.subr.mxu0 0.0
    %6294 = vmatpush1.msra.mxu0 0.0
    %6295 = vmatprep.subr.mxu0 0.0
    %6296 = vmatpush1.msra.mxu0 0.0
    %6297 = vmatprep.subr.mxu0 0.0
    %6298 = vmatpush1.msra.mxu0 0.0
    %6299 = vmatprep.subr.mxu0 0.0
    %6300 = vmatpush1.msra.mxu0 0.0
    %6301 = vmatprep.subr.mxu0 0.0
    %6302 = vmatpush1.msra.mxu0 0.0
    %6303 = vmatprep.subr.mxu0 0.0
    %6304 = vmatpush1.msra.mxu0 0.0
    %6305 = vmatprep.subr.mxu0 0.0
    %6306 = vmatpush1.msra.mxu0 0.0
    %6307 = vmatprep.subr.mxu0 0.0
    %6308 = vmatpush1.msra.mxu0 0.0
    %6309 = vmatprep.subr.mxu0 0.0
    %6310 = vmatpush1.msra.mxu0 0.0
    %6311 = vmatprep.subr.mxu0 0.0
    %6312 = vmatpush1.msra.mxu0 0.0
    %6313 = vmatprep.subr.mxu0 0.0
    %6314 = vmatpush1.msra.mxu0 0.0
    %6315 = vmatprep.subr.mxu0 0.0
    %6316 = vmatpush1.msra.mxu0 0.0
    %6317 = vmatprep.subr.mxu0 0.0
    %6318 = vmatpush1.msra.mxu0 0.0
    %6319 = vmatprep.subr.mxu0 0.0
    %6320 = vmatpush1.msra.mxu0 0.0
    %6321 = vmatprep.subr.mxu0 0.0
    %6322 = vmatpush1.msra.mxu0 0.0
    %6323 = vmatprep.subr.mxu0 0.0
    %6324 = vmatpush1.msra.mxu0 0.0
    %6325 = vmatprep.subr.mxu0 0.0
    %6326 = vmatpush1.msra.mxu0 0.0
    %6327 = vmatprep.subr.mxu0 0.0
    %6328 = vmatpush1.msra.mxu0 0.0
    %6329 = vmatprep.subr.mxu0 0.0
    %6330 = vmatpush1.msra.mxu0 0.0
    %6331 = vmatprep.subr.mxu0 0.0
    %6332 = vmatpush1.msra.mxu0 0.0
    %6333 = vmatprep.subr.mxu0 0.0
    %6334 = vmatpush1.msra.mxu0 0.0
    %6335 = vmatprep.subr.mxu0 0.0
    %6336 = vmatpush1.msra.mxu0 0.0
    %6337 = vmatprep.subr.mxu0 0.0
    %6338 = vmatpush1.msra.mxu0 0.0
    %6339 = vmatprep.subr.mxu0 0.0
    %6340 = vmatpush1.msra.mxu0 0.0
    %6341 = vmatprep.subr.mxu0 0.0
    %6342 = vmatpush1.msra.mxu0 0.0
    %6343 = vmatprep.subr.mxu0 0.0
    %6344 = vmatpush1.msra.mxu0 0.0
    %6345 = vmatprep.subr.mxu0 0.0
    %6346 = vmatpush1.msra.mxu0 0.0
    %6347 = vmatprep.subr.mxu0 0.0
    %6348 = vmatpush1.msra.mxu0 0.0
    %6349 = vmatprep.subr.mxu0 0.0
    %6350 = vmatpush1.msra.mxu0 0.0
    %6351 = vmatprep.subr.mxu0 0.0
    %6352 = vmatpush1.msra.mxu0 0.0
    %6353 = vmatprep.mubr.f32.mxu0 0.0
    %v6354 = vand.u32 %v5944, 4294901760
    %6355 = vmatmul.mubr.f32.gmra.mrb[0].mxu0 %v6354
    %v6356 = vpop.f32.mrb[0].mxu0
    %v6357 = vadd.f32 %v6273, %v6356
    %v6358 = vpop.f32.mrb[0].mxu0
    %v6359 = vadd.f32 %v6275, %v6358
    %6360 = vdwg.mxu0
    %v6361 = vand.u32 %v88, 4294901760
    %6362 = vmatprep.subr.mxu0 %v6361
    %v6363 = vand.u32 %v87, 4294901760
    %6364 = vmatpush1.msra.mxu0 %v6363
    %v6365 = vand.u32 %v90, 4294901760
    %6366 = vmatprep.subr.mxu0 %v6365
    %v6367 = vand.u32 %v89, 4294901760
    %6368 = vmatpush1.msra.mxu0 %v6367
    %6369 = vmatprep.subr.mxu0 0.0
    %6370 = vmatpush1.msra.mxu0 0.0
    %6371 = vmatprep.subr.mxu0 0.0
    %6372 = vmatpush1.msra.mxu0 0.0
    %6373 = vmatprep.subr.mxu0 0.0
    %6374 = vmatpush1.msra.mxu0 0.0
    %6375 = vmatprep.subr.mxu0 0.0
    %6376 = vmatpush1.msra.mxu0 0.0
    %6377 = vmatprep.subr.mxu0 0.0
    %6378 = vmatpush1.msra.mxu0 0.0
    %6379 = vmatprep.subr.mxu0 0.0
    %6380 = vmatpush1.msra.mxu0 0.0
    %6381 = vmatprep.subr.mxu0 0.0
    %6382 = vmatpush1.msra.mxu0 0.0
    %6383 = vmatprep.subr.mxu0 0.0
    %6384 = vmatpush1.msra.mxu0 0.0
    %6385 = vmatprep.subr.mxu0 0.0
    %6386 = vmatpush1.msra.mxu0 0.0
    %6387 = vmatprep.subr.mxu0 0.0
    %6388 = vmatpush1.msra.mxu0 0.0
    %6389 = vmatprep.subr.mxu0 0.0
    %6390 = vmatpush1.msra.mxu0 0.0
    %6391 = vmatprep.subr.mxu0 0.0
    %6392 = vmatpush1.msra.mxu0 0.0
    %6393 = vmatprep.subr.mxu0 0.0
    %6394 = vmatpush1.msra.mxu0 0.0
    %6395 = vmatprep.subr.mxu0 0.0
    %6396 = vmatpush1.msra.mxu0 0.0
    %6397 = vmatprep.subr.mxu0 0.0
    %6398 = vmatpush1.msra.mxu0 0.0
    %6399 = vmatprep.subr.mxu0 0.0
    %6400 = vmatpush1.msra.mxu0 0.0
    %6401 = vmatprep.subr.mxu0 0.0
    %6402 = vmatpush1.msra.mxu0 0.0
    %6403 = vmatprep.subr.mxu0 0.0
    %6404 = vmatpush1.msra.mxu0 0.0
    %6405 = vmatprep.subr.mxu0 0.0
    %6406 = vmatpush1.msra.mxu0 0.0
    %6407 = vmatprep.subr.mxu0 0.0
    %6408 = vmatpush1.msra.mxu0 0.0
    %6409 = vmatprep.subr.mxu0 0.0
    %6410 = vmatpush1.msra.mxu0 0.0
    %6411 = vmatprep.subr.mxu0 0.0
    %6412 = vmatpush1.msra.mxu0 0.0
    %6413 = vmatprep.subr.mxu0 0.0
    %6414 = vmatpush1.msra.mxu0 0.0
    %6415 = vmatprep.subr.mxu0 0.0
    %6416 = vmatpush1.msra.mxu0 0.0
    %6417 = vmatprep.subr.mxu0 0.0
    %6418 = vmatpush1.msra.mxu0 0.0
    %6419 = vmatprep.subr.mxu0 0.0
    %6420 = vmatpush1.msra.mxu0 0.0
    %6421 = vmatprep.subr.mxu0 0.0
    %6422 = vmatpush1.msra.mxu0 0.0
    %6423 = vmatprep.subr.mxu0 0.0
    %6424 = vmatpush1.msra.mxu0 0.0
    %6425 = vmatprep.subr.mxu0 0.0
    %6426 = vmatpush1.msra.mxu0 0.0
    %6427 = vmatprep.subr.mxu0 0.0
    %6428 = vmatpush1.msra.mxu0 0.0
    %6429 = vmatprep.mubr.f32.mxu0 0.0
    %v6430 = vand.u32 %v5944, 4294901760
    %6431 = vmatmul.mubr.f32.gmra.mrb[0].mxu0 %v6430
    %v6432 = vpop.f32.mrb[0].mxu0
    %v6433 = vadd.f32 %v6357, %v6432
    %v6434 = vpop.f32.mrb[0].mxu0
    %v6435 = vadd.f32 %v6359, %v6434
    %6436 = vdwg.mxu0
    %6438 = vrot.lane.b32.xlu0 %v5941, 80
    %v6439 = vpop.permute.xlu0 %6438
    %v6440 = vsel %vm4516, %v6439, 0
    %v6442 = vand.u32 %v92, 4294901760
    %6443 = vmatprep.subr.mxu0 %v6442
    %v6444 = vand.u32 %v91, 4294901760
    %6445 = vmatpush1.msra.mxu0 %v6444
    %v6446 = vand.u32 %v94, 4294901760
    %6447 = vmatprep.subr.mxu0 %v6446
    %v6448 = vand.u32 %v93, 4294901760
    %6449 = vmatpush1.msra.mxu0 %v6448
    %6450 = vmatprep.subr.mxu0 0.0
    %6451 = vmatpush1.msra.mxu0 0.0
    %6452 = vmatprep.subr.mxu0 0.0
    %6453 = vmatpush1.msra.mxu0 0.0
    %6454 = vmatprep.subr.mxu0 0.0
    %6455 = vmatpush1.msra.mxu0 0.0
    %6456 = vmatprep.subr.mxu0 0.0
    %6457 = vmatpush1.msra.mxu0 0.0
    %6458 = vmatprep.subr.mxu0 0.0
    %6459 = vmatpush1.msra.mxu0 0.0
    %6460 = vmatprep.subr.mxu0 0.0
    %6461 = vmatpush1.msra.mxu0 0.0
    %6462 = vmatprep.subr.mxu0 0.0
    %6463 = vmatpush1.msra.mxu0 0.0
    %6464 = vmatprep.subr.mxu0 0.0
    %6465 = vmatpush1.msra.mxu0 0.0
    %6466 = vmatprep.subr.mxu0 0.0
    %6467 = vmatpush1.msra.mxu0 0.0
    %6468 = vmatprep.subr.mxu0 0.0
    %6469 = vmatpush1.msra.mxu0 0.0
    %6470 = vmatprep.subr.mxu0 0.0
    %6471 = vmatpush1.msra.mxu0 0.0
    %6472 = vmatprep.subr.mxu0 0.0
    %6473 = vmatpush1.msra.mxu0 0.0
    %6474 = vmatprep.subr.mxu0 0.0
    %6475 = vmatpush1.msra.mxu0 0.0
    %6476 = vmatprep.subr.mxu0 0.0
    %6477 = vmatpush1.msra.mxu0 0.0
    %6478 = vmatprep.subr.mxu0 0.0
    %6479 = vmatpush1.msra.mxu0 0.0
    %6480 = vmatprep.subr.mxu0 0.0
    %6481 = vmatpush1.msra.mxu0 0.0
    %6482 = vmatprep.subr.mxu0 0.0
    %6483 = vmatpush1.msra.mxu0 0.0
    %6484 = vmatprep.subr.mxu0 0.0
    %6485 = vmatpush1.msra.mxu0 0.0
    %6486 = vmatprep.subr.mxu0 0.0
    %6487 = vmatpush1.msra.mxu0 0.0
    %6488 = vmatprep.subr.mxu0 0.0
    %6489 = vmatpush1.msra.mxu0 0.0
    %6490 = vmatprep.subr.mxu0 0.0
    %6491 = vmatpush1.msra.mxu0 0.0
    %6492 = vmatprep.subr.mxu0 0.0
    %6493 = vmatpush1.msra.mxu0 0.0
    %6494 = vmatprep.subr.mxu0 0.0
    %6495 = vmatpush1.msra.mxu0 0.0
    %6496 = vmatprep.subr.mxu0 0.0
    %6497 = vmatpush1.msra.mxu0 0.0
    %6498 = vmatprep.subr.mxu0 0.0
    %6499 = vmatpush1.msra.mxu0 0.0
    %6500 = vmatprep.subr.mxu0 0.0
    %6501 = vmatpush1.msra.mxu0 0.0
    %6502 = vmatprep.subr.mxu0 0.0
    %6503 = vmatpush1.msra.mxu0 0.0
    %6504 = vmatprep.subr.mxu0 0.0
    %6505 = vmatpush1.msra.mxu0 0.0
    %6506 = vmatprep.subr.mxu0 0.0
    %6507 = vmatpush1.msra.mxu0 0.0
    %6508 = vmatprep.subr.mxu0 0.0
    %6509 = vmatpush1.msra.mxu0 0.0
    %6510 = vmatprep.mubr.f32.mxu0 0.0
    %v6511 = vand.u32 %v6440, 4294901760
    %v6512 = vsub.f32 %v6440, %v6511
    %v6513 = vand.u32 %v6512, 4294901760
    %v6514 = vsub.f32 %v6512, %v6513
    %v6515 = vand.u32 %v6514, 4294901760
    %6516 = vmatmul.mubr.f32.gmra.mrb[0].mxu0 %v6515
    %v6517 = vpop.f32.mrb[0].mxu0
    %v6518 = vadd.f32 0.0, %v6517
    %v6519 = vpop.f32.mrb[0].mxu0
    %v6520 = vadd.f32 0.0, %v6519
    %6521 = vdwg.mxu0
    %v6522 = vand.u32 %v92, 4294901760
    %v6523 = vsub.f32 %v92, %v6522
    %v6524 = vand.u32 %v6523, 4294901760
    %v6525 = vsub.f32 %v6523, %v6524
    %v6526 = vand.u32 %v6525, 4294901760
    %6527 = vmatprep.subr.mxu0 %v6526
    %v6528 = vand.u32 %v91, 4294901760
    %v6529 = vsub.f32 %v91, %v6528
    %v6530 = vand.u32 %v6529, 4294901760
    %v6531 = vsub.f32 %v6529, %v6530
    %v6532 = vand.u32 %v6531, 4294901760
    %6533 = vmatpush1.msra.mxu0 %v6532
    %v6534 = vand.u32 %v94, 4294901760
    %v6535 = vsub.f32 %v94, %v6534
    %v6536 = vand.u32 %v6535, 4294901760
    %v6537 = vsub.f32 %v6535, %v6536
    %v6538 = vand.u32 %v6537, 4294901760
    %6539 = vmatprep.subr.mxu0 %v6538
    %v6540 = vand.u32 %v93, 4294901760
    %v6541 = vsub.f32 %v93, %v6540
    %v6542 = vand.u32 %v6541, 4294901760
    %v6543 = vsub.f32 %v6541, %v6542
    %v6544 = vand.u32 %v6543, 4294901760
    %6545 = vmatpush1.msra.mxu0 %v6544
    %6546 = vmatprep.subr.mxu0 0.0
    %6547 = vmatpush1.msra.mxu0 0.0
    %6548 = vmatprep.subr.mxu0 0.0
    %6549 = vmatpush1.msra.mxu0 0.0
    %6550 = vmatprep.subr.mxu0 0.0
    %6551 = vmatpush1.msra.mxu0 0.0
    %6552 = vmatprep.subr.mxu0 0.0
    %6553 = vmatpush1.msra.mxu0 0.0
    %6554 = vmatprep.subr.mxu0 0.0
    %6555 = vmatpush1.msra.mxu0 0.0
    %6556 = vmatprep.subr.mxu0 0.0
    %6557 = vmatpush1.msra.mxu0 0.0
    %6558 = vmatprep.subr.mxu0 0.0
    %6559 = vmatpush1.msra.mxu0 0.0
    %6560 = vmatprep.subr.mxu0 0.0
    %6561 = vmatpush1.msra.mxu0 0.0
    %6562 = vmatprep.subr.mxu0 0.0
    %6563 = vmatpush1.msra.mxu0 0.0
    %6564 = vmatprep.subr.mxu0 0.0
    %6565 = vmatpush1.msra.mxu0 0.0
    %6566 = vmatprep.subr.mxu0 0.0
    %6567 = vmatpush1.msra.mxu0 0.0
    %6568 = vmatprep.subr.mxu0 0.0
    %6569 = vmatpush1.msra.mxu0 0.0
    %6570 = vmatprep.subr.mxu0 0.0
    %6571 = vmatpush1.msra.mxu0 0.0
    %6572 = vmatprep.subr.mxu0 0.0
    %6573 = vmatpush1.msra.mxu0 0.0
    %6574 = vmatprep.subr.mxu0 0.0
    %6575 = vmatpush1.msra.mxu0 0.0
    %6576 = vmatprep.subr.mxu0 0.0
    %6577 = vmatpush1.msra.mxu0 0.0
    %6578 = vmatprep.subr.mxu0 0.0
    %6579 = vmatpush1.msra.mxu0 0.0
    %6580 = vmatprep.subr.mxu0 0.0
    %6581 = vmatpush1.msra.mxu0 0.0
    %6582 = vmatprep.subr.mxu0 0.0
    %6583 = vmatpush1.msra.mxu0 0.0
    %6584 = vmatprep.subr.mxu0 0.0
    %6585 = vmatpush1.msra.mxu0 0.0
    %6586 = vmatprep.subr.mxu0 0.0
    %6587 = vmatpush1.msra.mxu0 0.0
    %6588 = vmatprep.subr.mxu0 0.0
    %6589 = vmatpush1.msra.mxu0 0.0
    %6590 = vmatprep.subr.mxu0 0.0
    %6591 = vmatpush1.msra.mxu0 0.0
    %6592 = vmatprep.subr.mxu0 0.0
    %6593 = vmatpush1.msra.mxu0 0.0
    %6594 = vmatprep.subr.mxu0 0.0
    %6595 = vmatpush1.msra.mxu0 0.0
    %6596 = vmatprep.subr.mxu0 0.0
    %6597 = vmatpush1.msra.mxu0 0.0
    %6598 = vmatprep.subr.mxu0 0.0
    %6599 = vmatpush1.msra.mxu0 0.0
    %6600 = vmatprep.subr.mxu0 0.0
    %6601 = vmatpush1.msra.mxu0 0.0
    %6602 = vmatprep.subr.mxu0 0.0
    %6603 = vmatpush1.msra.mxu0 0.0
    %6604 = vmatprep.subr.mxu0 0.0
    %6605 = vmatpush1.msra.mxu0 0.0
    %6606 = vmatprep.mubr.f32.mxu0 0.0
    %v6607 = vand.u32 %v6440, 4294901760
    %6608 = vmatmul.mubr.f32.gmra.mrb[0].mxu0 %v6607
    %v6609 = vpop.f32.mrb[0].mxu0
    %v6610 = vadd.f32 %v6518, %v6609
    %v6611 = vpop.f32.mrb[0].mxu0
    %v6612 = vadd.f32 %v6520, %v6611
    %6613 = vdwg.mxu0
    %v6614 = vand.u32 %v92, 4294901760
    %v6615 = vsub.f32 %v92, %v6614
    %6616 = vmatprep.subr.mxu0 %v6615
    %v6617 = vand.u32 %v91, 4294901760
    %v6618 = vsub.f32 %v91, %v6617
    %6619 = vmatpush1.msra.mxu0 %v6618
    %v6620 = vand.u32 %v94, 4294901760
    %v6621 = vsub.f32 %v94, %v6620
    %6622 = vmatprep.subr.mxu0 %v6621
    %v6623 = vand.u32 %v93, 4294901760
    %v6624 = vsub.f32 %v93, %v6623
    %6625 = vmatpush1.msra.mxu0 %v6624
    %6626 = vmatprep.subr.mxu0 0.0
    %6627 = vmatpush1.msra.mxu0 0.0
    %6628 = vmatprep.subr.mxu0 0.0
    %6629 = vmatpush1.msra.mxu0 0.0
    %6630 = vmatprep.subr.mxu0 0.0
    %6631 = vmatpush1.msra.mxu0 0.0
    %6632 = vmatprep.subr.mxu0 0.0
    %6633 = vmatpush1.msra.mxu0 0.0
    %6634 = vmatprep.subr.mxu0 0.0
    %6635 = vmatpush1.msra.mxu0 0.0
    %6636 = vmatprep.subr.mxu0 0.0
    %6637 = vmatpush1.msra.mxu0 0.0
    %6638 = vmatprep.subr.mxu0 0.0
    %6639 = vmatpush1.msra.mxu0 0.0
    %6640 = vmatprep.subr.mxu0 0.0
    %6641 = vmatpush1.msra.mxu0 0.0
    %6642 = vmatprep.subr.mxu0 0.0
    %6643 = vmatpush1.msra.mxu0 0.0
    %6644 = vmatprep.subr.mxu0 0.0
    %6645 = vmatpush1.msra.mxu0 0.0
    %6646 = vmatprep.subr.mxu0 0.0
    %6647 = vmatpush1.msra.mxu0 0.0
    %6648 = vmatprep.subr.mxu0 0.0
    %6649 = vmatpush1.msra.mxu0 0.0
    %6650 = vmatprep.subr.mxu0 0.0
    %6651 = vmatpush1.msra.mxu0 0.0
    %6652 = vmatprep.subr.mxu0 0.0
    %6653 = vmatpush1.msra.mxu0 0.0
    %6654 = vmatprep.subr.mxu0 0.0
    %6655 = vmatpush1.msra.mxu0 0.0
    %6656 = vmatprep.subr.mxu0 0.0
    %6657 = vmatpush1.msra.mxu0 0.0
    %6658 = vmatprep.subr.mxu0 0.0
    %6659 = vmatpush1.msra.mxu0 0.0
    %6660 = vmatprep.subr.mxu0 0.0
    %6661 = vmatpush1.msra.mxu0 0.0
    %6662 = vmatprep.subr.mxu0 0.0
    %6663 = vmatpush1.msra.mxu0 0.0
    %6664 = vmatprep.subr.mxu0 0.0
    %6665 = vmatpush1.msra.mxu0 0.0
    %6666 = vmatprep.subr.mxu0 0.0
    %6667 = vmatpush1.msra.mxu0 0.0
    %6668 = vmatprep.subr.mxu0 0.0
    %6669 = vmatpush1.msra.mxu0 0.0
    %6670 = vmatprep.subr.mxu0 0.0
    %6671 = vmatpush1.msra.mxu0 0.0
    %6672 = vmatprep.subr.mxu0 0.0
    %6673 = vmatpush1.msra.mxu0 0.0
    %6674 = vmatprep.subr.mxu0 0.0
    %6675 = vmatpush1.msra.mxu0 0.0
    %6676 = vmatprep.subr.mxu0 0.0
    %6677 = vmatpush1.msra.mxu0 0.0
    %6678 = vmatprep.subr.mxu0 0.0
    %6679 = vmatpush1.msra.mxu0 0.0
    %6680 = vmatprep.subr.mxu0 0.0
    %6681 = vmatpush1.msra.mxu0 0.0
    %6682 = vmatprep.subr.mxu0 0.0
    %6683 = vmatpush1.msra.mxu0 0.0
    %6684 = vmatprep.subr.mxu0 0.0
    %6685 = vmatpush1.msra.mxu0 0.0
    %6686 = vmatprep.mubr.f32.mxu0 0.0
    %v6687 = vand.u32 %v6440, 4294901760
    %v6688 = vsub.f32 %v6440, %v6687
    %6689 = vmatmul.mubr.f32.gmra.mrb[0].mxu0 %v6688
    %v6690 = vpop.f32.mrb[0].mxu0
    %v6691 = vadd.f32 %v6610, %v6690
    %v6692 = vpop.f32.mrb[0].mxu0
    %v6693 = vadd.f32 %v6612, %v6692
    %6694 = vdwg.mxu0
    %v6695 = vand.u32 %v92, 4294901760
    %6696 = vmatprep.subr.mxu0 %v6695
    %v6697 = vand.u32 %v91, 4294901760
    %6698 = vmatpush1.msra.mxu0 %v6697
    %v6699 = vand.u32 %v94, 4294901760
    %6700 = vmatprep.subr.mxu0 %v6699
    %v6701 = vand.u32 %v93, 4294901760
    %6702 = vmatpush1.msra.mxu0 %v6701
    %6703 = vmatprep.subr.mxu0 0.0
    %6704 = vmatpush1.msra.mxu0 0.0
    %6705 = vmatprep.subr.mxu0 0.0
    %6706 = vmatpush1.msra.mxu0 0.0
    %6707 = vmatprep.subr.mxu0 0.0
    %6708 = vmatpush1.msra.mxu0 0.0
    %6709 = vmatprep.subr.mxu0 0.0
    %6710 = vmatpush1.msra.mxu0 0.0
    %6711 = vmatprep.subr.mxu0 0.0
    %6712 = vmatpush1.msra.mxu0 0.0
    %6713 = vmatprep.subr.mxu0 0.0
    %6714 = vmatpush1.msra.mxu0 0.0
    %6715 = vmatprep.subr.mxu0 0.0
    %6716 = vmatpush1.msra.mxu0 0.0
    %6717 = vmatprep.subr.mxu0 0.0
    %6718 = vmatpush1.msra.mxu0 0.0
    %6719 = vmatprep.subr.mxu0 0.0
    %6720 = vmatpush1.msra.mxu0 0.0
    %6721 = vmatprep.subr.mxu0 0.0
    %6722 = vmatpush1.msra.mxu0 0.0
    %6723 = vmatprep.subr.mxu0 0.0
    %6724 = vmatpush1.msra.mxu0 0.0
    %6725 = vmatprep.subr.mxu0 0.0
    %6726 = vmatpush1.msra.mxu0 0.0
    %6727 = vmatprep.subr.mxu0 0.0
    %6728 = vmatpush1.msra.mxu0 0.0
    %6729 = vmatprep.subr.mxu0 0.0
    %6730 = vmatpush1.msra.mxu0 0.0
    %6731 = vmatprep.subr.mxu0 0.0
    %6732 = vmatpush1.msra.mxu0 0.0
    %6733 = vmatprep.subr.mxu0 0.0
    %6734 = vmatpush1.msra.mxu0 0.0
    %6735 = vmatprep.subr.mxu0 0.0
    %6736 = vmatpush1.msra.mxu0 0.0
    %6737 = vmatprep.subr.mxu0 0.0
    %6738 = vmatpush1.msra.mxu0 0.0
    %6739 = vmatprep.subr.mxu0 0.0
    %6740 = vmatpush1.msra.mxu0 0.0
    %6741 = vmatprep.subr.mxu0 0.0
    %6742 = vmatpush1.msra.mxu0 0.0
    %6743 = vmatprep.subr.mxu0 0.0
    %6744 = vmatpush1.msra.mxu0 0.0
    %6745 = vmatprep.subr.mxu0 0.0
    %6746 = vmatpush1.msra.mxu0 0.0
    %6747 = vmatprep.subr.mxu0 0.0
    %6748 = vmatpush1.msra.mxu0 0.0
    %6749 = vmatprep.subr.mxu0 0.0
    %6750 = vmatpush1.msra.mxu0 0.0
    %6751 = vmatprep.subr.mxu0 0.0
    %6752 = vmatpush1.msra.mxu0 0.0
    %6753 = vmatprep.subr.mxu0 0.0
    %6754 = vmatpush1.msra.mxu0 0.0
    %6755 = vmatprep.subr.mxu0 0.0
    %6756 = vmatpush1.msra.mxu0 0.0
    %6757 = vmatprep.subr.mxu0 0.0
    %6758 = vmatpush1.msra.mxu0 0.0
    %6759 = vmatprep.subr.mxu0 0.0
    %6760 = vmatpush1.msra.mxu0 0.0
    %6761 = vmatprep.subr.mxu0 0.0
    %6762 = vmatpush1.msra.mxu0 0.0
    %6763 = vmatprep.mubr.f32.mxu0 0.0
    %v6764 = vand.u32 %v6440, 4294901760
    %v6765 = vsub.f32 %v6440, %v6764
    %v6766 = vand.u32 %v6765, 4294901760
    %6767 = vmatmul.mubr.f32.gmra.mrb[0].mxu0 %v6766
    %v6768 = vpop.f32.mrb[0].mxu0
    %v6769 = vadd.f32 %v6691, %v6768
    %v6770 = vpop.f32.mrb[0].mxu0
    %v6771 = vadd.f32 %v6693, %v6770
    %6772 = vdwg.mxu0
    %v6773 = vand.u32 %v92, 4294901760
    %v6774 = vsub.f32 %v92, %v6773
    %v6775 = vand.u32 %v6774, 4294901760
    %6776 = vmatprep.subr.mxu0 %v6775
    %v6777 = vand.u32 %v91, 4294901760
    %v6778 = vsub.f32 %v91, %v6777
    %v6779 = vand.u32 %v6778, 4294901760
    %6780 = vmatpush1.msra.mxu0 %v6779
    %v6781 = vand.u32 %v94, 4294901760
    %v6782 = vsub.f32 %v94, %v6781
    %v6783 = vand.u32 %v6782, 4294901760
    %6784 = vmatprep.subr.mxu0 %v6783
    %v6785 = vand.u32 %v93, 4294901760
    %v6786 = vsub.f32 %v93, %v6785
    %v6787 = vand.u32 %v6786, 4294901760
    %6788 = vmatpush1.msra.mxu0 %v6787
    %6789 = vmatprep.subr.mxu0 0.0
    %6790 = vmatpush1.msra.mxu0 0.0
    %6791 = vmatprep.subr.mxu0 0.0
    %6792 = vmatpush1.msra.mxu0 0.0
    %6793 = vmatprep.subr.mxu0 0.0
    %6794 = vmatpush1.msra.mxu0 0.0
    %6795 = vmatprep.subr.mxu0 0.0
    %6796 = vmatpush1.msra.mxu0 0.0
    %6797 = vmatprep.subr.mxu0 0.0
    %6798 = vmatpush1.msra.mxu0 0.0
    %6799 = vmatprep.subr.mxu0 0.0
    %6800 = vmatpush1.msra.mxu0 0.0
    %6801 = vmatprep.subr.mxu0 0.0
    %6802 = vmatpush1.msra.mxu0 0.0
    %6803 = vmatprep.subr.mxu0 0.0
    %6804 = vmatpush1.msra.mxu0 0.0
    %6805 = vmatprep.subr.mxu0 0.0
    %6806 = vmatpush1.msra.mxu0 0.0
    %6807 = vmatprep.subr.mxu0 0.0
    %6808 = vmatpush1.msra.mxu0 0.0
    %6809 = vmatprep.subr.mxu0 0.0
    %6810 = vmatpush1.msra.mxu0 0.0
    %6811 = vmatprep.subr.mxu0 0.0
    %6812 = vmatpush1.msra.mxu0 0.0
    %6813 = vmatprep.subr.mxu0 0.0
    %6814 = vmatpush1.msra.mxu0 0.0
    %6815 = vmatprep.subr.mxu0 0.0
    %6816 = vmatpush1.msra.mxu0 0.0
    %6817 = vmatprep.subr.mxu0 0.0
    %6818 = vmatpush1.msra.mxu0 0.0
    %6819 = vmatprep.subr.mxu0 0.0
    %6820 = vmatpush1.msra.mxu0 0.0
    %6821 = vmatprep.subr.mxu0 0.0
    %6822 = vmatpush1.msra.mxu0 0.0
    %6823 = vmatprep.subr.mxu0 0.0
    %6824 = vmatpush1.msra.mxu0 0.0
    %6825 = vmatprep.subr.mxu0 0.0
    %6826 = vmatpush1.msra.mxu0 0.0
    %6827 = vmatprep.subr.mxu0 0.0
    %6828 = vmatpush1.msra.mxu0 0.0
    %6829 = vmatprep.subr.mxu0 0.0
    %6830 = vmatpush1.msra.mxu0 0.0
    %6831 = vmatprep.subr.mxu0 0.0
    %6832 = vmatpush1.msra.mxu0 0.0
    %6833 = vmatprep.subr.mxu0 0.0
    %6834 = vmatpush1.msra.mxu0 0.0
    %6835 = vmatprep.subr.mxu0 0.0
    %6836 = vmatpush1.msra.mxu0 0.0
    %6837 = vmatprep.subr.mxu0 0.0
    %6838 = vmatpush1.msra.mxu0 0.0
    %6839 = vmatprep.subr.mxu0 0.0
    %6840 = vmatpush1.msra.mxu0 0.0
    %6841 = vmatprep.subr.mxu0 0.0
    %6842 = vmatpush1.msra.mxu0 0.0
    %6843 = vmatprep.subr.mxu0 0.0
    %6844 = vmatpush1.msra.mxu0 0.0
    %6845 = vmatprep.subr.mxu0 0.0
    %6846 = vmatpush1.msra.mxu0 0.0
    %6847 = vmatprep.subr.mxu0 0.0
    %6848 = vmatpush1.msra.mxu0 0.0
    %6849 = vmatprep.mubr.f32.mxu0 0.0
    %v6850 = vand.u32 %v6440, 4294901760
    %6851 = vmatmul.mubr.f32.gmra.mrb[0].mxu0 %v6850
    %v6852 = vpop.f32.mrb[0].mxu0
    %v6853 = vadd.f32 %v6769, %v6852
    %v6854 = vpop.f32.mrb[0].mxu0
    %v6855 = vadd.f32 %v6771, %v6854
    %6856 = vdwg.mxu0
    %v6857 = vand.u32 %v92, 4294901760
    %6858 = vmatprep.subr.mxu0 %v6857
    %v6859 = vand.u32 %v91, 4294901760
    %6860 = vmatpush1.msra.mxu0 %v6859
    %v6861 = vand.u32 %v94, 4294901760
    %6862 = vmatprep.subr.mxu0 %v6861
    %v6863 = vand.u32 %v93, 4294901760
    %6864 = vmatpush1.msra.mxu0 %v6863
    %6865 = vmatprep.subr.mxu0 0.0
    %6866 = vmatpush1.msra.mxu0 0.0
    %6867 = vmatprep.subr.mxu0 0.0
    %6868 = vmatpush1.msra.mxu0 0.0
    %6869 = vmatprep.subr.mxu0 0.0
    %6870 = vmatpush1.msra.mxu0 0.0
    %6871 = vmatprep.subr.mxu0 0.0
    %6872 = vmatpush1.msra.mxu0 0.0
    %6873 = vmatprep.subr.mxu0 0.0
    %6874 = vmatpush1.msra.mxu0 0.0
    %6875 = vmatprep.subr.mxu0 0.0
    %6876 = vmatpush1.msra.mxu0 0.0
    %6877 = vmatprep.subr.mxu0 0.0
    %6878 = vmatpush1.msra.mxu0 0.0
    %6879 = vmatprep.subr.mxu0 0.0
    %6880 = vmatpush1.msra.mxu0 0.0
    %6881 = vmatprep.subr.mxu0 0.0
    %6882 = vmatpush1.msra.mxu0 0.0
    %6883 = vmatprep.subr.mxu0 0.0
    %6884 = vmatpush1.msra.mxu0 0.0
    %6885 = vmatprep.subr.mxu0 0.0
    %6886 = vmatpush1.msra.mxu0 0.0
    %6887 = vmatprep.subr.mxu0 0.0
    %6888 = vmatpush1.msra.mxu0 0.0
    %6889 = vmatprep.subr.mxu0 0.0
    %6890 = vmatpush1.msra.mxu0 0.0
    %6891 = vmatprep.subr.mxu0 0.0
    %6892 = vmatpush1.msra.mxu0 0.0
    %6893 = vmatprep.subr.mxu0 0.0
    %6894 = vmatpush1.msra.mxu0 0.0
    %6895 = vmatprep.subr.mxu0 0.0
    %6896 = vmatpush1.msra.mxu0 0.0
    %6897 = vmatprep.subr.mxu0 0.0
    %6898 = vmatpush1.msra.mxu0 0.0
    %6899 = vmatprep.subr.mxu0 0.0
    %6900 = vmatpush1.msra.mxu0 0.0
    %6901 = vmatprep.subr.mxu0 0.0
    %6902 = vmatpush1.msra.mxu0 0.0
    %6903 = vmatprep.subr.mxu0 0.0
    %6904 = vmatpush1.msra.mxu0 0.0
    %6905 = vmatprep.subr.mxu0 0.0
    %6906 = vmatpush1.msra.mxu0 0.0
    %6907 = vmatprep.subr.mxu0 0.0
    %6908 = vmatpush1.msra.mxu0 0.0
    %6909 = vmatprep.subr.mxu0 0.0
    %6910 = vmatpush1.msra.mxu0 0.0
    %6911 = vmatprep.subr.mxu0 0.0
    %6912 = vmatpush1.msra.mxu0 0.0
    %6913 = vmatprep.subr.mxu0 0.0
    %6914 = vmatpush1.msra.mxu0 0.0
    %6915 = vmatprep.subr.mxu0 0.0
    %6916 = vmatpush1.msra.mxu0 0.0
    %6917 = vmatprep.subr.mxu0 0.0
    %6918 = vmatpush1.msra.mxu0 0.0
    %6919 = vmatprep.subr.mxu0 0.0
    %6920 = vmatpush1.msra.mxu0 0.0
    %6921 = vmatprep.subr.mxu0 0.0
    %6922 = vmatpush1.msra.mxu0 0.0
    %6923 = vmatprep.subr.mxu0 0.0
    %6924 = vmatpush1.msra.mxu0 0.0
    %6925 = vmatprep.mubr.f32.mxu0 0.0
    %v6926 = vand.u32 %v6440, 4294901760
    %6927 = vmatmul.mubr.f32.gmra.mrb[0].mxu0 %v6926
    %v6928 = vpop.f32.mrb[0].mxu0
    %v6929 = vadd.f32 %v6853, %v6928
    %v6930 = vpop.f32.mrb[0].mxu0
    %v6931 = vadd.f32 %v6855, %v6930
    %6932 = vdwg.mxu0
    %v6933 = vmul.f32 %v6433, %v6929
    %v6934 = vmul.f32 %v6435, %v6931
    %v6935 = vld [vmem:[#allocation2 + $0x4] sm:$0xf]
    %v6938 = vcombine.low %v6933, %v6934
    %v6940 = vunpack.c.l.s4 1983009808
    %v6941 = vunpack.c.0.s8 %v6940
    %v6942 = vlaneseq
    %v6943 = vshrl.u32 %v6942, 7
    %v6944 = vsub.s32 %v6941, %v6943
    %v6945 = vrot.slane %v6938, %v6944
    %v6947 = vmul.f32 %v6935, %v6945
    %6948 = vst [vmem:[#allocation8 + $0x4] sm:$0xf] %v6947
    %6949 = vset.pattern.permute.xlu0 2
    %6950 = vperm.xlu0 %6949, %v4925
    %v6951 = vpop.permute.xlu0 %6950
    %v6953 = vmul.f32 %v4377, %v6951
    %6954 = vrot.lane.b32.xlu0 %v4377, 64
    %v6955 = vpop.permute.xlu0 %6954
    %v6956 = vsel %vm4516, %v6955, 0
    %v6958 = vand.u32 %v88, 4294901760
    %6959 = vmatprep.subr.mxu0 %v6958
    %v6960 = vand.u32 %v87, 4294901760
    %6961 = vmatpush1.msra.mxu0 %v6960
    %v6962 = vand.u32 %v90, 4294901760
    %6963 = vmatprep.subr.mxu0 %v6962
    %v6964 = vand.u32 %v89, 4294901760
    %6965 = vmatpush1.msra.mxu0 %v6964
    %6966 = vmatprep.subr.mxu0 0.0
    %6967 = vmatpush1.msra.mxu0 0.0
    %6968 = vmatprep.subr.mxu0 0.0
    %6969 = vmatpush1.msra.mxu0 0.0
    %6970 = vmatprep.subr.mxu0 0.0
    %6971 = vmatpush1.msra.mxu0 0.0
    %6972 = vmatprep.subr.mxu0 0.0
    %6973 = vmatpush1.msra.mxu0 0.0
    %6974 = vmatprep.subr.mxu0 0.0
    %6975 = vmatpush1.msra.mxu0 0.0
    %6976 = vmatprep.subr.mxu0 0.0
    %6977 = vmatpush1.msra.mxu0 0.0
    %6978 = vmatprep.subr.mxu0 0.0
    %6979 = vmatpush1.msra.mxu0 0.0
    %6980 = vmatprep.subr.mxu0 0.0
    %6981 = vmatpush1.msra.mxu0 0.0
    %6982 = vmatprep.subr.mxu0 0.0
    %6983 = vmatpush1.msra.mxu0 0.0
    %6984 = vmatprep.subr.mxu0 0.0
    %6985 = vmatpush1.msra.mxu0 0.0
    %6986 = vmatprep.subr.mxu0 0.0
    %6987 = vmatpush1.msra.mxu0 0.0
    %6988 = vmatprep.subr.mxu0 0.0
    %6989 = vmatpush1.msra.mxu0 0.0
    %6990 = vmatprep.subr.mxu0 0.0
    %6991 = vmatpush1.msra.mxu0 0.0
    %6992 = vmatprep.subr.mxu0 0.0
    %6993 = vmatpush1.msra.mxu0 0.0
    %6994 = vmatprep.subr.mxu0 0.0
    %6995 = vmatpush1.msra.mxu0 0.0
    %6996 = vmatprep.subr.mxu0 0.0
    %6997 = vmatpush1.msra.mxu0 0.0
    %6998 = vmatprep.subr.mxu0 0.0
    %6999 = vmatpush1.msra.mxu0 0.0
    %7000 = vmatprep.subr.mxu0 0.0
    %7001 = vmatpush1.msra.mxu0 0.0
    %7002 = vmatprep.subr.mxu0 0.0
    %7003 = vmatpush1.msra.mxu0 0.0
    %7004 = vmatprep.subr.mxu0 0.0
    %7005 = vmatpush1.msra.mxu0 0.0
    %7006 = vmatprep.subr.mxu0 0.0
    %7007 = vmatpush1.msra.mxu0 0.0
    %7008 = vmatprep.subr.mxu0 0.0
    %7009 = vmatpush1.msra.mxu0 0.0
    %7010 = vmatprep.subr.mxu0 0.0
    %7011 = vmatpush1.msra.mxu0 0.0
    %7012 = vmatprep.subr.mxu0 0.0
    %7013 = vmatpush1.msra.mxu0 0.0
    %7014 = vmatprep.subr.mxu0 0.0
    %7015 = vmatpush1.msra.mxu0 0.0
    %7016 = vmatprep.subr.mxu0 0.0
    %7017 = vmatpush1.msra.mxu0 0.0
    %7018 = vmatprep.subr.mxu0 0.0
    %7019 = vmatpush1.msra.mxu0 0.0
    %7020 = vmatprep.subr.mxu0 0.0
    %7021 = vmatpush1.msra.mxu0 0.0
    %7022 = vmatprep.subr.mxu0 0.0
    %7023 = vmatpush1.msra.mxu0 0.0
    %7024 = vmatprep.subr.mxu0 0.0
    %7025 = vmatpush1.msra.mxu0 0.0
    %7026 = vmatprep.mubr.f32.mxu0 0.0
    %v7027 = vand.u32 %v6956, 4294901760
    %v7028 = vsub.f32 %v6956, %v7027
    %v7029 = vand.u32 %v7028, 4294901760
    %v7030 = vsub.f32 %v7028, %v7029
    %v7031 = vand.u32 %v7030, 4294901760
    %7032 = vmatmul.mubr.f32.gmra.mrb[0].mxu0 %v7031
    %v7033 = vpop.f32.mrb[0].mxu0
    %v7034 = vadd.f32 0.0, %v7033
    %v7035 = vpop.f32.mrb[0].mxu0
    %v7036 = vadd.f32 0.0, %v7035
    %7037 = vdwg.mxu0
    %v7038 = vand.u32 %v88, 4294901760
    %v7039 = vsub.f32 %v88, %v7038
    %v7040 = vand.u32 %v7039, 4294901760
    %v7041 = vsub.f32 %v7039, %v7040
    %v7042 = vand.u32 %v7041, 4294901760
    %7043 = vmatprep.subr.mxu0 %v7042
    %v7044 = vand.u32 %v87, 4294901760
    %v7045 = vsub.f32 %v87, %v7044
    %v7046 = vand.u32 %v7045, 4294901760
    %v7047 = vsub.f32 %v7045, %v7046
    %v7048 = vand.u32 %v7047, 4294901760
    %7049 = vmatpush1.msra.mxu0 %v7048
    %v7050 = vand.u32 %v90, 4294901760
    %v7051 = vsub.f32 %v90, %v7050
    %v7052 = vand.u32 %v7051, 4294901760
    %v7053 = vsub.f32 %v7051, %v7052
    %v7054 = vand.u32 %v7053, 4294901760
    %7055 = vmatprep.subr.mxu0 %v7054
    %v7056 = vand.u32 %v89, 4294901760
    %v7057 = vsub.f32 %v89, %v7056
    %v7058 = vand.u32 %v7057, 4294901760
    %v7059 = vsub.f32 %v7057, %v7058
    %v7060 = vand.u32 %v7059, 4294901760
    %7061 = vmatpush1.msra.mxu0 %v7060
    %7062 = vmatprep.subr.mxu0 0.0
    %7063 = vmatpush1.msra.mxu0 0.0
    %7064 = vmatprep.subr.mxu0 0.0
    %7065 = vmatpush1.msra.mxu0 0.0
    %7066 = vmatprep.subr.mxu0 0.0
    %7067 = vmatpush1.msra.mxu0 0.0
    %7068 = vmatprep.subr.mxu0 0.0
    %7069 = vmatpush1.msra.mxu0 0.0
    %7070 = vmatprep.subr.mxu0 0.0
    %7071 = vmatpush1.msra.mxu0 0.0
    %7072 = vmatprep.subr.mxu0 0.0
    %7073 = vmatpush1.msra.mxu0 0.0
    %7074 = vmatprep.subr.mxu0 0.0
    %7075 = vmatpush1.msra.mxu0 0.0
    %7076 = vmatprep.subr.mxu0 0.0
    %7077 = vmatpush1.msra.mxu0 0.0
    %7078 = vmatprep.subr.mxu0 0.0
    %7079 = vmatpush1.msra.mxu0 0.0
    %7080 = vmatprep.subr.mxu0 0.0
    %7081 = vmatpush1.msra.mxu0 0.0
    %7082 = vmatprep.subr.mxu0 0.0
    %7083 = vmatpush1.msra.mxu0 0.0
    %7084 = vmatprep.subr.mxu0 0.0
    %7085 = vmatpush1.msra.mxu0 0.0
    %7086 = vmatprep.subr.mxu0 0.0
    %7087 = vmatpush1.msra.mxu0 0.0
    %7088 = vmatprep.subr.mxu0 0.0
    %7089 = vmatpush1.msra.mxu0 0.0
    %7090 = vmatprep.subr.mxu0 0.0
    %7091 = vmatpush1.msra.mxu0 0.0
    %7092 = vmatprep.subr.mxu0 0.0
    %7093 = vmatpush1.msra.mxu0 0.0
    %7094 = vmatprep.subr.mxu0 0.0
    %7095 = vmatpush1.msra.mxu0 0.0
    %7096 = vmatprep.subr.mxu0 0.0
    %7097 = vmatpush1.msra.mxu0 0.0
    %7098 = vmatprep.subr.mxu0 0.0
    %7099 = vmatpush1.msra.mxu0 0.0
    %7100 = vmatprep.subr.mxu0 0.0
    %7101 = vmatpush1.msra.mxu0 0.0
    %7102 = vmatprep.subr.mxu0 0.0
    %7103 = vmatpush1.msra.mxu0 0.0
    %7104 = vmatprep.subr.mxu0 0.0
    %7105 = vmatpush1.msra.mxu0 0.0
    %7106 = vmatprep.subr.mxu0 0.0
    %7107 = vmatpush1.msra.mxu0 0.0
    %7108 = vmatprep.subr.mxu0 0.0
    %7109 = vmatpush1.msra.mxu0 0.0
    %7110 = vmatprep.subr.mxu0 0.0
    %7111 = vmatpush1.msra.mxu0 0.0
    %7112 = vmatprep.subr.mxu0 0.0
    %7113 = vmatpush1.msra.mxu0 0.0
    %7114 = vmatprep.subr.mxu0 0.0
    %7115 = vmatpush1.msra.mxu0 0.0
    %7116 = vmatprep.subr.mxu0 0.0
    %7117 = vmatpush1.msra.mxu0 0.0
    %7118 = vmatprep.subr.mxu0 0.0
    %7119 = vmatpush1.msra.mxu0 0.0
    %7120 = vmatprep.subr.mxu0 0.0
    %7121 = vmatpush1.msra.mxu0 0.0
    %7122 = vmatprep.mubr.f32.mxu0 0.0
    %v7123 = vand.u32 %v6956, 4294901760
    %7124 = vmatmul.mubr.f32.gmra.mrb[0].mxu0 %v7123
    %v7125 = vpop.f32.mrb[0].mxu0
    %v7126 = vadd.f32 %v7034, %v7125
    %v7127 = vpop.f32.mrb[0].mxu0
    %v7128 = vadd.f32 %v7036, %v7127
    %7129 = vdwg.mxu0
    %v7130 = vand.u32 %v88, 4294901760
    %v7131 = vsub.f32 %v88, %v7130
    %7132 = vmatprep.subr.mxu0 %v7131
    %v7133 = vand.u32 %v87, 4294901760
    %v7134 = vsub.f32 %v87, %v7133
    %7135 = vmatpush1.msra.mxu0 %v7134
    %v7136 = vand.u32 %v90, 4294901760
    %v7137 = vsub.f32 %v90, %v7136
    %7138 = vmatprep.subr.mxu0 %v7137
    %v7139 = vand.u32 %v89, 4294901760
    %v7140 = vsub.f32 %v89, %v7139
    %7141 = vmatpush1.msra.mxu0 %v7140
    %7142 = vmatprep.subr.mxu0 0.0
    %7143 = vmatpush1.msra.mxu0 0.0
    %7144 = vmatprep.subr.mxu0 0.0
    %7145 = vmatpush1.msra.mxu0 0.0
    %7146 = vmatprep.subr.mxu0 0.0
    %7147 = vmatpush1.msra.mxu0 0.0
    %7148 = vmatprep.subr.mxu0 0.0
    %7149 = vmatpush1.msra.mxu0 0.0
    %7150 = vmatprep.subr.mxu0 0.0
    %7151 = vmatpush1.msra.mxu0 0.0
    %7152 = vmatprep.subr.mxu0 0.0
    %7153 = vmatpush1.msra.mxu0 0.0
    %7154 = vmatprep.subr.mxu0 0.0
    %7155 = vmatpush1.msra.mxu0 0.0
    %7156 = vmatprep.subr.mxu0 0.0
    %7157 = vmatpush1.msra.mxu0 0.0
    %7158 = vmatprep.subr.mxu0 0.0
    %7159 = vmatpush1.msra.mxu0 0.0
    %7160 = vmatprep.subr.mxu0 0.0
    %7161 = vmatpush1.msra.mxu0 0.0
    %7162 = vmatprep.subr.mxu0 0.0
    %7163 = vmatpush1.msra.mxu0 0.0
    %7164 = vmatprep.subr.mxu0 0.0
    %7165 = vmatpush1.msra.mxu0 0.0
    %7166 = vmatprep.subr.mxu0 0.0
    %7167 = vmatpush1.msra.mxu0 0.0
    %7168 = vmatprep.subr.mxu0 0.0
    %7169 = vmatpush1.msra.mxu0 0.0
    %7170 = vmatprep.subr.mxu0 0.0
    %7171 = vmatpush1.msra.mxu0 0.0
    %7172 = vmatprep.subr.mxu0 0.0
    %7173 = vmatpush1.msra.mxu0 0.0
    %7174 = vmatprep.subr.mxu0 0.0
    %7175 = vmatpush1.msra.mxu0 0.0
    %7176 = vmatprep.subr.mxu0 0.0
    %7177 = vmatpush1.msra.mxu0 0.0
    %7178 = vmatprep.subr.mxu0 0.0
    %7179 = vmatpush1.msra.mxu0 0.0
    %7180 = vmatprep.subr.mxu0 0.0
    %7181 = vmatpush1.msra.mxu0 0.0
    %7182 = vmatprep.subr.mxu0 0.0
    %7183 = vmatpush1.msra.mxu0 0.0
    %7184 = vmatprep.subr.mxu0 0.0
    %7185 = vmatpush1.msra.mxu0 0.0
    %7186 = vmatprep.subr.mxu0 0.0
    %7187 = vmatpush1.msra.mxu0 0.0
    %7188 = vmatprep.subr.mxu0 0.0
    %7189 = vmatpush1.msra.mxu0 0.0
    %7190 = vmatprep.subr.mxu0 0.0
    %7191 = vmatpush1.msra.mxu0 0.0
    %7192 = vmatprep.subr.mxu0 0.0
    %7193 = vmatpush1.msra.mxu0 0.0
    %7194 = vmatprep.subr.mxu0 0.0
    %7195 = vmatpush1.msra.mxu0 0.0
    %7196 = vmatprep.subr.mxu0 0.0
    %7197 = vmatpush1.msra.mxu0 0.0
    %7198 = vmatprep.subr.mxu0 0.0
    %7199 = vmatpush1.msra.mxu0 0.0
    %7200 = vmatprep.subr.mxu0 0.0
    %7201 = vmatpush1.msra.mxu0 0.0
    %7202 = vmatprep.mubr.f32.mxu0 0.0
    %v7203 = vand.u32 %v6956, 4294901760
    %v7204 = vsub.f32 %v6956, %v7203
    %7205 = vmatmul.mubr.f32.gmra.mrb[0].mxu0 %v7204
    %v7206 = vpop.f32.mrb[0].mxu0
    %v7207 = vadd.f32 %v7126, %v7206
    %v7208 = vpop.f32.mrb[0].mxu0
    %v7209 = vadd.f32 %v7128, %v7208
    %7210 = vdwg.mxu0
    %v7211 = vand.u32 %v88, 4294901760
    %7212 = vmatprep.subr.mxu0 %v7211
    %v7213 = vand.u32 %v87, 4294901760
    %7214 = vmatpush1.msra.mxu0 %v7213
    %v7215 = vand.u32 %v90, 4294901760
    %7216 = vmatprep.subr.mxu0 %v7215
    %v7217 = vand.u32 %v89, 4294901760
    %7218 = vmatpush1.msra.mxu0 %v7217
    %7219 = vmatprep.subr.mxu0 0.0
    %7220 = vmatpush1.msra.mxu0 0.0
    %7221 = vmatprep.subr.mxu0 0.0
    %7222 = vmatpush1.msra.mxu0 0.0
    %7223 = vmatprep.subr.mxu0 0.0
    %7224 = vmatpush1.msra.mxu0 0.0
    %7225 = vmatprep.subr.mxu0 0.0
    %7226 = vmatpush1.msra.mxu0 0.0
    %7227 = vmatprep.subr.mxu0 0.0
    %7228 = vmatpush1.msra.mxu0 0.0
    %7229 = vmatprep.subr.mxu0 0.0
    %7230 = vmatpush1.msra.mxu0 0.0
    %7231 = vmatprep.subr.mxu0 0.0
    %7232 = vmatpush1.msra.mxu0 0.0
    %7233 = vmatprep.subr.mxu0 0.0
    %7234 = vmatpush1.msra.mxu0 0.0
    %7235 = vmatprep.subr.mxu0 0.0
    %7236 = vmatpush1.msra.mxu0 0.0
    %7237 = vmatprep.subr.mxu0 0.0
    %7238 = vmatpush1.msra.mxu0 0.0
    %7239 = vmatprep.subr.mxu0 0.0
    %7240 = vmatpush1.msra.mxu0 0.0
    %7241 = vmatprep.subr.mxu0 0.0
    %7242 = vmatpush1.msra.mxu0 0.0
    %7243 = vmatprep.subr.mxu0 0.0
    %7244 = vmatpush1.msra.mxu0 0.0
    %7245 = vmatprep.subr.mxu0 0.0
    %7246 = vmatpush1.msra.mxu0 0.0
    %7247 = vmatprep.subr.mxu0 0.0
    %7248 = vmatpush1.msra.mxu0 0.0
    %7249 = vmatprep.subr.mxu0 0.0
    %7250 = vmatpush1.msra.mxu0 0.0
    %7251 = vmatprep.subr.mxu0 0.0
    %7252 = vmatpush1.msra.mxu0 0.0
    %7253 = vmatprep.subr.mxu0 0.0
    %7254 = vmatpush1.msra.mxu0 0.0
    %7255 = vmatprep.subr.mxu0 0.0
    %7256 = vmatpush1.msra.mxu0 0.0
    %7257 = vmatprep.subr.mxu0 0.0
    %7258 = vmatpush1.msra.mxu0 0.0
    %7259 = vmatprep.subr.mxu0 0.0
    %7260 = vmatpush1.msra.mxu0 0.0
    %7261 = vmatprep.subr.mxu0 0.0
    %7262 = vmatpush1.msra.mxu0 0.0
    %7263 = vmatprep.subr.mxu0 0.0
    %7264 = vmatpush1.msra.mxu0 0.0
    %7265 = vmatprep.subr.mxu0 0.0
    %7266 = vmatpush1.msra.mxu0 0.0
    %7267 = vmatprep.subr.mxu0 0.0
    %7268 = vmatpush1.msra.mxu0 0.0
    %7269 = vmatprep.subr.mxu0 0.0
    %7270 = vmatpush1.msra.mxu0 0.0
    %7271 = vmatprep.subr.mxu0 0.0
    %7272 = vmatpush1.msra.mxu0 0.0
    %7273 = vmatprep.subr.mxu0 0.0
    %7274 = vmatpush1.msra.mxu0 0.0
    %7275 = vmatprep.subr.mxu0 0.0
    %7276 = vmatpush1.msra.mxu0 0.0
    %7277 = vmatprep.subr.mxu0 0.0
    %7278 = vmatpush1.msra.mxu0 0.0
    %7279 = vmatprep.mubr.f32.mxu0 0.0
    %v7280 = vand.u32 %v6956, 4294901760
    %v7281 = vsub.f32 %v6956, %v7280
    %v7282 = vand.u32 %v7281, 4294901760
    %7283 = vmatmul.mubr.f32.gmra.mrb[0].mxu0 %v7282
    %v7284 = vpop.f32.mrb[0].mxu0
    %v7285 = vadd.f32 %v7207, %v7284
    %v7286 = vpop.f32.mrb[0].mxu0
    %v7287 = vadd.f32 %v7209, %v7286
    %7288 = vdwg.mxu0
    %v7289 = vand.u32 %v88, 4294901760
    %v7290 = vsub.f32 %v88, %v7289
    %v7291 = vand.u32 %v7290, 4294901760
    %7292 = vmatprep.subr.mxu0 %v7291
    %v7293 = vand.u32 %v87, 4294901760
    %v7294 = vsub.f32 %v87, %v7293
    %v7295 = vand.u32 %v7294, 4294901760
    %7296 = vmatpush1.msra.mxu0 %v7295
    %v7297 = vand.u32 %v90, 4294901760
    %v7298 = vsub.f32 %v90, %v7297
    %v7299 = vand.u32 %v7298, 4294901760
    %7300 = vmatprep.subr.mxu0 %v7299
    %v7301 = vand.u32 %v89, 4294901760
    %v7302 = vsub.f32 %v89, %v7301
    %v7303 = vand.u32 %v7302, 4294901760
    %7304 = vmatpush1.msra.mxu0 %v7303
    %7305 = vmatprep.subr.mxu0 0.0
    %7306 = vmatpush1.msra.mxu0 0.0
    %7307 = vmatprep.subr.mxu0 0.0
    %7308 = vmatpush1.msra.mxu0 0.0
    %7309 = vmatprep.subr.mxu0 0.0
    %7310 = vmatpush1.msra.mxu0 0.0
    %7311 = vmatprep.subr.mxu0 0.0
    %7312 = vmatpush1.msra.mxu0 0.0
    %7313 = vmatprep.subr.mxu0 0.0
    %7314 = vmatpush1.msra.mxu0 0.0
    %7315 = vmatprep.subr.mxu0 0.0
    %7316 = vmatpush1.msra.mxu0 0.0
    %7317 = vmatprep.subr.mxu0 0.0
    %7318 = vmatpush1.msra.mxu0 0.0
    %7319 = vmatprep.subr.mxu0 0.0
    %7320 = vmatpush1.msra.mxu0 0.0
    %7321 = vmatprep.subr.mxu0 0.0
    %7322 = vmatpush1.msra.mxu0 0.0
    %7323 = vmatprep.subr.mxu0 0.0
    %7324 = vmatpush1.msra.mxu0 0.0
    %7325 = vmatprep.subr.mxu0 0.0
    %7326 = vmatpush1.msra.mxu0 0.0
    %7327 = vmatprep.subr.mxu0 0.0
    %7328 = vmatpush1.msra.mxu0 0.0
    %7329 = vmatprep.subr.mxu0 0.0
    %7330 = vmatpush1.msra.mxu0 0.0
    %7331 = vmatprep.subr.mxu0 0.0
    %7332 = vmatpush1.msra.mxu0 0.0
    %7333 = vmatprep.subr.mxu0 0.0
    %7334 = vmatpush1.msra.mxu0 0.0
    %7335 = vmatprep.subr.mxu0 0.0
    %7336 = vmatpush1.msra.mxu0 0.0
    %7337 = vmatprep.subr.mxu0 0.0
    %7338 = vmatpush1.msra.mxu0 0.0
    %7339 = vmatprep.subr.mxu0 0.0
    %7340 = vmatpush1.msra.mxu0 0.0
    %7341 = vmatprep.subr.mxu0 0.0
    %7342 = vmatpush1.msra.mxu0 0.0
    %7343 = vmatprep.subr.mxu0 0.0
    %7344 = vmatpush1.msra.mxu0 0.0
    %7345 = vmatprep.subr.mxu0 0.0
    %7346 = vmatpush1.msra.mxu0 0.0
    %7347 = vmatprep.subr.mxu0 0.0
    %7348 = vmatpush1.msra.mxu0 0.0
    %7349 = vmatprep.subr.mxu0 0.0
    %7350 = vmatpush1.msra.mxu0 0.0
    %7351 = vmatprep.subr.mxu0 0.0
    %7352 = vmatpush1.msra.mxu0 0.0
    %7353 = vmatprep.subr.mxu0 0.0
    %7354 = vmatpush1.msra.mxu0 0.0
    %7355 = vmatprep.subr.mxu0 0.0
    %7356 = vmatpush1.msra.mxu0 0.0
    %7357 = vmatprep.subr.mxu0 0.0
    %7358 = vmatpush1.msra.mxu0 0.0
    %7359 = vmatprep.subr.mxu0 0.0
    %7360 = vmatpush1.msra.mxu0 0.0
    %7361 = vmatprep.subr.mxu0 0.0
    %7362 = vmatpush1.msra.mxu0 0.0
    %7363 = vmatprep.subr.mxu0 0.0
    %7364 = vmatpush1.msra.mxu0 0.0
    %7365 = vmatprep.mubr.f32.mxu0 0.0
    %v7366 = vand.u32 %v6956, 4294901760
    %7367 = vmatmul.mubr.f32.gmra.mrb[0].mxu0 %v7366
    %v7368 = vpop.f32.mrb[0].mxu0
    %v7369 = vadd.f32 %v7285, %v7368
    %v7370 = vpop.f32.mrb[0].mxu0
    %v7371 = vadd.f32 %v7287, %v7370
    %7372 = vdwg.mxu0
    %v7373 = vand.u32 %v88, 4294901760
    %7374 = vmatprep.subr.mxu0 %v7373
    %v7375 = vand.u32 %v87, 4294901760
    %7376 = vmatpush1.msra.mxu0 %v7375
    %v7377 = vand.u32 %v90, 4294901760
    %7378 = vmatprep.subr.mxu0 %v7377
    %v7379 = vand.u32 %v89, 4294901760
    %7380 = vmatpush1.msra.mxu0 %v7379
    %7381 = vmatprep.subr.mxu0 0.0
    %7382 = vmatpush1.msra.mxu0 0.0
    %7383 = vmatprep.subr.mxu0 0.0
    %7384 = vmatpush1.msra.mxu0 0.0
    %7385 = vmatprep.subr.mxu0 0.0
    %7386 = vmatpush1.msra.mxu0 0.0
    %7387 = vmatprep.subr.mxu0 0.0
    %7388 = vmatpush1.msra.mxu0 0.0
    %7389 = vmatprep.subr.mxu0 0.0
    %7390 = vmatpush1.msra.mxu0 0.0
    %7391 = vmatprep.subr.mxu0 0.0
    %7392 = vmatpush1.msra.mxu0 0.0
    %7393 = vmatprep.subr.mxu0 0.0
    %7394 = vmatpush1.msra.mxu0 0.0
    %7395 = vmatprep.subr.mxu0 0.0
    %7396 = vmatpush1.msra.mxu0 0.0
    %7397 = vmatprep.subr.mxu0 0.0
    %7398 = vmatpush1.msra.mxu0 0.0
    %7399 = vmatprep.subr.mxu0 0.0
    %7400 = vmatpush1.msra.mxu0 0.0
    %7401 = vmatprep.subr.mxu0 0.0
    %7402 = vmatpush1.msra.mxu0 0.0
    %7403 = vmatprep.subr.mxu0 0.0
    %7404 = vmatpush1.msra.mxu0 0.0
    %7405 = vmatprep.subr.mxu0 0.0
    %7406 = vmatpush1.msra.mxu0 0.0
    %7407 = vmatprep.subr.mxu0 0.0
    %7408 = vmatpush1.msra.mxu0 0.0
    %7409 = vmatprep.subr.mxu0 0.0
    %7410 = vmatpush1.msra.mxu0 0.0
    %7411 = vmatprep.subr.mxu0 0.0
    %7412 = vmatpush1.msra.mxu0 0.0
    %7413 = vmatprep.subr.mxu0 0.0
    %7414 = vmatpush1.msra.mxu0 0.0
    %7415 = vmatprep.subr.mxu0 0.0
    %7416 = vmatpush1.msra.mxu0 0.0
    %7417 = vmatprep.subr.mxu0 0.0
    %7418 = vmatpush1.msra.mxu0 0.0
    %7419 = vmatprep.subr.mxu0 0.0
    %7420 = vmatpush1.msra.mxu0 0.0
    %7421 = vmatprep.subr.mxu0 0.0
    %7422 = vmatpush1.msra.mxu0 0.0
    %7423 = vmatprep.subr.mxu0 0.0
    %7424 = vmatpush1.msra.mxu0 0.0
    %7425 = vmatprep.subr.mxu0 0.0
    %7426 = vmatpush1.msra.mxu0 0.0
    %7427 = vmatprep.subr.mxu0 0.0
    %7428 = vmatpush1.msra.mxu0 0.0
    %7429 = vmatprep.subr.mxu0 0.0
    %7430 = vmatpush1.msra.mxu0 0.0
    %7431 = vmatprep.subr.mxu0 0.0
    %7432 = vmatpush1.msra.mxu0 0.0
    %7433 = vmatprep.subr.mxu0 0.0
    %7434 = vmatpush1.msra.mxu0 0.0
    %7435 = vmatprep.subr.mxu0 0.0
    %7436 = vmatpush1.msra.mxu0 0.0
    %7437 = vmatprep.subr.mxu0 0.0
    %7438 = vmatpush1.msra.mxu0 0.0
    %7439 = vmatprep.subr.mxu0 0.0
    %7440 = vmatpush1.msra.mxu0 0.0
    %7441 = vmatprep.mubr.f32.mxu0 0.0
    %v7442 = vand.u32 %v6956, 4294901760
    %7443 = vmatmul.mubr.f32.gmra.mrb[0].mxu0 %v7442
    %v7444 = vpop.f32.mrb[0].mxu0
    %v7445 = vadd.f32 %v7369, %v7444
    %v7446 = vpop.f32.mrb[0].mxu0
    %v7447 = vadd.f32 %v7371, %v7446
    %7448 = vdwg.mxu0
    %7450 = vrot.lane.b32.xlu0 %v6953, 48
    %v7451 = vpop.permute.xlu0 %7450
    %v7452 = vsel %vm4516, %v7451, 0
    %v7454 = vand.u32 %v92, 4294901760
    %7455 = vmatprep.subr.mxu0 %v7454
    %v7456 = vand.u32 %v91, 4294901760
    %7457 = vmatpush1.msra.mxu0 %v7456
    %v7458 = vand.u32 %v94, 4294901760
    %7459 = vmatprep.subr.mxu0 %v7458
    %v7460 = vand.u32 %v93, 4294901760
    %7461 = vmatpush1.msra.mxu0 %v7460
    %7462 = vmatprep.subr.mxu0 0.0
    %7463 = vmatpush1.msra.mxu0 0.0
    %7464 = vmatprep.subr.mxu0 0.0
    %7465 = vmatpush1.msra.mxu0 0.0
    %7466 = vmatprep.subr.mxu0 0.0
    %7467 = vmatpush1.msra.mxu0 0.0
    %7468 = vmatprep.subr.mxu0 0.0
    %7469 = vmatpush1.msra.mxu0 0.0
    %7470 = vmatprep.subr.mxu0 0.0
    %7471 = vmatpush1.msra.mxu0 0.0
    %7472 = vmatprep.subr.mxu0 0.0
    %7473 = vmatpush1.msra.mxu0 0.0
    %7474 = vmatprep.subr.mxu0 0.0
    %7475 = vmatpush1.msra.mxu0 0.0
    %7476 = vmatprep.subr.mxu0 0.0
    %7477 = vmatpush1.msra.mxu0 0.0
    %7478 = vmatprep.subr.mxu0 0.0
    %7479 = vmatpush1.msra.mxu0 0.0
    %7480 = vmatprep.subr.mxu0 0.0
    %7481 = vmatpush1.msra.mxu0 0.0
    %7482 = vmatprep.subr.mxu0 0.0
    %7483 = vmatpush1.msra.mxu0 0.0
    %7484 = vmatprep.subr.mxu0 0.0
    %7485 = vmatpush1.msra.mxu0 0.0
    %7486 = vmatprep.subr.mxu0 0.0
    %7487 = vmatpush1.msra.mxu0 0.0
    %7488 = vmatprep.subr.mxu0 0.0
    %7489 = vmatpush1.msra.mxu0 0.0
    %7490 = vmatprep.subr.mxu0 0.0
    %7491 = vmatpush1.msra.mxu0 0.0
    %7492 = vmatprep.subr.mxu0 0.0
    %7493 = vmatpush1.msra.mxu0 0.0
    %7494 = vmatprep.subr.mxu0 0.0
    %7495 = vmatpush1.msra.mxu0 0.0
    %7496 = vmatprep.subr.mxu0 0.0
    %7497 = vmatpush1.msra.mxu0 0.0
    %7498 = vmatprep.subr.mxu0 0.0
    %7499 = vmatpush1.msra.mxu0 0.0
    %7500 = vmatprep.subr.mxu0 0.0
    %7501 = vmatpush1.msra.mxu0 0.0
    %7502 = vmatprep.subr.mxu0 0.0
    %7503 = vmatpush1.msra.mxu0 0.0
    %7504 = vmatprep.subr.mxu0 0.0
    %7505 = vmatpush1.msra.mxu0 0.0
    %7506 = vmatprep.subr.mxu0 0.0
    %7507 = vmatpush1.msra.mxu0 0.0
    %7508 = vmatprep.subr.mxu0 0.0
    %7509 = vmatpush1.msra.mxu0 0.0
    %7510 = vmatprep.subr.mxu0 0.0
    %7511 = vmatpush1.msra.mxu0 0.0
    %7512 = vmatprep.subr.mxu0 0.0
    %7513 = vmatpush1.msra.mxu0 0.0
    %7514 = vmatprep.subr.mxu0 0.0
    %7515 = vmatpush1.msra.mxu0 0.0
    %7516 = vmatprep.subr.mxu0 0.0
    %7517 = vmatpush1.msra.mxu0 0.0
    %7518 = vmatprep.subr.mxu0 0.0
    %7519 = vmatpush1.msra.mxu0 0.0
    %7520 = vmatprep.subr.mxu0 0.0
    %7521 = vmatpush1.msra.mxu0 0.0
    %7522 = vmatprep.mubr.f32.mxu0 0.0
    %v7523 = vand.u32 %v7452, 4294901760
    %v7524 = vsub.f32 %v7452, %v7523
    %v7525 = vand.u32 %v7524, 4294901760
    %v7526 = vsub.f32 %v7524, %v7525
    %v7527 = vand.u32 %v7526, 4294901760
    %7528 = vmatmul.mubr.f32.gmra.mrb[0].mxu0 %v7527
    %v7529 = vpop.f32.mrb[0].mxu0
    %v7530 = vadd.f32 0.0, %v7529
    %v7531 = vpop.f32.mrb[0].mxu0
    %v7532 = vadd.f32 0.0, %v7531
    %7533 = vdwg.mxu0
    %v7534 = vand.u32 %v92, 4294901760
    %v7535 = vsub.f32 %v92, %v7534
    %v7536 = vand.u32 %v7535, 4294901760
    %v7537 = vsub.f32 %v7535, %v7536
    %v7538 = vand.u32 %v7537, 4294901760
    %7539 = vmatprep.subr.mxu0 %v7538
    %v7540 = vand.u32 %v91, 4294901760
    %v7541 = vsub.f32 %v91, %v7540
    %v7542 = vand.u32 %v7541, 4294901760
    %v7543 = vsub.f32 %v7541, %v7542
    %v7544 = vand.u32 %v7543, 4294901760
    %7545 = vmatpush1.msra.mxu0 %v7544
    %v7546 = vand.u32 %v94, 4294901760
    %v7547 = vsub.f32 %v94, %v7546
    %v7548 = vand.u32 %v7547, 4294901760
    %v7549 = vsub.f32 %v7547, %v7548
    %v7550 = vand.u32 %v7549, 4294901760
    %7551 = vmatprep.subr.mxu0 %v7550
    %v7552 = vand.u32 %v93, 4294901760
    %v7553 = vsub.f32 %v93, %v7552
    %v7554 = vand.u32 %v7553, 4294901760
    %v7555 = vsub.f32 %v7553, %v7554
    %v7556 = vand.u32 %v7555, 4294901760
    %7557 = vmatpush1.msra.mxu0 %v7556
    %7558 = vmatprep.subr.mxu0 0.0
    %7559 = vmatpush1.msra.mxu0 0.0
    %7560 = vmatprep.subr.mxu0 0.0
    %7561 = vmatpush1.msra.mxu0 0.0
    %7562 = vmatprep.subr.mxu0 0.0
    %7563 = vmatpush1.msra.mxu0 0.0
    %7564 = vmatprep.subr.mxu0 0.0
    %7565 = vmatpush1.msra.mxu0 0.0
    %7566 = vmatprep.subr.mxu0 0.0
    %7567 = vmatpush1.msra.mxu0 0.0
    %7568 = vmatprep.subr.mxu0 0.0
    %7569 = vmatpush1.msra.mxu0 0.0
    %7570 = vmatprep.subr.mxu0 0.0
    %7571 = vmatpush1.msra.mxu0 0.0
    %7572 = vmatprep.subr.mxu0 0.0
    %7573 = vmatpush1.msra.mxu0 0.0
    %7574 = vmatprep.subr.mxu0 0.0
    %7575 = vmatpush1.msra.mxu0 0.0
    %7576 = vmatprep.subr.mxu0 0.0
    %7577 = vmatpush1.msra.mxu0 0.0
    %7578 = vmatprep.subr.mxu0 0.0
    %7579 = vmatpush1.msra.mxu0 0.0
    %7580 = vmatprep.subr.mxu0 0.0
    %7581 = vmatpush1.msra.mxu0 0.0
    %7582 = vmatprep.subr.mxu0 0.0
    %7583 = vmatpush1.msra.mxu0 0.0
    %7584 = vmatprep.subr.mxu0 0.0
    %7585 = vmatpush1.msra.mxu0 0.0
    %7586 = vmatprep.subr.mxu0 0.0
    %7587 = vmatpush1.msra.mxu0 0.0
    %7588 = vmatprep.subr.mxu0 0.0
    %7589 = vmatpush1.msra.mxu0 0.0
    %7590 = vmatprep.subr.mxu0 0.0
    %7591 = vmatpush1.msra.mxu0 0.0
    %7592 = vmatprep.subr.mxu0 0.0
    %7593 = vmatpush1.msra.mxu0 0.0
    %7594 = vmatprep.subr.mxu0 0.0
    %7595 = vmatpush1.msra.mxu0 0.0
    %7596 = vmatprep.subr.mxu0 0.0
    %7597 = vmatpush1.msra.mxu0 0.0
    %7598 = vmatprep.subr.mxu0 0.0
    %7599 = vmatpush1.msra.mxu0 0.0
    %7600 = vmatprep.subr.mxu0 0.0
    %7601 = vmatpush1.msra.mxu0 0.0
    %7602 = vmatprep.subr.mxu0 0.0
    %7603 = vmatpush1.msra.mxu0 0.0
    %7604 = vmatprep.subr.mxu0 0.0
    %7605 = vmatpush1.msra.mxu0 0.0
    %7606 = vmatprep.subr.mxu0 0.0
    %7607 = vmatpush1.msra.mxu0 0.0
    %7608 = vmatprep.subr.mxu0 0.0
    %7609 = vmatpush1.msra.mxu0 0.0
    %7610 = vmatprep.subr.mxu0 0.0
    %7611 = vmatpush1.msra.mxu0 0.0
    %7612 = vmatprep.subr.mxu0 0.0
    %7613 = vmatpush1.msra.mxu0 0.0
    %7614 = vmatprep.subr.mxu0 0.0
    %7615 = vmatpush1.msra.mxu0 0.0
    %7616 = vmatprep.subr.mxu0 0.0
    %7617 = vmatpush1.msra.mxu0 0.0
    %7618 = vmatprep.mubr.f32.mxu0 0.0
    %v7619 = vand.u32 %v7452, 4294901760
    %7620 = vmatmul.mubr.f32.gmra.mrb[0].mxu0 %v7619
    %v7621 = vpop.f32.mrb[0].mxu0
    %v7622 = vadd.f32 %v7530, %v7621
    %v7623 = vpop.f32.mrb[0].mxu0
    %v7624 = vadd.f32 %v7532, %v7623
    %7625 = vdwg.mxu0
    %v7626 = vand.u32 %v92, 4294901760
    %v7627 = vsub.f32 %v92, %v7626
    %7628 = vmatprep.subr.mxu0 %v7627
    %v7629 = vand.u32 %v91, 4294901760
    %v7630 = vsub.f32 %v91, %v7629
    %7631 = vmatpush1.msra.mxu0 %v7630
    %v7632 = vand.u32 %v94, 4294901760
    %v7633 = vsub.f32 %v94, %v7632
    %7634 = vmatprep.subr.mxu0 %v7633
    %v7635 = vand.u32 %v93, 4294901760
    %v7636 = vsub.f32 %v93, %v7635
    %7637 = vmatpush1.msra.mxu0 %v7636
    %7638 = vmatprep.subr.mxu0 0.0
    %7639 = vmatpush1.msra.mxu0 0.0
    %7640 = vmatprep.subr.mxu0 0.0
    %7641 = vmatpush1.msra.mxu0 0.0
    %7642 = vmatprep.subr.mxu0 0.0
    %7643 = vmatpush1.msra.mxu0 0.0
    %7644 = vmatprep.subr.mxu0 0.0
    %7645 = vmatpush1.msra.mxu0 0.0
    %7646 = vmatprep.subr.mxu0 0.0
    %7647 = vmatpush1.msra.mxu0 0.0
    %7648 = vmatprep.subr.mxu0 0.0
    %7649 = vmatpush1.msra.mxu0 0.0
    %7650 = vmatprep.subr.mxu0 0.0
    %7651 = vmatpush1.msra.mxu0 0.0
    %7652 = vmatprep.subr.mxu0 0.0
    %7653 = vmatpush1.msra.mxu0 0.0
    %7654 = vmatprep.subr.mxu0 0.0
    %7655 = vmatpush1.msra.mxu0 0.0
    %7656 = vmatprep.subr.mxu0 0.0
    %7657 = vmatpush1.msra.mxu0 0.0
    %7658 = vmatprep.subr.mxu0 0.0
    %7659 = vmatpush1.msra.mxu0 0.0
    %7660 = vmatprep.subr.mxu0 0.0
    %7661 = vmatpush1.msra.mxu0 0.0
    %7662 = vmatprep.subr.mxu0 0.0
    %7663 = vmatpush1.msra.mxu0 0.0
    %7664 = vmatprep.subr.mxu0 0.0
    %7665 = vmatpush1.msra.mxu0 0.0
    %7666 = vmatprep.subr.mxu0 0.0
    %7667 = vmatpush1.msra.mxu0 0.0
    %7668 = vmatprep.subr.mxu0 0.0
    %7669 = vmatpush1.msra.mxu0 0.0
    %7670 = vmatprep.subr.mxu0 0.0
    %7671 = vmatpush1.msra.mxu0 0.0
    %7672 = vmatprep.subr.mxu0 0.0
    %7673 = vmatpush1.msra.mxu0 0.0
    %7674 = vmatprep.subr.mxu0 0.0
    %7675 = vmatpush1.msra.mxu0 0.0
    %7676 = vmatprep.subr.mxu0 0.0
    %7677 = vmatpush1.msra.mxu0 0.0
    %7678 = vmatprep.subr.mxu0 0.0
    %7679 = vmatpush1.msra.mxu0 0.0
    %7680 = vmatprep.subr.mxu0 0.0
    %7681 = vmatpush1.msra.mxu0 0.0
    %7682 = vmatprep.subr.mxu0 0.0
    %7683 = vmatpush1.msra.mxu0 0.0
    %7684 = vmatprep.subr.mxu0 0.0
    %7685 = vmatpush1.msra.mxu0 0.0
    %7686 = vmatprep.subr.mxu0 0.0
    %7687 = vmatpush1.msra.mxu0 0.0
    %7688 = vmatprep.subr.mxu0 0.0
    %7689 = vmatpush1.msra.mxu0 0.0
    %7690 = vmatprep.subr.mxu0 0.0
    %7691 = vmatpush1.msra.mxu0 0.0
    %7692 = vmatprep.subr.mxu0 0.0
    %7693 = vmatpush1.msra.mxu0 0.0
    %7694 = vmatprep.subr.mxu0 0.0
    %7695 = vmatpush1.msra.mxu0 0.0
    %7696 = vmatprep.subr.mxu0 0.0
    %7697 = vmatpush1.msra.mxu0 0.0
    %7698 = vmatprep.mubr.f32.mxu0 0.0
    %v7699 = vand.u32 %v7452, 4294901760
    %v7700 = vsub.f32 %v7452, %v7699
    %7701 = vmatmul.mubr.f32.gmra.mrb[0].mxu0 %v7700
    %v7702 = vpop.f32.mrb[0].mxu0
    %v7703 = vadd.f32 %v7622, %v7702
    %v7704 = vpop.f32.mrb[0].mxu0
    %v7705 = vadd.f32 %v7624, %v7704
    %7706 = vdwg.mxu0
    %v7707 = vand.u32 %v92, 4294901760
    %7708 = vmatprep.subr.mxu0 %v7707
    %v7709 = vand.u32 %v91, 4294901760
    %7710 = vmatpush1.msra.mxu0 %v7709
    %v7711 = vand.u32 %v94, 4294901760
    %7712 = vmatprep.subr.mxu0 %v7711
    %v7713 = vand.u32 %v93, 4294901760
    %7714 = vmatpush1.msra.mxu0 %v7713
    %7715 = vmatprep.subr.mxu0 0.0
    %7716 = vmatpush1.msra.mxu0 0.0
    %7717 = vmatprep.subr.mxu0 0.0
    %7718 = vmatpush1.msra.mxu0 0.0
    %7719 = vmatprep.subr.mxu0 0.0
    %7720 = vmatpush1.msra.mxu0 0.0
    %7721 = vmatprep.subr.mxu0 0.0
    %7722 = vmatpush1.msra.mxu0 0.0
    %7723 = vmatprep.subr.mxu0 0.0
    %7724 = vmatpush1.msra.mxu0 0.0
    %7725 = vmatprep.subr.mxu0 0.0
    %7726 = vmatpush1.msra.mxu0 0.0
    %7727 = vmatprep.subr.mxu0 0.0
    %7728 = vmatpush1.msra.mxu0 0.0
    %7729 = vmatprep.subr.mxu0 0.0
    %7730 = vmatpush1.msra.mxu0 0.0
    %7731 = vmatprep.subr.mxu0 0.0
    %7732 = vmatpush1.msra.mxu0 0.0
    %7733 = vmatprep.subr.mxu0 0.0
    %7734 = vmatpush1.msra.mxu0 0.0
    %7735 = vmatprep.subr.mxu0 0.0
    %7736 = vmatpush1.msra.mxu0 0.0
    %7737 = vmatprep.subr.mxu0 0.0
    %7738 = vmatpush1.msra.mxu0 0.0
    %7739 = vmatprep.subr.mxu0 0.0
    %7740 = vmatpush1.msra.mxu0 0.0
    %7741 = vmatprep.subr.mxu0 0.0
    %7742 = vmatpush1.msra.mxu0 0.0
    %7743 = vmatprep.subr.mxu0 0.0
    %7744 = vmatpush1.msra.mxu0 0.0
    %7745 = vmatprep.subr.mxu0 0.0
    %7746 = vmatpush1.msra.mxu0 0.0
    %7747 = vmatprep.subr.mxu0 0.0
    %7748 = vmatpush1.msra.mxu0 0.0
    %7749 = vmatprep.subr.mxu0 0.0
    %7750 = vmatpush1.msra.mxu0 0.0
    %7751 = vmatprep.subr.mxu0 0.0
    %7752 = vmatpush1.msra.mxu0 0.0
    %7753 = vmatprep.subr.mxu0 0.0
    %7754 = vmatpush1.msra.mxu0 0.0
    %7755 = vmatprep.subr.mxu0 0.0
    %7756 = vmatpush1.msra.mxu0 0.0
    %7757 = vmatprep.subr.mxu0 0.0
    %7758 = vmatpush1.msra.mxu0 0.0
    %7759 = vmatprep.subr.mxu0 0.0
    %7760 = vmatpush1.msra.mxu0 0.0
    %7761 = vmatprep.subr.mxu0 0.0
    %7762 = vmatpush1.msra.mxu0 0.0
    %7763 = vmatprep.subr.mxu0 0.0
    %7764 = vmatpush1.msra.mxu0 0.0
    %7765 = vmatprep.subr.mxu0 0.0
    %7766 = vmatpush1.msra.mxu0 0.0
    %7767 = vmatprep.subr.mxu0 0.0
    %7768 = vmatpush1.msra.mxu0 0.0
    %7769 = vmatprep.subr.mxu0 0.0
    %7770 = vmatpush1.msra.mxu0 0.0
    %7771 = vmatprep.subr.mxu0 0.0
    %7772 = vmatpush1.msra.mxu0 0.0
    %7773 = vmatprep.subr.mxu0 0.0
    %7774 = vmatpush1.msra.mxu0 0.0
    %7775 = vmatprep.mubr.f32.mxu0 0.0
    %v7776 = vand.u32 %v7452, 4294901760
    %v7777 = vsub.f32 %v7452, %v7776
    %v7778 = vand.u32 %v7777, 4294901760
    %7779 = vmatmul.mubr.f32.gmra.mrb[0].mxu0 %v7778
    %v7780 = vpop.f32.mrb[0].mxu0
    %v7781 = vadd.f32 %v7703, %v7780
    %v7782 = vpop.f32.mrb[0].mxu0
    %v7783 = vadd.f32 %v7705, %v7782
    %7784 = vdwg.mxu0
    %v7785 = vand.u32 %v92, 4294901760
    %v7786 = vsub.f32 %v92, %v7785
    %v7787 = vand.u32 %v7786, 4294901760
    %7788 = vmatprep.subr.mxu0 %v7787
    %v7789 = vand.u32 %v91, 4294901760
    %v7790 = vsub.f32 %v91, %v7789
    %v7791 = vand.u32 %v7790, 4294901760
    %7792 = vmatpush1.msra.mxu0 %v7791
    %v7793 = vand.u32 %v94, 4294901760
    %v7794 = vsub.f32 %v94, %v7793
    %v7795 = vand.u32 %v7794, 4294901760
    %7796 = vmatprep.subr.mxu0 %v7795
    %v7797 = vand.u32 %v93, 4294901760
    %v7798 = vsub.f32 %v93, %v7797
    %v7799 = vand.u32 %v7798, 4294901760
    %7800 = vmatpush1.msra.mxu0 %v7799
    %7801 = vmatprep.subr.mxu0 0.0
    %7802 = vmatpush1.msra.mxu0 0.0
    %7803 = vmatprep.subr.mxu0 0.0
    %7804 = vmatpush1.msra.mxu0 0.0
    %7805 = vmatprep.subr.mxu0 0.0
    %7806 = vmatpush1.msra.mxu0 0.0
    %7807 = vmatprep.subr.mxu0 0.0
    %7808 = vmatpush1.msra.mxu0 0.0
    %7809 = vmatprep.subr.mxu0 0.0
    %7810 = vmatpush1.msra.mxu0 0.0
    %7811 = vmatprep.subr.mxu0 0.0
    %7812 = vmatpush1.msra.mxu0 0.0
    %7813 = vmatprep.subr.mxu0 0.0
    %7814 = vmatpush1.msra.mxu0 0.0
    %7815 = vmatprep.subr.mxu0 0.0
    %7816 = vmatpush1.msra.mxu0 0.0
    %7817 = vmatprep.subr.mxu0 0.0
    %7818 = vmatpush1.msra.mxu0 0.0
    %7819 = vmatprep.subr.mxu0 0.0
    %7820 = vmatpush1.msra.mxu0 0.0
    %7821 = vmatprep.subr.mxu0 0.0
    %7822 = vmatpush1.msra.mxu0 0.0
    %7823 = vmatprep.subr.mxu0 0.0
    %7824 = vmatpush1.msra.mxu0 0.0
    %7825 = vmatprep.subr.mxu0 0.0
    %7826 = vmatpush1.msra.mxu0 0.0
    %7827 = vmatprep.subr.mxu0 0.0
    %7828 = vmatpush1.msra.mxu0 0.0
    %7829 = vmatprep.subr.mxu0 0.0
    %7830 = vmatpush1.msra.mxu0 0.0
    %7831 = vmatprep.subr.mxu0 0.0
    %7832 = vmatpush1.msra.mxu0 0.0
    %7833 = vmatprep.subr.mxu0 0.0
    %7834 = vmatpush1.msra.mxu0 0.0
    %7835 = vmatprep.subr.mxu0 0.0
    %7836 = vmatpush1.msra.mxu0 0.0
    %7837 = vmatprep.subr.mxu0 0.0
    %7838 = vmatpush1.msra.mxu0 0.0
    %7839 = vmatprep.subr.mxu0 0.0
    %7840 = vmatpush1.msra.mxu0 0.0
    %7841 = vmatprep.subr.mxu0 0.0
    %7842 = vmatpush1.msra.mxu0 0.0
    %7843 = vmatprep.subr.mxu0 0.0
    %7844 = vmatpush1.msra.mxu0 0.0
    %7845 = vmatprep.subr.mxu0 0.0
    %7846 = vmatpush1.msra.mxu0 0.0
    %7847 = vmatprep.subr.mxu0 0.0
    %7848 = vmatpush1.msra.mxu0 0.0
    %7849 = vmatprep.subr.mxu0 0.0
    %7850 = vmatpush1.msra.mxu0 0.0
    %7851 = vmatprep.subr.mxu0 0.0
    %7852 = vmatpush1.msra.mxu0 0.0
    %7853 = vmatprep.subr.mxu0 0.0
    %7854 = vmatpush1.msra.mxu0 0.0
    %7855 = vmatprep.subr.mxu0 0.0
    %7856 = vmatpush1.msra.mxu0 0.0
    %7857 = vmatprep.subr.mxu0 0.0
    %7858 = vmatpush1.msra.mxu0 0.0
    %7859 = vmatprep.subr.mxu0 0.0
    %7860 = vmatpush1.msra.mxu0 0.0
    %7861 = vmatprep.mubr.f32.mxu0 0.0
    %v7862 = vand.u32 %v7452, 4294901760
    %7863 = vmatmul.mubr.f32.gmra.mrb[0].mxu0 %v7862
    %v7864 = vpop.f32.mrb[0].mxu0
    %v7865 = vadd.f32 %v7781, %v7864
    %v7866 = vpop.f32.mrb[0].mxu0
    %v7867 = vadd.f32 %v7783, %v7866
    %7868 = vdwg.mxu0
    %v7869 = vand.u32 %v92, 4294901760
    %7870 = vmatprep.subr.mxu0 %v7869
    %v7871 = vand.u32 %v91, 4294901760
    %7872 = vmatpush1.msra.mxu0 %v7871
    %v7873 = vand.u32 %v94, 4294901760
    %7874 = vmatprep.subr.mxu0 %v7873
    %v7875 = vand.u32 %v93, 4294901760
    %7876 = vmatpush1.msra.mxu0 %v7875
    %7877 = vmatprep.subr.mxu0 0.0
    %7878 = vmatpush1.msra.mxu0 0.0
    %7879 = vmatprep.subr.mxu0 0.0
    %7880 = vmatpush1.msra.mxu0 0.0
    %7881 = vmatprep.subr.mxu0 0.0
    %7882 = vmatpush1.msra.mxu0 0.0
    %7883 = vmatprep.subr.mxu0 0.0
    %7884 = vmatpush1.msra.mxu0 0.0
    %7885 = vmatprep.subr.mxu0 0.0
    %7886 = vmatpush1.msra.mxu0 0.0
    %7887 = vmatprep.subr.mxu0 0.0
    %7888 = vmatpush1.msra.mxu0 0.0
    %7889 = vmatprep.subr.mxu0 0.0
    %7890 = vmatpush1.msra.mxu0 0.0
    %7891 = vmatprep.subr.mxu0 0.0
    %7892 = vmatpush1.msra.mxu0 0.0
    %7893 = vmatprep.subr.mxu0 0.0
    %7894 = vmatpush1.msra.mxu0 0.0
    %7895 = vmatprep.subr.mxu0 0.0
    %7896 = vmatpush1.msra.mxu0 0.0
    %7897 = vmatprep.subr.mxu0 0.0
    %7898 = vmatpush1.msra.mxu0 0.0
    %7899 = vmatprep.subr.mxu0 0.0
    %7900 = vmatpush1.msra.mxu0 0.0
    %7901 = vmatprep.subr.mxu0 0.0
    %7902 = vmatpush1.msra.mxu0 0.0
    %7903 = vmatprep.subr.mxu0 0.0
    %7904 = vmatpush1.msra.mxu0 0.0
    %7905 = vmatprep.subr.mxu0 0.0
    %7906 = vmatpush1.msra.mxu0 0.0
    %7907 = vmatprep.subr.mxu0 0.0
    %7908 = vmatpush1.msra.mxu0 0.0
    %7909 = vmatprep.subr.mxu0 0.0
    %7910 = vmatpush1.msra.mxu0 0.0
    %7911 = vmatprep.subr.mxu0 0.0
    %7912 = vmatpush1.msra.mxu0 0.0
    %7913 = vmatprep.subr.mxu0 0.0
    %7914 = vmatpush1.msra.mxu0 0.0
    %7915 = vmatprep.subr.mxu0 0.0
    %7916 = vmatpush1.msra.mxu0 0.0
    %7917 = vmatprep.subr.mxu0 0.0
    %7918 = vmatpush1.msra.mxu0 0.0
    %7919 = vmatprep.subr.mxu0 0.0
    %7920 = vmatpush1.msra.mxu0 0.0
    %7921 = vmatprep.subr.mxu0 0.0
    %7922 = vmatpush1.msra.mxu0 0.0
    %7923 = vmatprep.subr.mxu0 0.0
    %7924 = vmatpush1.msra.mxu0 0.0
    %7925 = vmatprep.subr.mxu0 0.0
    %7926 = vmatpush1.msra.mxu0 0.0
    %7927 = vmatprep.subr.mxu0 0.0
    %7928 = vmatpush1.msra.mxu0 0.0
    %7929 = vmatprep.subr.mxu0 0.0
    %7930 = vmatpush1.msra.mxu0 0.0
    %7931 = vmatprep.subr.mxu0 0.0
    %7932 = vmatpush1.msra.mxu0 0.0
    %7933 = vmatprep.subr.mxu0 0.0
    %7934 = vmatpush1.msra.mxu0 0.0
    %7935 = vmatprep.subr.mxu0 0.0
    %7936 = vmatpush1.msra.mxu0 0.0
    %7937 = vmatprep.mubr.f32.mxu0 0.0
    %v7938 = vand.u32 %v7452, 4294901760
    %7939 = vmatmul.mubr.f32.gmra.mrb[0].mxu0 %v7938
    %v7940 = vpop.f32.mrb[0].mxu0
    %v7941 = vadd.f32 %v7865, %v7940
    %v7942 = vpop.f32.mrb[0].mxu0
    %v7943 = vadd.f32 %v7867, %v7942
    %7944 = vdwg.mxu0
    %v7945 = vmul.f32 %v7445, %v7941
    %v7946 = vmul.f32 %v7447, %v7943
    %v7947 = vld [vmem:[#allocation2 + $0x8] sm:$0xf]
    %v7950 = vcombine.low %v7945, %v7946
    %v7952 = vunpack.c.l.s4 1983009808
    %v7953 = vunpack.c.0.s8 %v7952
    %v7954 = vlaneseq
    %v7955 = vshrl.u32 %v7954, 7
    %v7956 = vsub.s32 %v7953, %v7955
    %v7957 = vrot.slane %v7950, %v7956
    %v7959 = vmul.f32 %v7947, %v7957
    %7960 = vst [vmem:[#allocation8 + $0x8] sm:$0xf] %v7959
    %7961 = vset.pattern.permute.xlu0 3
    %7962 = vperm.xlu0 %7961, %v4925
    %v7963 = vpop.permute.xlu0 %7962
    %v7965 = vmul.f32 %v4377, %v7963
    %7966 = vrot.lane.b32.xlu0 %v4377, 32
    %v7967 = vpop.permute.xlu0 %7966
    %v7968 = vsel %vm4516, %v7967, 0
    %v7970 = vand.u32 %v88, 4294901760
    %7971 = vmatprep.subr.mxu0 %v7970
    %v7972 = vand.u32 %v87, 4294901760
    %7973 = vmatpush1.msra.mxu0 %v7972
    %v7974 = vand.u32 %v90, 4294901760
    %7975 = vmatprep.subr.mxu0 %v7974
    %v7976 = vand.u32 %v89, 4294901760
    %7977 = vmatpush1.msra.mxu0 %v7976
    %7978 = vmatprep.subr.mxu0 0.0
    %7979 = vmatpush1.msra.mxu0 0.0
    %7980 = vmatprep.subr.mxu0 0.0
    %7981 = vmatpush1.msra.mxu0 0.0
    %7982 = vmatprep.subr.mxu0 0.0
    %7983 = vmatpush1.msra.mxu0 0.0
    %7984 = vmatprep.subr.mxu0 0.0
    %7985 = vmatpush1.msra.mxu0 0.0
    %7986 = vmatprep.subr.mxu0 0.0
    %7987 = vmatpush1.msra.mxu0 0.0
    %7988 = vmatprep.subr.mxu0 0.0
    %7989 = vmatpush1.msra.mxu0 0.0
    %7990 = vmatprep.subr.mxu0 0.0
    %7991 = vmatpush1.msra.mxu0 0.0
    %7992 = vmatprep.subr.mxu0 0.0
    %7993 = vmatpush1.msra.mxu0 0.0
    %7994 = vmatprep.subr.mxu0 0.0
    %7995 = vmatpush1.msra.mxu0 0.0
    %7996 = vmatprep.subr.mxu0 0.0
    %7997 = vmatpush1.msra.mxu0 0.0
    %7998 = vmatprep.subr.mxu0 0.0
    %7999 = vmatpush1.msra.mxu0 0.0
    %8000 = vmatprep.subr.mxu0 0.0
    %8001 = vmatpush1.msra.mxu0 0.0
    %8002 = vmatprep.subr.mxu0 0.0
    %8003 = vmatpush1.msra.mxu0 0.0
    %8004 = vmatprep.subr.mxu0 0.0
    %8005 = vmatpush1.msra.mxu0 0.0
    %8006 = vmatprep.subr.mxu0 0.0
    %8007 = vmatpush1.msra.mxu0 0.0
    %8008 = vmatprep.subr.mxu0 0.0
    %8009 = vmatpush1.msra.mxu0 0.0
    %8010 = vmatprep.subr.mxu0 0.0
    %8011 = vmatpush1.msra.mxu0 0.0
    %8012 = vmatprep.subr.mxu0 0.0
    %8013 = vmatpush1.msra.mxu0 0.0
    %8014 = vmatprep.subr.mxu0 0.0
    %8015 = vmatpush1.msra.mxu0 0.0
    %8016 = vmatprep.subr.mxu0 0.0
    %8017 = vmatpush1.msra.mxu0 0.0
    %8018 = vmatprep.subr.mxu0 0.0
    %8019 = vmatpush1.msra.mxu0 0.0
    %8020 = vmatprep.subr.mxu0 0.0
    %8021 = vmatpush1.msra.mxu0 0.0
    %8022 = vmatprep.subr.mxu0 0.0
    %8023 = vmatpush1.msra.mxu0 0.0
    %8024 = vmatprep.subr.mxu0 0.0
    %8025 = vmatpush1.msra.mxu0 0.0
    %8026 = vmatprep.subr.mxu0 0.0
    %8027 = vmatpush1.msra.mxu0 0.0
    %8028 = vmatprep.subr.mxu0 0.0
    %8029 = vmatpush1.msra.mxu0 0.0
    %8030 = vmatprep.subr.mxu0 0.0
    %8031 = vmatpush1.msra.mxu0 0.0
    %8032 = vmatprep.subr.mxu0 0.0
    %8033 = vmatpush1.msra.mxu0 0.0
    %8034 = vmatprep.subr.mxu0 0.0
    %8035 = vmatpush1.msra.mxu0 0.0
    %8036 = vmatprep.subr.mxu0 0.0
    %8037 = vmatpush1.msra.mxu0 0.0
    %8038 = vmatprep.mubr.f32.mxu0 0.0
    %v8039 = vand.u32 %v7968, 4294901760
    %v8040 = vsub.f32 %v7968, %v8039
    %v8041 = vand.u32 %v8040, 4294901760
    %v8042 = vsub.f32 %v8040, %v8041
    %v8043 = vand.u32 %v8042, 4294901760
    %8044 = vmatmul.mubr.f32.gmra.mrb[0].mxu0 %v8043
    %v8045 = vpop.f32.mrb[0].mxu0
    %v8046 = vadd.f32 0.0, %v8045
    %v8047 = vpop.f32.mrb[0].mxu0
    %v8048 = vadd.f32 0.0, %v8047
    %8049 = vdwg.mxu0
    %v8050 = vand.u32 %v88, 4294901760
    %v8051 = vsub.f32 %v88, %v8050
    %v8052 = vand.u32 %v8051, 4294901760
    %v8053 = vsub.f32 %v8051, %v8052
    %v8054 = vand.u32 %v8053, 4294901760
    %8055 = vmatprep.subr.mxu0 %v8054
    %v8056 = vand.u32 %v87, 4294901760
    %v8057 = vsub.f32 %v87, %v8056
    %v8058 = vand.u32 %v8057, 4294901760
    %v8059 = vsub.f32 %v8057, %v8058
    %v8060 = vand.u32 %v8059, 4294901760
    %8061 = vmatpush1.msra.mxu0 %v8060
    %v8062 = vand.u32 %v90, 4294901760
    %v8063 = vsub.f32 %v90, %v8062
    %v8064 = vand.u32 %v8063, 4294901760
    %v8065 = vsub.f32 %v8063, %v8064
    %v8066 = vand.u32 %v8065, 4294901760
    %8067 = vmatprep.subr.mxu0 %v8066
    %v8068 = vand.u32 %v89, 4294901760
    %v8069 = vsub.f32 %v89, %v8068
    %v8070 = vand.u32 %v8069, 4294901760
    %v8071 = vsub.f32 %v8069, %v8070
    %v8072 = vand.u32 %v8071, 4294901760
    %8073 = vmatpush1.msra.mxu0 %v8072
    %8074 = vmatprep.subr.mxu0 0.0
    %8075 = vmatpush1.msra.mxu0 0.0
    %8076 = vmatprep.subr.mxu0 0.0
    %8077 = vmatpush1.msra.mxu0 0.0
    %8078 = vmatprep.subr.mxu0 0.0
    %8079 = vmatpush1.msra.mxu0 0.0
    %8080 = vmatprep.subr.mxu0 0.0
    %8081 = vmatpush1.msra.mxu0 0.0
    %8082 = vmatprep.subr.mxu0 0.0
    %8083 = vmatpush1.msra.mxu0 0.0
    %8084 = vmatprep.subr.mxu0 0.0
    %8085 = vmatpush1.msra.mxu0 0.0
    %8086 = vmatprep.subr.mxu0 0.0
    %8087 = vmatpush1.msra.mxu0 0.0
    %8088 = vmatprep.subr.mxu0 0.0
    %8089 = vmatpush1.msra.mxu0 0.0
    %8090 = vmatprep.subr.mxu0 0.0
    %8091 = vmatpush1.msra.mxu0 0.0
    %8092 = vmatprep.subr.mxu0 0.0
    %8093 = vmatpush1.msra.mxu0 0.0
    %8094 = vmatprep.subr.mxu0 0.0
    %8095 = vmatpush1.msra.mxu0 0.0
    %8096 = vmatprep.subr.mxu0 0.0
    %8097 = vmatpush1.msra.mxu0 0.0
    %8098 = vmatprep.subr.mxu0 0.0
    %8099 = vmatpush1.msra.mxu0 0.0
    %8100 = vmatprep.subr.mxu0 0.0
    %8101 = vmatpush1.msra.mxu0 0.0
    %8102 = vmatprep.subr.mxu0 0.0
    %8103 = vmatpush1.msra.mxu0 0.0
    %8104 = vmatprep.subr.mxu0 0.0
    %8105 = vmatpush1.msra.mxu0 0.0
    %8106 = vmatprep.subr.mxu0 0.0
    %8107 = vmatpush1.msra.mxu0 0.0
    %8108 = vmatprep.subr.mxu0 0.0
    %8109 = vmatpush1.msra.mxu0 0.0
    %8110 = vmatprep.subr.mxu0 0.0
    %8111 = vmatpush1.msra.mxu0 0.0
    %8112 = vmatprep.subr.mxu0 0.0
    %8113 = vmatpush1.msra.mxu0 0.0
    %8114 = vmatprep.subr.mxu0 0.0
    %8115 = vmatpush1.msra.mxu0 0.0
    %8116 = vmatprep.subr.mxu0 0.0
    %8117 = vmatpush1.msra.mxu0 0.0
    %8118 = vmatprep.subr.mxu0 0.0
    %8119 = vmatpush1.msra.mxu0 0.0
    %8120 = vmatprep.subr.mxu0 0.0
    %8121 = vmatpush1.msra.mxu0 0.0
    %8122 = vmatprep.subr.mxu0 0.0
    %8123 = vmatpush1.msra.mxu0 0.0
    %8124 = vmatprep.subr.mxu0 0.0
    %8125 = vmatpush1.msra.mxu0 0.0
    %8126 = vmatprep.subr.mxu0 0.0
    %8127 = vmatpush1.msra.mxu0 0.0
    %8128 = vmatprep.subr.mxu0 0.0
    %8129 = vmatpush1.msra.mxu0 0.0
    %8130 = vmatprep.subr.mxu0 0.0
    %8131 = vmatpush1.msra.mxu0 0.0
    %8132 = vmatprep.subr.mxu0 0.0
    %8133 = vmatpush1.msra.mxu0 0.0
    %8134 = vmatprep.mubr.f32.mxu0 0.0
    %v8135 = vand.u32 %v7968, 4294901760
    %8136 = vmatmul.mubr.f32.gmra.mrb[0].mxu0 %v8135
    %v8137 = vpop.f32.mrb[0].mxu0
    %v8138 = vadd.f32 %v8046, %v8137
    %v8139 = vpop.f32.mrb[0].mxu0
    %v8140 = vadd.f32 %v8048, %v8139
    %8141 = vdwg.mxu0
    %v8142 = vand.u32 %v88, 4294901760
    %v8143 = vsub.f32 %v88, %v8142
    %8144 = vmatprep.subr.mxu0 %v8143
    %v8145 = vand.u32 %v87, 4294901760
    %v8146 = vsub.f32 %v87, %v8145
    %8147 = vmatpush1.msra.mxu0 %v8146
    %v8148 = vand.u32 %v90, 4294901760
    %v8149 = vsub.f32 %v90, %v8148
    %8150 = vmatprep.subr.mxu0 %v8149
    %v8151 = vand.u32 %v89, 4294901760
    %v8152 = vsub.f32 %v89, %v8151
    %8153 = vmatpush1.msra.mxu0 %v8152
    %8154 = vmatprep.subr.mxu0 0.0
    %8155 = vmatpush1.msra.mxu0 0.0
    %8156 = vmatprep.subr.mxu0 0.0
    %8157 = vmatpush1.msra.mxu0 0.0
    %8158 = vmatprep.subr.mxu0 0.0
    %8159 = vmatpush1.msra.mxu0 0.0
    %8160 = vmatprep.subr.mxu0 0.0
    %8161 = vmatpush1.msra.mxu0 0.0
    %8162 = vmatprep.subr.mxu0 0.0
    %8163 = vmatpush1.msra.mxu0 0.0
    %8164 = vmatprep.subr.mxu0 0.0
    %8165 = vmatpush1.msra.mxu0 0.0
    %8166 = vmatprep.subr.mxu0 0.0
    %8167 = vmatpush1.msra.mxu0 0.0
    %8168 = vmatprep.subr.mxu0 0.0
    %8169 = vmatpush1.msra.mxu0 0.0
    %8170 = vmatprep.subr.mxu0 0.0
    %8171 = vmatpush1.msra.mxu0 0.0
    %8172 = vmatprep.subr.mxu0 0.0
    %8173 = vmatpush1.msra.mxu0 0.0
    %8174 = vmatprep.subr.mxu0 0.0
    %8175 = vmatpush1.msra.mxu0 0.0
    %8176 = vmatprep.subr.mxu0 0.0
    %8177 = vmatpush1.msra.mxu0 0.0
    %8178 = vmatprep.subr.mxu0 0.0
    %8179 = vmatpush1.msra.mxu0 0.0
    %8180 = vmatprep.subr.mxu0 0.0
    %8181 = vmatpush1.msra.mxu0 0.0
    %8182 = vmatprep.subr.mxu0 0.0
    %8183 = vmatpush1.msra.mxu0 0.0
    %8184 = vmatprep.subr.mxu0 0.0
    %8185 = vmatpush1.msra.mxu0 0.0
    %8186 = vmatprep.subr.mxu0 0.0
    %8187 = vmatpush1.msra.mxu0 0.0
    %8188 = vmatprep.subr.mxu0 0.0
    %8189 = vmatpush1.msra.mxu0 0.0
    %8190 = vmatprep.subr.mxu0 0.0
    %8191 = vmatpush1.msra.mxu0 0.0
    %8192 = vmatprep.subr.mxu0 0.0
    %8193 = vmatpush1.msra.mxu0 0.0
    %8194 = vmatprep.subr.mxu0 0.0
    %8195 = vmatpush1.msra.mxu0 0.0
    %8196 = vmatprep.subr.mxu0 0.0
    %8197 = vmatpush1.msra.mxu0 0.0
    %8198 = vmatprep.subr.mxu0 0.0
    %8199 = vmatpush1.msra.mxu0 0.0
    %8200 = vmatprep.subr.mxu0 0.0
    %8201 = vmatpush1.msra.mxu0 0.0
    %8202 = vmatprep.subr.mxu0 0.0
    %8203 = vmatpush1.msra.mxu0 0.0
    %8204 = vmatprep.subr.mxu0 0.0
    %8205 = vmatpush1.msra.mxu0 0.0
    %8206 = vmatprep.subr.mxu0 0.0
    %8207 = vmatpush1.msra.mxu0 0.0
    %8208 = vmatprep.subr.mxu0 0.0
    %8209 = vmatpush1.msra.mxu0 0.0
    %8210 = vmatprep.subr.mxu0 0.0
    %8211 = vmatpush1.msra.mxu0 0.0
    %8212 = vmatprep.subr.mxu0 0.0
    %8213 = vmatpush1.msra.mxu0 0.0
    %8214 = vmatprep.mubr.f32.mxu0 0.0
    %v8215 = vand.u32 %v7968, 4294901760
    %v8216 = vsub.f32 %v7968, %v8215
    %8217 = vmatmul.mubr.f32.gmra.mrb[0].mxu0 %v8216
    %v8218 = vpop.f32.mrb[0].mxu0
    %v8219 = vadd.f32 %v8138, %v8218
    %v8220 = vpop.f32.mrb[0].mxu0
    %v8221 = vadd.f32 %v8140, %v8220
    %8222 = vdwg.mxu0
    %v8223 = vand.u32 %v88, 4294901760
    %8224 = vmatprep.subr.mxu0 %v8223
    %v8225 = vand.u32 %v87, 4294901760
    %8226 = vmatpush1.msra.mxu0 %v8225
    %v8227 = vand.u32 %v90, 4294901760
    %8228 = vmatprep.subr.mxu0 %v8227
    %v8229 = vand.u32 %v89, 4294901760
    %8230 = vmatpush1.msra.mxu0 %v8229
    %8231 = vmatprep.subr.mxu0 0.0
    %8232 = vmatpush1.msra.mxu0 0.0
    %8233 = vmatprep.subr.mxu0 0.0
    %8234 = vmatpush1.msra.mxu0 0.0
    %8235 = vmatprep.subr.mxu0 0.0
    %8236 = vmatpush1.msra.mxu0 0.0
    %8237 = vmatprep.subr.mxu0 0.0
    %8238 = vmatpush1.msra.mxu0 0.0
    %8239 = vmatprep.subr.mxu0 0.0
    %8240 = vmatpush1.msra.mxu0 0.0
    %8241 = vmatprep.subr.mxu0 0.0
    %8242 = vmatpush1.msra.mxu0 0.0
    %8243 = vmatprep.subr.mxu0 0.0
    %8244 = vmatpush1.msra.mxu0 0.0
    %8245 = vmatprep.subr.mxu0 0.0
    %8246 = vmatpush1.msra.mxu0 0.0
    %8247 = vmatprep.subr.mxu0 0.0
    %8248 = vmatpush1.msra.mxu0 0.0
    %8249 = vmatprep.subr.mxu0 0.0
    %8250 = vmatpush1.msra.mxu0 0.0
    %8251 = vmatprep.subr.mxu0 0.0
    %8252 = vmatpush1.msra.mxu0 0.0
    %8253 = vmatprep.subr.mxu0 0.0
    %8254 = vmatpush1.msra.mxu0 0.0
    %8255 = vmatprep.subr.mxu0 0.0
    %8256 = vmatpush1.msra.mxu0 0.0
    %8257 = vmatprep.subr.mxu0 0.0
    %8258 = vmatpush1.msra.mxu0 0.0
    %8259 = vmatprep.subr.mxu0 0.0
    %8260 = vmatpush1.msra.mxu0 0.0
    %8261 = vmatprep.subr.mxu0 0.0
    %8262 = vmatpush1.msra.mxu0 0.0
    %8263 = vmatprep.subr.mxu0 0.0
    %8264 = vmatpush1.msra.mxu0 0.0
    %8265 = vmatprep.subr.mxu0 0.0
    %8266 = vmatpush1.msra.mxu0 0.0
    %8267 = vmatprep.subr.mxu0 0.0
    %8268 = vmatpush1.msra.mxu0 0.0
    %8269 = vmatprep.subr.mxu0 0.0
    %8270 = vmatpush1.msra.mxu0 0.0
    %8271 = vmatprep.subr.mxu0 0.0
    %8272 = vmatpush1.msra.mxu0 0.0
    %8273 = vmatprep.subr.mxu0 0.0
    %8274 = vmatpush1.msra.mxu0 0.0
    %8275 = vmatprep.subr.mxu0 0.0
    %8276 = vmatpush1.msra.mxu0 0.0
    %8277 = vmatprep.subr.mxu0 0.0
    %8278 = vmatpush1.msra.mxu0 0.0
    %8279 = vmatprep.subr.mxu0 0.0
    %8280 = vmatpush1.msra.mxu0 0.0
    %8281 = vmatprep.subr.mxu0 0.0
    %8282 = vmatpush1.msra.mxu0 0.0
    %8283 = vmatprep.subr.mxu0 0.0
    %8284 = vmatpush1.msra.mxu0 0.0
    %8285 = vmatprep.subr.mxu0 0.0
    %8286 = vmatpush1.msra.mxu0 0.0
    %8287 = vmatprep.subr.mxu0 0.0
    %8288 = vmatpush1.msra.mxu0 0.0
    %8289 = vmatprep.subr.mxu0 0.0
    %8290 = vmatpush1.msra.mxu0 0.0
    %8291 = vmatprep.mubr.f32.mxu0 0.0
    %v8292 = vand.u32 %v7968, 4294901760
    %v8293 = vsub.f32 %v7968, %v8292
    %v8294 = vand.u32 %v8293, 4294901760
    %8295 = vmatmul.mubr.f32.gmra.mrb[0].mxu0 %v8294
    %v8296 = vpop.f32.mrb[0].mxu0
    %v8297 = vadd.f32 %v8219, %v8296
    %v8298 = vpop.f32.mrb[0].mxu0
    %v8299 = vadd.f32 %v8221, %v8298
    %8300 = vdwg.mxu0
    %v8301 = vand.u32 %v88, 4294901760
    %v8302 = vsub.f32 %v88, %v8301
    %v8303 = vand.u32 %v8302, 4294901760
    %8304 = vmatprep.subr.mxu0 %v8303
    %v8305 = vand.u32 %v87, 4294901760
    %v8306 = vsub.f32 %v87, %v8305
    %v8307 = vand.u32 %v8306, 4294901760
    %8308 = vmatpush1.msra.mxu0 %v8307
    %v8309 = vand.u32 %v90, 4294901760
    %v8310 = vsub.f32 %v90, %v8309
    %v8311 = vand.u32 %v8310, 4294901760
    %8312 = vmatprep.subr.mxu0 %v8311
    %v8313 = vand.u32 %v89, 4294901760
    %v8314 = vsub.f32 %v89, %v8313
    %v8315 = vand.u32 %v8314, 4294901760
    %8316 = vmatpush1.msra.mxu0 %v8315
    %8317 = vmatprep.subr.mxu0 0.0
    %8318 = vmatpush1.msra.mxu0 0.0
    %8319 = vmatprep.subr.mxu0 0.0
    %8320 = vmatpush1.msra.mxu0 0.0
    %8321 = vmatprep.subr.mxu0 0.0
    %8322 = vmatpush1.msra.mxu0 0.0
    %8323 = vmatprep.subr.mxu0 0.0
    %8324 = vmatpush1.msra.mxu0 0.0
    %8325 = vmatprep.subr.mxu0 0.0
    %8326 = vmatpush1.msra.mxu0 0.0
    %8327 = vmatprep.subr.mxu0 0.0
    %8328 = vmatpush1.msra.mxu0 0.0
    %8329 = vmatprep.subr.mxu0 0.0
    %8330 = vmatpush1.msra.mxu0 0.0
    %8331 = vmatprep.subr.mxu0 0.0
    %8332 = vmatpush1.msra.mxu0 0.0
    %8333 = vmatprep.subr.mxu0 0.0
    %8334 = vmatpush1.msra.mxu0 0.0
    %8335 = vmatprep.subr.mxu0 0.0
    %8336 = vmatpush1.msra.mxu0 0.0
    %8337 = vmatprep.subr.mxu0 0.0
    %8338 = vmatpush1.msra.mxu0 0.0
    %8339 = vmatprep.subr.mxu0 0.0
    %8340 = vmatpush1.msra.mxu0 0.0
    %8341 = vmatprep.subr.mxu0 0.0
    %8342 = vmatpush1.msra.mxu0 0.0
    %8343 = vmatprep.subr.mxu0 0.0
    %8344 = vmatpush1.msra.mxu0 0.0
    %8345 = vmatprep.subr.mxu0 0.0
    %8346 = vmatpush1.msra.mxu0 0.0
    %8347 = vmatprep.subr.mxu0 0.0
    %8348 = vmatpush1.msra.mxu0 0.0
    %8349 = vmatprep.subr.mxu0 0.0
    %8350 = vmatpush1.msra.mxu0 0.0
    %8351 = vmatprep.subr.mxu0 0.0
    %8352 = vmatpush1.msra.mxu0 0.0
    %8353 = vmatprep.subr.mxu0 0.0
    %8354 = vmatpush1.msra.mxu0 0.0
    %8355 = vmatprep.subr.mxu0 0.0
    %8356 = vmatpush1.msra.mxu0 0.0
    %8357 = vmatprep.subr.mxu0 0.0
    %8358 = vmatpush1.msra.mxu0 0.0
    %8359 = vmatprep.subr.mxu0 0.0
    %8360 = vmatpush1.msra.mxu0 0.0
    %8361 = vmatprep.subr.mxu0 0.0
    %8362 = vmatpush1.msra.mxu0 0.0
    %8363 = vmatprep.subr.mxu0 0.0
    %8364 = vmatpush1.msra.mxu0 0.0
    %8365 = vmatprep.subr.mxu0 0.0
    %8366 = vmatpush1.msra.mxu0 0.0
    %8367 = vmatprep.subr.mxu0 0.0
    %8368 = vmatpush1.msra.mxu0 0.0
    %8369 = vmatprep.subr.mxu0 0.0
    %8370 = vmatpush1.msra.mxu0 0.0
    %8371 = vmatprep.subr.mxu0 0.0
    %8372 = vmatpush1.msra.mxu0 0.0
    %8373 = vmatprep.subr.mxu0 0.0
    %8374 = vmatpush1.msra.mxu0 0.0
    %8375 = vmatprep.subr.mxu0 0.0
    %8376 = vmatpush1.msra.mxu0 0.0
    %8377 = vmatprep.mubr.f32.mxu0 0.0
    %v8378 = vand.u32 %v7968, 4294901760
    %8379 = vmatmul.mubr.f32.gmra.mrb[0].mxu0 %v8378
    %v8380 = vpop.f32.mrb[0].mxu0
    %v8381 = vadd.f32 %v8297, %v8380
    %v8382 = vpop.f32.mrb[0].mxu0
    %v8383 = vadd.f32 %v8299, %v8382
    %8384 = vdwg.mxu0
    %v8385 = vand.u32 %v88, 4294901760
    %8386 = vmatprep.subr.mxu0 %v8385
    %v8387 = vand.u32 %v87, 4294901760
    %8388 = vmatpush1.msra.mxu0 %v8387
    %v8389 = vand.u32 %v90, 4294901760
    %8390 = vmatprep.subr.mxu0 %v8389
    %v8391 = vand.u32 %v89, 4294901760
    %8392 = vmatpush1.msra.mxu0 %v8391
    %8393 = vmatprep.subr.mxu0 0.0
    %8394 = vmatpush1.msra.mxu0 0.0
    %8395 = vmatprep.subr.mxu0 0.0
    %8396 = vmatpush1.msra.mxu0 0.0
    %8397 = vmatprep.subr.mxu0 0.0
    %8398 = vmatpush1.msra.mxu0 0.0
    %8399 = vmatprep.subr.mxu0 0.0
    %8400 = vmatpush1.msra.mxu0 0.0
    %8401 = vmatprep.subr.mxu0 0.0
    %8402 = vmatpush1.msra.mxu0 0.0
    %8403 = vmatprep.subr.mxu0 0.0
    %8404 = vmatpush1.msra.mxu0 0.0
    %8405 = vmatprep.subr.mxu0 0.0
    %8406 = vmatpush1.msra.mxu0 0.0
    %8407 = vmatprep.subr.mxu0 0.0
    %8408 = vmatpush1.msra.mxu0 0.0
    %8409 = vmatprep.subr.mxu0 0.0
    %8410 = vmatpush1.msra.mxu0 0.0
    %8411 = vmatprep.subr.mxu0 0.0
    %8412 = vmatpush1.msra.mxu0 0.0
    %8413 = vmatprep.subr.mxu0 0.0
    %8414 = vmatpush1.msra.mxu0 0.0
    %8415 = vmatprep.subr.mxu0 0.0
    %8416 = vmatpush1.msra.mxu0 0.0
    %8417 = vmatprep.subr.mxu0 0.0
    %8418 = vmatpush1.msra.mxu0 0.0
    %8419 = vmatprep.subr.mxu0 0.0
    %8420 = vmatpush1.msra.mxu0 0.0
    %8421 = vmatprep.subr.mxu0 0.0
    %8422 = vmatpush1.msra.mxu0 0.0
    %8423 = vmatprep.subr.mxu0 0.0
    %8424 = vmatpush1.msra.mxu0 0.0
    %8425 = vmatprep.subr.mxu0 0.0
    %8426 = vmatpush1.msra.mxu0 0.0
    %8427 = vmatprep.subr.mxu0 0.0
    %8428 = vmatpush1.msra.mxu0 0.0
    %8429 = vmatprep.subr.mxu0 0.0
    %8430 = vmatpush1.msra.mxu0 0.0
    %8431 = vmatprep.subr.mxu0 0.0
    %8432 = vmatpush1.msra.mxu0 0.0
    %8433 = vmatprep.subr.mxu0 0.0
    %8434 = vmatpush1.msra.mxu0 0.0
    %8435 = vmatprep.subr.mxu0 0.0
    %8436 = vmatpush1.msra.mxu0 0.0
    %8437 = vmatprep.subr.mxu0 0.0
    %8438 = vmatpush1.msra.mxu0 0.0
    %8439 = vmatprep.subr.mxu0 0.0
    %8440 = vmatpush1.msra.mxu0 0.0
    %8441 = vmatprep.subr.mxu0 0.0
    %8442 = vmatpush1.msra.mxu0 0.0
    %8443 = vmatprep.subr.mxu0 0.0
    %8444 = vmatpush1.msra.mxu0 0.0
    %8445 = vmatprep.subr.mxu0 0.0
    %8446 = vmatpush1.msra.mxu0 0.0
    %8447 = vmatprep.subr.mxu0 0.0
    %8448 = vmatpush1.msra.mxu0 0.0
    %8449 = vmatprep.subr.mxu0 0.0
    %8450 = vmatpush1.msra.mxu0 0.0
    %8451 = vmatprep.subr.mxu0 0.0
    %8452 = vmatpush1.msra.mxu0 0.0
    %8453 = vmatprep.mubr.f32.mxu0 0.0
    %v8454 = vand.u32 %v7968, 4294901760
    %8455 = vmatmul.mubr.f32.gmra.mrb[0].mxu0 %v8454
    %v8456 = vpop.f32.mrb[0].mxu0
    %v8457 = vadd.f32 %v8381, %v8456
    %v8458 = vpop.f32.mrb[0].mxu0
    %v8459 = vadd.f32 %v8383, %v8458
    %8460 = vdwg.mxu0
    %8462 = vrot.lane.b32.xlu0 %v7965, 16
    %v8463 = vpop.permute.xlu0 %8462
    %v8464 = vsel %vm4516, %v8463, 0
    %v8466 = vand.u32 %v92, 4294901760
    %8467 = vmatprep.subr.mxu0 %v8466
    %v8468 = vand.u32 %v91, 4294901760
    %8469 = vmatpush1.msra.mxu0 %v8468
    %v8470 = vand.u32 %v94, 4294901760
    %8471 = vmatprep.subr.mxu0 %v8470
    %v8472 = vand.u32 %v93, 4294901760
    %8473 = vmatpush1.msra.mxu0 %v8472
    %8474 = vmatprep.subr.mxu0 0.0
    %8475 = vmatpush1.msra.mxu0 0.0
    %8476 = vmatprep.subr.mxu0 0.0
    %8477 = vmatpush1.msra.mxu0 0.0
    %8478 = vmatprep.subr.mxu0 0.0
    %8479 = vmatpush1.msra.mxu0 0.0
    %8480 = vmatprep.subr.mxu0 0.0
    %8481 = vmatpush1.msra.mxu0 0.0
    %8482 = vmatprep.subr.mxu0 0.0
    %8483 = vmatpush1.msra.mxu0 0.0
    %8484 = vmatprep.subr.mxu0 0.0
    %8485 = vmatpush1.msra.mxu0 0.0
    %8486 = vmatprep.subr.mxu0 0.0
    %8487 = vmatpush1.msra.mxu0 0.0
    %8488 = vmatprep.subr.mxu0 0.0
    %8489 = vmatpush1.msra.mxu0 0.0
    %8490 = vmatprep.subr.mxu0 0.0
    %8491 = vmatpush1.msra.mxu0 0.0
    %8492 = vmatprep.subr.mxu0 0.0
    %8493 = vmatpush1.msra.mxu0 0.0
    %8494 = vmatprep.subr.mxu0 0.0
    %8495 = vmatpush1.msra.mxu0 0.0
    %8496 = vmatprep.subr.mxu0 0.0
    %8497 = vmatpush1.msra.mxu0 0.0
    %8498 = vmatprep.subr.mxu0 0.0
    %8499 = vmatpush1.msra.mxu0 0.0
    %8500 = vmatprep.subr.mxu0 0.0
    %8501 = vmatpush1.msra.mxu0 0.0
    %8502 = vmatprep.subr.mxu0 0.0
    %8503 = vmatpush1.msra.mxu0 0.0
    %8504 = vmatprep.subr.mxu0 0.0
    %8505 = vmatpush1.msra.mxu0 0.0
    %8506 = vmatprep.subr.mxu0 0.0
    %8507 = vmatpush1.msra.mxu0 0.0
    %8508 = vmatprep.subr.mxu0 0.0
    %8509 = vmatpush1.msra.mxu0 0.0
    %8510 = vmatprep.subr.mxu0 0.0
    %8511 = vmatpush1.msra.mxu0 0.0
    %8512 = vmatprep.subr.mxu0 0.0
    %8513 = vmatpush1.msra.mxu0 0.0
    %8514 = vmatprep.subr.mxu0 0.0
    %8515 = vmatpush1.msra.mxu0 0.0
    %8516 = vmatprep.subr.mxu0 0.0
    %8517 = vmatpush1.msra.mxu0 0.0
    %8518 = vmatprep.subr.mxu0 0.0
    %8519 = vmatpush1.msra.mxu0 0.0
    %8520 = vmatprep.subr.mxu0 0.0
    %8521 = vmatpush1.msra.mxu0 0.0
    %8522 = vmatprep.subr.mxu0 0.0
    %8523 = vmatpush1.msra.mxu0 0.0
    %8524 = vmatprep.subr.mxu0 0.0
    %8525 = vmatpush1.msra.mxu0 0.0
    %8526 = vmatprep.subr.mxu0 0.0
    %8527 = vmatpush1.msra.mxu0 0.0
    %8528 = vmatprep.subr.mxu0 0.0
    %8529 = vmatpush1.msra.mxu0 0.0
    %8530 = vmatprep.subr.mxu0 0.0
    %8531 = vmatpush1.msra.mxu0 0.0
    %8532 = vmatprep.subr.mxu0 0.0
    %8533 = vmatpush1.msra.mxu0 0.0
    %8534 = vmatprep.mubr.f32.mxu0 0.0
    %v8535 = vand.u32 %v8464, 4294901760
    %v8536 = vsub.f32 %v8464, %v8535
    %v8537 = vand.u32 %v8536, 4294901760
    %v8538 = vsub.f32 %v8536, %v8537
    %v8539 = vand.u32 %v8538, 4294901760
    %8540 = vmatmul.mubr.f32.gmra.mrb[0].mxu0 %v8539
    %v8541 = vpop.f32.mrb[0].mxu0
    %v8542 = vadd.f32 0.0, %v8541
    %v8543 = vpop.f32.mrb[0].mxu0
    %v8544 = vadd.f32 0.0, %v8543
    %8545 = vdwg.mxu0
    %v8546 = vand.u32 %v92, 4294901760
    %v8547 = vsub.f32 %v92, %v8546
    %v8548 = vand.u32 %v8547, 4294901760
    %v8549 = vsub.f32 %v8547, %v8548
    %v8550 = vand.u32 %v8549, 4294901760
    %8551 = vmatprep.subr.mxu0 %v8550
    %v8552 = vand.u32 %v91, 4294901760
    %v8553 = vsub.f32 %v91, %v8552
    %v8554 = vand.u32 %v8553, 4294901760
    %v8555 = vsub.f32 %v8553, %v8554
    %v8556 = vand.u32 %v8555, 4294901760
    %8557 = vmatpush1.msra.mxu0 %v8556
    %v8558 = vand.u32 %v94, 4294901760
    %v8559 = vsub.f32 %v94, %v8558
    %v8560 = vand.u32 %v8559, 4294901760
    %v8561 = vsub.f32 %v8559, %v8560
    %v8562 = vand.u32 %v8561, 4294901760
    %8563 = vmatprep.subr.mxu0 %v8562
    %v8564 = vand.u32 %v93, 4294901760
    %v8565 = vsub.f32 %v93, %v8564
    %v8566 = vand.u32 %v8565, 4294901760
    %v8567 = vsub.f32 %v8565, %v8566
    %v8568 = vand.u32 %v8567, 4294901760
    %8569 = vmatpush1.msra.mxu0 %v8568
    %8570 = vmatprep.subr.mxu0 0.0
    %8571 = vmatpush1.msra.mxu0 0.0
    %8572 = vmatprep.subr.mxu0 0.0
    %8573 = vmatpush1.msra.mxu0 0.0
    %8574 = vmatprep.subr.mxu0 0.0
    %8575 = vmatpush1.msra.mxu0 0.0
    %8576 = vmatprep.subr.mxu0 0.0
    %8577 = vmatpush1.msra.mxu0 0.0
    %8578 = vmatprep.subr.mxu0 0.0
    %8579 = vmatpush1.msra.mxu0 0.0
    %8580 = vmatprep.subr.mxu0 0.0
    %8581 = vmatpush1.msra.mxu0 0.0
    %8582 = vmatprep.subr.mxu0 0.0
    %8583 = vmatpush1.msra.mxu0 0.0
    %8584 = vmatprep.subr.mxu0 0.0
    %8585 = vmatpush1.msra.mxu0 0.0
    %8586 = vmatprep.subr.mxu0 0.0
    %8587 = vmatpush1.msra.mxu0 0.0
    %8588 = vmatprep.subr.mxu0 0.0
    %8589 = vmatpush1.msra.mxu0 0.0
    %8590 = vmatprep.subr.mxu0 0.0
    %8591 = vmatpush1.msra.mxu0 0.0
    %8592 = vmatprep.subr.mxu0 0.0
    %8593 = vmatpush1.msra.mxu0 0.0
    %8594 = vmatprep.subr.mxu0 0.0
    %8595 = vmatpush1.msra.mxu0 0.0
    %8596 = vmatprep.subr.mxu0 0.0
    %8597 = vmatpush1.msra.mxu0 0.0
    %8598 = vmatprep.subr.mxu0 0.0
    %8599 = vmatpush1.msra.mxu0 0.0
    %8600 = vmatprep.subr.mxu0 0.0
    %8601 = vmatpush1.msra.mxu0 0.0
    %8602 = vmatprep.subr.mxu0 0.0
    %8603 = vmatpush1.msra.mxu0 0.0
    %8604 = vmatprep.subr.mxu0 0.0
    %8605 = vmatpush1.msra.mxu0 0.0
    %8606 = vmatprep.subr.mxu0 0.0
    %8607 = vmatpush1.msra.mxu0 0.0
    %8608 = vmatprep.subr.mxu0 0.0
    %8609 = vmatpush1.msra.mxu0 0.0
    %8610 = vmatprep.subr.mxu0 0.0
    %8611 = vmatpush1.msra.mxu0 0.0
    %8612 = vmatprep.subr.mxu0 0.0
    %8613 = vmatpush1.msra.mxu0 0.0
    %8614 = vmatprep.subr.mxu0 0.0
    %8615 = vmatpush1.msra.mxu0 0.0
    %8616 = vmatprep.subr.mxu0 0.0
    %8617 = vmatpush1.msra.mxu0 0.0
    %8618 = vmatprep.subr.mxu0 0.0
    %8619 = vmatpush1.msra.mxu0 0.0
    %8620 = vmatprep.subr.mxu0 0.0
    %8621 = vmatpush1.msra.mxu0 0.0
    %8622 = vmatprep.subr.mxu0 0.0
    %8623 = vmatpush1.msra.mxu0 0.0
    %8624 = vmatprep.subr.mxu0 0.0
    %8625 = vmatpush1.msra.mxu0 0.0
    %8626 = vmatprep.subr.mxu0 0.0
    %8627 = vmatpush1.msra.mxu0 0.0
    %8628 = vmatprep.subr.mxu0 0.0
    %8629 = vmatpush1.msra.mxu0 0.0
    %8630 = vmatprep.mubr.f32.mxu0 0.0
    %v8631 = vand.u32 %v8464, 4294901760
    %8632 = vmatmul.mubr.f32.gmra.mrb[0].mxu0 %v8631
    %v8633 = vpop.f32.mrb[0].mxu0
    %v8634 = vadd.f32 %v8542, %v8633
    %v8635 = vpop.f32.mrb[0].mxu0
    %v8636 = vadd.f32 %v8544, %v8635
    %8637 = vdwg.mxu0
    %v8638 = vand.u32 %v92, 4294901760
    %v8639 = vsub.f32 %v92, %v8638
    %8640 = vmatprep.subr.mxu0 %v8639
    %v8641 = vand.u32 %v91, 4294901760
    %v8642 = vsub.f32 %v91, %v8641
    %8643 = vmatpush1.msra.mxu0 %v8642
    %v8644 = vand.u32 %v94, 4294901760
    %v8645 = vsub.f32 %v94, %v8644
    %8646 = vmatprep.subr.mxu0 %v8645
    %v8647 = vand.u32 %v93, 4294901760
    %v8648 = vsub.f32 %v93, %v8647
    %8649 = vmatpush1.msra.mxu0 %v8648
    %8650 = vmatprep.subr.mxu0 0.0
    %8651 = vmatpush1.msra.mxu0 0.0
    %8652 = vmatprep.subr.mxu0 0.0
    %8653 = vmatpush1.msra.mxu0 0.0
    %8654 = vmatprep.subr.mxu0 0.0
    %8655 = vmatpush1.msra.mxu0 0.0
    %8656 = vmatprep.subr.mxu0 0.0
    %8657 = vmatpush1.msra.mxu0 0.0
    %8658 = vmatprep.subr.mxu0 0.0
    %8659 = vmatpush1.msra.mxu0 0.0
    %8660 = vmatprep.subr.mxu0 0.0
    %8661 = vmatpush1.msra.mxu0 0.0
    %8662 = vmatprep.subr.mxu0 0.0
    %8663 = vmatpush1.msra.mxu0 0.0
    %8664 = vmatprep.subr.mxu0 0.0
    %8665 = vmatpush1.msra.mxu0 0.0
    %8666 = vmatprep.subr.mxu0 0.0
    %8667 = vmatpush1.msra.mxu0 0.0
    %8668 = vmatprep.subr.mxu0 0.0
    %8669 = vmatpush1.msra.mxu0 0.0
    %8670 = vmatprep.subr.mxu0 0.0
    %8671 = vmatpush1.msra.mxu0 0.0
    %8672 = vmatprep.subr.mxu0 0.0
    %8673 = vmatpush1.msra.mxu0 0.0
    %8674 = vmatprep.subr.mxu0 0.0
    %8675 = vmatpush1.msra.mxu0 0.0
    %8676 = vmatprep.subr.mxu0 0.0
    %8677 = vmatpush1.msra.mxu0 0.0
    %8678 = vmatprep.subr.mxu0 0.0
    %8679 = vmatpush1.msra.mxu0 0.0
    %8680 = vmatprep.subr.mxu0 0.0
    %8681 = vmatpush1.msra.mxu0 0.0
    %8682 = vmatprep.subr.mxu0 0.0
    %8683 = vmatpush1.msra.mxu0 0.0
    %8684 = vmatprep.subr.mxu0 0.0
    %8685 = vmatpush1.msra.mxu0 0.0
    %8686 = vmatprep.subr.mxu0 0.0
    %8687 = vmatpush1.msra.mxu0 0.0
    %8688 = vmatprep.subr.mxu0 0.0
    %8689 = vmatpush1.msra.mxu0 0.0
    %8690 = vmatprep.subr.mxu0 0.0
    %8691 = vmatpush1.msra.mxu0 0.0
    %8692 = vmatprep.subr.mxu0 0.0
    %8693 = vmatpush1.msra.mxu0 0.0
    %8694 = vmatprep.subr.mxu0 0.0
    %8695 = vmatpush1.msra.mxu0 0.0
    %8696 = vmatprep.subr.mxu0 0.0
    %8697 = vmatpush1.msra.mxu0 0.0
    %8698 = vmatprep.subr.mxu0 0.0
    %8699 = vmatpush1.msra.mxu0 0.0
    %8700 = vmatprep.subr.mxu0 0.0
    %8701 = vmatpush1.msra.mxu0 0.0
    %8702 = vmatprep.subr.mxu0 0.0
    %8703 = vmatpush1.msra.mxu0 0.0
    %8704 = vmatprep.subr.mxu0 0.0
    %8705 = vmatpush1.msra.mxu0 0.0
    %8706 = vmatprep.subr.mxu0 0.0
    %8707 = vmatpush1.msra.mxu0 0.0
    %8708 = vmatprep.subr.mxu0 0.0
    %8709 = vmatpush1.msra.mxu0 0.0
    %8710 = vmatprep.mubr.f32.mxu0 0.0
    %v8711 = vand.u32 %v8464, 4294901760
    %v8712 = vsub.f32 %v8464, %v8711
    %8713 = vmatmul.mubr.f32.gmra.mrb[0].mxu0 %v8712
    %v8714 = vpop.f32.mrb[0].mxu0
    %v8715 = vadd.f32 %v8634, %v8714
    %v8716 = vpop.f32.mrb[0].mxu0
    %v8717 = vadd.f32 %v8636, %v8716
    %8718 = vdwg.mxu0
    %v8719 = vand.u32 %v92, 4294901760
    %8720 = vmatprep.subr.mxu0 %v8719
    %v8721 = vand.u32 %v91, 4294901760
    %8722 = vmatpush1.msra.mxu0 %v8721
    %v8723 = vand.u32 %v94, 4294901760
    %8724 = vmatprep.subr.mxu0 %v8723
    %v8725 = vand.u32 %v93, 4294901760
    %8726 = vmatpush1.msra.mxu0 %v8725
    %8727 = vmatprep.subr.mxu0 0.0
    %8728 = vmatpush1.msra.mxu0 0.0
    %8729 = vmatprep.subr.mxu0 0.0
    %8730 = vmatpush1.msra.mxu0 0.0
    %8731 = vmatprep.subr.mxu0 0.0
    %8732 = vmatpush1.msra.mxu0 0.0
    %8733 = vmatprep.subr.mxu0 0.0
    %8734 = vmatpush1.msra.mxu0 0.0
    %8735 = vmatprep.subr.mxu0 0.0
    %8736 = vmatpush1.msra.mxu0 0.0
    %8737 = vmatprep.subr.mxu0 0.0
    %8738 = vmatpush1.msra.mxu0 0.0
    %8739 = vmatprep.subr.mxu0 0.0
    %8740 = vmatpush1.msra.mxu0 0.0
    %8741 = vmatprep.subr.mxu0 0.0
    %8742 = vmatpush1.msra.mxu0 0.0
    %8743 = vmatprep.subr.mxu0 0.0
    %8744 = vmatpush1.msra.mxu0 0.0
    %8745 = vmatprep.subr.mxu0 0.0
    %8746 = vmatpush1.msra.mxu0 0.0
    %8747 = vmatprep.subr.mxu0 0.0
    %8748 = vmatpush1.msra.mxu0 0.0
    %8749 = vmatprep.subr.mxu0 0.0
    %8750 = vmatpush1.msra.mxu0 0.0
    %8751 = vmatprep.subr.mxu0 0.0
    %8752 = vmatpush1.msra.mxu0 0.0
    %8753 = vmatprep.subr.mxu0 0.0
    %8754 = vmatpush1.msra.mxu0 0.0
    %8755 = vmatprep.subr.mxu0 0.0
    %8756 = vmatpush1.msra.mxu0 0.0
    %8757 = vmatprep.subr.mxu0 0.0
    %8758 = vmatpush1.msra.mxu0 0.0
    %8759 = vmatprep.subr.mxu0 0.0
    %8760 = vmatpush1.msra.mxu0 0.0
    %8761 = vmatprep.subr.mxu0 0.0
    %8762 = vmatpush1.msra.mxu0 0.0
    %8763 = vmatprep.subr.mxu0 0.0
    %8764 = vmatpush1.msra.mxu0 0.0
    %8765 = vmatprep.subr.mxu0 0.0
    %8766 = vmatpush1.msra.mxu0 0.0
    %8767 = vmatprep.subr.mxu0 0.0
    %8768 = vmatpush1.msra.mxu0 0.0
    %8769 = vmatprep.subr.mxu0 0.0
    %8770 = vmatpush1.msra.mxu0 0.0
    %8771 = vmatprep.subr.mxu0 0.0
    %8772 = vmatpush1.msra.mxu0 0.0
    %8773 = vmatprep.subr.mxu0 0.0
    %8774 = vmatpush1.msra.mxu0 0.0
    %8775 = vmatprep.subr.mxu0 0.0
    %8776 = vmatpush1.msra.mxu0 0.0
    %8777 = vmatprep.subr.mxu0 0.0
    %8778 = vmatpush1.msra.mxu0 0.0
    %8779 = vmatprep.subr.mxu0 0.0
    %8780 = vmatpush1.msra.mxu0 0.0
    %8781 = vmatprep.subr.mxu0 0.0
    %8782 = vmatpush1.msra.mxu0 0.0
    %8783 = vmatprep.subr.mxu0 0.0
    %8784 = vmatpush1.msra.mxu0 0.0
    %8785 = vmatprep.subr.mxu0 0.0
    %8786 = vmatpush1.msra.mxu0 0.0
    %8787 = vmatprep.mubr.f32.mxu0 0.0
    %v8788 = vand.u32 %v8464, 4294901760
    %v8789 = vsub.f32 %v8464, %v8788
    %v8790 = vand.u32 %v8789, 4294901760
    %8791 = vmatmul.mubr.f32.gmra.mrb[0].mxu0 %v8790
    %v8792 = vpop.f32.mrb[0].mxu0
    %v8793 = vadd.f32 %v8715, %v8792
    %v8794 = vpop.f32.mrb[0].mxu0
    %v8795 = vadd.f32 %v8717, %v8794
    %8796 = vdwg.mxu0
    %v8797 = vand.u32 %v92, 4294901760
    %v8798 = vsub.f32 %v92, %v8797
    %v8799 = vand.u32 %v8798, 4294901760
    %8800 = vmatprep.subr.mxu0 %v8799
    %v8801 = vand.u32 %v91, 4294901760
    %v8802 = vsub.f32 %v91, %v8801
    %v8803 = vand.u32 %v8802, 4294901760
    %8804 = vmatpush1.msra.mxu0 %v8803
    %v8805 = vand.u32 %v94, 4294901760
    %v8806 = vsub.f32 %v94, %v8805
    %v8807 = vand.u32 %v8806, 4294901760
    %8808 = vmatprep.subr.mxu0 %v8807
    %v8809 = vand.u32 %v93, 4294901760
    %v8810 = vsub.f32 %v93, %v8809
    %v8811 = vand.u32 %v8810, 4294901760
    %8812 = vmatpush1.msra.mxu0 %v8811
    %8813 = vmatprep.subr.mxu0 0.0
    %8814 = vmatpush1.msra.mxu0 0.0
    %8815 = vmatprep.subr.mxu0 0.0
    %8816 = vmatpush1.msra.mxu0 0.0
    %8817 = vmatprep.subr.mxu0 0.0
    %8818 = vmatpush1.msra.mxu0 0.0
    %8819 = vmatprep.subr.mxu0 0.0
    %8820 = vmatpush1.msra.mxu0 0.0
    %8821 = vmatprep.subr.mxu0 0.0
    %8822 = vmatpush1.msra.mxu0 0.0
    %8823 = vmatprep.subr.mxu0 0.0
    %8824 = vmatpush1.msra.mxu0 0.0
    %8825 = vmatprep.subr.mxu0 0.0
    %8826 = vmatpush1.msra.mxu0 0.0
    %8827 = vmatprep.subr.mxu0 0.0
    %8828 = vmatpush1.msra.mxu0 0.0
    %8829 = vmatprep.subr.mxu0 0.0
    %8830 = vmatpush1.msra.mxu0 0.0
    %8831 = vmatprep.subr.mxu0 0.0
    %8832 = vmatpush1.msra.mxu0 0.0
    %8833 = vmatprep.subr.mxu0 0.0
    %8834 = vmatpush1.msra.mxu0 0.0
    %8835 = vmatprep.subr.mxu0 0.0
    %8836 = vmatpush1.msra.mxu0 0.0
    %8837 = vmatprep.subr.mxu0 0.0
    %8838 = vmatpush1.msra.mxu0 0.0
    %8839 = vmatprep.subr.mxu0 0.0
    %8840 = vmatpush1.msra.mxu0 0.0
    %8841 = vmatprep.subr.mxu0 0.0
    %8842 = vmatpush1.msra.mxu0 0.0
    %8843 = vmatprep.subr.mxu0 0.0
    %8844 = vmatpush1.msra.mxu0 0.0
    %8845 = vmatprep.subr.mxu0 0.0
    %8846 = vmatpush1.msra.mxu0 0.0
    %8847 = vmatprep.subr.mxu0 0.0
    %8848 = vmatpush1.msra.mxu0 0.0
    %8849 = vmatprep.subr.mxu0 0.0
    %8850 = vmatpush1.msra.mxu0 0.0
    %8851 = vmatprep.subr.mxu0 0.0
    %8852 = vmatpush1.msra.mxu0 0.0
    %8853 = vmatprep.subr.mxu0 0.0
    %8854 = vmatpush1.msra.mxu0 0.0
    %8855 = vmatprep.subr.mxu0 0.0
    %8856 = vmatpush1.msra.mxu0 0.0
    %8857 = vmatprep.subr.mxu0 0.0
    %8858 = vmatpush1.msra.mxu0 0.0
    %8859 = vmatprep.subr.mxu0 0.0
    %8860 = vmatpush1.msra.mxu0 0.0
    %8861 = vmatprep.subr.mxu0 0.0
    %8862 = vmatpush1.msra.mxu0 0.0
    %8863 = vmatprep.subr.mxu0 0.0
    %8864 = vmatpush1.msra.mxu0 0.0
    %8865 = vmatprep.subr.mxu0 0.0
    %8866 = vmatpush1.msra.mxu0 0.0
    %8867 = vmatprep.subr.mxu0 0.0
    %8868 = vmatpush1.msra.mxu0 0.0
    %8869 = vmatprep.subr.mxu0 0.0
    %8870 = vmatpush1.msra.mxu0 0.0
    %8871 = vmatprep.subr.mxu0 0.0
    %8872 = vmatpush1.msra.mxu0 0.0
    %8873 = vmatprep.mubr.f32.mxu0 0.0
    %v8874 = vand.u32 %v8464, 4294901760
    %8875 = vmatmul.mubr.f32.gmra.mrb[0].mxu0 %v8874
    %v8876 = vpop.f32.mrb[0].mxu0
    %v8877 = vadd.f32 %v8793, %v8876
    %v8878 = vpop.f32.mrb[0].mxu0
    %v8879 = vadd.f32 %v8795, %v8878
    %8880 = vdwg.mxu0
    %v8881 = vand.u32 %v92, 4294901760
    %8882 = vmatprep.subr.mxu0 %v8881
    %v8883 = vand.u32 %v91, 4294901760
    %8884 = vmatpush1.msra.mxu0 %v8883
    %v8885 = vand.u32 %v94, 4294901760
    %8886 = vmatprep.subr.mxu0 %v8885
    %v8887 = vand.u32 %v93, 4294901760
    %8888 = vmatpush1.msra.mxu0 %v8887
    %8889 = vmatprep.subr.mxu0 0.0
    %8890 = vmatpush1.msra.mxu0 0.0
    %8891 = vmatprep.subr.mxu0 0.0
    %8892 = vmatpush1.msra.mxu0 0.0
    %8893 = vmatprep.subr.mxu0 0.0
    %8894 = vmatpush1.msra.mxu0 0.0
    %8895 = vmatprep.subr.mxu0 0.0
    %8896 = vmatpush1.msra.mxu0 0.0
    %8897 = vmatprep.subr.mxu0 0.0
    %8898 = vmatpush1.msra.mxu0 0.0
    %8899 = vmatprep.subr.mxu0 0.0
    %8900 = vmatpush1.msra.mxu0 0.0
    %8901 = vmatprep.subr.mxu0 0.0
    %8902 = vmatpush1.msra.mxu0 0.0
    %8903 = vmatprep.subr.mxu0 0.0
    %8904 = vmatpush1.msra.mxu0 0.0
    %8905 = vmatprep.subr.mxu0 0.0
    %8906 = vmatpush1.msra.mxu0 0.0
    %8907 = vmatprep.subr.mxu0 0.0
    %8908 = vmatpush1.msra.mxu0 0.0
    %8909 = vmatprep.subr.mxu0 0.0
    %8910 = vmatpush1.msra.mxu0 0.0
    %8911 = vmatprep.subr.mxu0 0.0
    %8912 = vmatpush1.msra.mxu0 0.0
    %8913 = vmatprep.subr.mxu0 0.0
    %8914 = vmatpush1.msra.mxu0 0.0
    %8915 = vmatprep.subr.mxu0 0.0
    %8916 = vmatpush1.msra.mxu0 0.0
    %8917 = vmatprep.subr.mxu0 0.0
    %8918 = vmatpush1.msra.mxu0 0.0
    %8919 = vmatprep.subr.mxu0 0.0
    %8920 = vmatpush1.msra.mxu0 0.0
    %8921 = vmatprep.subr.mxu0 0.0
    %8922 = vmatpush1.msra.mxu0 0.0
    %8923 = vmatprep.subr.mxu0 0.0
    %8924 = vmatpush1.msra.mxu0 0.0
    %8925 = vmatprep.subr.mxu0 0.0
    %8926 = vmatpush1.msra.mxu0 0.0
    %8927 = vmatprep.subr.mxu0 0.0
    %8928 = vmatpush1.msra.mxu0 0.0
    %8929 = vmatprep.subr.mxu0 0.0
    %8930 = vmatpush1.msra.mxu0 0.0
    %8931 = vmatprep.subr.mxu0 0.0
    %8932 = vmatpush1.msra.mxu0 0.0
    %8933 = vmatprep.subr.mxu0 0.0
    %8934 = vmatpush1.msra.mxu0 0.0
    %8935 = vmatprep.subr.mxu0 0.0
    %8936 = vmatpush1.msra.mxu0 0.0
    %8937 = vmatprep.subr.mxu0 0.0
    %8938 = vmatpush1.msra.mxu0 0.0
    %8939 = vmatprep.subr.mxu0 0.0
    %8940 = vmatpush1.msra.mxu0 0.0
    %8941 = vmatprep.subr.mxu0 0.0
    %8942 = vmatpush1.msra.mxu0 0.0
    %8943 = vmatprep.subr.mxu0 0.0
    %8944 = vmatpush1.msra.mxu0 0.0
    %8945 = vmatprep.subr.mxu0 0.0
    %8946 = vmatpush1.msra.mxu0 0.0
    %8947 = vmatprep.subr.mxu0 0.0
    %8948 = vmatpush1.msra.mxu0 0.0
    %8949 = vmatprep.mubr.f32.mxu0 0.0
    %v8950 = vand.u32 %v8464, 4294901760
    %8951 = vmatmul.mubr.f32.gmra.mrb[0].mxu0 %v8950
    %v8952 = vpop.f32.mrb[0].mxu0
    %v8953 = vadd.f32 %v8877, %v8952
    %v8954 = vpop.f32.mrb[0].mxu0
    %v8955 = vadd.f32 %v8879, %v8954
    %8956 = vdwg.mxu0
    %v8957 = vmul.f32 %v8457, %v8953
    %v8958 = vmul.f32 %v8459, %v8955
    %v8959 = vld [vmem:[#allocation2 + $0xc] sm:$0xf]
    %v8962 = vcombine.low %v8957, %v8958
    %v8964 = vunpack.c.l.s4 1983009808
    %v8965 = vunpack.c.0.s8 %v8964
    %v8966 = vlaneseq
    %v8967 = vshrl.u32 %v8966, 7
    %v8968 = vsub.s32 %v8965, %v8967
    %v8969 = vrot.slane %v8962, %v8968
    %v8971 = vmul.f32 %v8959, %v8969
    %8972 = vst [vmem:[#allocation8 + $0xc] sm:$0xf] %v8971
    // Predicated region
    $region26: #{_taja_call.1} parent=1 // pred_check
      _
    $region27: #{_taja_call.1} parent=1 // pred_check_branch
      %8974 = sbr.rel (0) target = $region29
    $region28: #{_taja_call.1} parent=1 // pred_region
      %s8976 = ssub.s32 256, 256
      %8977 = vsyncadd [#allocation4], %s8976
      %s8979 = sshll.u32 [#allocation8], 4
      %s8980 = int_to_ptr.vmem [resolvable:$true] %s8979
      %8982 = dma.vmem_to_hbm [thread:$0]  %s8980, 256, %s3, [#allocation4]
    $region29: #{_taja_call.1} parent=1 // pred_fallthru
      _
    // Predicated region
    $region30: #{_taja_call.1} parent=1 // pred_check
      _
    $region31: #{_taja_call.1} parent=1 // pred_check_branch
      %8984 = sbr.rel (0) target = $region33
    $region32: #{_taja_call.1} parent=1 // pred_region
      %8985 = dma.done [#allocation4], 256
    $region33: #{_taja_call.1} parent=1 // pred_fallthru
      _
    %8986 = vsyncpa [#allocation3], 1
    %8987 = vsyncpa [#allocation6], 1
    %8988 = vsyncpa [#allocation4], 1

</llo_original>
